<compile_context>
chip_gen: v5e
topology: v5e:2x2
jax: 0.10.0
libtpu: 0.0.40
codegen_flags: <defaults>
</compile_context>

<pallas_src>
import functools
import math

import numpy as np
import jax
import jax.numpy as jnp
from jax import lax
from jax.experimental import pallas as pl
from jax.experimental.pallas import tpu as pltpu

EPS = 1e-5
_VMEM_LIMIT = 16 * 1024 * 1024   # working set ~5 MiB; fits v5e / v6e / v7x


# ----------------------------------------------------------------------------
# Fused Pallas kernel.  All activations are [points, channels]; all weights
# are [cin, cout]; all per-channel vectors are [1, C] rows.
# ----------------------------------------------------------------------------
def _pointnet_fused_kernel(
        xT_ref, t1_ref, t2_ref, s1_ref, s2_ref, s3_ref, pool_ref,
        w10, b10, w11, b11, w12, b12,          # mlp level 1 (w10 pre-sliced)
        w20, b20, w21, b21, w22, b22,          # mlp level 2 (w20 pre-sliced)
        w30, b30, w31, b31, w32, b32,          # mlp level 3 (w30 pre-sliced)
        c1w, c1b, c1g, c1be,                   # conv1 + GroupNorm(512, 512)
        c2w, c2b, c2g, c2be,                   # conv2 + GroupNorm(16, 512)
        mcg_ref, mgc_ref,                      # GN(16) masks: [C,G] (pre-scaled), [G,C]
        o_ref,                                 # [ndet, 512]
        *, eps):
    f32 = jnp.float32

    def dot(a, b):
        return jnp.dot(a, b, preferred_element_type=f32)

    def mm(h, w_ref):
        w = w_ref[...]
        if w.dtype == jnp.bfloat16:            # bf16 MXU path, f32 accumulate;
            h = h.astype(jnp.bfloat16)         # only the (small) activation is cast here
        return jnp.dot(h, w, preferred_element_type=f32)

    def conv_relu(h, w_ref, b_ref):
        return jnp.maximum(mm(h, w_ref) + b_ref[...], 0.0)

    # --- input transform (STN transform precomputed on wrapper side) --------
    feats = dot(xT_ref[...], t1_ref[...])                         # [N, 3]

    # --- level 1: static point selection (0/1 row-gather matmul) + MLP ------
    g = dot(s1_ref[...], feats)                                   # [n1, 3]
    g = conv_relu(g, w10, b10)
    g = conv_relu(g, w11, b11)
    l1 = conv_relu(g, w12, b12)                                   # [n1, 128]

    # --- feature transform with precomputed trans2 --------------------------
    l1 = dot(l1, t2_ref[...])                                     # [n1, 128]

    # --- level 2 -------------------------------------------------------------
    g = dot(s2_ref[...], l1)                                      # [n2, 128]
    g = conv_relu(g, w20, b20)
    g = conv_relu(g, w21, b21)
    l2 = conv_relu(g, w22, b22)                                   # [n2, 256]

    # --- level 3 -------------------------------------------------------------
    g = dot(s3_ref[...], l2)                                      # [n3, 256]
    g = conv_relu(g, w30, b30)
    g = conv_relu(g, w31, b31)
    l3 = conv_relu(g, w32, b32)                                   # [n3, 1024]

    # --- conv1 + GroupNorm(512, 512): per-channel stats over the n3 points --
    y = mm(l3, c1w) + c1b[...]                                    # [n3, 512]
    mu = jnp.mean(y, axis=0, keepdims=True)                       # [1, 512]
    d = y - mu
    var = jnp.mean(d * d, axis=0, keepdims=True)                  # [1, 512]
    scale1 = c1g[...] * lax.rsqrt(var + eps)                      # gamma folded in
    h = jnp.maximum(d * scale1 + c1be[...], 0.0)                  # [n3, 512]

    # --- per-detection AdaptiveAvgPool1d(1) as a segment-mean matmul --------
    fp = dot(pool_ref[...], h)                                    # [ndet, 512]

    # --- conv2: directly lane-dense [ndet, 512] ------------------------------
    z = mm(fp, c2w) + c2b[...]                                    # [ndet, 512]

    # --- GroupNorm(16, 512): stats over (32 channels x ndet) per group ------
    zsum = jnp.sum(z, axis=0, keepdims=True)                      # [1, 512]
    gmean = dot(zsum, mcg_ref[...])                               # [1, 16]  (mask pre-scaled)
    mean_c = dot(gmean, mgc_ref[...])                             # [1, 512]
    dz = z - mean_c
    dsum = jnp.sum(dz * dz, axis=0, keepdims=True)                # [1, 512]
    gvar = dot(dsum, mcg_ref[...])                                # [1, 16]
    var_c = dot(gvar, mgc_ref[...])                               # [1, 512]
    scale2 = c2g[...] * lax.rsqrt(var_c + eps)
    o_ref[...] = jnp.maximum(dz * scale2 + c2be[...], 0.0)        # [ndet, 512]


# ----------------------------------------------------------------------------
# Parameter init (deterministic, in-script; mirrors the PyTorch module)
# ----------------------------------------------------------------------------
def _rand(key, shape, scale=0.05):
    return scale * jax.random.normal(key, shape, jnp.float32)


def _init_conv(key, cout, cin):
    k1, k2 = jax.random.split(key)
    return {"w": _rand(k1, (cout, cin)), "b": _rand(k2, (cout, 1))}


def _init_conv_gn(key, cout, cin):
    p = _init_conv(key, cout, cin)
    p["gamma"] = jnp.ones((cout, 1), jnp.float32)
    p["beta"] = jnp.zeros((cout, 1), jnp.float32)
    return p


def _init_stn(key, in_channels, out_size):
    # conv1..3 / fc1 / fc2.w and all GN scales are retained for module
    # fidelity but are provably dead in the forward pass (see _stn_transform).
    ks = jax.random.split(key, 7)
    p = {}
    p["conv1"] = _init_conv_gn(ks[0], 64, in_channels)
    p["conv2"] = _init_conv_gn(ks[1], 128, 64)
    p["conv3"] = _init_conv_gn(ks[2], 1024, 128)
    p["fc1"] = {"w": _rand(ks[3], (512, 1024)), "b": _rand(ks[4], (512, 1)),
                "gamma": jnp.ones((512, 1), jnp.float32),
                "beta": jnp.zeros((512, 1), jnp.float32)}
    p["fc2"] = {"w": _rand(ks[5], (256, 512)), "b": _rand(ks[6], (256, 1)),
                "gamma": jnp.ones((256, 1), jnp.float32),
                "beta": jnp.zeros((256, 1), jnp.float32)}
    # nn.init.constant_(output.weight, 0) / constant_(output.bias, 0)
    p["out"] = {"w_t": jnp.zeros((256, out_size * out_size), jnp.float32),
                "b": jnp.zeros((1, out_size * out_size), jnp.float32)}
    return p


def init_pointnet_v2(key, in_channels=3, out_channels=512):
    assert out_channels == 512, "module only self-consistent for out_channels=512 (reduction=1)"
    ks = jax.random.split(key, 13)
    p = {}
    p["stn1"] = _init_stn(ks[0], in_channels, in_channels)
    p["stn2"] = _init_stn(ks[1], 128, 128)
    p["conv1"] = _init_conv_gn(ks[2], 512, 1024)            # + GroupNorm(512, 512)
    p["conv2"] = _init_conv_gn(ks[3], out_channels, 512)    # + GroupNorm(16, 512)
    p["mlp1"] = [_init_conv(ks[4], 64, in_channels + 3),
                 _init_conv(ks[5], 64, 64),
                 _init_conv(ks[6], 128, 64)]
    p["mlp2"] = [_init_conv(ks[7], 128, 128 + 3),
                 _init_conv(ks[8], 128, 128),
                 _init_conv(ks[9], 256, 128)]
    p["mlp3"] = [_init_conv(ks[10], 256, 256 + 3),
                 _init_conv(ks[11], 512, 256),
                 _init_conv(ks[12], 1024, 512)]
    return p


# ----------------------------------------------------------------------------
# Host-side (trace-time) helpers
# ----------------------------------------------------------------------------
def _stn_transform(stn):
    """GroupNorm(num_groups == num_channels) on a per-sample [C] vector has one
    element per group (spatial size 1), so its output is exactly the GN bias.
    Therefore trans = output(relu(fc_bn2.bias)).view(os, os) + I reproduces the
    PyTorch STN3d output for any weights and inputs."""
    r2 = jnp.maximum(stn["fc2"]["beta"], 0.0).reshape(1, -1)      # [1, 256]
    flat = jnp.dot(r2, stn["out"]["w_t"],
                   preferred_element_type=jnp.float32) + stn["out"]["b"]
    os_ = int(math.isqrt(stn["out"]["w_t"].shape[1]))
    return flat.reshape(os_, os_) + jnp.eye(os_, dtype=jnp.float32)


def _stand_in_levels(point_split, n_levels=3):
    """TODO(synk): stand-in for PointNetSetAbstraction — take the first
    npoint = n//2 + 2 points of every detection at every level; returns static
    0/1 row-selection matrices [n_out, N_in] and the per-level splits."""
    splits, sel_mats = [[int(s) for s in point_split]], []
    for _ in range(n_levels):
        prev = splits[-1]
        cols, new_split = [], [0]
        for i in range(len(prev) - 1):
            n = prev[i + 1] - prev[i]
            npoint = min(n // 2 + 2, n)
            cols.extend(range(prev[i], prev[i] + npoint))
            new_split.append(new_split[-1] + npoint)
        s = np.zeros((len(cols), prev[-1]), np.float32)
        s[np.arange(len(cols)), np.asarray(cols)] = 1.0
        sel_mats.append(s)
        splits.append(new_split)
    return sel_mats, splits


def _segment_mean_matrix(split):
    """[ndet, n3] segment-mean matrix (AdaptiveAvgPool1d(1) per detection)."""
    n, ndet = split[-1], len(split) - 1
    pool = np.zeros((ndet, n), np.float32)
    for i in range(ndet):
        pool[i, split[i]:split[i + 1]] = 1.0 / (split[i + 1] - split[i])
    return pool


def _gn16_masks(channels, groups, ndet):
    """Group masks for GroupNorm(16, C) with stats over (cpg channels x ndet):
    mcg [C, G] pre-scaled by 1/(cpg*ndet) for the reduce, mgc [G, C] for the
    broadcast back to channels."""
    cpg = channels // groups
    m = np.zeros((channels, groups), np.float32)
    for g in range(groups):
        m[g * cpg:(g + 1) * cpg, g] = 1.0
    return m / float(cpg * ndet), np.ascontiguousarray(m.T)


# ----------------------------------------------------------------------------
# Forward (jit'ed; point_split is static so all gather/pool/mask matrices are
# compile-time constants and the whole forward is one XLA program with a
# single pallas_call inside).
# ----------------------------------------------------------------------------
@functools.partial(jax.jit, static_argnums=1)
def pointnet_v2_forward(points, point_split, params):
    # points: [1, C_in, N] float32; point_split: tuple of python ints (static)
    assert points.shape[0] == 1 and points.shape[1] == 3
    xT = points[0].T                                               # [N, 3] (one-time XLA transpose)

    # STN transforms are input-independent (degenerate GroupNorm head).
    trans1 = _stn_transform(params["stn1"])                        # [3, 3]
    trans2 = _stn_transform(params["stn2"])                        # [128, 128]

    sel_np, splits = _stand_in_levels(point_split)
    split3 = splits[-1]
    ndet = len(split3) - 1
    pool_np = _segment_mean_matrix(split3)                         # [ndet, n3]

    out_ch = params["conv2"]["w"].shape[0]
    mcg_np, mgc_np = _gn16_masks(out_ch, 16, ndet)

    def row(v):                     # [C, 1] -> [1, C] row vector
        return v.reshape(1, -1)

    def prep_w(w, drop_rel_xyz=False, bf16=False):
        # Pre-transpose to [cin, cout]; optionally drop the 3 all-zero
        # relative-xyz input channels; optionally pre-cast to bf16 (weight DMA
        # is the dominant cost at this problem size).
        if drop_rel_xyz:
            w = w[:, 3:]
        w = w.T
        return w.astype(jnp.bfloat16) if bf16 else w

    def lvl(mlp, bf16_flags):
        return (prep_w(mlp[0]["w"], drop_rel_xyz=True, bf16=bf16_flags[0]), row(mlp[0]["b"]),
                prep_w(mlp[1]["w"], bf16=bf16_flags[1]), row(mlp[1]["b"]),
                prep_w(mlp[2]["w"], bf16=bf16_flags[2]), row(mlp[2]["b"]))

    c1, c2 = params["conv1"], params["conv2"]
    args = (
        xT, trans1, trans2,
        jnp.asarray(sel_np[0]), jnp.asarray(sel_np[1]), jnp.asarray(sel_np[2]),
        jnp.asarray(pool_np),
        *lvl(params["mlp1"], (False, False, False)),
        *lvl(params["mlp2"], (False, False, True)),
        *lvl(params["mlp3"], (True, True, True)),
        prep_w(c1["w"], bf16=True), row(c1["b"]), row(c1["gamma"]), row(c1["beta"]),
        prep_w(c2["w"], bf16=True), row(c2["b"]), row(c2["gamma"]), row(c2["beta"]),
        jnp.asarray(mcg_np), jnp.asarray(mgc_np),
    )

    kernel = functools.partial(_pointnet_fused_kernel, eps=EPS)

    # NOTE: grid-less single call is right at this size (DMA/overhead bound).
    # If ndet / point counts grow, add a ("parallel",) grid over detections so
    # v7x's second TensorCore is used and VMEM stays bounded.
    out = pl.pallas_call(
        kernel,
        out_shape=jax.ShapeDtypeStruct((ndet, out_ch), jnp.float32),
        in_specs=[pl.BlockSpec(memory_space=pltpu.MemorySpace.VMEM)] * len(args),
        out_specs=pl.BlockSpec(memory_space=pltpu.MemorySpace.VMEM),
        compiler_params=pltpu.CompilerParams(vmem_limit_bytes=_VMEM_LIMIT),
    )(*args)
    return out, [trans1, trans2]


if __name__ == "__main__":
    key = jax.random.PRNGKey(0)
    kp, kx = jax.random.split(key)

    in_channels = 3
    n_points = 128
    points = jax.random.normal(kx, (1, in_channels, n_points), jnp.float32)
    point_split = (0, 64, 128)                                     # 2 detections (static)

    params = init_pointnet_v2(kp, in_channels=in_channels, out_channels=512)
    out, trans = pointnet_v2_forward(points, point_split, params)

    jax.block_until_ready(out)
    jax.block_until_ready(trans)
    assert out.shape == (len(point_split) - 1, 512)
    assert trans[0].shape == (3, 3) and trans[1].shape == (128, 128)
    assert bool(jnp.all(jnp.isfinite(out)))
    print("KERNEL_OK")
</pallas_src>

<mosaic_0001>
module attributes {stable_mosaic.version = 11 : i64} {
  func.func @_pointnet_fused_kernel(%arg0: memref<128x3xf32, #tpu.memory_space<vmem>>, %arg1: memref<3x3xf32, #tpu.memory_space<vmem>>, %arg2: memref<128x128xf32, #tpu.memory_space<vmem>>, %arg3: memref<68x128xf32, #tpu.memory_space<vmem>>, %arg4: memref<38x68xf32, #tpu.memory_space<vmem>>, %arg5: memref<22x38xf32, #tpu.memory_space<vmem>>, %arg6: memref<2x22xf32, #tpu.memory_space<vmem>>, %arg7: memref<3x64xf32, #tpu.memory_space<vmem>>, %arg8: memref<1x64xf32, #tpu.memory_space<vmem>>, %arg9: memref<64x64xf32, #tpu.memory_space<vmem>>, %arg10: memref<1x64xf32, #tpu.memory_space<vmem>>, %arg11: memref<64x128xf32, #tpu.memory_space<vmem>>, %arg12: memref<1x128xf32, #tpu.memory_space<vmem>>, %arg13: memref<128x128xf32, #tpu.memory_space<vmem>>, %arg14: memref<1x128xf32, #tpu.memory_space<vmem>>, %arg15: memref<128x128xf32, #tpu.memory_space<vmem>>, %arg16: memref<1x128xf32, #tpu.memory_space<vmem>>, %arg17: memref<128x256xbf16, #tpu.memory_space<vmem>>, %arg18: memref<1x256xf32, #tpu.memory_space<vmem>>, %arg19: memref<256x256xbf16, #tpu.memory_space<vmem>>, %arg20: memref<1x256xf32, #tpu.memory_space<vmem>>, %arg21: memref<256x512xbf16, #tpu.memory_space<vmem>>, %arg22: memref<1x512xf32, #tpu.memory_space<vmem>>, %arg23: memref<512x1024xbf16, #tpu.memory_space<vmem>>, %arg24: memref<1x1024xf32, #tpu.memory_space<vmem>>, %arg25: memref<1024x512xbf16, #tpu.memory_space<vmem>>, %arg26: memref<1x512xf32, #tpu.memory_space<vmem>>, %arg27: memref<1x512xf32, #tpu.memory_space<vmem>>, %arg28: memref<1x512xf32, #tpu.memory_space<vmem>>, %arg29: memref<512x512xbf16, #tpu.memory_space<vmem>>, %arg30: memref<1x512xf32, #tpu.memory_space<vmem>>, %arg31: memref<1x512xf32, #tpu.memory_space<vmem>>, %arg32: memref<1x512xf32, #tpu.memory_space<vmem>>, %arg33: memref<512x16xf32, #tpu.memory_space<vmem>>, %arg34: memref<16x512xf32, #tpu.memory_space<vmem>>, %arg35: memref<2x512xf32, #tpu.memory_space<vmem>>) attributes {dimension_semantics = [], scalar_prefetch = 0 : i64, scratch_operands = 0 : i64, tpu.core_type = #tpu.core_type<tc>} {
    %c0 = arith.constant 0 : index
    %c0_0 = arith.constant 0 : index
    %0 = vector.load %arg0[%c0, %c0_0] : memref<128x3xf32, #tpu.memory_space<vmem>>, vector<128x3xf32>
    %c0_1 = arith.constant 0 : index
    %c0_2 = arith.constant 0 : index
    %1 = vector.load %arg1[%c0_1, %c0_2] : memref<3x3xf32, #tpu.memory_space<vmem>>, vector<3x3xf32>
    %cst = arith.constant dense<0.000000e+00> : vector<128x3xf32>
    %2 = tpu.matmul %0, %1, %cst {dimension_numbers = #tpu.dot_dimension_numbers<[1], [0], [0], [1], [0, 0, 1, 1], [], []>} : vector<128x3xf32>, vector<3x3xf32>, vector<128x3xf32> -> vector<128x3xf32>
    %c0_3 = arith.constant 0 : index
    %c0_4 = arith.constant 0 : index
    %3 = vector.load %arg3[%c0_3, %c0_4] : memref<68x128xf32, #tpu.memory_space<vmem>>, vector<68x128xf32>
    %cst_5 = arith.constant dense<0.000000e+00> : vector<68x3xf32>
    %4 = tpu.matmul %3, %2, %cst_5 {dimension_numbers = #tpu.dot_dimension_numbers<[1], [0], [0], [1], [0, 0, 1, 1], [], []>} : vector<68x128xf32>, vector<128x3xf32>, vector<68x3xf32> -> vector<68x3xf32>
    %c0_6 = arith.constant 0 : index
    %c0_7 = arith.constant 0 : index
    %5 = vector.load %arg7[%c0_6, %c0_7] : memref<3x64xf32, #tpu.memory_space<vmem>>, vector<3x64xf32>
    %cst_8 = arith.constant dense<0.000000e+00> : vector<68x64xf32>
    %6 = tpu.matmul %4, %5, %cst_8 {dimension_numbers = #tpu.dot_dimension_numbers<[1], [0], [0], [1], [0, 0, 1, 1], [], []>} : vector<68x3xf32>, vector<3x64xf32>, vector<68x64xf32> -> vector<68x64xf32>
    %c0_9 = arith.constant 0 : index
    %c0_10 = arith.constant 0 : index
    %7 = vector.load %arg8[%c0_9, %c0_10] : memref<1x64xf32, #tpu.memory_space<vmem>>, vector<1x64xf32>
    %8 = vector.broadcast %7 : vector<1x64xf32> to vector<68x64xf32>
    %9 = arith.addf %6, %8 : vector<68x64xf32>
    %cst_11 = arith.constant 0.000000e+00 : f32
    %10 = vector.broadcast %cst_11 : f32 to vector<68x64xf32>
    %11 = arith.maximumf %9, %10 : vector<68x64xf32>
    %c0_12 = arith.constant 0 : index
    %c0_13 = arith.constant 0 : index
    %12 = vector.load %arg9[%c0_12, %c0_13] : memref<64x64xf32, #tpu.memory_space<vmem>>, vector<64x64xf32>
    %cst_14 = arith.constant dense<0.000000e+00> : vector<68x64xf32>
    %13 = tpu.matmul %11, %12, %cst_14 {dimension_numbers = #tpu.dot_dimension_numbers<[1], [0], [0], [1], [0, 0, 1, 1], [], []>} : vector<68x64xf32>, vector<64x64xf32>, vector<68x64xf32> -> vector<68x64xf32>
    %c0_15 = arith.constant 0 : index
    %c0_16 = arith.constant 0 : index
    %14 = vector.load %arg10[%c0_15, %c0_16] : memref<1x64xf32, #tpu.memory_space<vmem>>, vector<1x64xf32>
    %15 = vector.broadcast %14 : vector<1x64xf32> to vector<68x64xf32>
    %16 = arith.addf %13, %15 : vector<68x64xf32>
    %cst_17 = arith.constant 0.000000e+00 : f32
    %17 = vector.broadcast %cst_17 : f32 to vector<68x64xf32>
    %18 = arith.maximumf %16, %17 : vector<68x64xf32>
    %c0_18 = arith.constant 0 : index
    %c0_19 = arith.constant 0 : index
    %19 = vector.load %arg11[%c0_18, %c0_19] : memref<64x128xf32, #tpu.memory_space<vmem>>, vector<64x128xf32>
    %cst_20 = arith.constant dense<0.000000e+00> : vector<68x128xf32>
    %20 = tpu.matmul %18, %19, %cst_20 {dimension_numbers = #tpu.dot_dimension_numbers<[1], [0], [0], [1], [0, 0, 1, 1], [], []>} : vector<68x64xf32>, vector<64x128xf32>, vector<68x128xf32> -> vector<68x128xf32>
    %c0_21 = arith.constant 0 : index
    %c0_22 = arith.constant 0 : index
    %21 = vector.load %arg12[%c0_21, %c0_22] : memref<1x128xf32, #tpu.memory_space<vmem>>, vector<1x128xf32>
    %22 = vector.broadcast %21 : vector<1x128xf32> to vector<68x128xf32>
    %23 = arith.addf %20, %22 : vector<68x128xf32>
    %cst_23 = arith.constant 0.000000e+00 : f32
    %24 = vector.broadcast %cst_23 : f32 to vector<68x128xf32>
    %25 = arith.maximumf %23, %24 : vector<68x128xf32>
    %c0_24 = arith.constant 0 : index
    %c0_25 = arith.constant 0 : index
    %26 = vector.load %arg2[%c0_24, %c0_25] : memref<128x128xf32, #tpu.memory_space<vmem>>, vector<128x128xf32>
    %cst_26 = arith.constant dense<0.000000e+00> : vector<68x128xf32>
    %27 = tpu.matmul %25, %26, %cst_26 {dimension_numbers = #tpu.dot_dimension_numbers<[1], [0], [0], [1], [0, 0, 1, 1], [], []>} : vector<68x128xf32>, vector<128x128xf32>, vector<68x128xf32> -> vector<68x128xf32>
    %c0_27 = arith.constant 0 : index
    %c0_28 = arith.constant 0 : index
    %28 = vector.load %arg4[%c0_27, %c0_28] : memref<38x68xf32, #tpu.memory_space<vmem>>, vector<38x68xf32>
    %cst_29 = arith.constant dense<0.000000e+00> : vector<38x128xf32>
    %29 = tpu.matmul %28, %27, %cst_29 {dimension_numbers = #tpu.dot_dimension_numbers<[1], [0], [0], [1], [0, 0, 1, 1], [], []>} : vector<38x68xf32>, vector<68x128xf32>, vector<38x128xf32> -> vector<38x128xf32>
    %c0_30 = arith.constant 0 : index
    %c0_31 = arith.constant 0 : index
    %30 = vector.load %arg13[%c0_30, %c0_31] : memref<128x128xf32, #tpu.memory_space<vmem>>, vector<128x128xf32>
    %cst_32 = arith.constant dense<0.000000e+00> : vector<38x128xf32>
    %31 = tpu.matmul %29, %30, %cst_32 {dimension_numbers = #tpu.dot_dimension_numbers<[1], [0], [0], [1], [0, 0, 1, 1], [], []>} : vector<38x128xf32>, vector<128x128xf32>, vector<38x128xf32> -> vector<38x128xf32>
    %c0_33 = arith.constant 0 : index
    %c0_34 = arith.constant 0 : index
    %32 = vector.load %arg14[%c0_33, %c0_34] : memref<1x128xf32, #tpu.memory_space<vmem>>, vector<1x128xf32>
    %33 = vector.broadcast %32 : vector<1x128xf32> to vector<38x128xf32>
    %34 = arith.addf %31, %33 : vector<38x128xf32>
    %cst_35 = arith.constant 0.000000e+00 : f32
    %35 = vector.broadcast %cst_35 : f32 to vector<38x128xf32>
    %36 = arith.maximumf %34, %35 : vector<38x128xf32>
    %c0_36 = arith.constant 0 : index
    %c0_37 = arith.constant 0 : index
    %37 = vector.load %arg15[%c0_36, %c0_37] : memref<128x128xf32, #tpu.memory_space<vmem>>, vector<128x128xf32>
    %cst_38 = arith.constant dense<0.000000e+00> : vector<38x128xf32>
    %38 = tpu.matmul %36, %37, %cst_38 {dimension_numbers = #tpu.dot_dimension_numbers<[1], [0], [0], [1], [0, 0, 1, 1], [], []>} : vector<38x128xf32>, vector<128x128xf32>, vector<38x128xf32> -> vector<38x128xf32>
    %c0_39 = arith.constant 0 : index
    %c0_40 = arith.constant 0 : index
    %39 = vector.load %arg16[%c0_39, %c0_40] : memref<1x128xf32, #tpu.memory_space<vmem>>, vector<1x128xf32>
    %40 = vector.broadcast %39 : vector<1x128xf32> to vector<38x128xf32>
    %41 = arith.addf %38, %40 : vector<38x128xf32>
    %cst_41 = arith.constant 0.000000e+00 : f32
    %42 = vector.broadcast %cst_41 : f32 to vector<38x128xf32>
    %43 = arith.maximumf %41, %42 : vector<38x128xf32>
    %c0_42 = arith.constant 0 : index
    %c0_43 = arith.constant 0 : index
    %44 = vector.load %arg17[%c0_42, %c0_43] : memref<128x256xbf16, #tpu.memory_space<vmem>>, vector<128x256xbf16>
    %45 = arith.truncf %43 : vector<38x128xf32> to vector<38x128xbf16>
    %cst_44 = arith.constant dense<0.000000e+00> : vector<38x256xf32>
    %46 = tpu.matmul %45, %44, %cst_44 {dimension_numbers = #tpu.dot_dimension_numbers<[1], [0], [0], [1], [0, 0, 1, 1], [], []>} : vector<38x128xbf16>, vector<128x256xbf16>, vector<38x256xf32> -> vector<38x256xf32>
    %c0_45 = arith.constant 0 : index
    %c0_46 = arith.constant 0 : index
    %47 = vector.load %arg18[%c0_45, %c0_46] : memref<1x256xf32, #tpu.memory_space<vmem>>, vector<1x256xf32>
    %48 = vector.broadcast %47 : vector<1x256xf32> to vector<38x256xf32>
    %49 = arith.addf %46, %48 : vector<38x256xf32>
    %cst_47 = arith.constant 0.000000e+00 : f32
    %50 = vector.broadcast %cst_47 : f32 to vector<38x256xf32>
    %51 = arith.maximumf %49, %50 : vector<38x256xf32>
    %c0_48 = arith.constant 0 : index
    %c0_49 = arith.constant 0 : index
    %52 = vector.load %arg5[%c0_48, %c0_49] : memref<22x38xf32, #tpu.memory_space<vmem>>, vector<22x38xf32>
    %cst_50 = arith.constant dense<0.000000e+00> : vector<22x256xf32>
    %53 = tpu.matmul %52, %51, %cst_50 {dimension_numbers = #tpu.dot_dimension_numbers<[1], [0], [0], [1], [0, 0, 1, 1], [], []>} : vector<22x38xf32>, vector<38x256xf32>, vector<22x256xf32> -> vector<22x256xf32>
    %c0_51 = arith.constant 0 : index
    %c0_52 = arith.constant 0 : index
    %54 = vector.load %arg19[%c0_51, %c0_52] : memref<256x256xbf16, #tpu.memory_space<vmem>>, vector<256x256xbf16>
    %55 = arith.truncf %53 : vector<22x256xf32> to vector<22x256xbf16>
    %cst_53 = arith.constant dense<0.000000e+00> : vector<22x256xf32>
    %56 = tpu.matmul %55, %54, %cst_53 {dimension_numbers = #tpu.dot_dimension_numbers<[1], [0], [0], [1], [0, 0, 1, 1], [], []>} : vector<22x256xbf16>, vector<256x256xbf16>, vector<22x256xf32> -> vector<22x256xf32>
    %c0_54 = arith.constant 0 : index
    %c0_55 = arith.constant 0 : index
    %57 = vector.load %arg20[%c0_54, %c0_55] : memref<1x256xf32, #tpu.memory_space<vmem>>, vector<1x256xf32>
    %58 = vector.broadcast %57 : vector<1x256xf32> to vector<22x256xf32>
    %59 = arith.addf %56, %58 : vector<22x256xf32>
    %cst_56 = arith.constant 0.000000e+00 : f32
    %60 = vector.broadcast %cst_56 : f32 to vector<22x256xf32>
    %61 = arith.maximumf %59, %60 : vector<22x256xf32>
    %c0_57 = arith.constant 0 : index
    %c0_58 = arith.constant 0 : index
    %62 = vector.load %arg21[%c0_57, %c0_58] : memref<256x512xbf16, #tpu.memory_space<vmem>>, vector<256x512xbf16>
    %63 = arith.truncf %61 : vector<22x256xf32> to vector<22x256xbf16>
    %cst_59 = arith.constant dense<0.000000e+00> : vector<22x512xf32>
    %64 = tpu.matmul %63, %62, %cst_59 {dimension_numbers = #tpu.dot_dimension_numbers<[1], [0], [0], [1], [0, 0, 1, 1], [], []>} : vector<22x256xbf16>, vector<256x512xbf16>, vector<22x512xf32> -> vector<22x512xf32>
    %c0_60 = arith.constant 0 : index
    %c0_61 = arith.constant 0 : index
    %65 = vector.load %arg22[%c0_60, %c0_61] : memref<1x512xf32, #tpu.memory_space<vmem>>, vector<1x512xf32>
    %66 = vector.broadcast %65 : vector<1x512xf32> to vector<22x512xf32>
    %67 = arith.addf %64, %66 : vector<22x512xf32>
    %cst_62 = arith.constant 0.000000e+00 : f32
    %68 = vector.broadcast %cst_62 : f32 to vector<22x512xf32>
    %69 = arith.maximumf %67, %68 : vector<22x512xf32>
    %c0_63 = arith.constant 0 : index
    %c0_64 = arith.constant 0 : index
    %70 = vector.load %arg23[%c0_63, %c0_64] : memref<512x1024xbf16, #tpu.memory_space<vmem>>, vector<512x1024xbf16>
    %71 = arith.truncf %69 : vector<22x512xf32> to vector<22x512xbf16>
    %cst_65 = arith.constant dense<0.000000e+00> : vector<22x1024xf32>
    %72 = tpu.matmul %71, %70, %cst_65 {dimension_numbers = #tpu.dot_dimension_numbers<[1], [0], [0], [1], [0, 0, 1, 1], [], []>} : vector<22x512xbf16>, vector<512x1024xbf16>, vector<22x1024xf32> -> vector<22x1024xf32>
    %c0_66 = arith.constant 0 : index
    %c0_67 = arith.constant 0 : index
    %73 = vector.load %arg24[%c0_66, %c0_67] : memref<1x1024xf32, #tpu.memory_space<vmem>>, vector<1x1024xf32>
    %74 = vector.broadcast %73 : vector<1x1024xf32> to vector<22x1024xf32>
    %75 = arith.addf %72, %74 : vector<22x1024xf32>
    %cst_68 = arith.constant 0.000000e+00 : f32
    %76 = vector.broadcast %cst_68 : f32 to vector<22x1024xf32>
    %77 = arith.maximumf %75, %76 : vector<22x1024xf32>
    %c0_69 = arith.constant 0 : index
    %c0_70 = arith.constant 0 : index
    %78 = vector.load %arg25[%c0_69, %c0_70] : memref<1024x512xbf16, #tpu.memory_space<vmem>>, vector<1024x512xbf16>
    %79 = arith.truncf %77 : vector<22x1024xf32> to vector<22x1024xbf16>
    %cst_71 = arith.constant dense<0.000000e+00> : vector<22x512xf32>
    %80 = tpu.matmul %79, %78, %cst_71 {dimension_numbers = #tpu.dot_dimension_numbers<[1], [0], [0], [1], [0, 0, 1, 1], [], []>} : vector<22x1024xbf16>, vector<1024x512xbf16>, vector<22x512xf32> -> vector<22x512xf32>
    %c0_72 = arith.constant 0 : index
    %c0_73 = arith.constant 0 : index
    %81 = vector.load %arg26[%c0_72, %c0_73] : memref<1x512xf32, #tpu.memory_space<vmem>>, vector<1x512xf32>
    %82 = vector.broadcast %81 : vector<1x512xf32> to vector<22x512xf32>
    %83 = arith.addf %80, %82 : vector<22x512xf32>
    %cst_74 = arith.constant dense<0.000000e+00> : vector<512xf32>
    %84 = vector.multi_reduction <add>, %83, %cst_74 [0] : vector<22x512xf32> to vector<512xf32>
    %85 = vector.shape_cast %84 : vector<512xf32> to vector<1x512xf32>
    %cst_75 = arith.constant 2.200000e+01 : f32
    %86 = vector.broadcast %cst_75 : f32 to vector<1x512xf32>
    %87 = arith.divf %85, %86 : vector<1x512xf32>
    %88 = vector.broadcast %87 : vector<1x512xf32> to vector<22x512xf32>
    %89 = arith.subf %83, %88 : vector<22x512xf32>
    %90 = arith.mulf %89, %89 : vector<22x512xf32>
    %cst_76 = arith.constant dense<0.000000e+00> : vector<512xf32>
    %91 = vector.multi_reduction <add>, %90, %cst_76 [0] : vector<22x512xf32> to vector<512xf32>
    %92 = vector.shape_cast %91 : vector<512xf32> to vector<1x512xf32>
    %cst_77 = arith.constant 2.200000e+01 : f32
    %93 = vector.broadcast %cst_77 : f32 to vector<1x512xf32>
    %94 = arith.divf %92, %93 : vector<1x512xf32>
    %c0_78 = arith.constant 0 : index
    %c0_79 = arith.constant 0 : index
    %95 = vector.load %arg27[%c0_78, %c0_79] : memref<1x512xf32, #tpu.memory_space<vmem>>, vector<1x512xf32>
    %cst_80 = arith.constant 9.99999974E-6 : f32
    %96 = vector.broadcast %cst_80 : f32 to vector<1x512xf32>
    %97 = arith.addf %94, %96 : vector<1x512xf32>
    %98 = math.rsqrt %97 : vector<1x512xf32>
    %99 = arith.mulf %95, %98 : vector<1x512xf32>
    %100 = vector.broadcast %99 : vector<1x512xf32> to vector<22x512xf32>
    %101 = arith.mulf %89, %100 : vector<22x512xf32>
    %c0_81 = arith.constant 0 : index
    %c0_82 = arith.constant 0 : index
    %102 = vector.load %arg28[%c0_81, %c0_82] : memref<1x512xf32, #tpu.memory_space<vmem>>, vector<1x512xf32>
    %103 = vector.broadcast %102 : vector<1x512xf32> to vector<22x512xf32>
    %104 = arith.addf %101, %103 : vector<22x512xf32>
    %cst_83 = arith.constant 0.000000e+00 : f32
    %105 = vector.broadcast %cst_83 : f32 to vector<22x512xf32>
    %106 = arith.maximumf %104, %105 : vector<22x512xf32>
    %c0_84 = arith.constant 0 : index
    %c0_85 = arith.constant 0 : index
    %107 = vector.load %arg6[%c0_84, %c0_85] : memref<2x22xf32, #tpu.memory_space<vmem>>, vector<2x22xf32>
    %cst_86 = arith.constant dense<0.000000e+00> : vector<2x512xf32>
    %108 = tpu.matmul %107, %106, %cst_86 {dimension_numbers = #tpu.dot_dimension_numbers<[1], [0], [0], [1], [0, 0, 1, 1], [], []>} : vector<2x22xf32>, vector<22x512xf32>, vector<2x512xf32> -> vector<2x512xf32>
    %c0_87 = arith.constant 0 : index
    %c0_88 = arith.constant 0 : index
    %109 = vector.load %arg29[%c0_87, %c0_88] : memref<512x512xbf16, #tpu.memory_space<vmem>>, vector<512x512xbf16>
    %110 = arith.truncf %108 : vector<2x512xf32> to vector<2x512xbf16>
    %cst_89 = arith.constant dense<0.000000e+00> : vector<2x512xf32>
    %111 = tpu.matmul %110, %109, %cst_89 {dimension_numbers = #tpu.dot_dimension_numbers<[1], [0], [0], [1], [0, 0, 1, 1], [], []>} : vector<2x512xbf16>, vector<512x512xbf16>, vector<2x512xf32> -> vector<2x512xf32>
    %c0_90 = arith.constant 0 : index
    %c0_91 = arith.constant 0 : index
    %112 = vector.load %arg30[%c0_90, %c0_91] : memref<1x512xf32, #tpu.memory_space<vmem>>, vector<1x512xf32>
    %113 = vector.broadcast %112 : vector<1x512xf32> to vector<2x512xf32>
    %114 = arith.addf %111, %113 : vector<2x512xf32>
    %cst_92 = arith.constant dense<0.000000e+00> : vector<512xf32>
    %115 = vector.multi_reduction <add>, %114, %cst_92 [0] : vector<2x512xf32> to vector<512xf32>
    %116 = vector.shape_cast %115 : vector<512xf32> to vector<1x512xf32>
    %c0_93 = arith.constant 0 : index
    %c0_94 = arith.constant 0 : index
    %117 = vector.load %arg33[%c0_93, %c0_94] : memref<512x16xf32, #tpu.memory_space<vmem>>, vector<512x16xf32>
    %cst_95 = arith.constant dense<0.000000e+00> : vector<1x16xf32>
    %118 = tpu.matmul %116, %117, %cst_95 {dimension_numbers = #tpu.dot_dimension_numbers<[1], [0], [0], [1], [0, 0, 1, 1], [], []>} : vector<1x512xf32>, vector<512x16xf32>, vector<1x16xf32> -> vector<1x16xf32>
    %c0_96 = arith.constant 0 : index
    %c0_97 = arith.constant 0 : index
    %119 = vector.load %arg34[%c0_96, %c0_97] : memref<16x512xf32, #tpu.memory_space<vmem>>, vector<16x512xf32>
    %cst_98 = arith.constant dense<0.000000e+00> : vector<1x512xf32>
    %120 = tpu.matmul %118, %119, %cst_98 {dimension_numbers = #tpu.dot_dimension_numbers<[1], [0], [0], [1], [0, 0, 1, 1], [], []>} : vector<1x16xf32>, vector<16x512xf32>, vector<1x512xf32> -> vector<1x512xf32>
    %121 = vector.broadcast %120 : vector<1x512xf32> to vector<2x512xf32>
    %122 = arith.subf %114, %121 : vector<2x512xf32>
    %123 = arith.mulf %122, %122 : vector<2x512xf32>
    %cst_99 = arith.constant dense<0.000000e+00> : vector<512xf32>
    %124 = vector.multi_reduction <add>, %123, %cst_99 [0] : vector<2x512xf32> to vector<512xf32>
    %125 = vector.shape_cast %124 : vector<512xf32> to vector<1x512xf32>
    %c0_100 = arith.constant 0 : index
    %c0_101 = arith.constant 0 : index
    %126 = vector.load %arg33[%c0_100, %c0_101] : memref<512x16xf32, #tpu.memory_space<vmem>>, vector<512x16xf32>
    %cst_102 = arith.constant dense<0.000000e+00> : vector<1x16xf32>
    %127 = tpu.matmul %125, %126, %cst_102 {dimension_numbers = #tpu.dot_dimension_numbers<[1], [0], [0], [1], [0, 0, 1, 1], [], []>} : vector<1x512xf32>, vector<512x16xf32>, vector<1x16xf32> -> vector<1x16xf32>
    %c0_103 = arith.constant 0 : index
    %c0_104 = arith.constant 0 : index
    %128 = vector.load %arg34[%c0_103, %c0_104] : memref<16x512xf32, #tpu.memory_space<vmem>>, vector<16x512xf32>
    %cst_105 = arith.constant dense<0.000000e+00> : vector<1x512xf32>
    %129 = tpu.matmul %127, %128, %cst_105 {dimension_numbers = #tpu.dot_dimension_numbers<[1], [0], [0], [1], [0, 0, 1, 1], [], []>} : vector<1x16xf32>, vector<16x512xf32>, vector<1x512xf32> -> vector<1x512xf32>
    %c0_106 = arith.constant 0 : index
    %c0_107 = arith.constant 0 : index
    %130 = vector.load %arg31[%c0_106, %c0_107] : memref<1x512xf32, #tpu.memory_space<vmem>>, vector<1x512xf32>
    %cst_108 = arith.constant 9.99999974E-6 : f32
    %131 = vector.broadcast %cst_108 : f32 to vector<1x512xf32>
    %132 = arith.addf %129, %131 : vector<1x512xf32>
    %133 = math.rsqrt %132 : vector<1x512xf32>
    %134 = arith.mulf %130, %133 : vector<1x512xf32>
    %135 = vector.broadcast %134 : vector<1x512xf32> to vector<2x512xf32>
    %136 = arith.mulf %122, %135 : vector<2x512xf32>
    %c0_109 = arith.constant 0 : index
    %c0_110 = arith.constant 0 : index
    %137 = vector.load %arg32[%c0_109, %c0_110] : memref<1x512xf32, #tpu.memory_space<vmem>>, vector<1x512xf32>
    %138 = vector.broadcast %137 : vector<1x512xf32> to vector<2x512xf32>
    %139 = arith.addf %136, %138 : vector<2x512xf32>
    %cst_111 = arith.constant 0.000000e+00 : f32
    %140 = vector.broadcast %cst_111 : f32 to vector<2x512xf32>
    %141 = arith.maximumf %139, %140 : vector<2x512xf32>
    %c0_112 = arith.constant 0 : index
    %c0_113 = arith.constant 0 : index
    %142 = vector.load %arg35[%c0_112, %c0_113] : memref<2x512xf32, #tpu.memory_space<vmem>>, vector<2x512xf32>
    tpu.vector_store %arg35[%c0_112, %c0_113], %141 {strides = array<i32>} : memref<2x512xf32, #tpu.memory_space<vmem>>, vector<2x512xf32>,
    return
  }
}

</mosaic_0001>

<llo_original>
// kernel: pointnet_v2_forward.1
$region0: #{pointnet_v2_forward.1}
  #allocation0 [shape = 'u32[]', space=smem, size = 0x4, offset = 0x4, fixed_abs, tag = 'smem constant byte address 0x4 - core index']
  #allocation1 [shape = 'u32[72,128]{1,0:T(1,128)}', space=vmem, size = 0x9000, scoped, tag = 'internal scratch']
  %s0 = inlined_call_operand.smem [shape: u32[36], index: -1, kind: input, shape index: {}]
  %s1 = sld [smem:[%s0]]
  %s2 = scalar_lea.smem %s0, 1
  %s3 = sld [smem:[%s2]]
  %s4 = scalar_lea.smem %s0, 2
  %s5 = sld [smem:[%s4]]
  %s6 = scalar_lea.smem %s0, 3
  %s7 = sld [smem:[%s6]]
  %s8 = scalar_lea.smem %s0, 4
  %s9 = sld [smem:[%s8]]
  %s10 = scalar_lea.smem %s0, 5
  %s11 = sld [smem:[%s10]]
  %s12 = scalar_lea.smem %s0, 6
  %s13 = sld [smem:[%s12]]
  %s14 = scalar_lea.smem %s0, 7
  %s15 = sld [smem:[%s14]]
  %s16 = scalar_lea.smem %s0, 8
  %s17 = sld [smem:[%s16]]
  %s18 = scalar_lea.smem %s0, 9
  %s19 = sld [smem:[%s18]]
  %s20 = scalar_lea.smem %s0, 10
  %s21 = sld [smem:[%s20]]
  %s22 = scalar_lea.smem %s0, 11
  %s23 = sld [smem:[%s22]]
  %s24 = scalar_lea.smem %s0, 12
  %s25 = sld [smem:[%s24]]
  %s26 = scalar_lea.smem %s0, 13
  %s27 = sld [smem:[%s26]]
  %s28 = scalar_lea.smem %s0, 14
  %s29 = sld [smem:[%s28]]
  %s30 = scalar_lea.smem %s0, 15
  %s31 = sld [smem:[%s30]]
  %s32 = scalar_lea.smem %s0, 16
  %s33 = sld [smem:[%s32]]
  %s34 = scalar_lea.smem %s0, 17
  %s35 = sld [smem:[%s34]]
  %s36 = scalar_lea.smem %s0, 18
  %s37 = sld [smem:[%s36]]
  %s38 = scalar_lea.smem %s0, 19
  %s39 = sld [smem:[%s38]]
  %s40 = scalar_lea.smem %s0, 20
  %s41 = sld [smem:[%s40]]
  %s42 = scalar_lea.smem %s0, 21
  %s43 = sld [smem:[%s42]]
  %s44 = scalar_lea.smem %s0, 22
  %s45 = sld [smem:[%s44]]
  %s46 = scalar_lea.smem %s0, 23
  %s47 = sld [smem:[%s46]]
  %s48 = scalar_lea.smem %s0, 24
  %s49 = sld [smem:[%s48]]
  %s50 = scalar_lea.smem %s0, 25
  %s51 = sld [smem:[%s50]]
  %s52 = scalar_lea.smem %s0, 26
  %s53 = sld [smem:[%s52]]
  %s54 = scalar_lea.smem %s0, 27
  %s55 = sld [smem:[%s54]]
  %s56 = scalar_lea.smem %s0, 28
  %s57 = sld [smem:[%s56]]
  %s58 = scalar_lea.smem %s0, 29
  %s59 = sld [smem:[%s58]]
  %s60 = scalar_lea.smem %s0, 30
  %s61 = sld [smem:[%s60]]
  %s62 = scalar_lea.smem %s0, 31
  %s63 = sld [smem:[%s62]]
  %s64 = scalar_lea.smem %s0, 32
  %s65 = sld [smem:[%s64]]
  %s66 = scalar_lea.smem %s0, 33
  %s67 = sld [smem:[%s66]]
  %s68 = scalar_lea.smem %s0, 34
  %s69 = sld [smem:[%s68]]
  %s70 = scalar_lea.smem %s0, 35
  %s71 = sld [smem:[%s70]]
  %s72 = sld [smem:[#allocation0]]
  $region150: #{pointnet_v2_forward.1} parent=0
    _
  %s74 = ssub.s32 1, %s72
  %s75 = scalar_select 0, %s74, %s72
  $region1: #{pointnet_v2_forward.1} parent=0
    #allocation2 [shape = 'u8[4096]{0}', space=vmem, size = 0x1000, scoped, tag = 'output window, operand 0, single buffered']
    #allocation3 [shape = 's32[1]{0}', space=sflag, size = 0x4, scoped, tag = 'scoped memory for pointnet_v2_forward.1']
    %76 = vsyncpa [#allocation3], 0
    // Predicated region
    $region2: #{pointnet_v2_forward.1} parent=1 // pred_check
      _
    $region3: #{pointnet_v2_forward.1} parent=1 // pred_check_branch
      %78 = sbr.rel (0) target = $region5
    $region4: #{pointnet_v2_forward.1} parent=1 // pred_region
      _
    $region5: #{pointnet_v2_forward.1} parent=1 // pred_fallthru
      _
    // Predicated region
    $region6: #{pointnet_v2_forward.1} parent=1 // pred_check
      _
    $region7: #{pointnet_v2_forward.1} parent=1 // pred_check_branch
      %80 = sbr.rel (0) target = $region9
    $region8: #{pointnet_v2_forward.1} parent=1 // pred_region
      _
    $region9: #{pointnet_v2_forward.1} parent=1 // pred_fallthru
      _
    // Predicated region
    $region10: #{pointnet_v2_forward.1} parent=1 // pred_check
      _
    $region11: #{pointnet_v2_forward.1} parent=1 // pred_check_branch
      %82 = sbr.rel (0) target = $region13
    $region12: #{pointnet_v2_forward.1} parent=1 // pred_region
      _
    $region13: #{pointnet_v2_forward.1} parent=1 // pred_fallthru
      _
    // Predicated region
    $region14: #{pointnet_v2_forward.1} parent=1 // pred_check
      _
    $region15: #{pointnet_v2_forward.1} parent=1 // pred_check_branch
      %84 = sbr.rel (0) target = $region17
    $region16: #{pointnet_v2_forward.1} parent=1 // pred_region
      _
    $region17: #{pointnet_v2_forward.1} parent=1 // pred_fallthru
      _
    // Predicated region
    $region18: #{pointnet_v2_forward.1} parent=1 // pred_check
      _
    $region19: #{pointnet_v2_forward.1} parent=1 // pred_check_branch
      %86 = sbr.rel (0) target = $region21
    $region20: #{pointnet_v2_forward.1} parent=1 // pred_region
      _
    $region21: #{pointnet_v2_forward.1} parent=1 // pred_fallthru
      _
    // Predicated region
    $region22: #{pointnet_v2_forward.1} parent=1 // pred_check
      _
    $region23: #{pointnet_v2_forward.1} parent=1 // pred_check_branch
      %88 = sbr.rel (0) target = $region25
    $region24: #{pointnet_v2_forward.1} parent=1 // pred_region
      _
    $region25: #{pointnet_v2_forward.1} parent=1 // pred_fallthru
      _
    // Predicated region
    $region26: #{pointnet_v2_forward.1} parent=1 // pred_check
      _
    $region27: #{pointnet_v2_forward.1} parent=1 // pred_check_branch
      %90 = sbr.rel (0) target = $region29
    $region28: #{pointnet_v2_forward.1} parent=1 // pred_region
      _
    $region29: #{pointnet_v2_forward.1} parent=1 // pred_fallthru
      _
    // Predicated region
    $region30: #{pointnet_v2_forward.1} parent=1 // pred_check
      _
    $region31: #{pointnet_v2_forward.1} parent=1 // pred_check_branch
      %92 = sbr.rel (0) target = $region33
    $region32: #{pointnet_v2_forward.1} parent=1 // pred_region
      _
    $region33: #{pointnet_v2_forward.1} parent=1 // pred_fallthru
      _
    // Predicated region
    $region34: #{pointnet_v2_forward.1} parent=1 // pred_check
      _
    $region35: #{pointnet_v2_forward.1} parent=1 // pred_check_branch
      %94 = sbr.rel (0) target = $region37
    $region36: #{pointnet_v2_forward.1} parent=1 // pred_region
      _
    $region37: #{pointnet_v2_forward.1} parent=1 // pred_fallthru
      _
    // Predicated region
    $region38: #{pointnet_v2_forward.1} parent=1 // pred_check
      _
    $region39: #{pointnet_v2_forward.1} parent=1 // pred_check_branch
      %96 = sbr.rel (0) target = $region41
    $region40: #{pointnet_v2_forward.1} parent=1 // pred_region
      _
    $region41: #{pointnet_v2_forward.1} parent=1 // pred_fallthru
      _
    // Predicated region
    $region42: #{pointnet_v2_forward.1} parent=1 // pred_check
      _
    $region43: #{pointnet_v2_forward.1} parent=1 // pred_check_branch
      %98 = sbr.rel (0) target = $region45
    $region44: #{pointnet_v2_forward.1} parent=1 // pred_region
      _
    $region45: #{pointnet_v2_forward.1} parent=1 // pred_fallthru
      _
    // Predicated region
    $region46: #{pointnet_v2_forward.1} parent=1 // pred_check
      _
    $region47: #{pointnet_v2_forward.1} parent=1 // pred_check_branch
      %100 = sbr.rel (0) target = $region49
    $region48: #{pointnet_v2_forward.1} parent=1 // pred_region
      _
    $region49: #{pointnet_v2_forward.1} parent=1 // pred_fallthru
      _
    // Predicated region
    $region50: #{pointnet_v2_forward.1} parent=1 // pred_check
      _
    $region51: #{pointnet_v2_forward.1} parent=1 // pred_check_branch
      %102 = sbr.rel (0) target = $region53
    $region52: #{pointnet_v2_forward.1} parent=1 // pred_region
      _
    $region53: #{pointnet_v2_forward.1} parent=1 // pred_fallthru
      _
    // Predicated region
    $region54: #{pointnet_v2_forward.1} parent=1 // pred_check
      _
    $region55: #{pointnet_v2_forward.1} parent=1 // pred_check_branch
      %104 = sbr.rel (0) target = $region57
    $region56: #{pointnet_v2_forward.1} parent=1 // pred_region
      _
    $region57: #{pointnet_v2_forward.1} parent=1 // pred_fallthru
      _
    // Predicated region
    $region58: #{pointnet_v2_forward.1} parent=1 // pred_check
      _
    $region59: #{pointnet_v2_forward.1} parent=1 // pred_check_branch
      %106 = sbr.rel (0) target = $region61
    $region60: #{pointnet_v2_forward.1} parent=1 // pred_region
      _
    $region61: #{pointnet_v2_forward.1} parent=1 // pred_fallthru
      _
    // Predicated region
    $region62: #{pointnet_v2_forward.1} parent=1 // pred_check
      _
    $region63: #{pointnet_v2_forward.1} parent=1 // pred_check_branch
      %108 = sbr.rel (0) target = $region65
    $region64: #{pointnet_v2_forward.1} parent=1 // pred_region
      _
    $region65: #{pointnet_v2_forward.1} parent=1 // pred_fallthru
      _
    // Predicated region
    $region66: #{pointnet_v2_forward.1} parent=1 // pred_check
      _
    $region67: #{pointnet_v2_forward.1} parent=1 // pred_check_branch
      %110 = sbr.rel (0) target = $region69
    $region68: #{pointnet_v2_forward.1} parent=1 // pred_region
      _
    $region69: #{pointnet_v2_forward.1} parent=1 // pred_fallthru
      _
    // Predicated region
    $region70: #{pointnet_v2_forward.1} parent=1 // pred_check
      _
    $region71: #{pointnet_v2_forward.1} parent=1 // pred_check_branch
      %112 = sbr.rel (0) target = $region73
    $region72: #{pointnet_v2_forward.1} parent=1 // pred_region
      _
    $region73: #{pointnet_v2_forward.1} parent=1 // pred_fallthru
      _
    // Predicated region
    $region74: #{pointnet_v2_forward.1} parent=1 // pred_check
      _
    $region75: #{pointnet_v2_forward.1} parent=1 // pred_check_branch
      %114 = sbr.rel (0) target = $region77
    $region76: #{pointnet_v2_forward.1} parent=1 // pred_region
      _
    $region77: #{pointnet_v2_forward.1} parent=1 // pred_fallthru
      _
    // Predicated region
    $region78: #{pointnet_v2_forward.1} parent=1 // pred_check
      _
    $region79: #{pointnet_v2_forward.1} parent=1 // pred_check_branch
      %116 = sbr.rel (0) target = $region81
    $region80: #{pointnet_v2_forward.1} parent=1 // pred_region
      _
    $region81: #{pointnet_v2_forward.1} parent=1 // pred_fallthru
      _
    // Predicated region
    $region82: #{pointnet_v2_forward.1} parent=1 // pred_check
      _
    $region83: #{pointnet_v2_forward.1} parent=1 // pred_check_branch
      %118 = sbr.rel (0) target = $region85
    $region84: #{pointnet_v2_forward.1} parent=1 // pred_region
      _
    $region85: #{pointnet_v2_forward.1} parent=1 // pred_fallthru
      _
    // Predicated region
    $region86: #{pointnet_v2_forward.1} parent=1 // pred_check
      _
    $region87: #{pointnet_v2_forward.1} parent=1 // pred_check_branch
      %120 = sbr.rel (0) target = $region89
    $region88: #{pointnet_v2_forward.1} parent=1 // pred_region
      _
    $region89: #{pointnet_v2_forward.1} parent=1 // pred_fallthru
      _
    // Predicated region
    $region90: #{pointnet_v2_forward.1} parent=1 // pred_check
      _
    $region91: #{pointnet_v2_forward.1} parent=1 // pred_check_branch
      %122 = sbr.rel (0) target = $region93
    $region92: #{pointnet_v2_forward.1} parent=1 // pred_region
      _
    $region93: #{pointnet_v2_forward.1} parent=1 // pred_fallthru
      _
    // Predicated region
    $region94: #{pointnet_v2_forward.1} parent=1 // pred_check
      _
    $region95: #{pointnet_v2_forward.1} parent=1 // pred_check_branch
      %124 = sbr.rel (0) target = $region97
    $region96: #{pointnet_v2_forward.1} parent=1 // pred_region
      _
    $region97: #{pointnet_v2_forward.1} parent=1 // pred_fallthru
      _
    // Predicated region
    $region98: #{pointnet_v2_forward.1} parent=1 // pred_check
      _
    $region99: #{pointnet_v2_forward.1} parent=1 // pred_check_branch
      %126 = sbr.rel (0) target = $region101
    $region100: #{pointnet_v2_forward.1} parent=1 // pred_region
      _
    $region101: #{pointnet_v2_forward.1} parent=1 // pred_fallthru
      _
    // Predicated region
    $region102: #{pointnet_v2_forward.1} parent=1 // pred_check
      _
    $region103: #{pointnet_v2_forward.1} parent=1 // pred_check_branch
      %128 = sbr.rel (0) target = $region105
    $region104: #{pointnet_v2_forward.1} parent=1 // pred_region
      _
    $region105: #{pointnet_v2_forward.1} parent=1 // pred_fallthru
      _
    // Predicated region
    $region106: #{pointnet_v2_forward.1} parent=1 // pred_check
      _
    $region107: #{pointnet_v2_forward.1} parent=1 // pred_check_branch
      %130 = sbr.rel (0) target = $region109
    $region108: #{pointnet_v2_forward.1} parent=1 // pred_region
      _
    $region109: #{pointnet_v2_forward.1} parent=1 // pred_fallthru
      _
    // Predicated region
    $region110: #{pointnet_v2_forward.1} parent=1 // pred_check
      _
    $region111: #{pointnet_v2_forward.1} parent=1 // pred_check_branch
      %132 = sbr.rel (0) target = $region113
    $region112: #{pointnet_v2_forward.1} parent=1 // pred_region
      _
    $region113: #{pointnet_v2_forward.1} parent=1 // pred_fallthru
      _
    // Predicated region
    $region114: #{pointnet_v2_forward.1} parent=1 // pred_check
      _
    $region115: #{pointnet_v2_forward.1} parent=1 // pred_check_branch
      %134 = sbr.rel (0) target = $region117
    $region116: #{pointnet_v2_forward.1} parent=1 // pred_region
      _
    $region117: #{pointnet_v2_forward.1} parent=1 // pred_fallthru
      _
    // Predicated region
    $region118: #{pointnet_v2_forward.1} parent=1 // pred_check
      _
    $region119: #{pointnet_v2_forward.1} parent=1 // pred_check_branch
      %136 = sbr.rel (0) target = $region121
    $region120: #{pointnet_v2_forward.1} parent=1 // pred_region
      _
    $region121: #{pointnet_v2_forward.1} parent=1 // pred_fallthru
      _
    // Predicated region
    $region122: #{pointnet_v2_forward.1} parent=1 // pred_check
      _
    $region123: #{pointnet_v2_forward.1} parent=1 // pred_check_branch
      %138 = sbr.rel (0) target = $region125
    $region124: #{pointnet_v2_forward.1} parent=1 // pred_region
      _
    $region125: #{pointnet_v2_forward.1} parent=1 // pred_fallthru
      _
    // Predicated region
    $region126: #{pointnet_v2_forward.1} parent=1 // pred_check
      _
    $region127: #{pointnet_v2_forward.1} parent=1 // pred_check_branch
      %140 = sbr.rel (0) target = $region129
    $region128: #{pointnet_v2_forward.1} parent=1 // pred_region
      _
    $region129: #{pointnet_v2_forward.1} parent=1 // pred_fallthru
      _
    // Predicated region
    $region130: #{pointnet_v2_forward.1} parent=1 // pred_check
      _
    $region131: #{pointnet_v2_forward.1} parent=1 // pred_check_branch
      %142 = sbr.rel (0) target = $region133
    $region132: #{pointnet_v2_forward.1} parent=1 // pred_region
      _
    $region133: #{pointnet_v2_forward.1} parent=1 // pred_fallthru
      _
    // Predicated region
    $region134: #{pointnet_v2_forward.1} parent=1 // pred_check
      _
    $region135: #{pointnet_v2_forward.1} parent=1 // pred_check_branch
      %144 = sbr.rel (0) target = $region137
    $region136: #{pointnet_v2_forward.1} parent=1 // pred_region
      _
    $region137: #{pointnet_v2_forward.1} parent=1 // pred_fallthru
      _
    // Predicated region
    $region138: #{pointnet_v2_forward.1} parent=1 // pred_check
      _
    $region139: #{pointnet_v2_forward.1} parent=1 // pred_check_branch
      %146 = sbr.rel (0) target = $region141
    $region140: #{pointnet_v2_forward.1} parent=1 // pred_region
      _
    $region141: #{pointnet_v2_forward.1} parent=1 // pred_fallthru
      _
    %v147 = vld [vmem:[%s1] sm:$0xff]
    %v148 = vld [vmem:[%s1 + $0x8] sm:$0xff]
    %v149 = vld [vmem:[%s1 + $0x10] sm:$0xff]
    %v150 = vld [vmem:[%s1 + $0x18] sm:$0xff]
    %v151 = vld [vmem:[%s1 + $0x20] sm:$0xff]
    %v152 = vld [vmem:[%s1 + $0x28] sm:$0xff]
    %v153 = vld [vmem:[%s1 + $0x30] sm:$0xff]
    %v154 = vld [vmem:[%s1 + $0x38] sm:$0xff]
    %v155 = vld [vmem:[%s1 + $0x40] sm:$0xff]
    %v156 = vld [vmem:[%s1 + $0x48] sm:$0xff]
    %v157 = vld [vmem:[%s1 + $0x50] sm:$0xff]
    %v158 = vld [vmem:[%s1 + $0x58] sm:$0xff]
    %v159 = vld [vmem:[%s1 + $0x60] sm:$0xff]
    %v160 = vld [vmem:[%s1 + $0x68] sm:$0xff]
    %v161 = vld [vmem:[%s1 + $0x70] sm:$0xff]
    %v162 = vld [vmem:[%s1 + $0x78] sm:$0xff]
    %v163 = vld [vmem:[%s3] sm:$0x7]
    %vm164 = vcmask 23552
    %v166 = vsel %vm164, %v147, 0
    %v169 = vsel %vm164, %v148, 0
    %v172 = vsel %vm164, %v149, 0
    %v175 = vsel %vm164, %v150, 0
    %v178 = vsel %vm164, %v151, 0
    %v181 = vsel %vm164, %v152, 0
    %v184 = vsel %vm164, %v153, 0
    %v187 = vsel %vm164, %v154, 0
    %v190 = vsel %vm164, %v155, 0
    %v193 = vsel %vm164, %v156, 0
    %v196 = vsel %vm164, %v157, 0
    %v199 = vsel %vm164, %v158, 0
    %v202 = vsel %vm164, %v159, 0
    %v205 = vsel %vm164, %v160, 0
    %v208 = vsel %vm164, %v161, 0
    %v211 = vsel %vm164, %v162, 0
    %vm213 = vcmask 1042432
    %v215 = vsel %vm213, %v163, 0
    %217 = vmatpush.msra.mxu0 0.0
    %218 = vmatpush.msra.mxu0 0.0
    %219 = vmatpush.msra.mxu0 0.0
    %220 = vmatpush.msra.mxu0 0.0
    %221 = vmatpush.msra.mxu0 0.0
    %222 = vmatpush.msra.mxu0 0.0
    %223 = vmatpush.msra.mxu0 0.0
    %224 = vmatpush.msra.mxu0 0.0
    %225 = vmatpush.msra.mxu0 0.0
    %226 = vmatpush.msra.mxu0 0.0
    %227 = vmatpush.msra.mxu0 0.0
    %228 = vmatpush.msra.mxu0 0.0
    %229 = vmatpush.msra.mxu0 0.0
    %230 = vmatpush.msra.mxu0 0.0
    %231 = vmatpush.msra.mxu0 0.0
    %232 = vmatpush.msra.mxu0 %v215
    %233 = vmatmul.f32.gmra.mxu0 %v166
    %v234 = vpop.f32.mrf.mxu0
    %v235 = vadd.f32 0.0, %v234
    %236 = vmatmul.f32.gmra.mxu0 %v169
    %v237 = vpop.f32.mrf.mxu0
    %v238 = vadd.f32 0.0, %v237
    %239 = vmatmul.f32.gmra.mxu0 %v172
    %v240 = vpop.f32.mrf.mxu0
    %v241 = vadd.f32 0.0, %v240
    %242 = vmatmul.f32.gmra.mxu0 %v175
    %v243 = vpop.f32.mrf.mxu0
    %v244 = vadd.f32 0.0, %v243
    %245 = vmatmul.f32.gmra.mxu0 %v178
    %v246 = vpop.f32.mrf.mxu0
    %v247 = vadd.f32 0.0, %v246
    %248 = vmatmul.f32.gmra.mxu0 %v181
    %v249 = vpop.f32.mrf.mxu0
    %v250 = vadd.f32 0.0, %v249
    %251 = vmatmul.f32.gmra.mxu0 %v184
    %v252 = vpop.f32.mrf.mxu0
    %v253 = vadd.f32 0.0, %v252
    %254 = vmatmul.f32.gmra.mxu0 %v187
    %v255 = vpop.f32.mrf.mxu0
    %v256 = vadd.f32 0.0, %v255
    %257 = vmatmul.f32.gmra.mxu0 %v190
    %v258 = vpop.f32.mrf.mxu0
    %v259 = vadd.f32 0.0, %v258
    %260 = vmatmul.f32.gmra.mxu0 %v193
    %v261 = vpop.f32.mrf.mxu0
    %v262 = vadd.f32 0.0, %v261
    %263 = vmatmul.f32.gmra.mxu0 %v196
    %v264 = vpop.f32.mrf.mxu0
    %v265 = vadd.f32 0.0, %v264
    %266 = vmatmul.f32.gmra.mxu0 %v199
    %v267 = vpop.f32.mrf.mxu0
    %v268 = vadd.f32 0.0, %v267
    %269 = vmatmul.f32.gmra.mxu0 %v202
    %v270 = vpop.f32.mrf.mxu0
    %v271 = vadd.f32 0.0, %v270
    %272 = vmatmul.f32.gmra.mxu0 %v205
    %v273 = vpop.f32.mrf.mxu0
    %v274 = vadd.f32 0.0, %v273
    %275 = vmatmul.f32.gmra.mxu0 %v208
    %v276 = vpop.f32.mrf.mxu0
    %v277 = vadd.f32 0.0, %v276
    %278 = vmatmul.f32.gmra.mxu0 %v211
    %v279 = vpop.f32.mrf.mxu0
    %v280 = vadd.f32 0.0, %v279
    %281 = vdwg.mxu0
    %v282 = vld [vmem:[%s7] sm:$0xff]
    %v283 = vld [vmem:[%s7 + $0x8] sm:$0xff]
    %v284 = vld [vmem:[%s7 + $0x10] sm:$0xff]
    %v285 = vld [vmem:[%s7 + $0x18] sm:$0xff]
    %v286 = vld [vmem:[%s7 + $0x20] sm:$0xff]
    %v287 = vld [vmem:[%s7 + $0x28] sm:$0xff]
    %v288 = vld [vmem:[%s7 + $0x30] sm:$0xff]
    %v289 = vld [vmem:[%s7 + $0x38] sm:$0xff]
    %v290 = vld [vmem:[%s7 + $0x40] sm:$0xf]
    %291 = vmatpush.msra.mxu0 %v280
    %292 = vmatpush.msra.mxu0 %v277
    %293 = vmatpush.msra.mxu0 %v274
    %294 = vmatpush.msra.mxu0 %v271
    %295 = vmatpush.msra.mxu0 %v268
    %296 = vmatpush.msra.mxu0 %v265
    %297 = vmatpush.msra.mxu0 %v262
    %298 = vmatpush.msra.mxu0 %v259
    %299 = vmatpush.msra.mxu0 %v256
    %300 = vmatpush.msra.mxu0 %v253
    %301 = vmatpush.msra.mxu0 %v250
    %302 = vmatpush.msra.mxu0 %v247
    %303 = vmatpush.msra.mxu0 %v244
    %304 = vmatpush.msra.mxu0 %v241
    %305 = vmatpush.msra.mxu0 %v238
    %306 = vmatpush.msra.mxu0 %v235
    %307 = vmatmul.f32.gmra.mxu0 %v282
    %v308 = vpop.f32.mrf.mxu0
    %v309 = vadd.f32 0.0, %v308
    %310 = vmatmul.f32.gmra.mxu0 %v283
    %v311 = vpop.f32.mrf.mxu0
    %v312 = vadd.f32 0.0, %v311
    %313 = vmatmul.f32.gmra.mxu0 %v284
    %v314 = vpop.f32.mrf.mxu0
    %v315 = vadd.f32 0.0, %v314
    %316 = vmatmul.f32.gmra.mxu0 %v285
    %v317 = vpop.f32.mrf.mxu0
    %v318 = vadd.f32 0.0, %v317
    %319 = vmatmul.f32.gmra.mxu0 %v286
    %v320 = vpop.f32.mrf.mxu0
    %v321 = vadd.f32 0.0, %v320
    %322 = vmatmul.f32.gmra.mxu0 %v287
    %v323 = vpop.f32.mrf.mxu0
    %v324 = vadd.f32 0.0, %v323
    %325 = vmatmul.f32.gmra.mxu0 %v288
    %v326 = vpop.f32.mrf.mxu0
    %v327 = vadd.f32 0.0, %v326
    %328 = vmatmul.f32.gmra.mxu0 %v289
    %v329 = vpop.f32.mrf.mxu0
    %v330 = vadd.f32 0.0, %v329
    %331 = vmatmul.f32.gmra.mxu0 %v290
    %v332 = vpop.f32.mrf.mxu0
    %v333 = vadd.f32 0.0, %v332
    %334 = vdwg.mxu0
    %v335 = vld [vmem:[%s15] sm:$0x7]
    %v336 = vld [vmem:[%s17] sm:$0x1]
    %v338 = vperm.slane %v336, 0
    %v341 = vsel %vm164, %v309, 0
    %v344 = vsel %vm164, %v312, 0
    %v347 = vsel %vm164, %v315, 0
    %v350 = vsel %vm164, %v318, 0
    %v353 = vsel %vm164, %v321, 0
    %v356 = vsel %vm164, %v324, 0
    %v359 = vsel %vm164, %v327, 0
    %v362 = vsel %vm164, %v330, 0
    %v365 = vsel %vm164, %v333, 0
    %v368 = vsel %vm213, %v335, 0
    %370 = vmatpush.msra.mxu0 0.0
    %371 = vmatpush.msra.mxu0 0.0
    %372 = vmatpush.msra.mxu0 0.0
    %373 = vmatpush.msra.mxu0 0.0
    %374 = vmatpush.msra.mxu0 0.0
    %375 = vmatpush.msra.mxu0 0.0
    %376 = vmatpush.msra.mxu0 0.0
    %377 = vmatpush.msra.mxu0 0.0
    %378 = vmatpush.msra.mxu0 0.0
    %379 = vmatpush.msra.mxu0 0.0
    %380 = vmatpush.msra.mxu0 0.0
    %381 = vmatpush.msra.mxu0 0.0
    %382 = vmatpush.msra.mxu0 0.0
    %383 = vmatpush.msra.mxu0 0.0
    %384 = vmatpush.msra.mxu0 0.0
    %385 = vmatpush.msra.mxu0 %v368
    %386 = vmatmul.f32.gmra.mxu0 %v341
    %v387 = vpop.f32.mrf.mxu0
    %v388 = vadd.f32 %v338, %v387
    %389 = vmatmul.f32.gmra.mxu0 %v344
    %v390 = vpop.f32.mrf.mxu0
    %v391 = vadd.f32 %v338, %v390
    %392 = vmatmul.f32.gmra.mxu0 %v347
    %v393 = vpop.f32.mrf.mxu0
    %v394 = vadd.f32 %v338, %v393
    %395 = vmatmul.f32.gmra.mxu0 %v350
    %v396 = vpop.f32.mrf.mxu0
    %v397 = vadd.f32 %v338, %v396
    %398 = vmatmul.f32.gmra.mxu0 %v353
    %v399 = vpop.f32.mrf.mxu0
    %v400 = vadd.f32 %v338, %v399
    %401 = vmatmul.f32.gmra.mxu0 %v356
    %v402 = vpop.f32.mrf.mxu0
    %v403 = vadd.f32 %v338, %v402
    %404 = vmatmul.f32.gmra.mxu0 %v359
    %v405 = vpop.f32.mrf.mxu0
    %v406 = vadd.f32 %v338, %v405
    %407 = vmatmul.f32.gmra.mxu0 %v362
    %v408 = vpop.f32.mrf.mxu0
    %v409 = vadd.f32 %v338, %v408
    %410 = vmatmul.f32.gmra.mxu0 %v365
    %v411 = vpop.f32.mrf.mxu0
    %v412 = vadd.f32 %v338, %v411
    %413 = vdwg.mxu0
    %v414 = vmax.f32 %v388, 0.0
    %v415 = vmax.f32 %v391, 0.0
    %v416 = vmax.f32 %v394, 0.0
    %v417 = vmax.f32 %v397, 0.0
    %v418 = vmax.f32 %v400, 0.0
    %v419 = vmax.f32 %v403, 0.0
    %v420 = vmax.f32 %v406, 0.0
    %v421 = vmax.f32 %v409, 0.0
    %v422 = vmax.f32 %v412, 0.0
    %v423 = vld [vmem:[%s19] sm:$0xff]
    %v424 = vld [vmem:[%s19 + $0x8] sm:$0xff]
    %v425 = vld [vmem:[%s19 + $0x10] sm:$0xff]
    %v426 = vld [vmem:[%s19 + $0x18] sm:$0xff]
    %v427 = vld [vmem:[%s19 + $0x20] sm:$0xff]
    %v428 = vld [vmem:[%s19 + $0x28] sm:$0xff]
    %v429 = vld [vmem:[%s19 + $0x30] sm:$0xff]
    %v430 = vld [vmem:[%s19 + $0x38] sm:$0xff]
    %v431 = vld [vmem:[%s21] sm:$0x1]
    %v433 = vperm.slane %v431, 0
    %vm435 = vcmask 523264
    %v437 = vsel %vm435, %v414, 0
    %v440 = vsel %vm435, %v415, 0
    %v443 = vsel %vm435, %v416, 0
    %v446 = vsel %vm435, %v417, 0
    %v449 = vsel %vm435, %v418, 0
    %v452 = vsel %vm435, %v419, 0
    %v455 = vsel %vm435, %v420, 0
    %v458 = vsel %vm435, %v421, 0
    %v461 = vsel %vm435, %v422, 0
    %463 = vmatpush.msra.mxu0 0.0
    %464 = vmatpush.msra.mxu0 0.0
    %465 = vmatpush.msra.mxu0 0.0
    %466 = vmatpush.msra.mxu0 0.0
    %467 = vmatpush.msra.mxu0 0.0
    %468 = vmatpush.msra.mxu0 0.0
    %469 = vmatpush.msra.mxu0 0.0
    %470 = vmatpush.msra.mxu0 0.0
    %471 = vmatpush.msra.mxu0 %v430
    %472 = vmatpush.msra.mxu0 %v429
    %473 = vmatpush.msra.mxu0 %v428
    %474 = vmatpush.msra.mxu0 %v427
    %475 = vmatpush.msra.mxu0 %v426
    %476 = vmatpush.msra.mxu0 %v425
    %477 = vmatpush.msra.mxu0 %v424
    %478 = vmatpush.msra.mxu0 %v423
    %479 = vmatmul.f32.gmra.mxu0 %v437
    %v480 = vpop.f32.mrf.mxu0
    %v481 = vadd.f32 %v433, %v480
    %482 = vmatmul.f32.gmra.mxu0 %v440
    %v483 = vpop.f32.mrf.mxu0
    %v484 = vadd.f32 %v433, %v483
    %485 = vmatmul.f32.gmra.mxu0 %v443
    %v486 = vpop.f32.mrf.mxu0
    %v487 = vadd.f32 %v433, %v486
    %488 = vmatmul.f32.gmra.mxu0 %v446
    %v489 = vpop.f32.mrf.mxu0
    %v490 = vadd.f32 %v433, %v489
    %491 = vmatmul.f32.gmra.mxu0 %v449
    %v492 = vpop.f32.mrf.mxu0
    %v493 = vadd.f32 %v433, %v492
    %494 = vmatmul.f32.gmra.mxu0 %v452
    %v495 = vpop.f32.mrf.mxu0
    %v496 = vadd.f32 %v433, %v495
    %497 = vmatmul.f32.gmra.mxu0 %v455
    %v498 = vpop.f32.mrf.mxu0
    %v499 = vadd.f32 %v433, %v498
    %500 = vmatmul.f32.gmra.mxu0 %v458
    %v501 = vpop.f32.mrf.mxu0
    %v502 = vadd.f32 %v433, %v501
    %503 = vmatmul.f32.gmra.mxu0 %v461
    %v504 = vpop.f32.mrf.mxu0
    %v505 = vadd.f32 %v433, %v504
    %506 = vdwg.mxu0
    %v507 = vmax.f32 %v481, 0.0
    %v508 = vmax.f32 %v484, 0.0
    %v509 = vmax.f32 %v487, 0.0
    %v510 = vmax.f32 %v490, 0.0
    %v511 = vmax.f32 %v493, 0.0
    %v512 = vmax.f32 %v496, 0.0
    %v513 = vmax.f32 %v499, 0.0
    %v514 = vmax.f32 %v502, 0.0
    %v515 = vmax.f32 %v505, 0.0
    %v516 = vld [vmem:[%s23] sm:$0xff]
    %v517 = vld [vmem:[%s23 + $0x8] sm:$0xff]
    %v518 = vld [vmem:[%s23 + $0x10] sm:$0xff]
    %v519 = vld [vmem:[%s23 + $0x18] sm:$0xff]
    %v520 = vld [vmem:[%s23 + $0x20] sm:$0xff]
    %v521 = vld [vmem:[%s23 + $0x28] sm:$0xff]
    %v522 = vld [vmem:[%s23 + $0x30] sm:$0xff]
    %v523 = vld [vmem:[%s23 + $0x38] sm:$0xff]
    %v524 = vld [vmem:[%s25] sm:$0x1]
    %v526 = vperm.slane %v524, 0
    %v529 = vsel %vm435, %v507, 0
    %v532 = vsel %vm435, %v508, 0
    %v535 = vsel %vm435, %v509, 0
    %v538 = vsel %vm435, %v510, 0
    %v541 = vsel %vm435, %v511, 0
    %v544 = vsel %vm435, %v512, 0
    %v547 = vsel %vm435, %v513, 0
    %v550 = vsel %vm435, %v514, 0
    %v553 = vsel %vm435, %v515, 0
    %555 = vmatpush.msra.mxu0 0.0
    %556 = vmatpush.msra.mxu0 0.0
    %557 = vmatpush.msra.mxu0 0.0
    %558 = vmatpush.msra.mxu0 0.0
    %559 = vmatpush.msra.mxu0 0.0
    %560 = vmatpush.msra.mxu0 0.0
    %561 = vmatpush.msra.mxu0 0.0
    %562 = vmatpush.msra.mxu0 0.0
    %563 = vmatpush.msra.mxu0 %v523
    %564 = vmatpush.msra.mxu0 %v522
    %565 = vmatpush.msra.mxu0 %v521
    %566 = vmatpush.msra.mxu0 %v520
    %567 = vmatpush.msra.mxu0 %v519
    %568 = vmatpush.msra.mxu0 %v518
    %569 = vmatpush.msra.mxu0 %v517
    %570 = vmatpush.msra.mxu0 %v516
    %571 = vmatmul.f32.gmra.mxu0 %v529
    %v572 = vpop.f32.mrf.mxu0
    %v573 = vadd.f32 %v526, %v572
    %574 = vmatmul.f32.gmra.mxu0 %v532
    %v575 = vpop.f32.mrf.mxu0
    %v576 = vadd.f32 %v526, %v575
    %577 = vmatmul.f32.gmra.mxu0 %v535
    %v578 = vpop.f32.mrf.mxu0
    %v579 = vadd.f32 %v526, %v578
    %580 = vmatmul.f32.gmra.mxu0 %v538
    %v581 = vpop.f32.mrf.mxu0
    %v582 = vadd.f32 %v526, %v581
    %583 = vmatmul.f32.gmra.mxu0 %v541
    %v584 = vpop.f32.mrf.mxu0
    %v585 = vadd.f32 %v526, %v584
    %586 = vmatmul.f32.gmra.mxu0 %v544
    %v587 = vpop.f32.mrf.mxu0
    %v588 = vadd.f32 %v526, %v587
    %589 = vmatmul.f32.gmra.mxu0 %v547
    %v590 = vpop.f32.mrf.mxu0
    %v591 = vadd.f32 %v526, %v590
    %592 = vmatmul.f32.gmra.mxu0 %v550
    %v593 = vpop.f32.mrf.mxu0
    %v594 = vadd.f32 %v526, %v593
    %595 = vmatmul.f32.gmra.mxu0 %v553
    %v596 = vpop.f32.mrf.mxu0
    %v597 = vadd.f32 %v526, %v596
    %598 = vdwg.mxu0
    %v599 = vmax.f32 %v573, 0.0
    %v600 = vmax.f32 %v576, 0.0
    %v601 = vmax.f32 %v579, 0.0
    %v602 = vmax.f32 %v582, 0.0
    %v603 = vmax.f32 %v585, 0.0
    %v604 = vmax.f32 %v588, 0.0
    %v605 = vmax.f32 %v591, 0.0
    %v606 = vmax.f32 %v594, 0.0
    %v607 = vmax.f32 %v597, 0.0
    %v608 = vld [vmem:[%s5] sm:$0xff]
    %v609 = vld [vmem:[%s5 + $0x8] sm:$0xff]
    %v610 = vld [vmem:[%s5 + $0x10] sm:$0xff]
    %v611 = vld [vmem:[%s5 + $0x18] sm:$0xff]
    %v612 = vld [vmem:[%s5 + $0x20] sm:$0xff]
    %v613 = vld [vmem:[%s5 + $0x28] sm:$0xff]
    %v614 = vld [vmem:[%s5 + $0x30] sm:$0xff]
    %v615 = vld [vmem:[%s5 + $0x38] sm:$0xff]
    %v616 = vld [vmem:[%s5 + $0x40] sm:$0xff]
    %v617 = vld [vmem:[%s5 + $0x48] sm:$0xff]
    %v618 = vld [vmem:[%s5 + $0x50] sm:$0xff]
    %v619 = vld [vmem:[%s5 + $0x58] sm:$0xff]
    %v620 = vld [vmem:[%s5 + $0x60] sm:$0xff]
    %v621 = vld [vmem:[%s5 + $0x68] sm:$0xff]
    %v622 = vld [vmem:[%s5 + $0x70] sm:$0xff]
    %v623 = vld [vmem:[%s5 + $0x78] sm:$0xff]
    %624 = vmatpush.msra.mxu0 %v623
    %625 = vmatpush.msra.mxu0 %v622
    %626 = vmatpush.msra.mxu0 %v621
    %627 = vmatpush.msra.mxu0 %v620
    %628 = vmatpush.msra.mxu0 %v619
    %629 = vmatpush.msra.mxu0 %v618
    %630 = vmatpush.msra.mxu0 %v617
    %631 = vmatpush.msra.mxu0 %v616
    %632 = vmatpush.msra.mxu0 %v615
    %633 = vmatpush.msra.mxu0 %v614
    %634 = vmatpush.msra.mxu0 %v613
    %635 = vmatpush.msra.mxu0 %v612
    %636 = vmatpush.msra.mxu0 %v611
    %637 = vmatpush.msra.mxu0 %v610
    %638 = vmatpush.msra.mxu0 %v609
    %639 = vmatpush.msra.mxu0 %v608
    %640 = vmatmul.f32.gmra.mxu0 %v599
    %v641 = vpop.f32.mrf.mxu0
    %v642 = vadd.f32 0.0, %v641
    %643 = vmatmul.f32.gmra.mxu0 %v600
    %v644 = vpop.f32.mrf.mxu0
    %v645 = vadd.f32 0.0, %v644
    %646 = vmatmul.f32.gmra.mxu0 %v601
    %v647 = vpop.f32.mrf.mxu0
    %v648 = vadd.f32 0.0, %v647
    %649 = vmatmul.f32.gmra.mxu0 %v602
    %v650 = vpop.f32.mrf.mxu0
    %v651 = vadd.f32 0.0, %v650
    %652 = vmatmul.f32.gmra.mxu0 %v603
    %v653 = vpop.f32.mrf.mxu0
    %v654 = vadd.f32 0.0, %v653
    %655 = vmatmul.f32.gmra.mxu0 %v604
    %v656 = vpop.f32.mrf.mxu0
    %v657 = vadd.f32 0.0, %v656
    %658 = vmatmul.f32.gmra.mxu0 %v605
    %v659 = vpop.f32.mrf.mxu0
    %v660 = vadd.f32 0.0, %v659
    %661 = vmatmul.f32.gmra.mxu0 %v606
    %v662 = vpop.f32.mrf.mxu0
    %v663 = vadd.f32 0.0, %v662
    %664 = vmatmul.f32.gmra.mxu0 %v607
    %v665 = vpop.f32.mrf.mxu0
    %v666 = vadd.f32 0.0, %v665
    %667 = vdwg.mxu0
    %v668 = vld [vmem:[%s9] sm:$0xff]
    %v669 = vld [vmem:[%s9 + $0x8] sm:$0xff]
    %v670 = vld [vmem:[%s9 + $0x10] sm:$0xff]
    %v671 = vld [vmem:[%s9 + $0x18] sm:$0xff]
    %v672 = vld [vmem:[%s9 + $0x20] sm:$0x3f]
    %vm673 = vcmask 556032
    %v675 = vsel %vm673, %v668, 0
    %v678 = vsel %vm673, %v669, 0
    %v681 = vsel %vm673, %v670, 0
    %v684 = vsel %vm673, %v671, 0
    %v687 = vsel %vm673, %v672, 0
    %vm689 = vcmask 1043456
    %v691 = vsel %vm689, %v666, 0
    %693 = vmatpush.msra.mxu0 0.0
    %694 = vmatpush.msra.mxu0 0.0
    %695 = vmatpush.msra.mxu0 0.0
    %696 = vmatpush.msra.mxu0 0.0
    %697 = vmatpush.msra.mxu0 0.0
    %698 = vmatpush.msra.mxu0 0.0
    %699 = vmatpush.msra.mxu0 0.0
    %700 = vmatpush.msra.mxu0 %v691
    %701 = vmatpush.msra.mxu0 %v663
    %702 = vmatpush.msra.mxu0 %v660
    %703 = vmatpush.msra.mxu0 %v657
    %704 = vmatpush.msra.mxu0 %v654
    %705 = vmatpush.msra.mxu0 %v651
    %706 = vmatpush.msra.mxu0 %v648
    %707 = vmatpush.msra.mxu0 %v645
    %708 = vmatpush.msra.mxu0 %v642
    %709 = vmatmul.f32.gmra.mxu0 %v675
    %v710 = vpop.f32.mrf.mxu0
    %v711 = vadd.f32 0.0, %v710
    %712 = vmatmul.f32.gmra.mxu0 %v678
    %v713 = vpop.f32.mrf.mxu0
    %v714 = vadd.f32 0.0, %v713
    %715 = vmatmul.f32.gmra.mxu0 %v681
    %v716 = vpop.f32.mrf.mxu0
    %v717 = vadd.f32 0.0, %v716
    %718 = vmatmul.f32.gmra.mxu0 %v684
    %v719 = vpop.f32.mrf.mxu0
    %v720 = vadd.f32 0.0, %v719
    %721 = vmatmul.f32.gmra.mxu0 %v687
    %v722 = vpop.f32.mrf.mxu0
    %v723 = vadd.f32 0.0, %v722
    %724 = vdwg.mxu0
    %v725 = vld [vmem:[%s27] sm:$0xff]
    %v726 = vld [vmem:[%s27 + $0x8] sm:$0xff]
    %v727 = vld [vmem:[%s27 + $0x10] sm:$0xff]
    %v728 = vld [vmem:[%s27 + $0x18] sm:$0xff]
    %v729 = vld [vmem:[%s27 + $0x20] sm:$0xff]
    %v730 = vld [vmem:[%s27 + $0x28] sm:$0xff]
    %v731 = vld [vmem:[%s27 + $0x30] sm:$0xff]
    %v732 = vld [vmem:[%s27 + $0x38] sm:$0xff]
    %v733 = vld [vmem:[%s27 + $0x40] sm:$0xff]
    %v734 = vld [vmem:[%s27 + $0x48] sm:$0xff]
    %v735 = vld [vmem:[%s27 + $0x50] sm:$0xff]
    %v736 = vld [vmem:[%s27 + $0x58] sm:$0xff]
    %v737 = vld [vmem:[%s27 + $0x60] sm:$0xff]
    %v738 = vld [vmem:[%s27 + $0x68] sm:$0xff]
    %v739 = vld [vmem:[%s27 + $0x70] sm:$0xff]
    %v740 = vld [vmem:[%s27 + $0x78] sm:$0xff]
    %v741 = vld [vmem:[%s29] sm:$0x1]
    %v743 = vperm.slane %v741, 0
    %745 = vmatpush.msra.mxu0 %v740
    %746 = vmatpush.msra.mxu0 %v739
    %747 = vmatpush.msra.mxu0 %v738
    %748 = vmatpush.msra.mxu0 %v737
    %749 = vmatpush.msra.mxu0 %v736
    %750 = vmatpush.msra.mxu0 %v735
    %751 = vmatpush.msra.mxu0 %v734
    %752 = vmatpush.msra.mxu0 %v733
    %753 = vmatpush.msra.mxu0 %v732
    %754 = vmatpush.msra.mxu0 %v731
    %755 = vmatpush.msra.mxu0 %v730
    %756 = vmatpush.msra.mxu0 %v729
    %757 = vmatpush.msra.mxu0 %v728
    %758 = vmatpush.msra.mxu0 %v727
    %759 = vmatpush.msra.mxu0 %v726
    %760 = vmatpush.msra.mxu0 %v725
    %761 = vmatmul.f32.gmra.mxu0 %v711
    %v762 = vpop.f32.mrf.mxu0
    %v763 = vadd.f32 %v743, %v762
    %764 = vmatmul.f32.gmra.mxu0 %v714
    %v765 = vpop.f32.mrf.mxu0
    %v766 = vadd.f32 %v743, %v765
    %767 = vmatmul.f32.gmra.mxu0 %v717
    %v768 = vpop.f32.mrf.mxu0
    %v769 = vadd.f32 %v743, %v768
    %770 = vmatmul.f32.gmra.mxu0 %v720
    %v771 = vpop.f32.mrf.mxu0
    %v772 = vadd.f32 %v743, %v771
    %773 = vmatmul.f32.gmra.mxu0 %v723
    %v774 = vpop.f32.mrf.mxu0
    %v775 = vadd.f32 %v743, %v774
    %776 = vdwg.mxu0
    %v777 = vmax.f32 %v763, 0.0
    %v778 = vmax.f32 %v766, 0.0
    %v779 = vmax.f32 %v769, 0.0
    %v780 = vmax.f32 %v772, 0.0
    %v781 = vmax.f32 %v775, 0.0
    %v782 = vld [vmem:[%s31] sm:$0xff]
    %v783 = vld [vmem:[%s31 + $0x8] sm:$0xff]
    %v784 = vld [vmem:[%s31 + $0x10] sm:$0xff]
    %v785 = vld [vmem:[%s31 + $0x18] sm:$0xff]
    %v786 = vld [vmem:[%s31 + $0x20] sm:$0xff]
    %v787 = vld [vmem:[%s31 + $0x28] sm:$0xff]
    %v788 = vld [vmem:[%s31 + $0x30] sm:$0xff]
    %v789 = vld [vmem:[%s31 + $0x38] sm:$0xff]
    %v790 = vld [vmem:[%s31 + $0x40] sm:$0xff]
    %v791 = vld [vmem:[%s31 + $0x48] sm:$0xff]
    %v792 = vld [vmem:[%s31 + $0x50] sm:$0xff]
    %v793 = vld [vmem:[%s31 + $0x58] sm:$0xff]
    %v794 = vld [vmem:[%s31 + $0x60] sm:$0xff]
    %v795 = vld [vmem:[%s31 + $0x68] sm:$0xff]
    %v796 = vld [vmem:[%s31 + $0x70] sm:$0xff]
    %v797 = vld [vmem:[%s31 + $0x78] sm:$0xff]
    %v798 = vld [vmem:[%s33] sm:$0x1]
    %v800 = vperm.slane %v798, 0
    %802 = vmatpush.msra.mxu0 %v797
    %803 = vmatpush.msra.mxu0 %v796
    %804 = vmatpush.msra.mxu0 %v795
    %805 = vmatpush.msra.mxu0 %v794
    %806 = vmatpush.msra.mxu0 %v793
    %807 = vmatpush.msra.mxu0 %v792
    %808 = vmatpush.msra.mxu0 %v791
    %809 = vmatpush.msra.mxu0 %v790
    %810 = vmatpush.msra.mxu0 %v789
    %811 = vmatpush.msra.mxu0 %v788
    %812 = vmatpush.msra.mxu0 %v787
    %813 = vmatpush.msra.mxu0 %v786
    %814 = vmatpush.msra.mxu0 %v785
    %815 = vmatpush.msra.mxu0 %v784
    %816 = vmatpush.msra.mxu0 %v783
    %817 = vmatpush.msra.mxu0 %v782
    %818 = vmatmul.f32.gmra.mxu0 %v777
    %v819 = vpop.f32.mrf.mxu0
    %v820 = vadd.f32 %v800, %v819
    %821 = vmatmul.f32.gmra.mxu0 %v778
    %v822 = vpop.f32.mrf.mxu0
    %v823 = vadd.f32 %v800, %v822
    %824 = vmatmul.f32.gmra.mxu0 %v779
    %v825 = vpop.f32.mrf.mxu0
    %v826 = vadd.f32 %v800, %v825
    %827 = vmatmul.f32.gmra.mxu0 %v780
    %v828 = vpop.f32.mrf.mxu0
    %v829 = vadd.f32 %v800, %v828
    %830 = vmatmul.f32.gmra.mxu0 %v781
    %v831 = vpop.f32.mrf.mxu0
    %v832 = vadd.f32 %v800, %v831
    %833 = vdwg.mxu0
    %v834 = vmax.f32 %v820, 0.0
    %v835 = vmax.f32 %v823, 0.0
    %v836 = vmax.f32 %v826, 0.0
    %v837 = vmax.f32 %v829, 0.0
    %v838 = vmax.f32 %v832, 0.0
    %v839 = vld [vmem:[%s35] sm:$0xff]
    %v840 = vld [vmem:[%s35 + $0x8] sm:$0xff]
    %v841 = vld [vmem:[%s35 + $0x10] sm:$0xff]
    %v842 = vld [vmem:[%s35 + $0x18] sm:$0xff]
    %v843 = vld [vmem:[%s35 + $0x20] sm:$0xff]
    %v844 = vld [vmem:[%s35 + $0x28] sm:$0xff]
    %v845 = vld [vmem:[%s35 + $0x30] sm:$0xff]
    %v846 = vld [vmem:[%s35 + $0x38] sm:$0xff]
    %v847 = vld [vmem:[%s35 + $0x40] sm:$0xff]
    %v848 = vld [vmem:[%s35 + $0x48] sm:$0xff]
    %v849 = vld [vmem:[%s35 + $0x50] sm:$0xff]
    %v850 = vld [vmem:[%s35 + $0x58] sm:$0xff]
    %v851 = vld [vmem:[%s35 + $0x60] sm:$0xff]
    %v852 = vld [vmem:[%s35 + $0x68] sm:$0xff]
    %v853 = vld [vmem:[%s35 + $0x70] sm:$0xff]
    %v854 = vld [vmem:[%s35 + $0x78] sm:$0xff]
    %v855 = vpack.c.bf16 %v835, %v834
    %v856 = vpack.c.bf16 %v837, %v836
    %v857 = vpack.c.bf16 %v838, %v838
    %v858 = vld [vmem:[%s37] sm:$0x3]
    %v860 = vperm.slane %v858, 0
    %v861 = vperm.slane %v858, 1
    %v880 = vunpack.c.l.b16 %v839
    %v881 = vunpack.c.h.b16 %v839
    %v882 = vunpack.c.l.b16 %v840
    %v883 = vunpack.c.h.b16 %v840
    %v884 = vunpack.c.l.b16 %v841
    %v885 = vunpack.c.h.b16 %v841
    %v886 = vunpack.c.l.b16 %v842
    %v887 = vunpack.c.h.b16 %v842
    %v888 = vunpack.c.l.b16 %v843
    %v889 = vunpack.c.h.b16 %v843
    %v890 = vunpack.c.l.b16 %v844
    %v891 = vunpack.c.h.b16 %v844
    %v892 = vunpack.c.l.b16 %v845
    %v893 = vunpack.c.h.b16 %v845
    %v894 = vunpack.c.l.b16 %v846
    %v895 = vunpack.c.h.b16 %v846
    %v896 = vunpack.c.l.b16 %v847
    %v897 = vunpack.c.h.b16 %v847
    %v898 = vunpack.c.l.b16 %v848
    %v899 = vunpack.c.h.b16 %v848
    %v900 = vunpack.c.l.b16 %v849
    %v901 = vunpack.c.h.b16 %v849
    %v902 = vunpack.c.l.b16 %v850
    %v903 = vunpack.c.h.b16 %v850
    %v904 = vunpack.c.l.b16 %v851
    %v905 = vunpack.c.h.b16 %v851
    %v906 = vunpack.c.l.b16 %v852
    %v907 = vunpack.c.h.b16 %v852
    %v908 = vunpack.c.l.b16 %v853
    %v909 = vunpack.c.h.b16 %v853
    %v910 = vunpack.c.l.b16 %v854
    %v911 = vunpack.c.h.b16 %v854
    %v912 = vpack.c.b16 %v882, %v880
    %v913 = vpack.c.b16 %v883, %v881
    %v914 = vpack.c.b16 %v886, %v884
    %v915 = vpack.c.b16 %v887, %v885
    %v916 = vpack.c.b16 %v890, %v888
    %v917 = vpack.c.b16 %v891, %v889
    %v918 = vpack.c.b16 %v894, %v892
    %v919 = vpack.c.b16 %v895, %v893
    %v920 = vpack.c.b16 %v898, %v896
    %v921 = vpack.c.b16 %v899, %v897
    %v922 = vpack.c.b16 %v902, %v900
    %v923 = vpack.c.b16 %v903, %v901
    %v924 = vpack.c.b16 %v906, %v904
    %v925 = vpack.c.b16 %v907, %v905
    %v926 = vpack.c.b16 %v910, %v908
    %v927 = vpack.c.b16 %v911, %v909
    %944 = vmatpush.bf16.msra.mxu0 %v926
    %945 = vmatpush.bf16.msra.mxu0 %v924
    %946 = vmatpush.bf16.msra.mxu0 %v922
    %947 = vmatpush.bf16.msra.mxu0 %v920
    %948 = vmatpush.bf16.msra.mxu0 %v918
    %949 = vmatpush.bf16.msra.mxu0 %v916
    %950 = vmatpush.bf16.msra.mxu0 %v914
    %951 = vmatpush.bf16.msra.mxu0 %v912
    %952 = vmatmul.bf16.gmra.mxu0 %v855
    %v953 = vpop.f32.mrf.mxu0
    %v954 = vadd.f32 %v860, %v953
    %v955 = vpop.f32.mrf.mxu0
    %v956 = vadd.f32 %v860, %v955
    %957 = vmatmul.bf16.gmra.mxu0 %v856
    %v958 = vpop.f32.mrf.mxu0
    %v959 = vadd.f32 %v860, %v958
    %v960 = vpop.f32.mrf.mxu0
    %v961 = vadd.f32 %v860, %v960
    %962 = vmatmul.bf16.gmra.mxu0 %v857
    %v963 = vpop.f32.mrf.mxu0
    %v964 = vadd.f32 %v860, %v963
    %v965 = vpop.f32.mrf.mxu0
    %966 = vdwg.mxu0
    %967 = vmatpush.bf16.msra.mxu0 %v927
    %968 = vmatpush.bf16.msra.mxu0 %v925
    %969 = vmatpush.bf16.msra.mxu0 %v923
    %970 = vmatpush.bf16.msra.mxu0 %v921
    %971 = vmatpush.bf16.msra.mxu0 %v919
    %972 = vmatpush.bf16.msra.mxu0 %v917
    %973 = vmatpush.bf16.msra.mxu0 %v915
    %974 = vmatpush.bf16.msra.mxu0 %v913
    %975 = vmatmul.bf16.gmra.mxu0 %v855
    %v976 = vpop.f32.mrf.mxu0
    %v977 = vadd.f32 %v861, %v976
    %v978 = vpop.f32.mrf.mxu0
    %v979 = vadd.f32 %v861, %v978
    %980 = vmatmul.bf16.gmra.mxu0 %v856
    %v981 = vpop.f32.mrf.mxu0
    %v982 = vadd.f32 %v861, %v981
    %v983 = vpop.f32.mrf.mxu0
    %v984 = vadd.f32 %v861, %v983
    %985 = vmatmul.bf16.gmra.mxu0 %v857
    %v986 = vpop.f32.mrf.mxu0
    %v987 = vadd.f32 %v861, %v986
    %v988 = vpop.f32.mrf.mxu0
    %989 = vdwg.mxu0
    %v990 = vmax.f32 %v954, 0.0
    %v991 = vmax.f32 %v977, 0.0
    %v992 = vmax.f32 %v956, 0.0
    %v993 = vmax.f32 %v979, 0.0
    %v994 = vmax.f32 %v959, 0.0
    %v995 = vmax.f32 %v982, 0.0
    %v996 = vmax.f32 %v961, 0.0
    %v997 = vmax.f32 %v984, 0.0
    %v998 = vmax.f32 %v964, 0.0
    %v999 = vmax.f32 %v987, 0.0
    %v1000 = vld [vmem:[%s11] sm:$0xff]
    %v1001 = vld [vmem:[%s11 + $0x8] sm:$0xff]
    %v1002 = vld [vmem:[%s11 + $0x10] sm:$0x3f]
    %vm1003 = vcmask 310272
    %v1005 = vsel %vm1003, %v1000, 0
    %v1008 = vsel %vm1003, %v1001, 0
    %v1011 = vsel %vm1003, %v1002, 0
    %vm1013 = vcmask 1045504
    %v1015 = vsel %vm1013, %v998, 0
    %v1018 = vsel %vm1013, %v999, 0
    %1020 = vmatpush.msra.mxu0 0.0
    %1021 = vmatpush.msra.mxu0 0.0
    %1022 = vmatpush.msra.mxu0 0.0
    %1023 = vmatpush.msra.mxu0 0.0
    %1024 = vmatpush.msra.mxu0 0.0
    %1025 = vmatpush.msra.mxu0 0.0
    %1026 = vmatpush.msra.mxu0 0.0
    %1027 = vmatpush.msra.mxu0 0.0
    %1028 = vmatpush.msra.mxu0 0.0
    %1029 = vmatpush.msra.mxu0 0.0
    %1030 = vmatpush.msra.mxu0 0.0
    %1031 = vmatpush.msra.mxu0 %v1015
    %1032 = vmatpush.msra.mxu0 %v996
    %1033 = vmatpush.msra.mxu0 %v994
    %1034 = vmatpush.msra.mxu0 %v992
    %1035 = vmatpush.msra.mxu0 %v990
    %1036 = vmatmul.f32.gmra.mxu0 %v1005
    %v1037 = vpop.f32.mrf.mxu0
    %v1038 = vadd.f32 0.0, %v1037
    %1039 = vmatmul.f32.gmra.mxu0 %v1008
    %v1040 = vpop.f32.mrf.mxu0
    %v1041 = vadd.f32 0.0, %v1040
    %1042 = vmatmul.f32.gmra.mxu0 %v1011
    %v1043 = vpop.f32.mrf.mxu0
    %v1044 = vadd.f32 0.0, %v1043
    %1045 = vdwg.mxu0
    %1046 = vmatpush.msra.mxu0 0.0
    %1047 = vmatpush.msra.mxu0 0.0
    %1048 = vmatpush.msra.mxu0 0.0
    %1049 = vmatpush.msra.mxu0 0.0
    %1050 = vmatpush.msra.mxu0 0.0
    %1051 = vmatpush.msra.mxu0 0.0
    %1052 = vmatpush.msra.mxu0 0.0
    %1053 = vmatpush.msra.mxu0 0.0
    %1054 = vmatpush.msra.mxu0 0.0
    %1055 = vmatpush.msra.mxu0 0.0
    %1056 = vmatpush.msra.mxu0 0.0
    %1057 = vmatpush.msra.mxu0 %v1018
    %1058 = vmatpush.msra.mxu0 %v997
    %1059 = vmatpush.msra.mxu0 %v995
    %1060 = vmatpush.msra.mxu0 %v993
    %1061 = vmatpush.msra.mxu0 %v991
    %1062 = vmatmul.f32.gmra.mxu0 %v1005
    %v1063 = vpop.f32.mrf.mxu0
    %v1064 = vadd.f32 0.0, %v1063
    %1065 = vmatmul.f32.gmra.mxu0 %v1008
    %v1066 = vpop.f32.mrf.mxu0
    %v1067 = vadd.f32 0.0, %v1066
    %1068 = vmatmul.f32.gmra.mxu0 %v1011
    %v1069 = vpop.f32.mrf.mxu0
    %v1070 = vadd.f32 0.0, %v1069
    %1071 = vdwg.mxu0
    %v1072 = vld [vmem:[%s39] sm:$0xff]
    %v1073 = vld [vmem:[%s39 + $0x8] sm:$0xff]
    %v1074 = vld [vmem:[%s39 + $0x10] sm:$0xff]
    %v1075 = vld [vmem:[%s39 + $0x18] sm:$0xff]
    %v1076 = vld [vmem:[%s39 + $0x20] sm:$0xff]
    %v1077 = vld [vmem:[%s39 + $0x28] sm:$0xff]
    %v1078 = vld [vmem:[%s39 + $0x30] sm:$0xff]
    %v1079 = vld [vmem:[%s39 + $0x38] sm:$0xff]
    %v1080 = vld [vmem:[%s39 + $0x40] sm:$0xff]
    %v1081 = vld [vmem:[%s39 + $0x48] sm:$0xff]
    %v1082 = vld [vmem:[%s39 + $0x50] sm:$0xff]
    %v1083 = vld [vmem:[%s39 + $0x58] sm:$0xff]
    %v1084 = vld [vmem:[%s39 + $0x60] sm:$0xff]
    %v1085 = vld [vmem:[%s39 + $0x68] sm:$0xff]
    %v1086 = vld [vmem:[%s39 + $0x70] sm:$0xff]
    %v1087 = vld [vmem:[%s39 + $0x78] sm:$0xff]
    %v1088 = vld [vmem:[%s39 + $0x80] sm:$0xff]
    %v1089 = vld [vmem:[%s39 + $0x88] sm:$0xff]
    %v1090 = vld [vmem:[%s39 + $0x90] sm:$0xff]
    %v1091 = vld [vmem:[%s39 + $0x98] sm:$0xff]
    %v1092 = vld [vmem:[%s39 + $0xa0] sm:$0xff]
    %v1093 = vld [vmem:[%s39 + $0xa8] sm:$0xff]
    %v1094 = vld [vmem:[%s39 + $0xb0] sm:$0xff]
    %v1095 = vld [vmem:[%s39 + $0xb8] sm:$0xff]
    %v1096 = vld [vmem:[%s39 + $0xc0] sm:$0xff]
    %v1097 = vld [vmem:[%s39 + $0xc8] sm:$0xff]
    %v1098 = vld [vmem:[%s39 + $0xd0] sm:$0xff]
    %v1099 = vld [vmem:[%s39 + $0xd8] sm:$0xff]
    %v1100 = vld [vmem:[%s39 + $0xe0] sm:$0xff]
    %v1101 = vld [vmem:[%s39 + $0xe8] sm:$0xff]
    %v1102 = vld [vmem:[%s39 + $0xf0] sm:$0xff]
    %v1103 = vld [vmem:[%s39 + $0xf8] sm:$0xff]
    %v1104 = vpack.c.bf16 %v1041, %v1038
    %v1105 = vpack.c.bf16 %v1067, %v1064
    %v1106 = vpack.c.bf16 %v1044, %v1044
    %v1107 = vpack.c.bf16 %v1070, %v1070
    %v1108 = vld [vmem:[%s41] sm:$0x3]
    %v1110 = vperm.slane %v1108, 0
    %v1111 = vperm.slane %v1108, 1
    %v1146 = vunpack.c.l.b16 %v1072
    %v1147 = vunpack.c.h.b16 %v1072
    %v1148 = vunpack.c.l.b16 %v1073
    %v1149 = vunpack.c.h.b16 %v1073
    %v1150 = vunpack.c.l.b16 %v1074
    %v1151 = vunpack.c.h.b16 %v1074
    %v1152 = vunpack.c.l.b16 %v1075
    %v1153 = vunpack.c.h.b16 %v1075
    %v1154 = vunpack.c.l.b16 %v1076
    %v1155 = vunpack.c.h.b16 %v1076
    %v1156 = vunpack.c.l.b16 %v1077
    %v1157 = vunpack.c.h.b16 %v1077
    %v1158 = vunpack.c.l.b16 %v1078
    %v1159 = vunpack.c.h.b16 %v1078
    %v1160 = vunpack.c.l.b16 %v1079
    %v1161 = vunpack.c.h.b16 %v1079
    %v1162 = vunpack.c.l.b16 %v1080
    %v1163 = vunpack.c.h.b16 %v1080
    %v1164 = vunpack.c.l.b16 %v1081
    %v1165 = vunpack.c.h.b16 %v1081
    %v1166 = vunpack.c.l.b16 %v1082
    %v1167 = vunpack.c.h.b16 %v1082
    %v1168 = vunpack.c.l.b16 %v1083
    %v1169 = vunpack.c.h.b16 %v1083
    %v1170 = vunpack.c.l.b16 %v1084
    %v1171 = vunpack.c.h.b16 %v1084
    %v1172 = vunpack.c.l.b16 %v1085
    %v1173 = vunpack.c.h.b16 %v1085
    %v1174 = vunpack.c.l.b16 %v1086
    %v1175 = vunpack.c.h.b16 %v1086
    %v1176 = vunpack.c.l.b16 %v1087
    %v1177 = vunpack.c.h.b16 %v1087
    %v1178 = vunpack.c.l.b16 %v1088
    %v1179 = vunpack.c.h.b16 %v1088
    %v1180 = vunpack.c.l.b16 %v1089
    %v1181 = vunpack.c.h.b16 %v1089
    %v1182 = vunpack.c.l.b16 %v1090
    %v1183 = vunpack.c.h.b16 %v1090
    %v1184 = vunpack.c.l.b16 %v1091
    %v1185 = vunpack.c.h.b16 %v1091
    %v1186 = vunpack.c.l.b16 %v1092
    %v1187 = vunpack.c.h.b16 %v1092
    %v1188 = vunpack.c.l.b16 %v1093
    %v1189 = vunpack.c.h.b16 %v1093
    %v1190 = vunpack.c.l.b16 %v1094
    %v1191 = vunpack.c.h.b16 %v1094
    %v1192 = vunpack.c.l.b16 %v1095
    %v1193 = vunpack.c.h.b16 %v1095
    %v1194 = vunpack.c.l.b16 %v1096
    %v1195 = vunpack.c.h.b16 %v1096
    %v1196 = vunpack.c.l.b16 %v1097
    %v1197 = vunpack.c.h.b16 %v1097
    %v1198 = vunpack.c.l.b16 %v1098
    %v1199 = vunpack.c.h.b16 %v1098
    %v1200 = vunpack.c.l.b16 %v1099
    %v1201 = vunpack.c.h.b16 %v1099
    %v1202 = vunpack.c.l.b16 %v1100
    %v1203 = vunpack.c.h.b16 %v1100
    %v1204 = vunpack.c.l.b16 %v1101
    %v1205 = vunpack.c.h.b16 %v1101
    %v1206 = vunpack.c.l.b16 %v1102
    %v1207 = vunpack.c.h.b16 %v1102
    %v1208 = vunpack.c.l.b16 %v1103
    %v1209 = vunpack.c.h.b16 %v1103
    %v1210 = vpack.c.b16 %v1148, %v1146
    %v1211 = vpack.c.b16 %v1149, %v1147
    %v1212 = vpack.c.b16 %v1152, %v1150
    %v1213 = vpack.c.b16 %v1153, %v1151
    %v1214 = vpack.c.b16 %v1156, %v1154
    %v1215 = vpack.c.b16 %v1157, %v1155
    %v1216 = vpack.c.b16 %v1160, %v1158
    %v1217 = vpack.c.b16 %v1161, %v1159
    %v1218 = vpack.c.b16 %v1164, %v1162
    %v1219 = vpack.c.b16 %v1165, %v1163
    %v1220 = vpack.c.b16 %v1168, %v1166
    %v1221 = vpack.c.b16 %v1169, %v1167
    %v1222 = vpack.c.b16 %v1172, %v1170
    %v1223 = vpack.c.b16 %v1173, %v1171
    %v1224 = vpack.c.b16 %v1176, %v1174
    %v1225 = vpack.c.b16 %v1177, %v1175
    %v1226 = vpack.c.b16 %v1180, %v1178
    %v1227 = vpack.c.b16 %v1181, %v1179
    %v1228 = vpack.c.b16 %v1184, %v1182
    %v1229 = vpack.c.b16 %v1185, %v1183
    %v1230 = vpack.c.b16 %v1188, %v1186
    %v1231 = vpack.c.b16 %v1189, %v1187
    %v1232 = vpack.c.b16 %v1192, %v1190
    %v1233 = vpack.c.b16 %v1193, %v1191
    %v1234 = vpack.c.b16 %v1196, %v1194
    %v1235 = vpack.c.b16 %v1197, %v1195
    %v1236 = vpack.c.b16 %v1200, %v1198
    %v1237 = vpack.c.b16 %v1201, %v1199
    %v1238 = vpack.c.b16 %v1204, %v1202
    %v1239 = vpack.c.b16 %v1205, %v1203
    %v1240 = vpack.c.b16 %v1208, %v1206
    %v1241 = vpack.c.b16 %v1209, %v1207
    %1274 = vmatpush.bf16.msra.mxu0 %v1224
    %1275 = vmatpush.bf16.msra.mxu0 %v1222
    %1276 = vmatpush.bf16.msra.mxu0 %v1220
    %1277 = vmatpush.bf16.msra.mxu0 %v1218
    %1278 = vmatpush.bf16.msra.mxu0 %v1216
    %1279 = vmatpush.bf16.msra.mxu0 %v1214
    %1280 = vmatpush.bf16.msra.mxu0 %v1212
    %1281 = vmatpush.bf16.msra.mxu0 %v1210
    %1282 = vmatmul.bf16.gmra.mxu0 %v1104
    %v1283 = vpop.f32.mrf.mxu0
    %v1284 = vadd.f32 %v1110, %v1283
    %v1285 = vpop.f32.mrf.mxu0
    %v1286 = vadd.f32 %v1110, %v1285
    %1287 = vmatmul.bf16.gmra.mxu0 %v1106
    %v1288 = vpop.f32.mrf.mxu0
    %v1289 = vadd.f32 %v1110, %v1288
    %v1290 = vpop.f32.mrf.mxu0
    %1291 = vdwg.mxu0
    %1292 = vmatpush.bf16.msra.mxu0 %v1240
    %1293 = vmatpush.bf16.msra.mxu0 %v1238
    %1294 = vmatpush.bf16.msra.mxu0 %v1236
    %1295 = vmatpush.bf16.msra.mxu0 %v1234
    %1296 = vmatpush.bf16.msra.mxu0 %v1232
    %1297 = vmatpush.bf16.msra.mxu0 %v1230
    %1298 = vmatpush.bf16.msra.mxu0 %v1228
    %1299 = vmatpush.bf16.msra.mxu0 %v1226
    %1300 = vmatmul.bf16.gmra.mxu0 %v1105
    %v1301 = vpop.f32.mrf.mxu0
    %v1302 = vadd.f32 %v1284, %v1301
    %v1303 = vpop.f32.mrf.mxu0
    %v1304 = vadd.f32 %v1286, %v1303
    %1305 = vmatmul.bf16.gmra.mxu0 %v1107
    %v1306 = vpop.f32.mrf.mxu0
    %v1307 = vadd.f32 %v1289, %v1306
    %v1308 = vpop.f32.mrf.mxu0
    %1309 = vdwg.mxu0
    %1310 = vmatpush.bf16.msra.mxu0 %v1225
    %1311 = vmatpush.bf16.msra.mxu0 %v1223
    %1312 = vmatpush.bf16.msra.mxu0 %v1221
    %1313 = vmatpush.bf16.msra.mxu0 %v1219
    %1314 = vmatpush.bf16.msra.mxu0 %v1217
    %1315 = vmatpush.bf16.msra.mxu0 %v1215
    %1316 = vmatpush.bf16.msra.mxu0 %v1213
    %1317 = vmatpush.bf16.msra.mxu0 %v1211
    %1318 = vmatmul.bf16.gmra.mxu0 %v1104
    %v1319 = vpop.f32.mrf.mxu0
    %v1320 = vadd.f32 %v1111, %v1319
    %v1321 = vpop.f32.mrf.mxu0
    %v1322 = vadd.f32 %v1111, %v1321
    %1323 = vmatmul.bf16.gmra.mxu0 %v1106
    %v1324 = vpop.f32.mrf.mxu0
    %v1325 = vadd.f32 %v1111, %v1324
    %v1326 = vpop.f32.mrf.mxu0
    %1327 = vdwg.mxu0
    %1328 = vmatpush.bf16.msra.mxu0 %v1241
    %1329 = vmatpush.bf16.msra.mxu0 %v1239
    %1330 = vmatpush.bf16.msra.mxu0 %v1237
    %1331 = vmatpush.bf16.msra.mxu0 %v1235
    %1332 = vmatpush.bf16.msra.mxu0 %v1233
    %1333 = vmatpush.bf16.msra.mxu0 %v1231
    %1334 = vmatpush.bf16.msra.mxu0 %v1229
    %1335 = vmatpush.bf16.msra.mxu0 %v1227
    %1336 = vmatmul.bf16.gmra.mxu0 %v1105
    %v1337 = vpop.f32.mrf.mxu0
    %v1338 = vadd.f32 %v1320, %v1337
    %v1339 = vpop.f32.mrf.mxu0
    %v1340 = vadd.f32 %v1322, %v1339
    %1341 = vmatmul.bf16.gmra.mxu0 %v1107
    %v1342 = vpop.f32.mrf.mxu0
    %v1343 = vadd.f32 %v1325, %v1342
    %v1344 = vpop.f32.mrf.mxu0
    %1345 = vdwg.mxu0
    %v1346 = vmax.f32 %v1302, 0.0
    %v1347 = vmax.f32 %v1338, 0.0
    %v1348 = vmax.f32 %v1304, 0.0
    %v1349 = vmax.f32 %v1340, 0.0
    %v1350 = vmax.f32 %v1307, 0.0
    %v1351 = vmax.f32 %v1343, 0.0
    %v1352 = vld [vmem:[%s43] sm:$0xff]
    %v1353 = vld [vmem:[%s43 + $0x8] sm:$0xff]
    %v1354 = vld [vmem:[%s43 + $0x10] sm:$0xff]
    %v1355 = vld [vmem:[%s43 + $0x18] sm:$0xff]
    %v1356 = vld [vmem:[%s43 + $0x20] sm:$0xff]
    %v1357 = vld [vmem:[%s43 + $0x28] sm:$0xff]
    %v1358 = vld [vmem:[%s43 + $0x30] sm:$0xff]
    %v1359 = vld [vmem:[%s43 + $0x38] sm:$0xff]
    %v1360 = vld [vmem:[%s43 + $0x40] sm:$0xff]
    %v1361 = vld [vmem:[%s43 + $0x48] sm:$0xff]
    %v1362 = vld [vmem:[%s43 + $0x50] sm:$0xff]
    %v1363 = vld [vmem:[%s43 + $0x58] sm:$0xff]
    %v1364 = vld [vmem:[%s43 + $0x60] sm:$0xff]
    %v1365 = vld [vmem:[%s43 + $0x68] sm:$0xff]
    %v1366 = vld [vmem:[%s43 + $0x70] sm:$0xff]
    %v1367 = vld [vmem:[%s43 + $0x78] sm:$0xff]
    %v1368 = vld [vmem:[%s43 + $0x80] sm:$0xff]
    %v1369 = vld [vmem:[%s43 + $0x88] sm:$0xff]
    %v1370 = vld [vmem:[%s43 + $0x90] sm:$0xff]
    %v1371 = vld [vmem:[%s43 + $0x98] sm:$0xff]
    %v1372 = vld [vmem:[%s43 + $0xa0] sm:$0xff]
    %v1373 = vld [vmem:[%s43 + $0xa8] sm:$0xff]
    %v1374 = vld [vmem:[%s43 + $0xb0] sm:$0xff]
    %v1375 = vld [vmem:[%s43 + $0xb8] sm:$0xff]
    %v1376 = vld [vmem:[%s43 + $0xc0] sm:$0xff]
    %v1377 = vld [vmem:[%s43 + $0xc8] sm:$0xff]
    %v1378 = vld [vmem:[%s43 + $0xd0] sm:$0xff]
    %v1379 = vld [vmem:[%s43 + $0xd8] sm:$0xff]
    %v1380 = vld [vmem:[%s43 + $0xe0] sm:$0xff]
    %v1381 = vld [vmem:[%s43 + $0xe8] sm:$0xff]
    %v1382 = vld [vmem:[%s43 + $0xf0] sm:$0xff]
    %v1383 = vld [vmem:[%s43 + $0xf8] sm:$0xff]
    %v1384 = vld [vmem:[%s43 + $0x100] sm:$0xff]
    %v1385 = vld [vmem:[%s43 + $0x108] sm:$0xff]
    %v1386 = vld [vmem:[%s43 + $0x110] sm:$0xff]
    %v1387 = vld [vmem:[%s43 + $0x118] sm:$0xff]
    %v1388 = vld [vmem:[%s43 + $0x120] sm:$0xff]
    %v1389 = vld [vmem:[%s43 + $0x128] sm:$0xff]
    %v1390 = vld [vmem:[%s43 + $0x130] sm:$0xff]
    %v1391 = vld [vmem:[%s43 + $0x138] sm:$0xff]
    %v1392 = vld [vmem:[%s43 + $0x140] sm:$0xff]
    %v1393 = vld [vmem:[%s43 + $0x148] sm:$0xff]
    %v1394 = vld [vmem:[%s43 + $0x150] sm:$0xff]
    %v1395 = vld [vmem:[%s43 + $0x158] sm:$0xff]
    %v1396 = vld [vmem:[%s43 + $0x160] sm:$0xff]
    %v1397 = vld [vmem:[%s43 + $0x168] sm:$0xff]
    %v1398 = vld [vmem:[%s43 + $0x170] sm:$0xff]
    %v1399 = vld [vmem:[%s43 + $0x178] sm:$0xff]
    %v1400 = vld [vmem:[%s43 + $0x180] sm:$0xff]
    %v1401 = vld [vmem:[%s43 + $0x188] sm:$0xff]
    %v1402 = vld [vmem:[%s43 + $0x190] sm:$0xff]
    %v1403 = vld [vmem:[%s43 + $0x198] sm:$0xff]
    %v1404 = vld [vmem:[%s43 + $0x1a0] sm:$0xff]
    %v1405 = vld [vmem:[%s43 + $0x1a8] sm:$0xff]
    %v1406 = vld [vmem:[%s43 + $0x1b0] sm:$0xff]
    %v1407 = vld [vmem:[%s43 + $0x1b8] sm:$0xff]
    %v1408 = vld [vmem:[%s43 + $0x1c0] sm:$0xff]
    %v1409 = vld [vmem:[%s43 + $0x1c8] sm:$0xff]
    %v1410 = vld [vmem:[%s43 + $0x1d0] sm:$0xff]
    %v1411 = vld [vmem:[%s43 + $0x1d8] sm:$0xff]
    %v1412 = vld [vmem:[%s43 + $0x1e0] sm:$0xff]
    %v1413 = vld [vmem:[%s43 + $0x1e8] sm:$0xff]
    %v1414 = vld [vmem:[%s43 + $0x1f0] sm:$0xff]
    %v1415 = vld [vmem:[%s43 + $0x1f8] sm:$0xff]
    %v1416 = vpack.c.bf16 %v1348, %v1346
    %v1417 = vpack.c.bf16 %v1349, %v1347
    %v1418 = vpack.c.bf16 %v1350, %v1350
    %v1419 = vpack.c.bf16 %v1351, %v1351
    %v1420 = vld [vmem:[%s45] sm:$0xf]
    %v1422 = vperm.slane %v1420, 0
    %v1423 = vperm.slane %v1420, 1
    %v1424 = vperm.slane %v1420, 2
    %v1425 = vperm.slane %v1420, 3
    %v1494 = vunpack.c.l.b16 %v1352
    %v1495 = vunpack.c.h.b16 %v1352
    %v1496 = vunpack.c.l.b16 %v1353
    %v1497 = vunpack.c.h.b16 %v1353
    %v1498 = vunpack.c.l.b16 %v1354
    %v1499 = vunpack.c.h.b16 %v1354
    %v1500 = vunpack.c.l.b16 %v1355
    %v1501 = vunpack.c.h.b16 %v1355
    %v1502 = vunpack.c.l.b16 %v1356
    %v1503 = vunpack.c.h.b16 %v1356
    %v1504 = vunpack.c.l.b16 %v1357
    %v1505 = vunpack.c.h.b16 %v1357
    %v1506 = vunpack.c.l.b16 %v1358
    %v1507 = vunpack.c.h.b16 %v1358
    %v1508 = vunpack.c.l.b16 %v1359
    %v1509 = vunpack.c.h.b16 %v1359
    %v1510 = vunpack.c.l.b16 %v1360
    %v1511 = vunpack.c.h.b16 %v1360
    %v1512 = vunpack.c.l.b16 %v1361
    %v1513 = vunpack.c.h.b16 %v1361
    %v1514 = vunpack.c.l.b16 %v1362
    %v1515 = vunpack.c.h.b16 %v1362
    %v1516 = vunpack.c.l.b16 %v1363
    %v1517 = vunpack.c.h.b16 %v1363
    %v1518 = vunpack.c.l.b16 %v1364
    %v1519 = vunpack.c.h.b16 %v1364
    %v1520 = vunpack.c.l.b16 %v1365
    %v1521 = vunpack.c.h.b16 %v1365
    %v1522 = vunpack.c.l.b16 %v1366
    %v1523 = vunpack.c.h.b16 %v1366
    %v1524 = vunpack.c.l.b16 %v1367
    %v1525 = vunpack.c.h.b16 %v1367
    %v1526 = vunpack.c.l.b16 %v1368
    %v1527 = vunpack.c.h.b16 %v1368
    %v1528 = vunpack.c.l.b16 %v1369
    %v1529 = vunpack.c.h.b16 %v1369
    %v1530 = vunpack.c.l.b16 %v1370
    %v1531 = vunpack.c.h.b16 %v1370
    %v1532 = vunpack.c.l.b16 %v1371
    %v1533 = vunpack.c.h.b16 %v1371
    %v1534 = vunpack.c.l.b16 %v1372
    %v1535 = vunpack.c.h.b16 %v1372
    %v1536 = vunpack.c.l.b16 %v1373
    %v1537 = vunpack.c.h.b16 %v1373
    %v1538 = vunpack.c.l.b16 %v1374
    %v1539 = vunpack.c.h.b16 %v1374
    %v1540 = vunpack.c.l.b16 %v1375
    %v1541 = vunpack.c.h.b16 %v1375
    %v1542 = vunpack.c.l.b16 %v1376
    %v1543 = vunpack.c.h.b16 %v1376
    %v1544 = vunpack.c.l.b16 %v1377
    %v1545 = vunpack.c.h.b16 %v1377
    %v1546 = vunpack.c.l.b16 %v1378
    %v1547 = vunpack.c.h.b16 %v1378
    %v1548 = vunpack.c.l.b16 %v1379
    %v1549 = vunpack.c.h.b16 %v1379
    %v1550 = vunpack.c.l.b16 %v1380
    %v1551 = vunpack.c.h.b16 %v1380
    %v1552 = vunpack.c.l.b16 %v1381
    %v1553 = vunpack.c.h.b16 %v1381
    %v1554 = vunpack.c.l.b16 %v1382
    %v1555 = vunpack.c.h.b16 %v1382
    %v1556 = vunpack.c.l.b16 %v1383
    %v1557 = vunpack.c.h.b16 %v1383
    %v1558 = vunpack.c.l.b16 %v1384
    %v1559 = vunpack.c.h.b16 %v1384
    %v1560 = vunpack.c.l.b16 %v1385
    %v1561 = vunpack.c.h.b16 %v1385
    %v1562 = vunpack.c.l.b16 %v1386
    %v1563 = vunpack.c.h.b16 %v1386
    %v1564 = vunpack.c.l.b16 %v1387
    %v1565 = vunpack.c.h.b16 %v1387
    %v1566 = vunpack.c.l.b16 %v1388
    %v1567 = vunpack.c.h.b16 %v1388
    %v1568 = vunpack.c.l.b16 %v1389
    %v1569 = vunpack.c.h.b16 %v1389
    %v1570 = vunpack.c.l.b16 %v1390
    %v1571 = vunpack.c.h.b16 %v1390
    %v1572 = vunpack.c.l.b16 %v1391
    %v1573 = vunpack.c.h.b16 %v1391
    %v1574 = vunpack.c.l.b16 %v1392
    %v1575 = vunpack.c.h.b16 %v1392
    %v1576 = vunpack.c.l.b16 %v1393
    %v1577 = vunpack.c.h.b16 %v1393
    %v1578 = vunpack.c.l.b16 %v1394
    %v1579 = vunpack.c.h.b16 %v1394
    %v1580 = vunpack.c.l.b16 %v1395
    %v1581 = vunpack.c.h.b16 %v1395
    %v1582 = vunpack.c.l.b16 %v1396
    %v1583 = vunpack.c.h.b16 %v1396
    %v1584 = vunpack.c.l.b16 %v1397
    %v1585 = vunpack.c.h.b16 %v1397
    %v1586 = vunpack.c.l.b16 %v1398
    %v1587 = vunpack.c.h.b16 %v1398
    %v1588 = vunpack.c.l.b16 %v1399
    %v1589 = vunpack.c.h.b16 %v1399
    %v1590 = vunpack.c.l.b16 %v1400
    %v1591 = vunpack.c.h.b16 %v1400
    %v1592 = vunpack.c.l.b16 %v1401
    %v1593 = vunpack.c.h.b16 %v1401
    %v1594 = vunpack.c.l.b16 %v1402
    %v1595 = vunpack.c.h.b16 %v1402
    %v1596 = vunpack.c.l.b16 %v1403
    %v1597 = vunpack.c.h.b16 %v1403
    %v1598 = vunpack.c.l.b16 %v1404
    %v1599 = vunpack.c.h.b16 %v1404
    %v1600 = vunpack.c.l.b16 %v1405
    %v1601 = vunpack.c.h.b16 %v1405
    %v1602 = vunpack.c.l.b16 %v1406
    %v1603 = vunpack.c.h.b16 %v1406
    %v1604 = vunpack.c.l.b16 %v1407
    %v1605 = vunpack.c.h.b16 %v1407
    %v1606 = vunpack.c.l.b16 %v1408
    %v1607 = vunpack.c.h.b16 %v1408
    %v1608 = vunpack.c.l.b16 %v1409
    %v1609 = vunpack.c.h.b16 %v1409
    %v1610 = vunpack.c.l.b16 %v1410
    %v1611 = vunpack.c.h.b16 %v1410
    %v1612 = vunpack.c.l.b16 %v1411
    %v1613 = vunpack.c.h.b16 %v1411
    %v1614 = vunpack.c.l.b16 %v1412
    %v1615 = vunpack.c.h.b16 %v1412
    %v1616 = vunpack.c.l.b16 %v1413
    %v1617 = vunpack.c.h.b16 %v1413
    %v1618 = vunpack.c.l.b16 %v1414
    %v1619 = vunpack.c.h.b16 %v1414
    %v1620 = vunpack.c.l.b16 %v1415
    %v1621 = vunpack.c.h.b16 %v1415
    %v1622 = vpack.c.b16 %v1498, %v1494
    %v1623 = vpack.c.b16 %v1499, %v1495
    %v1624 = vpack.c.b16 %v1500, %v1496
    %v1625 = vpack.c.b16 %v1501, %v1497
    %v1626 = vpack.c.b16 %v1506, %v1502
    %v1627 = vpack.c.b16 %v1507, %v1503
    %v1628 = vpack.c.b16 %v1508, %v1504
    %v1629 = vpack.c.b16 %v1509, %v1505
    %v1630 = vpack.c.b16 %v1514, %v1510
    %v1631 = vpack.c.b16 %v1515, %v1511
    %v1632 = vpack.c.b16 %v1516, %v1512
    %v1633 = vpack.c.b16 %v1517, %v1513
    %v1634 = vpack.c.b16 %v1522, %v1518
    %v1635 = vpack.c.b16 %v1523, %v1519
    %v1636 = vpack.c.b16 %v1524, %v1520
    %v1637 = vpack.c.b16 %v1525, %v1521
    %v1638 = vpack.c.b16 %v1530, %v1526
    %v1639 = vpack.c.b16 %v1531, %v1527
    %v1640 = vpack.c.b16 %v1532, %v1528
    %v1641 = vpack.c.b16 %v1533, %v1529
    %v1642 = vpack.c.b16 %v1538, %v1534
    %v1643 = vpack.c.b16 %v1539, %v1535
    %v1644 = vpack.c.b16 %v1540, %v1536
    %v1645 = vpack.c.b16 %v1541, %v1537
    %v1646 = vpack.c.b16 %v1546, %v1542
    %v1647 = vpack.c.b16 %v1547, %v1543
    %v1648 = vpack.c.b16 %v1548, %v1544
    %v1649 = vpack.c.b16 %v1549, %v1545
    %v1650 = vpack.c.b16 %v1554, %v1550
    %v1651 = vpack.c.b16 %v1555, %v1551
    %v1652 = vpack.c.b16 %v1556, %v1552
    %v1653 = vpack.c.b16 %v1557, %v1553
    %v1654 = vpack.c.b16 %v1562, %v1558
    %v1655 = vpack.c.b16 %v1563, %v1559
    %v1656 = vpack.c.b16 %v1564, %v1560
    %v1657 = vpack.c.b16 %v1565, %v1561
    %v1658 = vpack.c.b16 %v1570, %v1566
    %v1659 = vpack.c.b16 %v1571, %v1567
    %v1660 = vpack.c.b16 %v1572, %v1568
    %v1661 = vpack.c.b16 %v1573, %v1569
    %v1662 = vpack.c.b16 %v1578, %v1574
    %v1663 = vpack.c.b16 %v1579, %v1575
    %v1664 = vpack.c.b16 %v1580, %v1576
    %v1665 = vpack.c.b16 %v1581, %v1577
    %v1666 = vpack.c.b16 %v1586, %v1582
    %v1667 = vpack.c.b16 %v1587, %v1583
    %v1668 = vpack.c.b16 %v1588, %v1584
    %v1669 = vpack.c.b16 %v1589, %v1585
    %v1670 = vpack.c.b16 %v1594, %v1590
    %v1671 = vpack.c.b16 %v1595, %v1591
    %v1672 = vpack.c.b16 %v1596, %v1592
    %v1673 = vpack.c.b16 %v1597, %v1593
    %v1674 = vpack.c.b16 %v1602, %v1598
    %v1675 = vpack.c.b16 %v1603, %v1599
    %v1676 = vpack.c.b16 %v1604, %v1600
    %v1677 = vpack.c.b16 %v1605, %v1601
    %v1678 = vpack.c.b16 %v1610, %v1606
    %v1679 = vpack.c.b16 %v1611, %v1607
    %v1680 = vpack.c.b16 %v1612, %v1608
    %v1681 = vpack.c.b16 %v1613, %v1609
    %v1682 = vpack.c.b16 %v1618, %v1614
    %v1683 = vpack.c.b16 %v1619, %v1615
    %v1684 = vpack.c.b16 %v1620, %v1616
    %v1685 = vpack.c.b16 %v1621, %v1617
    %1750 = vmatpush.bf16.msra.mxu0 %v1650
    %1751 = vmatpush.bf16.msra.mxu0 %v1646
    %1752 = vmatpush.bf16.msra.mxu0 %v1642
    %1753 = vmatpush.bf16.msra.mxu0 %v1638
    %1754 = vmatpush.bf16.msra.mxu0 %v1634
    %1755 = vmatpush.bf16.msra.mxu0 %v1630
    %1756 = vmatpush.bf16.msra.mxu0 %v1626
    %1757 = vmatpush.bf16.msra.mxu0 %v1622
    %1758 = vmatmul.bf16.gmra.mxu0 %v1416
    %v1759 = vpop.f32.mrf.mxu0
    %v1760 = vadd.f32 %v1422, %v1759
    %v1761 = vpop.f32.mrf.mxu0
    %v1762 = vadd.f32 %v1422, %v1761
    %1763 = vmatmul.bf16.gmra.mxu0 %v1418
    %v1764 = vpop.f32.mrf.mxu0
    %v1765 = vadd.f32 %v1422, %v1764
    %v1766 = vpop.f32.mrf.mxu0
    %1767 = vdwg.mxu0
    %1768 = vmatpush.bf16.msra.mxu0 %v1682
    %1769 = vmatpush.bf16.msra.mxu0 %v1678
    %1770 = vmatpush.bf16.msra.mxu0 %v1674
    %1771 = vmatpush.bf16.msra.mxu0 %v1670
    %1772 = vmatpush.bf16.msra.mxu0 %v1666
    %1773 = vmatpush.bf16.msra.mxu0 %v1662
    %1774 = vmatpush.bf16.msra.mxu0 %v1658
    %1775 = vmatpush.bf16.msra.mxu0 %v1654
    %1776 = vmatmul.bf16.gmra.mxu0 %v1417
    %v1777 = vpop.f32.mrf.mxu0
    %v1778 = vadd.f32 %v1760, %v1777
    %v1779 = vpop.f32.mrf.mxu0
    %v1780 = vadd.f32 %v1762, %v1779
    %1781 = vmatmul.bf16.gmra.mxu0 %v1419
    %v1782 = vpop.f32.mrf.mxu0
    %v1783 = vadd.f32 %v1765, %v1782
    %v1784 = vpop.f32.mrf.mxu0
    %1785 = vdwg.mxu0
    %1786 = vmatpush.bf16.msra.mxu0 %v1651
    %1787 = vmatpush.bf16.msra.mxu0 %v1647
    %1788 = vmatpush.bf16.msra.mxu0 %v1643
    %1789 = vmatpush.bf16.msra.mxu0 %v1639
    %1790 = vmatpush.bf16.msra.mxu0 %v1635
    %1791 = vmatpush.bf16.msra.mxu0 %v1631
    %1792 = vmatpush.bf16.msra.mxu0 %v1627
    %1793 = vmatpush.bf16.msra.mxu0 %v1623
    %1794 = vmatmul.bf16.gmra.mxu0 %v1416
    %v1795 = vpop.f32.mrf.mxu0
    %v1796 = vadd.f32 %v1423, %v1795
    %v1797 = vpop.f32.mrf.mxu0
    %v1798 = vadd.f32 %v1423, %v1797
    %1799 = vmatmul.bf16.gmra.mxu0 %v1418
    %v1800 = vpop.f32.mrf.mxu0
    %v1801 = vadd.f32 %v1423, %v1800
    %v1802 = vpop.f32.mrf.mxu0
    %1803 = vdwg.mxu0
    %1804 = vmatpush.bf16.msra.mxu0 %v1683
    %1805 = vmatpush.bf16.msra.mxu0 %v1679
    %1806 = vmatpush.bf16.msra.mxu0 %v1675
    %1807 = vmatpush.bf16.msra.mxu0 %v1671
    %1808 = vmatpush.bf16.msra.mxu0 %v1667
    %1809 = vmatpush.bf16.msra.mxu0 %v1663
    %1810 = vmatpush.bf16.msra.mxu0 %v1659
    %1811 = vmatpush.bf16.msra.mxu0 %v1655
    %1812 = vmatmul.bf16.gmra.mxu0 %v1417
    %v1813 = vpop.f32.mrf.mxu0
    %v1814 = vadd.f32 %v1796, %v1813
    %v1815 = vpop.f32.mrf.mxu0
    %v1816 = vadd.f32 %v1798, %v1815
    %1817 = vmatmul.bf16.gmra.mxu0 %v1419
    %v1818 = vpop.f32.mrf.mxu0
    %v1819 = vadd.f32 %v1801, %v1818
    %v1820 = vpop.f32.mrf.mxu0
    %1821 = vdwg.mxu0
    %1822 = vmatpush.bf16.msra.mxu0 %v1652
    %1823 = vmatpush.bf16.msra.mxu0 %v1648
    %1824 = vmatpush.bf16.msra.mxu0 %v1644
    %1825 = vmatpush.bf16.msra.mxu0 %v1640
    %1826 = vmatpush.bf16.msra.mxu0 %v1636
    %1827 = vmatpush.bf16.msra.mxu0 %v1632
    %1828 = vmatpush.bf16.msra.mxu0 %v1628
    %1829 = vmatpush.bf16.msra.mxu0 %v1624
    %1830 = vmatmul.bf16.gmra.mxu0 %v1416
    %v1831 = vpop.f32.mrf.mxu0
    %v1832 = vadd.f32 %v1424, %v1831
    %v1833 = vpop.f32.mrf.mxu0
    %v1834 = vadd.f32 %v1424, %v1833
    %1835 = vmatmul.bf16.gmra.mxu0 %v1418
    %v1836 = vpop.f32.mrf.mxu0
    %v1837 = vadd.f32 %v1424, %v1836
    %v1838 = vpop.f32.mrf.mxu0
    %1839 = vdwg.mxu0
    %1840 = vmatpush.bf16.msra.mxu0 %v1684
    %1841 = vmatpush.bf16.msra.mxu0 %v1680
    %1842 = vmatpush.bf16.msra.mxu0 %v1676
    %1843 = vmatpush.bf16.msra.mxu0 %v1672
    %1844 = vmatpush.bf16.msra.mxu0 %v1668
    %1845 = vmatpush.bf16.msra.mxu0 %v1664
    %1846 = vmatpush.bf16.msra.mxu0 %v1660
    %1847 = vmatpush.bf16.msra.mxu0 %v1656
    %1848 = vmatmul.bf16.gmra.mxu0 %v1417
    %v1849 = vpop.f32.mrf.mxu0
    %v1850 = vadd.f32 %v1832, %v1849
    %v1851 = vpop.f32.mrf.mxu0
    %v1852 = vadd.f32 %v1834, %v1851
    %1853 = vmatmul.bf16.gmra.mxu0 %v1419
    %v1854 = vpop.f32.mrf.mxu0
    %v1855 = vadd.f32 %v1837, %v1854
    %v1856 = vpop.f32.mrf.mxu0
    %1857 = vdwg.mxu0
    %1858 = vmatpush.bf16.msra.mxu0 %v1653
    %1859 = vmatpush.bf16.msra.mxu0 %v1649
    %1860 = vmatpush.bf16.msra.mxu0 %v1645
    %1861 = vmatpush.bf16.msra.mxu0 %v1641
    %1862 = vmatpush.bf16.msra.mxu0 %v1637
    %1863 = vmatpush.bf16.msra.mxu0 %v1633
    %1864 = vmatpush.bf16.msra.mxu0 %v1629
    %1865 = vmatpush.bf16.msra.mxu0 %v1625
    %1866 = vmatmul.bf16.gmra.mxu0 %v1416
    %v1867 = vpop.f32.mrf.mxu0
    %v1868 = vadd.f32 %v1425, %v1867
    %v1869 = vpop.f32.mrf.mxu0
    %v1870 = vadd.f32 %v1425, %v1869
    %1871 = vmatmul.bf16.gmra.mxu0 %v1418
    %v1872 = vpop.f32.mrf.mxu0
    %v1873 = vadd.f32 %v1425, %v1872
    %v1874 = vpop.f32.mrf.mxu0
    %1875 = vdwg.mxu0
    %1876 = vmatpush.bf16.msra.mxu0 %v1685
    %1877 = vmatpush.bf16.msra.mxu0 %v1681
    %1878 = vmatpush.bf16.msra.mxu0 %v1677
    %1879 = vmatpush.bf16.msra.mxu0 %v1673
    %1880 = vmatpush.bf16.msra.mxu0 %v1669
    %1881 = vmatpush.bf16.msra.mxu0 %v1665
    %1882 = vmatpush.bf16.msra.mxu0 %v1661
    %1883 = vmatpush.bf16.msra.mxu0 %v1657
    %1884 = vmatmul.bf16.gmra.mxu0 %v1417
    %v1885 = vpop.f32.mrf.mxu0
    %v1886 = vadd.f32 %v1868, %v1885
    %v1887 = vpop.f32.mrf.mxu0
    %v1888 = vadd.f32 %v1870, %v1887
    %1889 = vmatmul.bf16.gmra.mxu0 %v1419
    %v1890 = vpop.f32.mrf.mxu0
    %v1891 = vadd.f32 %v1873, %v1890
    %v1892 = vpop.f32.mrf.mxu0
    %1893 = vdwg.mxu0
    %v1894 = vmax.f32 %v1778, 0.0
    %v1895 = vmax.f32 %v1814, 0.0
    %v1896 = vmax.f32 %v1850, 0.0
    %v1897 = vmax.f32 %v1886, 0.0
    %v1898 = vmax.f32 %v1780, 0.0
    %v1899 = vmax.f32 %v1816, 0.0
    %v1900 = vmax.f32 %v1852, 0.0
    %v1901 = vmax.f32 %v1888, 0.0
    %v1902 = vmax.f32 %v1783, 0.0
    %v1903 = vmax.f32 %v1819, 0.0
    %v1904 = vmax.f32 %v1855, 0.0
    %v1905 = vmax.f32 %v1891, 0.0
    %v1906 = vld [vmem:[%s47] sm:$0xff]
    %v1907 = vld [vmem:[%s47 + $0x8] sm:$0xff]
    %v1908 = vld [vmem:[%s47 + $0x10] sm:$0xff]
    %v1909 = vld [vmem:[%s47 + $0x18] sm:$0xff]
    %v1910 = vld [vmem:[%s47 + $0x20] sm:$0xff]
    %v1911 = vld [vmem:[%s47 + $0x28] sm:$0xff]
    %v1912 = vld [vmem:[%s47 + $0x30] sm:$0xff]
    %v1913 = vld [vmem:[%s47 + $0x38] sm:$0xff]
    %v1914 = vld [vmem:[%s47 + $0x40] sm:$0xff]
    %v1915 = vld [vmem:[%s47 + $0x48] sm:$0xff]
    %v1916 = vld [vmem:[%s47 + $0x50] sm:$0xff]
    %v1917 = vld [vmem:[%s47 + $0x58] sm:$0xff]
    %v1918 = vld [vmem:[%s47 + $0x60] sm:$0xff]
    %v1919 = vld [vmem:[%s47 + $0x68] sm:$0xff]
    %v1920 = vld [vmem:[%s47 + $0x70] sm:$0xff]
    %v1921 = vld [vmem:[%s47 + $0x78] sm:$0xff]
    %v1922 = vld [vmem:[%s47 + $0x80] sm:$0xff]
    %v1923 = vld [vmem:[%s47 + $0x88] sm:$0xff]
    %v1924 = vld [vmem:[%s47 + $0x90] sm:$0xff]
    %v1925 = vld [vmem:[%s47 + $0x98] sm:$0xff]
    %v1926 = vld [vmem:[%s47 + $0xa0] sm:$0xff]
    %v1927 = vld [vmem:[%s47 + $0xa8] sm:$0xff]
    %v1928 = vld [vmem:[%s47 + $0xb0] sm:$0xff]
    %v1929 = vld [vmem:[%s47 + $0xb8] sm:$0xff]
    %v1930 = vld [vmem:[%s47 + $0xc0] sm:$0xff]
    %v1931 = vld [vmem:[%s47 + $0xc8] sm:$0xff]
    %v1932 = vld [vmem:[%s47 + $0xd0] sm:$0xff]
    %v1933 = vld [vmem:[%s47 + $0xd8] sm:$0xff]
    %v1934 = vld [vmem:[%s47 + $0xe0] sm:$0xff]
    %v1935 = vld [vmem:[%s47 + $0xe8] sm:$0xff]
    %v1936 = vld [vmem:[%s47 + $0xf0] sm:$0xff]
    %v1937 = vld [vmem:[%s47 + $0xf8] sm:$0xff]
    %v1938 = vld [vmem:[%s47 + $0x100] sm:$0xff]
    %v1939 = vld [vmem:[%s47 + $0x108] sm:$0xff]
    %v1940 = vld [vmem:[%s47 + $0x110] sm:$0xff]
    %v1941 = vld [vmem:[%s47 + $0x118] sm:$0xff]
    %v1942 = vld [vmem:[%s47 + $0x120] sm:$0xff]
    %v1943 = vld [vmem:[%s47 + $0x128] sm:$0xff]
    %v1944 = vld [vmem:[%s47 + $0x130] sm:$0xff]
    %v1945 = vld [vmem:[%s47 + $0x138] sm:$0xff]
    %v1946 = vld [vmem:[%s47 + $0x140] sm:$0xff]
    %v1947 = vld [vmem:[%s47 + $0x148] sm:$0xff]
    %v1948 = vld [vmem:[%s47 + $0x150] sm:$0xff]
    %v1949 = vld [vmem:[%s47 + $0x158] sm:$0xff]
    %v1950 = vld [vmem:[%s47 + $0x160] sm:$0xff]
    %v1951 = vld [vmem:[%s47 + $0x168] sm:$0xff]
    %v1952 = vld [vmem:[%s47 + $0x170] sm:$0xff]
    %v1953 = vld [vmem:[%s47 + $0x178] sm:$0xff]
    %v1954 = vld [vmem:[%s47 + $0x180] sm:$0xff]
    %v1955 = vld [vmem:[%s47 + $0x188] sm:$0xff]
    %v1956 = vld [vmem:[%s47 + $0x190] sm:$0xff]
    %v1957 = vld [vmem:[%s47 + $0x198] sm:$0xff]
    %v1958 = vld [vmem:[%s47 + $0x1a0] sm:$0xff]
    %v1959 = vld [vmem:[%s47 + $0x1a8] sm:$0xff]
    %v1960 = vld [vmem:[%s47 + $0x1b0] sm:$0xff]
    %v1961 = vld [vmem:[%s47 + $0x1b8] sm:$0xff]
    %v1962 = vld [vmem:[%s47 + $0x1c0] sm:$0xff]
    %v1963 = vld [vmem:[%s47 + $0x1c8] sm:$0xff]
    %v1964 = vld [vmem:[%s47 + $0x1d0] sm:$0xff]
    %v1965 = vld [vmem:[%s47 + $0x1d8] sm:$0xff]
    %v1966 = vld [vmem:[%s47 + $0x1e0] sm:$0xff]
    %v1967 = vld [vmem:[%s47 + $0x1e8] sm:$0xff]
    %v1968 = vld [vmem:[%s47 + $0x1f0] sm:$0xff]
    %v1969 = vld [vmem:[%s47 + $0x1f8] sm:$0xff]
    %v1970 = vld [vmem:[%s47 + $0x200] sm:$0xff]
    %v1971 = vld [vmem:[%s47 + $0x208] sm:$0xff]
    %v1972 = vld [vmem:[%s47 + $0x210] sm:$0xff]
    %v1973 = vld [vmem:[%s47 + $0x218] sm:$0xff]
    %v1974 = vld [vmem:[%s47 + $0x220] sm:$0xff]
    %v1975 = vld [vmem:[%s47 + $0x228] sm:$0xff]
    %v1976 = vld [vmem:[%s47 + $0x230] sm:$0xff]
    %v1977 = vld [vmem:[%s47 + $0x238] sm:$0xff]
    %v1978 = vld [vmem:[%s47 + $0x240] sm:$0xff]
    %v1979 = vld [vmem:[%s47 + $0x248] sm:$0xff]
    %v1980 = vld [vmem:[%s47 + $0x250] sm:$0xff]
    %v1981 = vld [vmem:[%s47 + $0x258] sm:$0xff]
    %v1982 = vld [vmem:[%s47 + $0x260] sm:$0xff]
    %v1983 = vld [vmem:[%s47 + $0x268] sm:$0xff]
    %v1984 = vld [vmem:[%s47 + $0x270] sm:$0xff]
    %v1985 = vld [vmem:[%s47 + $0x278] sm:$0xff]
    %v1986 = vld [vmem:[%s47 + $0x280] sm:$0xff]
    %v1987 = vld [vmem:[%s47 + $0x288] sm:$0xff]
    %v1988 = vld [vmem:[%s47 + $0x290] sm:$0xff]
    %v1989 = vld [vmem:[%s47 + $0x298] sm:$0xff]
    %v1990 = vld [vmem:[%s47 + $0x2a0] sm:$0xff]
    %v1991 = vld [vmem:[%s47 + $0x2a8] sm:$0xff]
    %v1992 = vld [vmem:[%s47 + $0x2b0] sm:$0xff]
    %v1993 = vld [vmem:[%s47 + $0x2b8] sm:$0xff]
    %v1994 = vld [vmem:[%s47 + $0x2c0] sm:$0xff]
    %v1995 = vld [vmem:[%s47 + $0x2c8] sm:$0xff]
    %v1996 = vld [vmem:[%s47 + $0x2d0] sm:$0xff]
    %v1997 = vld [vmem:[%s47 + $0x2d8] sm:$0xff]
    %v1998 = vld [vmem:[%s47 + $0x2e0] sm:$0xff]
    %v1999 = vld [vmem:[%s47 + $0x2e8] sm:$0xff]
    %v2000 = vld [vmem:[%s47 + $0x2f0] sm:$0xff]
    %v2001 = vld [vmem:[%s47 + $0x2f8] sm:$0xff]
    %v2002 = vld [vmem:[%s47 + $0x300] sm:$0xff]
    %v2003 = vld [vmem:[%s47 + $0x308] sm:$0xff]
    %v2004 = vld [vmem:[%s47 + $0x310] sm:$0xff]
    %v2005 = vld [vmem:[%s47 + $0x318] sm:$0xff]
    %v2006 = vld [vmem:[%s47 + $0x320] sm:$0xff]
    %v2007 = vld [vmem:[%s47 + $0x328] sm:$0xff]
    %v2008 = vld [vmem:[%s47 + $0x330] sm:$0xff]
    %v2009 = vld [vmem:[%s47 + $0x338] sm:$0xff]
    %v2010 = vld [vmem:[%s47 + $0x340] sm:$0xff]
    %v2011 = vld [vmem:[%s47 + $0x348] sm:$0xff]
    %v2012 = vld [vmem:[%s47 + $0x350] sm:$0xff]
    %v2013 = vld [vmem:[%s47 + $0x358] sm:$0xff]
    %v2014 = vld [vmem:[%s47 + $0x360] sm:$0xff]
    %v2015 = vld [vmem:[%s47 + $0x368] sm:$0xff]
    %v2016 = vld [vmem:[%s47 + $0x370] sm:$0xff]
    %v2017 = vld [vmem:[%s47 + $0x378] sm:$0xff]
    %v2018 = vld [vmem:[%s47 + $0x380] sm:$0xff]
    %v2019 = vld [vmem:[%s47 + $0x388] sm:$0xff]
    %v2020 = vld [vmem:[%s47 + $0x390] sm:$0xff]
    %v2021 = vld [vmem:[%s47 + $0x398] sm:$0xff]
    %v2022 = vld [vmem:[%s47 + $0x3a0] sm:$0xff]
    %v2023 = vld [vmem:[%s47 + $0x3a8] sm:$0xff]
    %v2024 = vld [vmem:[%s47 + $0x3b0] sm:$0xff]
    %v2025 = vld [vmem:[%s47 + $0x3b8] sm:$0xff]
    %v2026 = vld [vmem:[%s47 + $0x3c0] sm:$0xff]
    %v2027 = vld [vmem:[%s47 + $0x3c8] sm:$0xff]
    %v2028 = vld [vmem:[%s47 + $0x3d0] sm:$0xff]
    %v2029 = vld [vmem:[%s47 + $0x3d8] sm:$0xff]
    %v2030 = vld [vmem:[%s47 + $0x3e0] sm:$0xff]
    %v2031 = vld [vmem:[%s47 + $0x3e8] sm:$0xff]
    %v2032 = vld [vmem:[%s47 + $0x3f0] sm:$0xff]
    %v2033 = vld [vmem:[%s47 + $0x3f8] sm:$0xff]
    %v2034 = vld [vmem:[%s47 + $0x400] sm:$0xff]
    %v2035 = vld [vmem:[%s47 + $0x408] sm:$0xff]
    %v2036 = vld [vmem:[%s47 + $0x410] sm:$0xff]
    %v2037 = vld [vmem:[%s47 + $0x418] sm:$0xff]
    %v2038 = vld [vmem:[%s47 + $0x420] sm:$0xff]
    %v2039 = vld [vmem:[%s47 + $0x428] sm:$0xff]
    %v2040 = vld [vmem:[%s47 + $0x430] sm:$0xff]
    %v2041 = vld [vmem:[%s47 + $0x438] sm:$0xff]
    %v2042 = vld [vmem:[%s47 + $0x440] sm:$0xff]
    %v2043 = vld [vmem:[%s47 + $0x448] sm:$0xff]
    %v2044 = vld [vmem:[%s47 + $0x450] sm:$0xff]
    %v2045 = vld [vmem:[%s47 + $0x458] sm:$0xff]
    %v2046 = vld [vmem:[%s47 + $0x460] sm:$0xff]
    %v2047 = vld [vmem:[%s47 + $0x468] sm:$0xff]
    %v2048 = vld [vmem:[%s47 + $0x470] sm:$0xff]
    %v2049 = vld [vmem:[%s47 + $0x478] sm:$0xff]
    %v2050 = vld [vmem:[%s47 + $0x480] sm:$0xff]
    %v2051 = vld [vmem:[%s47 + $0x488] sm:$0xff]
    %v2052 = vld [vmem:[%s47 + $0x490] sm:$0xff]
    %v2053 = vld [vmem:[%s47 + $0x498] sm:$0xff]
    %v2054 = vld [vmem:[%s47 + $0x4a0] sm:$0xff]
    %v2055 = vld [vmem:[%s47 + $0x4a8] sm:$0xff]
    %v2056 = vld [vmem:[%s47 + $0x4b0] sm:$0xff]
    %v2057 = vld [vmem:[%s47 + $0x4b8] sm:$0xff]
    %v2058 = vld [vmem:[%s47 + $0x4c0] sm:$0xff]
    %v2059 = vld [vmem:[%s47 + $0x4c8] sm:$0xff]
    %v2060 = vld [vmem:[%s47 + $0x4d0] sm:$0xff]
    %v2061 = vld [vmem:[%s47 + $0x4d8] sm:$0xff]
    %v2062 = vld [vmem:[%s47 + $0x4e0] sm:$0xff]
    %v2063 = vld [vmem:[%s47 + $0x4e8] sm:$0xff]
    %v2064 = vld [vmem:[%s47 + $0x4f0] sm:$0xff]
    %v2065 = vld [vmem:[%s47 + $0x4f8] sm:$0xff]
    %v2066 = vld [vmem:[%s47 + $0x500] sm:$0xff]
    %v2067 = vld [vmem:[%s47 + $0x508] sm:$0xff]
    %v2068 = vld [vmem:[%s47 + $0x510] sm:$0xff]
    %v2069 = vld [vmem:[%s47 + $0x518] sm:$0xff]
    %v2070 = vld [vmem:[%s47 + $0x520] sm:$0xff]
    %v2071 = vld [vmem:[%s47 + $0x528] sm:$0xff]
    %v2072 = vld [vmem:[%s47 + $0x530] sm:$0xff]
    %v2073 = vld [vmem:[%s47 + $0x538] sm:$0xff]
    %v2074 = vld [vmem:[%s47 + $0x540] sm:$0xff]
    %v2075 = vld [vmem:[%s47 + $0x548] sm:$0xff]
    %v2076 = vld [vmem:[%s47 + $0x550] sm:$0xff]
    %v2077 = vld [vmem:[%s47 + $0x558] sm:$0xff]
    %v2078 = vld [vmem:[%s47 + $0x560] sm:$0xff]
    %v2079 = vld [vmem:[%s47 + $0x568] sm:$0xff]
    %v2080 = vld [vmem:[%s47 + $0x570] sm:$0xff]
    %v2081 = vld [vmem:[%s47 + $0x578] sm:$0xff]
    %v2082 = vld [vmem:[%s47 + $0x580] sm:$0xff]
    %v2083 = vld [vmem:[%s47 + $0x588] sm:$0xff]
    %v2084 = vld [vmem:[%s47 + $0x590] sm:$0xff]
    %v2085 = vld [vmem:[%s47 + $0x598] sm:$0xff]
    %v2086 = vld [vmem:[%s47 + $0x5a0] sm:$0xff]
    %v2087 = vld [vmem:[%s47 + $0x5a8] sm:$0xff]
    %v2088 = vld [vmem:[%s47 + $0x5b0] sm:$0xff]
    %v2089 = vld [vmem:[%s47 + $0x5b8] sm:$0xff]
    %v2090 = vld [vmem:[%s47 + $0x5c0] sm:$0xff]
    %v2091 = vld [vmem:[%s47 + $0x5c8] sm:$0xff]
    %v2092 = vld [vmem:[%s47 + $0x5d0] sm:$0xff]
    %v2093 = vld [vmem:[%s47 + $0x5d8] sm:$0xff]
    %v2094 = vld [vmem:[%s47 + $0x5e0] sm:$0xff]
    %v2095 = vld [vmem:[%s47 + $0x5e8] sm:$0xff]
    %v2096 = vld [vmem:[%s47 + $0x5f0] sm:$0xff]
    %v2097 = vld [vmem:[%s47 + $0x5f8] sm:$0xff]
    %v2098 = vld [vmem:[%s47 + $0x600] sm:$0xff]
    %v2099 = vld [vmem:[%s47 + $0x608] sm:$0xff]
    %v2100 = vld [vmem:[%s47 + $0x610] sm:$0xff]
    %v2101 = vld [vmem:[%s47 + $0x618] sm:$0xff]
    %v2102 = vld [vmem:[%s47 + $0x620] sm:$0xff]
    %v2103 = vld [vmem:[%s47 + $0x628] sm:$0xff]
    %v2104 = vld [vmem:[%s47 + $0x630] sm:$0xff]
    %v2105 = vld [vmem:[%s47 + $0x638] sm:$0xff]
    %v2106 = vld [vmem:[%s47 + $0x640] sm:$0xff]
    %v2107 = vld [vmem:[%s47 + $0x648] sm:$0xff]
    %v2108 = vld [vmem:[%s47 + $0x650] sm:$0xff]
    %v2109 = vld [vmem:[%s47 + $0x658] sm:$0xff]
    %v2110 = vld [vmem:[%s47 + $0x660] sm:$0xff]
    %v2111 = vld [vmem:[%s47 + $0x668] sm:$0xff]
    %v2112 = vld [vmem:[%s47 + $0x670] sm:$0xff]
    %v2113 = vld [vmem:[%s47 + $0x678] sm:$0xff]
    %v2114 = vld [vmem:[%s47 + $0x680] sm:$0xff]
    %v2115 = vld [vmem:[%s47 + $0x688] sm:$0xff]
    %v2116 = vld [vmem:[%s47 + $0x690] sm:$0xff]
    %v2117 = vld [vmem:[%s47 + $0x698] sm:$0xff]
    %v2118 = vld [vmem:[%s47 + $0x6a0] sm:$0xff]
    %v2119 = vld [vmem:[%s47 + $0x6a8] sm:$0xff]
    %v2120 = vld [vmem:[%s47 + $0x6b0] sm:$0xff]
    %v2121 = vld [vmem:[%s47 + $0x6b8] sm:$0xff]
    %v2122 = vld [vmem:[%s47 + $0x6c0] sm:$0xff]
    %v2123 = vld [vmem:[%s47 + $0x6c8] sm:$0xff]
    %v2124 = vld [vmem:[%s47 + $0x6d0] sm:$0xff]
    %v2125 = vld [vmem:[%s47 + $0x6d8] sm:$0xff]
    %v2126 = vld [vmem:[%s47 + $0x6e0] sm:$0xff]
    %v2127 = vld [vmem:[%s47 + $0x6e8] sm:$0xff]
    %v2128 = vld [vmem:[%s47 + $0x6f0] sm:$0xff]
    %v2129 = vld [vmem:[%s47 + $0x6f8] sm:$0xff]
    %v2130 = vld [vmem:[%s47 + $0x700] sm:$0xff]
    %v2131 = vld [vmem:[%s47 + $0x708] sm:$0xff]
    %v2132 = vld [vmem:[%s47 + $0x710] sm:$0xff]
    %v2133 = vld [vmem:[%s47 + $0x718] sm:$0xff]
    %v2134 = vld [vmem:[%s47 + $0x720] sm:$0xff]
    %v2135 = vld [vmem:[%s47 + $0x728] sm:$0xff]
    %v2136 = vld [vmem:[%s47 + $0x730] sm:$0xff]
    %v2137 = vld [vmem:[%s47 + $0x738] sm:$0xff]
    %v2138 = vld [vmem:[%s47 + $0x740] sm:$0xff]
    %v2139 = vld [vmem:[%s47 + $0x748] sm:$0xff]
    %v2140 = vld [vmem:[%s47 + $0x750] sm:$0xff]
    %v2141 = vld [vmem:[%s47 + $0x758] sm:$0xff]
    %v2142 = vld [vmem:[%s47 + $0x760] sm:$0xff]
    %v2143 = vld [vmem:[%s47 + $0x768] sm:$0xff]
    %v2144 = vld [vmem:[%s47 + $0x770] sm:$0xff]
    %v2145 = vld [vmem:[%s47 + $0x778] sm:$0xff]
    %v2146 = vld [vmem:[%s47 + $0x780] sm:$0xff]
    %v2147 = vld [vmem:[%s47 + $0x788] sm:$0xff]
    %v2148 = vld [vmem:[%s47 + $0x790] sm:$0xff]
    %v2149 = vld [vmem:[%s47 + $0x798] sm:$0xff]
    %v2150 = vld [vmem:[%s47 + $0x7a0] sm:$0xff]
    %v2151 = vld [vmem:[%s47 + $0x7a8] sm:$0xff]
    %v2152 = vld [vmem:[%s47 + $0x7b0] sm:$0xff]
    %v2153 = vld [vmem:[%s47 + $0x7b8] sm:$0xff]
    %v2154 = vld [vmem:[%s47 + $0x7c0] sm:$0xff]
    %v2155 = vld [vmem:[%s47 + $0x7c8] sm:$0xff]
    %v2156 = vld [vmem:[%s47 + $0x7d0] sm:$0xff]
    %v2157 = vld [vmem:[%s47 + $0x7d8] sm:$0xff]
    %v2158 = vld [vmem:[%s47 + $0x7e0] sm:$0xff]
    %v2159 = vld [vmem:[%s47 + $0x7e8] sm:$0xff]
    %v2160 = vld [vmem:[%s47 + $0x7f0] sm:$0xff]
    %v2161 = vld [vmem:[%s47 + $0x7f8] sm:$0xff]
    %v2162 = vpack.c.bf16 %v1898, %v1894
    %v2163 = vpack.c.bf16 %v1899, %v1895
    %v2164 = vpack.c.bf16 %v1900, %v1896
    %v2165 = vpack.c.bf16 %v1901, %v1897
    %v2166 = vpack.c.bf16 %v1902, %v1902
    %v2167 = vpack.c.bf16 %v1903, %v1903
    %v2168 = vpack.c.bf16 %v1904, %v1904
    %v2169 = vpack.c.bf16 %v1905, %v1905
    %v2170 = vld [vmem:[%s49] sm:$0xff]
    %v2172 = vperm.slane %v2170, 0
    %v2173 = vperm.slane %v2170, 1
    %v2174 = vperm.slane %v2170, 2
    %v2175 = vperm.slane %v2170, 3
    %v2176 = vperm.slane %v2170, 4
    %v2177 = vperm.slane %v2170, 5
    %v2178 = vperm.slane %v2170, 6
    %v2179 = vperm.slane %v2170, 7
    %v2444 = vunpack.c.l.b16 %v1906
    %v2445 = vunpack.c.h.b16 %v1906
    %v2446 = vunpack.c.l.b16 %v1907
    %v2447 = vunpack.c.h.b16 %v1907
    %v2448 = vunpack.c.l.b16 %v1908
    %v2449 = vunpack.c.h.b16 %v1908
    %v2450 = vunpack.c.l.b16 %v1909
    %v2451 = vunpack.c.h.b16 %v1909
    %v2452 = vunpack.c.l.b16 %v1910
    %v2453 = vunpack.c.h.b16 %v1910
    %v2454 = vunpack.c.l.b16 %v1911
    %v2455 = vunpack.c.h.b16 %v1911
    %v2456 = vunpack.c.l.b16 %v1912
    %v2457 = vunpack.c.h.b16 %v1912
    %v2458 = vunpack.c.l.b16 %v1913
    %v2459 = vunpack.c.h.b16 %v1913
    %v2460 = vunpack.c.l.b16 %v1914
    %v2461 = vunpack.c.h.b16 %v1914
    %v2462 = vunpack.c.l.b16 %v1915
    %v2463 = vunpack.c.h.b16 %v1915
    %v2464 = vunpack.c.l.b16 %v1916
    %v2465 = vunpack.c.h.b16 %v1916
    %v2466 = vunpack.c.l.b16 %v1917
    %v2467 = vunpack.c.h.b16 %v1917
    %v2468 = vunpack.c.l.b16 %v1918
    %v2469 = vunpack.c.h.b16 %v1918
    %v2470 = vunpack.c.l.b16 %v1919
    %v2471 = vunpack.c.h.b16 %v1919
    %v2472 = vunpack.c.l.b16 %v1920
    %v2473 = vunpack.c.h.b16 %v1920
    %v2474 = vunpack.c.l.b16 %v1921
    %v2475 = vunpack.c.h.b16 %v1921
    %v2476 = vunpack.c.l.b16 %v1922
    %v2477 = vunpack.c.h.b16 %v1922
    %v2478 = vunpack.c.l.b16 %v1923
    %v2479 = vunpack.c.h.b16 %v1923
    %v2480 = vunpack.c.l.b16 %v1924
    %v2481 = vunpack.c.h.b16 %v1924
    %v2482 = vunpack.c.l.b16 %v1925
    %v2483 = vunpack.c.h.b16 %v1925
    %v2484 = vunpack.c.l.b16 %v1926
    %v2485 = vunpack.c.h.b16 %v1926
    %v2486 = vunpack.c.l.b16 %v1927
    %v2487 = vunpack.c.h.b16 %v1927
    %v2488 = vunpack.c.l.b16 %v1928
    %v2489 = vunpack.c.h.b16 %v1928
    %v2490 = vunpack.c.l.b16 %v1929
    %v2491 = vunpack.c.h.b16 %v1929
    %v2492 = vunpack.c.l.b16 %v1930
    %v2493 = vunpack.c.h.b16 %v1930
    %v2494 = vunpack.c.l.b16 %v1931
    %v2495 = vunpack.c.h.b16 %v1931
    %v2496 = vunpack.c.l.b16 %v1932
    %v2497 = vunpack.c.h.b16 %v1932
    %v2498 = vunpack.c.l.b16 %v1933
    %v2499 = vunpack.c.h.b16 %v1933
    %v2500 = vunpack.c.l.b16 %v1934
    %v2501 = vunpack.c.h.b16 %v1934
    %v2502 = vunpack.c.l.b16 %v1935
    %v2503 = vunpack.c.h.b16 %v1935
    %v2504 = vunpack.c.l.b16 %v1936
    %v2505 = vunpack.c.h.b16 %v1936
    %v2506 = vunpack.c.l.b16 %v1937
    %v2507 = vunpack.c.h.b16 %v1937
    %v2508 = vunpack.c.l.b16 %v1938
    %v2509 = vunpack.c.h.b16 %v1938
    %v2510 = vunpack.c.l.b16 %v1939
    %v2511 = vunpack.c.h.b16 %v1939
    %v2512 = vunpack.c.l.b16 %v1940
    %v2513 = vunpack.c.h.b16 %v1940
    %v2514 = vunpack.c.l.b16 %v1941
    %v2515 = vunpack.c.h.b16 %v1941
    %v2516 = vunpack.c.l.b16 %v1942
    %v2517 = vunpack.c.h.b16 %v1942
    %v2518 = vunpack.c.l.b16 %v1943
    %v2519 = vunpack.c.h.b16 %v1943
    %v2520 = vunpack.c.l.b16 %v1944
    %v2521 = vunpack.c.h.b16 %v1944
    %v2522 = vunpack.c.l.b16 %v1945
    %v2523 = vunpack.c.h.b16 %v1945
    %v2524 = vunpack.c.l.b16 %v1946
    %v2525 = vunpack.c.h.b16 %v1946
    %v2526 = vunpack.c.l.b16 %v1947
    %v2527 = vunpack.c.h.b16 %v1947
    %v2528 = vunpack.c.l.b16 %v1948
    %v2529 = vunpack.c.h.b16 %v1948
    %v2530 = vunpack.c.l.b16 %v1949
    %v2531 = vunpack.c.h.b16 %v1949
    %v2532 = vunpack.c.l.b16 %v1950
    %v2533 = vunpack.c.h.b16 %v1950
    %v2534 = vunpack.c.l.b16 %v1951
    %v2535 = vunpack.c.h.b16 %v1951
    %v2536 = vunpack.c.l.b16 %v1952
    %v2537 = vunpack.c.h.b16 %v1952
    %v2538 = vunpack.c.l.b16 %v1953
    %v2539 = vunpack.c.h.b16 %v1953
    %v2540 = vunpack.c.l.b16 %v1954
    %v2541 = vunpack.c.h.b16 %v1954
    %v2542 = vunpack.c.l.b16 %v1955
    %v2543 = vunpack.c.h.b16 %v1955
    %v2544 = vunpack.c.l.b16 %v1956
    %v2545 = vunpack.c.h.b16 %v1956
    %v2546 = vunpack.c.l.b16 %v1957
    %v2547 = vunpack.c.h.b16 %v1957
    %v2548 = vunpack.c.l.b16 %v1958
    %v2549 = vunpack.c.h.b16 %v1958
    %v2550 = vunpack.c.l.b16 %v1959
    %v2551 = vunpack.c.h.b16 %v1959
    %v2552 = vunpack.c.l.b16 %v1960
    %v2553 = vunpack.c.h.b16 %v1960
    %v2554 = vunpack.c.l.b16 %v1961
    %v2555 = vunpack.c.h.b16 %v1961
    %v2556 = vunpack.c.l.b16 %v1962
    %v2557 = vunpack.c.h.b16 %v1962
    %v2558 = vunpack.c.l.b16 %v1963
    %v2559 = vunpack.c.h.b16 %v1963
    %v2560 = vunpack.c.l.b16 %v1964
    %v2561 = vunpack.c.h.b16 %v1964
    %v2562 = vunpack.c.l.b16 %v1965
    %v2563 = vunpack.c.h.b16 %v1965
    %v2564 = vunpack.c.l.b16 %v1966
    %v2565 = vunpack.c.h.b16 %v1966
    %v2566 = vunpack.c.l.b16 %v1967
    %v2567 = vunpack.c.h.b16 %v1967
    %v2568 = vunpack.c.l.b16 %v1968
    %v2569 = vunpack.c.h.b16 %v1968
    %v2570 = vunpack.c.l.b16 %v1969
    %v2571 = vunpack.c.h.b16 %v1969
    %v2572 = vunpack.c.l.b16 %v1970
    %v2573 = vunpack.c.h.b16 %v1970
    %v2574 = vunpack.c.l.b16 %v1971
    %v2575 = vunpack.c.h.b16 %v1971
    %v2576 = vunpack.c.l.b16 %v1972
    %v2577 = vunpack.c.h.b16 %v1972
    %v2578 = vunpack.c.l.b16 %v1973
    %v2579 = vunpack.c.h.b16 %v1973
    %v2580 = vunpack.c.l.b16 %v1974
    %v2581 = vunpack.c.h.b16 %v1974
    %v2582 = vunpack.c.l.b16 %v1975
    %v2583 = vunpack.c.h.b16 %v1975
    %v2584 = vunpack.c.l.b16 %v1976
    %v2585 = vunpack.c.h.b16 %v1976
    %v2586 = vunpack.c.l.b16 %v1977
    %v2587 = vunpack.c.h.b16 %v1977
    %v2588 = vunpack.c.l.b16 %v1978
    %v2589 = vunpack.c.h.b16 %v1978
    %v2590 = vunpack.c.l.b16 %v1979
    %v2591 = vunpack.c.h.b16 %v1979
    %v2592 = vunpack.c.l.b16 %v1980
    %v2593 = vunpack.c.h.b16 %v1980
    %v2594 = vunpack.c.l.b16 %v1981
    %v2595 = vunpack.c.h.b16 %v1981
    %v2596 = vunpack.c.l.b16 %v1982
    %v2597 = vunpack.c.h.b16 %v1982
    %v2598 = vunpack.c.l.b16 %v1983
    %v2599 = vunpack.c.h.b16 %v1983
    %v2600 = vunpack.c.l.b16 %v1984
    %v2601 = vunpack.c.h.b16 %v1984
    %v2602 = vunpack.c.l.b16 %v1985
    %v2603 = vunpack.c.h.b16 %v1985
    %v2604 = vunpack.c.l.b16 %v1986
    %v2605 = vunpack.c.h.b16 %v1986
    %v2606 = vunpack.c.l.b16 %v1987
    %v2607 = vunpack.c.h.b16 %v1987
    %v2608 = vunpack.c.l.b16 %v1988
    %v2609 = vunpack.c.h.b16 %v1988
    %v2610 = vunpack.c.l.b16 %v1989
    %v2611 = vunpack.c.h.b16 %v1989
    %v2612 = vunpack.c.l.b16 %v1990
    %v2613 = vunpack.c.h.b16 %v1990
    %v2614 = vunpack.c.l.b16 %v1991
    %v2615 = vunpack.c.h.b16 %v1991
    %v2616 = vunpack.c.l.b16 %v1992
    %v2617 = vunpack.c.h.b16 %v1992
    %v2618 = vunpack.c.l.b16 %v1993
    %v2619 = vunpack.c.h.b16 %v1993
    %v2620 = vunpack.c.l.b16 %v1994
    %v2621 = vunpack.c.h.b16 %v1994
    %v2622 = vunpack.c.l.b16 %v1995
    %v2623 = vunpack.c.h.b16 %v1995
    %v2624 = vunpack.c.l.b16 %v1996
    %v2625 = vunpack.c.h.b16 %v1996
    %v2626 = vunpack.c.l.b16 %v1997
    %v2627 = vunpack.c.h.b16 %v1997
    %v2628 = vunpack.c.l.b16 %v1998
    %v2629 = vunpack.c.h.b16 %v1998
    %v2630 = vunpack.c.l.b16 %v1999
    %v2631 = vunpack.c.h.b16 %v1999
    %v2632 = vunpack.c.l.b16 %v2000
    %v2633 = vunpack.c.h.b16 %v2000
    %v2634 = vunpack.c.l.b16 %v2001
    %v2635 = vunpack.c.h.b16 %v2001
    %v2636 = vunpack.c.l.b16 %v2002
    %v2637 = vunpack.c.h.b16 %v2002
    %v2638 = vunpack.c.l.b16 %v2003
    %v2639 = vunpack.c.h.b16 %v2003
    %v2640 = vunpack.c.l.b16 %v2004
    %v2641 = vunpack.c.h.b16 %v2004
    %v2642 = vunpack.c.l.b16 %v2005
    %v2643 = vunpack.c.h.b16 %v2005
    %v2644 = vunpack.c.l.b16 %v2006
    %v2645 = vunpack.c.h.b16 %v2006
    %v2646 = vunpack.c.l.b16 %v2007
    %v2647 = vunpack.c.h.b16 %v2007
    %v2648 = vunpack.c.l.b16 %v2008
    %v2649 = vunpack.c.h.b16 %v2008
    %v2650 = vunpack.c.l.b16 %v2009
    %v2651 = vunpack.c.h.b16 %v2009
    %v2652 = vunpack.c.l.b16 %v2010
    %v2653 = vunpack.c.h.b16 %v2010
    %v2654 = vunpack.c.l.b16 %v2011
    %v2655 = vunpack.c.h.b16 %v2011
    %v2656 = vunpack.c.l.b16 %v2012
    %v2657 = vunpack.c.h.b16 %v2012
    %v2658 = vunpack.c.l.b16 %v2013
    %v2659 = vunpack.c.h.b16 %v2013
    %v2660 = vunpack.c.l.b16 %v2014
    %v2661 = vunpack.c.h.b16 %v2014
    %v2662 = vunpack.c.l.b16 %v2015
    %v2663 = vunpack.c.h.b16 %v2015
    %v2664 = vunpack.c.l.b16 %v2016
    %v2665 = vunpack.c.h.b16 %v2016
    %v2666 = vunpack.c.l.b16 %v2017
    %v2667 = vunpack.c.h.b16 %v2017
    %v2668 = vunpack.c.l.b16 %v2018
    %v2669 = vunpack.c.h.b16 %v2018
    %v2670 = vunpack.c.l.b16 %v2019
    %v2671 = vunpack.c.h.b16 %v2019
    %v2672 = vunpack.c.l.b16 %v2020
    %v2673 = vunpack.c.h.b16 %v2020
    %v2674 = vunpack.c.l.b16 %v2021
    %v2675 = vunpack.c.h.b16 %v2021
    %v2676 = vunpack.c.l.b16 %v2022
    %v2677 = vunpack.c.h.b16 %v2022
    %v2678 = vunpack.c.l.b16 %v2023
    %v2679 = vunpack.c.h.b16 %v2023
    %v2680 = vunpack.c.l.b16 %v2024
    %v2681 = vunpack.c.h.b16 %v2024
    %v2682 = vunpack.c.l.b16 %v2025
    %v2683 = vunpack.c.h.b16 %v2025
    %v2684 = vunpack.c.l.b16 %v2026
    %v2685 = vunpack.c.h.b16 %v2026
    %v2686 = vunpack.c.l.b16 %v2027
    %v2687 = vunpack.c.h.b16 %v2027
    %v2688 = vunpack.c.l.b16 %v2028
    %v2689 = vunpack.c.h.b16 %v2028
    %v2690 = vunpack.c.l.b16 %v2029
    %v2691 = vunpack.c.h.b16 %v2029
    %v2692 = vunpack.c.l.b16 %v2030
    %v2693 = vunpack.c.h.b16 %v2030
    %v2694 = vunpack.c.l.b16 %v2031
    %v2695 = vunpack.c.h.b16 %v2031
    %v2696 = vunpack.c.l.b16 %v2032
    %v2697 = vunpack.c.h.b16 %v2032
    %v2698 = vunpack.c.l.b16 %v2033
    %v2699 = vunpack.c.h.b16 %v2033
    %v2700 = vunpack.c.l.b16 %v2034
    %v2701 = vunpack.c.h.b16 %v2034
    %v2702 = vunpack.c.l.b16 %v2035
    %v2703 = vunpack.c.h.b16 %v2035
    %v2704 = vunpack.c.l.b16 %v2036
    %v2705 = vunpack.c.h.b16 %v2036
    %v2706 = vunpack.c.l.b16 %v2037
    %v2707 = vunpack.c.h.b16 %v2037
    %v2708 = vunpack.c.l.b16 %v2038
    %v2709 = vunpack.c.h.b16 %v2038
    %v2710 = vunpack.c.l.b16 %v2039
    %v2711 = vunpack.c.h.b16 %v2039
    %v2712 = vunpack.c.l.b16 %v2040
    %v2713 = vunpack.c.h.b16 %v2040
    %v2714 = vunpack.c.l.b16 %v2041
    %v2715 = vunpack.c.h.b16 %v2041
    %v2716 = vunpack.c.l.b16 %v2042
    %v2717 = vunpack.c.h.b16 %v2042
    %v2718 = vunpack.c.l.b16 %v2043
    %v2719 = vunpack.c.h.b16 %v2043
    %v2720 = vunpack.c.l.b16 %v2044
    %v2721 = vunpack.c.h.b16 %v2044
    %v2722 = vunpack.c.l.b16 %v2045
    %v2723 = vunpack.c.h.b16 %v2045
    %v2724 = vunpack.c.l.b16 %v2046
    %v2725 = vunpack.c.h.b16 %v2046
    %v2726 = vunpack.c.l.b16 %v2047
    %v2727 = vunpack.c.h.b16 %v2047
    %v2728 = vunpack.c.l.b16 %v2048
    %v2729 = vunpack.c.h.b16 %v2048
    %v2730 = vunpack.c.l.b16 %v2049
    %v2731 = vunpack.c.h.b16 %v2049
    %v2732 = vunpack.c.l.b16 %v2050
    %v2733 = vunpack.c.h.b16 %v2050
    %v2734 = vunpack.c.l.b16 %v2051
    %v2735 = vunpack.c.h.b16 %v2051
    %v2736 = vunpack.c.l.b16 %v2052
    %v2737 = vunpack.c.h.b16 %v2052
    %v2738 = vunpack.c.l.b16 %v2053
    %v2739 = vunpack.c.h.b16 %v2053
    %v2740 = vunpack.c.l.b16 %v2054
    %v2741 = vunpack.c.h.b16 %v2054
    %v2742 = vunpack.c.l.b16 %v2055
    %v2743 = vunpack.c.h.b16 %v2055
    %v2744 = vunpack.c.l.b16 %v2056
    %v2745 = vunpack.c.h.b16 %v2056
    %v2746 = vunpack.c.l.b16 %v2057
    %v2747 = vunpack.c.h.b16 %v2057
    %v2748 = vunpack.c.l.b16 %v2058
    %v2749 = vunpack.c.h.b16 %v2058
    %v2750 = vunpack.c.l.b16 %v2059
    %v2751 = vunpack.c.h.b16 %v2059
    %v2752 = vunpack.c.l.b16 %v2060
    %v2753 = vunpack.c.h.b16 %v2060
    %v2754 = vunpack.c.l.b16 %v2061
    %v2755 = vunpack.c.h.b16 %v2061
    %v2756 = vunpack.c.l.b16 %v2062
    %v2757 = vunpack.c.h.b16 %v2062
    %v2758 = vunpack.c.l.b16 %v2063
    %v2759 = vunpack.c.h.b16 %v2063
    %v2760 = vunpack.c.l.b16 %v2064
    %v2761 = vunpack.c.h.b16 %v2064
    %v2762 = vunpack.c.l.b16 %v2065
    %v2763 = vunpack.c.h.b16 %v2065
    %v2764 = vunpack.c.l.b16 %v2066
    %v2765 = vunpack.c.h.b16 %v2066
    %v2766 = vunpack.c.l.b16 %v2067
    %v2767 = vunpack.c.h.b16 %v2067
    %v2768 = vunpack.c.l.b16 %v2068
    %v2769 = vunpack.c.h.b16 %v2068
    %v2770 = vunpack.c.l.b16 %v2069
    %v2771 = vunpack.c.h.b16 %v2069
    %v2772 = vunpack.c.l.b16 %v2070
    %v2773 = vunpack.c.h.b16 %v2070
    %v2774 = vunpack.c.l.b16 %v2071
    %v2775 = vunpack.c.h.b16 %v2071
    %v2776 = vunpack.c.l.b16 %v2072
    %v2777 = vunpack.c.h.b16 %v2072
    %v2778 = vunpack.c.l.b16 %v2073
    %v2779 = vunpack.c.h.b16 %v2073
    %v2780 = vunpack.c.l.b16 %v2074
    %v2781 = vunpack.c.h.b16 %v2074
    %v2782 = vunpack.c.l.b16 %v2075
    %v2783 = vunpack.c.h.b16 %v2075
    %v2784 = vunpack.c.l.b16 %v2076
    %v2785 = vunpack.c.h.b16 %v2076
    %v2786 = vunpack.c.l.b16 %v2077
    %v2787 = vunpack.c.h.b16 %v2077
    %v2788 = vunpack.c.l.b16 %v2078
    %v2789 = vunpack.c.h.b16 %v2078
    %v2790 = vunpack.c.l.b16 %v2079
    %v2791 = vunpack.c.h.b16 %v2079
    %v2792 = vunpack.c.l.b16 %v2080
    %v2793 = vunpack.c.h.b16 %v2080
    %v2794 = vunpack.c.l.b16 %v2081
    %v2795 = vunpack.c.h.b16 %v2081
    %v2796 = vunpack.c.l.b16 %v2082
    %v2797 = vunpack.c.h.b16 %v2082
    %v2798 = vunpack.c.l.b16 %v2083
    %v2799 = vunpack.c.h.b16 %v2083
    %v2800 = vunpack.c.l.b16 %v2084
    %v2801 = vunpack.c.h.b16 %v2084
    %v2802 = vunpack.c.l.b16 %v2085
    %v2803 = vunpack.c.h.b16 %v2085
    %v2804 = vunpack.c.l.b16 %v2086
    %v2805 = vunpack.c.h.b16 %v2086
    %v2806 = vunpack.c.l.b16 %v2087
    %v2807 = vunpack.c.h.b16 %v2087
    %v2808 = vunpack.c.l.b16 %v2088
    %v2809 = vunpack.c.h.b16 %v2088
    %v2810 = vunpack.c.l.b16 %v2089
    %v2811 = vunpack.c.h.b16 %v2089
    %v2812 = vunpack.c.l.b16 %v2090
    %v2813 = vunpack.c.h.b16 %v2090
    %v2814 = vunpack.c.l.b16 %v2091
    %v2815 = vunpack.c.h.b16 %v2091
    %v2816 = vunpack.c.l.b16 %v2092
    %v2817 = vunpack.c.h.b16 %v2092
    %v2818 = vunpack.c.l.b16 %v2093
    %v2819 = vunpack.c.h.b16 %v2093
    %v2820 = vunpack.c.l.b16 %v2094
    %v2821 = vunpack.c.h.b16 %v2094
    %v2822 = vunpack.c.l.b16 %v2095
    %v2823 = vunpack.c.h.b16 %v2095
    %v2824 = vunpack.c.l.b16 %v2096
    %v2825 = vunpack.c.h.b16 %v2096
    %v2826 = vunpack.c.l.b16 %v2097
    %v2827 = vunpack.c.h.b16 %v2097
    %v2828 = vunpack.c.l.b16 %v2098
    %v2829 = vunpack.c.h.b16 %v2098
    %v2830 = vunpack.c.l.b16 %v2099
    %v2831 = vunpack.c.h.b16 %v2099
    %v2832 = vunpack.c.l.b16 %v2100
    %v2833 = vunpack.c.h.b16 %v2100
    %v2834 = vunpack.c.l.b16 %v2101
    %v2835 = vunpack.c.h.b16 %v2101
    %v2836 = vunpack.c.l.b16 %v2102
    %v2837 = vunpack.c.h.b16 %v2102
    %v2838 = vunpack.c.l.b16 %v2103
    %v2839 = vunpack.c.h.b16 %v2103
    %v2840 = vunpack.c.l.b16 %v2104
    %v2841 = vunpack.c.h.b16 %v2104
    %v2842 = vunpack.c.l.b16 %v2105
    %v2843 = vunpack.c.h.b16 %v2105
    %v2844 = vunpack.c.l.b16 %v2106
    %v2845 = vunpack.c.h.b16 %v2106
    %v2846 = vunpack.c.l.b16 %v2107
    %v2847 = vunpack.c.h.b16 %v2107
    %v2848 = vunpack.c.l.b16 %v2108
    %v2849 = vunpack.c.h.b16 %v2108
    %v2850 = vunpack.c.l.b16 %v2109
    %v2851 = vunpack.c.h.b16 %v2109
    %v2852 = vunpack.c.l.b16 %v2110
    %v2853 = vunpack.c.h.b16 %v2110
    %v2854 = vunpack.c.l.b16 %v2111
    %v2855 = vunpack.c.h.b16 %v2111
    %v2856 = vunpack.c.l.b16 %v2112
    %v2857 = vunpack.c.h.b16 %v2112
    %v2858 = vunpack.c.l.b16 %v2113
    %v2859 = vunpack.c.h.b16 %v2113
    %v2860 = vunpack.c.l.b16 %v2114
    %v2861 = vunpack.c.h.b16 %v2114
    %v2862 = vunpack.c.l.b16 %v2115
    %v2863 = vunpack.c.h.b16 %v2115
    %v2864 = vunpack.c.l.b16 %v2116
    %v2865 = vunpack.c.h.b16 %v2116
    %v2866 = vunpack.c.l.b16 %v2117
    %v2867 = vunpack.c.h.b16 %v2117
    %v2868 = vunpack.c.l.b16 %v2118
    %v2869 = vunpack.c.h.b16 %v2118
    %v2870 = vunpack.c.l.b16 %v2119
    %v2871 = vunpack.c.h.b16 %v2119
    %v2872 = vunpack.c.l.b16 %v2120
    %v2873 = vunpack.c.h.b16 %v2120
    %v2874 = vunpack.c.l.b16 %v2121
    %v2875 = vunpack.c.h.b16 %v2121
    %v2876 = vunpack.c.l.b16 %v2122
    %v2877 = vunpack.c.h.b16 %v2122
    %v2878 = vunpack.c.l.b16 %v2123
    %v2879 = vunpack.c.h.b16 %v2123
    %v2880 = vunpack.c.l.b16 %v2124
    %v2881 = vunpack.c.h.b16 %v2124
    %v2882 = vunpack.c.l.b16 %v2125
    %v2883 = vunpack.c.h.b16 %v2125
    %v2884 = vunpack.c.l.b16 %v2126
    %v2885 = vunpack.c.h.b16 %v2126
    %v2886 = vunpack.c.l.b16 %v2127
    %v2887 = vunpack.c.h.b16 %v2127
    %v2888 = vunpack.c.l.b16 %v2128
    %v2889 = vunpack.c.h.b16 %v2128
    %v2890 = vunpack.c.l.b16 %v2129
    %v2891 = vunpack.c.h.b16 %v2129
    %v2892 = vunpack.c.l.b16 %v2130
    %v2893 = vunpack.c.h.b16 %v2130
    %v2894 = vunpack.c.l.b16 %v2131
    %v2895 = vunpack.c.h.b16 %v2131
    %v2896 = vunpack.c.l.b16 %v2132
    %v2897 = vunpack.c.h.b16 %v2132
    %v2898 = vunpack.c.l.b16 %v2133
    %v2899 = vunpack.c.h.b16 %v2133
    %v2900 = vunpack.c.l.b16 %v2134
    %v2901 = vunpack.c.h.b16 %v2134
    %v2902 = vunpack.c.l.b16 %v2135
    %v2903 = vunpack.c.h.b16 %v2135
    %v2904 = vunpack.c.l.b16 %v2136
    %v2905 = vunpack.c.h.b16 %v2136
    %v2906 = vunpack.c.l.b16 %v2137
    %v2907 = vunpack.c.h.b16 %v2137
    %v2908 = vunpack.c.l.b16 %v2138
    %v2909 = vunpack.c.h.b16 %v2138
    %v2910 = vunpack.c.l.b16 %v2139
    %v2911 = vunpack.c.h.b16 %v2139
    %v2912 = vunpack.c.l.b16 %v2140
    %v2913 = vunpack.c.h.b16 %v2140
    %v2914 = vunpack.c.l.b16 %v2141
    %v2915 = vunpack.c.h.b16 %v2141
    %v2916 = vunpack.c.l.b16 %v2142
    %v2917 = vunpack.c.h.b16 %v2142
    %v2918 = vunpack.c.l.b16 %v2143
    %v2919 = vunpack.c.h.b16 %v2143
    %v2920 = vunpack.c.l.b16 %v2144
    %v2921 = vunpack.c.h.b16 %v2144
    %v2922 = vunpack.c.l.b16 %v2145
    %v2923 = vunpack.c.h.b16 %v2145
    %v2924 = vunpack.c.l.b16 %v2146
    %v2925 = vunpack.c.h.b16 %v2146
    %v2926 = vunpack.c.l.b16 %v2147
    %v2927 = vunpack.c.h.b16 %v2147
    %v2928 = vunpack.c.l.b16 %v2148
    %v2929 = vunpack.c.h.b16 %v2148
    %v2930 = vunpack.c.l.b16 %v2149
    %v2931 = vunpack.c.h.b16 %v2149
    %v2932 = vunpack.c.l.b16 %v2150
    %v2933 = vunpack.c.h.b16 %v2150
    %v2934 = vunpack.c.l.b16 %v2151
    %v2935 = vunpack.c.h.b16 %v2151
    %v2936 = vunpack.c.l.b16 %v2152
    %v2937 = vunpack.c.h.b16 %v2152
    %v2938 = vunpack.c.l.b16 %v2153
    %v2939 = vunpack.c.h.b16 %v2153
    %v2940 = vunpack.c.l.b16 %v2154
    %v2941 = vunpack.c.h.b16 %v2154
    %v2942 = vunpack.c.l.b16 %v2155
    %v2943 = vunpack.c.h.b16 %v2155
    %v2944 = vunpack.c.l.b16 %v2156
    %v2945 = vunpack.c.h.b16 %v2156
    %v2946 = vunpack.c.l.b16 %v2157
    %v2947 = vunpack.c.h.b16 %v2157
    %v2948 = vunpack.c.l.b16 %v2158
    %v2949 = vunpack.c.h.b16 %v2158
    %v2950 = vunpack.c.l.b16 %v2159
    %v2951 = vunpack.c.h.b16 %v2159
    %v2952 = vunpack.c.l.b16 %v2160
    %v2953 = vunpack.c.h.b16 %v2160
    %v2954 = vunpack.c.l.b16 %v2161
    %v2955 = vunpack.c.h.b16 %v2161
    %v2956 = vpack.c.b16 %v2452, %v2444
    %v2957 = vpack.c.b16 %v2453, %v2445
    %v2958 = vpack.c.b16 %v2454, %v2446
    %v2959 = vpack.c.b16 %v2455, %v2447
    %v2960 = vpack.c.b16 %v2456, %v2448
    %v2961 = vpack.c.b16 %v2457, %v2449
    %v2962 = vpack.c.b16 %v2458, %v2450
    %v2963 = vpack.c.b16 %v2459, %v2451
    %v2964 = vpack.c.b16 %v2468, %v2460
    %v2965 = vpack.c.b16 %v2469, %v2461
    %v2966 = vpack.c.b16 %v2470, %v2462
    %v2967 = vpack.c.b16 %v2471, %v2463
    %v2968 = vpack.c.b16 %v2472, %v2464
    %v2969 = vpack.c.b16 %v2473, %v2465
    %v2970 = vpack.c.b16 %v2474, %v2466
    %v2971 = vpack.c.b16 %v2475, %v2467
    %v2972 = vpack.c.b16 %v2484, %v2476
    %v2973 = vpack.c.b16 %v2485, %v2477
    %v2974 = vpack.c.b16 %v2486, %v2478
    %v2975 = vpack.c.b16 %v2487, %v2479
    %v2976 = vpack.c.b16 %v2488, %v2480
    %v2977 = vpack.c.b16 %v2489, %v2481
    %v2978 = vpack.c.b16 %v2490, %v2482
    %v2979 = vpack.c.b16 %v2491, %v2483
    %v2980 = vpack.c.b16 %v2500, %v2492
    %v2981 = vpack.c.b16 %v2501, %v2493
    %v2982 = vpack.c.b16 %v2502, %v2494
    %v2983 = vpack.c.b16 %v2503, %v2495
    %v2984 = vpack.c.b16 %v2504, %v2496
    %v2985 = vpack.c.b16 %v2505, %v2497
    %v2986 = vpack.c.b16 %v2506, %v2498
    %v2987 = vpack.c.b16 %v2507, %v2499
    %v2988 = vpack.c.b16 %v2516, %v2508
    %v2989 = vpack.c.b16 %v2517, %v2509
    %v2990 = vpack.c.b16 %v2518, %v2510
    %v2991 = vpack.c.b16 %v2519, %v2511
    %v2992 = vpack.c.b16 %v2520, %v2512
    %v2993 = vpack.c.b16 %v2521, %v2513
    %v2994 = vpack.c.b16 %v2522, %v2514
    %v2995 = vpack.c.b16 %v2523, %v2515
    %v2996 = vpack.c.b16 %v2532, %v2524
    %v2997 = vpack.c.b16 %v2533, %v2525
    %v2998 = vpack.c.b16 %v2534, %v2526
    %v2999 = vpack.c.b16 %v2535, %v2527
    %v3000 = vpack.c.b16 %v2536, %v2528
    %v3001 = vpack.c.b16 %v2537, %v2529
    %v3002 = vpack.c.b16 %v2538, %v2530
    %v3003 = vpack.c.b16 %v2539, %v2531
    %v3004 = vpack.c.b16 %v2548, %v2540
    %v3005 = vpack.c.b16 %v2549, %v2541
    %v3006 = vpack.c.b16 %v2550, %v2542
    %v3007 = vpack.c.b16 %v2551, %v2543
    %v3008 = vpack.c.b16 %v2552, %v2544
    %v3009 = vpack.c.b16 %v2553, %v2545
    %v3010 = vpack.c.b16 %v2554, %v2546
    %v3011 = vpack.c.b16 %v2555, %v2547
    %v3012 = vpack.c.b16 %v2564, %v2556
    %v3013 = vpack.c.b16 %v2565, %v2557
    %v3014 = vpack.c.b16 %v2566, %v2558
    %v3015 = vpack.c.b16 %v2567, %v2559
    %v3016 = vpack.c.b16 %v2568, %v2560
    %v3017 = vpack.c.b16 %v2569, %v2561
    %v3018 = vpack.c.b16 %v2570, %v2562
    %v3019 = vpack.c.b16 %v2571, %v2563
    %v3020 = vpack.c.b16 %v2580, %v2572
    %v3021 = vpack.c.b16 %v2581, %v2573
    %v3022 = vpack.c.b16 %v2582, %v2574
    %v3023 = vpack.c.b16 %v2583, %v2575
    %v3024 = vpack.c.b16 %v2584, %v2576
    %v3025 = vpack.c.b16 %v2585, %v2577
    %v3026 = vpack.c.b16 %v2586, %v2578
    %v3027 = vpack.c.b16 %v2587, %v2579
    %v3028 = vpack.c.b16 %v2596, %v2588
    %v3029 = vpack.c.b16 %v2597, %v2589
    %v3030 = vpack.c.b16 %v2598, %v2590
    %v3031 = vpack.c.b16 %v2599, %v2591
    %v3032 = vpack.c.b16 %v2600, %v2592
    %v3033 = vpack.c.b16 %v2601, %v2593
    %v3034 = vpack.c.b16 %v2602, %v2594
    %v3035 = vpack.c.b16 %v2603, %v2595
    %v3036 = vpack.c.b16 %v2612, %v2604
    %v3037 = vpack.c.b16 %v2613, %v2605
    %v3038 = vpack.c.b16 %v2614, %v2606
    %v3039 = vpack.c.b16 %v2615, %v2607
    %v3040 = vpack.c.b16 %v2616, %v2608
    %v3041 = vpack.c.b16 %v2617, %v2609
    %v3042 = vpack.c.b16 %v2618, %v2610
    %v3043 = vpack.c.b16 %v2619, %v2611
    %v3044 = vpack.c.b16 %v2628, %v2620
    %v3045 = vpack.c.b16 %v2629, %v2621
    %v3046 = vpack.c.b16 %v2630, %v2622
    %v3047 = vpack.c.b16 %v2631, %v2623
    %v3048 = vpack.c.b16 %v2632, %v2624
    %v3049 = vpack.c.b16 %v2633, %v2625
    %v3050 = vpack.c.b16 %v2634, %v2626
    %v3051 = vpack.c.b16 %v2635, %v2627
    %v3052 = vpack.c.b16 %v2644, %v2636
    %v3053 = vpack.c.b16 %v2645, %v2637
    %v3054 = vpack.c.b16 %v2646, %v2638
    %v3055 = vpack.c.b16 %v2647, %v2639
    %v3056 = vpack.c.b16 %v2648, %v2640
    %v3057 = vpack.c.b16 %v2649, %v2641
    %v3058 = vpack.c.b16 %v2650, %v2642
    %v3059 = vpack.c.b16 %v2651, %v2643
    %v3060 = vpack.c.b16 %v2660, %v2652
    %v3061 = vpack.c.b16 %v2661, %v2653
    %v3062 = vpack.c.b16 %v2662, %v2654
    %v3063 = vpack.c.b16 %v2663, %v2655
    %v3064 = vpack.c.b16 %v2664, %v2656
    %v3065 = vpack.c.b16 %v2665, %v2657
    %v3066 = vpack.c.b16 %v2666, %v2658
    %v3067 = vpack.c.b16 %v2667, %v2659
    %v3068 = vpack.c.b16 %v2676, %v2668
    %v3069 = vpack.c.b16 %v2677, %v2669
    %v3070 = vpack.c.b16 %v2678, %v2670
    %v3071 = vpack.c.b16 %v2679, %v2671
    %v3072 = vpack.c.b16 %v2680, %v2672
    %v3073 = vpack.c.b16 %v2681, %v2673
    %v3074 = vpack.c.b16 %v2682, %v2674
    %v3075 = vpack.c.b16 %v2683, %v2675
    %v3076 = vpack.c.b16 %v2692, %v2684
    %v3077 = vpack.c.b16 %v2693, %v2685
    %v3078 = vpack.c.b16 %v2694, %v2686
    %v3079 = vpack.c.b16 %v2695, %v2687
    %v3080 = vpack.c.b16 %v2696, %v2688
    %v3081 = vpack.c.b16 %v2697, %v2689
    %v3082 = vpack.c.b16 %v2698, %v2690
    %v3083 = vpack.c.b16 %v2699, %v2691
    %v3084 = vpack.c.b16 %v2708, %v2700
    %v3085 = vpack.c.b16 %v2709, %v2701
    %v3086 = vpack.c.b16 %v2710, %v2702
    %v3087 = vpack.c.b16 %v2711, %v2703
    %v3088 = vpack.c.b16 %v2712, %v2704
    %v3089 = vpack.c.b16 %v2713, %v2705
    %v3090 = vpack.c.b16 %v2714, %v2706
    %v3091 = vpack.c.b16 %v2715, %v2707
    %v3092 = vpack.c.b16 %v2724, %v2716
    %v3093 = vpack.c.b16 %v2725, %v2717
    %v3094 = vpack.c.b16 %v2726, %v2718
    %v3095 = vpack.c.b16 %v2727, %v2719
    %v3096 = vpack.c.b16 %v2728, %v2720
    %v3097 = vpack.c.b16 %v2729, %v2721
    %v3098 = vpack.c.b16 %v2730, %v2722
    %v3099 = vpack.c.b16 %v2731, %v2723
    %v3100 = vpack.c.b16 %v2740, %v2732
    %v3101 = vpack.c.b16 %v2741, %v2733
    %v3102 = vpack.c.b16 %v2742, %v2734
    %v3103 = vpack.c.b16 %v2743, %v2735
    %v3104 = vpack.c.b16 %v2744, %v2736
    %v3105 = vpack.c.b16 %v2745, %v2737
    %v3106 = vpack.c.b16 %v2746, %v2738
    %v3107 = vpack.c.b16 %v2747, %v2739
    %v3108 = vpack.c.b16 %v2756, %v2748
    %v3109 = vpack.c.b16 %v2757, %v2749
    %v3110 = vpack.c.b16 %v2758, %v2750
    %v3111 = vpack.c.b16 %v2759, %v2751
    %v3112 = vpack.c.b16 %v2760, %v2752
    %v3113 = vpack.c.b16 %v2761, %v2753
    %v3114 = vpack.c.b16 %v2762, %v2754
    %v3115 = vpack.c.b16 %v2763, %v2755
    %v3116 = vpack.c.b16 %v2772, %v2764
    %v3117 = vpack.c.b16 %v2773, %v2765
    %v3118 = vpack.c.b16 %v2774, %v2766
    %v3119 = vpack.c.b16 %v2775, %v2767
    %v3120 = vpack.c.b16 %v2776, %v2768
    %v3121 = vpack.c.b16 %v2777, %v2769
    %v3122 = vpack.c.b16 %v2778, %v2770
    %v3123 = vpack.c.b16 %v2779, %v2771
    %v3124 = vpack.c.b16 %v2788, %v2780
    %v3125 = vpack.c.b16 %v2789, %v2781
    %v3126 = vpack.c.b16 %v2790, %v2782
    %v3127 = vpack.c.b16 %v2791, %v2783
    %v3128 = vpack.c.b16 %v2792, %v2784
    %v3129 = vpack.c.b16 %v2793, %v2785
    %v3130 = vpack.c.b16 %v2794, %v2786
    %v3131 = vpack.c.b16 %v2795, %v2787
    %v3132 = vpack.c.b16 %v2804, %v2796
    %v3133 = vpack.c.b16 %v2805, %v2797
    %v3134 = vpack.c.b16 %v2806, %v2798
    %v3135 = vpack.c.b16 %v2807, %v2799
    %v3136 = vpack.c.b16 %v2808, %v2800
    %v3137 = vpack.c.b16 %v2809, %v2801
    %v3138 = vpack.c.b16 %v2810, %v2802
    %v3139 = vpack.c.b16 %v2811, %v2803
    %v3140 = vpack.c.b16 %v2820, %v2812
    %v3141 = vpack.c.b16 %v2821, %v2813
    %v3142 = vpack.c.b16 %v2822, %v2814
    %v3143 = vpack.c.b16 %v2823, %v2815
    %v3144 = vpack.c.b16 %v2824, %v2816
    %v3145 = vpack.c.b16 %v2825, %v2817
    %v3146 = vpack.c.b16 %v2826, %v2818
    %v3147 = vpack.c.b16 %v2827, %v2819
    %v3148 = vpack.c.b16 %v2836, %v2828
    %v3149 = vpack.c.b16 %v2837, %v2829
    %v3150 = vpack.c.b16 %v2838, %v2830
    %v3151 = vpack.c.b16 %v2839, %v2831
    %v3152 = vpack.c.b16 %v2840, %v2832
    %v3153 = vpack.c.b16 %v2841, %v2833
    %v3154 = vpack.c.b16 %v2842, %v2834
    %v3155 = vpack.c.b16 %v2843, %v2835
    %v3156 = vpack.c.b16 %v2852, %v2844
    %v3157 = vpack.c.b16 %v2853, %v2845
    %v3158 = vpack.c.b16 %v2854, %v2846
    %v3159 = vpack.c.b16 %v2855, %v2847
    %v3160 = vpack.c.b16 %v2856, %v2848
    %v3161 = vpack.c.b16 %v2857, %v2849
    %v3162 = vpack.c.b16 %v2858, %v2850
    %v3163 = vpack.c.b16 %v2859, %v2851
    %v3164 = vpack.c.b16 %v2868, %v2860
    %v3165 = vpack.c.b16 %v2869, %v2861
    %v3166 = vpack.c.b16 %v2870, %v2862
    %v3167 = vpack.c.b16 %v2871, %v2863
    %v3168 = vpack.c.b16 %v2872, %v2864
    %v3169 = vpack.c.b16 %v2873, %v2865
    %v3170 = vpack.c.b16 %v2874, %v2866
    %v3171 = vpack.c.b16 %v2875, %v2867
    %v3172 = vpack.c.b16 %v2884, %v2876
    %v3173 = vpack.c.b16 %v2885, %v2877
    %v3174 = vpack.c.b16 %v2886, %v2878
    %v3175 = vpack.c.b16 %v2887, %v2879
    %v3176 = vpack.c.b16 %v2888, %v2880
    %v3177 = vpack.c.b16 %v2889, %v2881
    %v3178 = vpack.c.b16 %v2890, %v2882
    %v3179 = vpack.c.b16 %v2891, %v2883
    %v3180 = vpack.c.b16 %v2900, %v2892
    %v3181 = vpack.c.b16 %v2901, %v2893
    %v3182 = vpack.c.b16 %v2902, %v2894
    %v3183 = vpack.c.b16 %v2903, %v2895
    %v3184 = vpack.c.b16 %v2904, %v2896
    %v3185 = vpack.c.b16 %v2905, %v2897
    %v3186 = vpack.c.b16 %v2906, %v2898
    %v3187 = vpack.c.b16 %v2907, %v2899
    %v3188 = vpack.c.b16 %v2916, %v2908
    %v3189 = vpack.c.b16 %v2917, %v2909
    %v3190 = vpack.c.b16 %v2918, %v2910
    %v3191 = vpack.c.b16 %v2919, %v2911
    %v3192 = vpack.c.b16 %v2920, %v2912
    %v3193 = vpack.c.b16 %v2921, %v2913
    %v3194 = vpack.c.b16 %v2922, %v2914
    %v3195 = vpack.c.b16 %v2923, %v2915
    %v3196 = vpack.c.b16 %v2932, %v2924
    %v3197 = vpack.c.b16 %v2933, %v2925
    %v3198 = vpack.c.b16 %v2934, %v2926
    %v3199 = vpack.c.b16 %v2935, %v2927
    %v3200 = vpack.c.b16 %v2936, %v2928
    %v3201 = vpack.c.b16 %v2937, %v2929
    %v3202 = vpack.c.b16 %v2938, %v2930
    %v3203 = vpack.c.b16 %v2939, %v2931
    %v3204 = vpack.c.b16 %v2948, %v2940
    %v3205 = vpack.c.b16 %v2949, %v2941
    %v3206 = vpack.c.b16 %v2950, %v2942
    %v3207 = vpack.c.b16 %v2951, %v2943
    %v3208 = vpack.c.b16 %v2952, %v2944
    %v3209 = vpack.c.b16 %v2953, %v2945
    %v3210 = vpack.c.b16 %v2954, %v2946
    %v3211 = vpack.c.b16 %v2955, %v2947
    %3468 = vmatpush.bf16.msra.mxu0 %v3012
    %3469 = vmatpush.bf16.msra.mxu0 %v3004
    %3470 = vmatpush.bf16.msra.mxu0 %v2996
    %3471 = vmatpush.bf16.msra.mxu0 %v2988
    %3472 = vmatpush.bf16.msra.mxu0 %v2980
    %3473 = vmatpush.bf16.msra.mxu0 %v2972
    %3474 = vmatpush.bf16.msra.mxu0 %v2964
    %3475 = vmatpush.bf16.msra.mxu0 %v2956
    %3476 = vmatmul.bf16.gmra.mxu0 %v2162
    %v3477 = vpop.f32.mrf.mxu0
    %v3478 = vadd.f32 %v2172, %v3477
    %v3479 = vpop.f32.mrf.mxu0
    %v3480 = vadd.f32 %v2172, %v3479
    %3481 = vmatmul.bf16.gmra.mxu0 %v2166
    %v3482 = vpop.f32.mrf.mxu0
    %v3483 = vadd.f32 %v2172, %v3482
    %v3484 = vpop.f32.mrf.mxu0
    %3485 = vdwg.mxu0
    %3486 = vmatpush.bf16.msra.mxu0 %v3076
    %3487 = vmatpush.bf16.msra.mxu0 %v3068
    %3488 = vmatpush.bf16.msra.mxu0 %v3060
    %3489 = vmatpush.bf16.msra.mxu0 %v3052
    %3490 = vmatpush.bf16.msra.mxu0 %v3044
    %3491 = vmatpush.bf16.msra.mxu0 %v3036
    %3492 = vmatpush.bf16.msra.mxu0 %v3028
    %3493 = vmatpush.bf16.msra.mxu0 %v3020
    %3494 = vmatmul.bf16.gmra.mxu0 %v2163
    %v3495 = vpop.f32.mrf.mxu0
    %v3496 = vadd.f32 %v3478, %v3495
    %v3497 = vpop.f32.mrf.mxu0
    %v3498 = vadd.f32 %v3480, %v3497
    %3499 = vmatmul.bf16.gmra.mxu0 %v2167
    %v3500 = vpop.f32.mrf.mxu0
    %v3501 = vadd.f32 %v3483, %v3500
    %v3502 = vpop.f32.mrf.mxu0
    %3503 = vdwg.mxu0
    %3504 = vmatpush.bf16.msra.mxu0 %v3140
    %3505 = vmatpush.bf16.msra.mxu0 %v3132
    %3506 = vmatpush.bf16.msra.mxu0 %v3124
    %3507 = vmatpush.bf16.msra.mxu0 %v3116
    %3508 = vmatpush.bf16.msra.mxu0 %v3108
    %3509 = vmatpush.bf16.msra.mxu0 %v3100
    %3510 = vmatpush.bf16.msra.mxu0 %v3092
    %3511 = vmatpush.bf16.msra.mxu0 %v3084
    %3512 = vmatmul.bf16.gmra.mxu0 %v2164
    %v3513 = vpop.f32.mrf.mxu0
    %v3514 = vadd.f32 %v3496, %v3513
    %v3515 = vpop.f32.mrf.mxu0
    %v3516 = vadd.f32 %v3498, %v3515
    %3517 = vmatmul.bf16.gmra.mxu0 %v2168
    %v3518 = vpop.f32.mrf.mxu0
    %v3519 = vadd.f32 %v3501, %v3518
    %v3520 = vpop.f32.mrf.mxu0
    %3521 = vdwg.mxu0
    %3522 = vmatpush.bf16.msra.mxu0 %v3204
    %3523 = vmatpush.bf16.msra.mxu0 %v3196
    %3524 = vmatpush.bf16.msra.mxu0 %v3188
    %3525 = vmatpush.bf16.msra.mxu0 %v3180
    %3526 = vmatpush.bf16.msra.mxu0 %v3172
    %3527 = vmatpush.bf16.msra.mxu0 %v3164
    %3528 = vmatpush.bf16.msra.mxu0 %v3156
    %3529 = vmatpush.bf16.msra.mxu0 %v3148
    %3530 = vmatmul.bf16.gmra.mxu0 %v2165
    %v3531 = vpop.f32.mrf.mxu0
    %v3532 = vadd.f32 %v3514, %v3531
    %v3533 = vpop.f32.mrf.mxu0
    %v3534 = vadd.f32 %v3516, %v3533
    %3535 = vmatmul.bf16.gmra.mxu0 %v2169
    %v3536 = vpop.f32.mrf.mxu0
    %v3537 = vadd.f32 %v3519, %v3536
    %v3538 = vpop.f32.mrf.mxu0
    %3539 = vdwg.mxu0
    %3540 = vmatpush.bf16.msra.mxu0 %v3013
    %3541 = vmatpush.bf16.msra.mxu0 %v3005
    %3542 = vmatpush.bf16.msra.mxu0 %v2997
    %3543 = vmatpush.bf16.msra.mxu0 %v2989
    %3544 = vmatpush.bf16.msra.mxu0 %v2981
    %3545 = vmatpush.bf16.msra.mxu0 %v2973
    %3546 = vmatpush.bf16.msra.mxu0 %v2965
    %3547 = vmatpush.bf16.msra.mxu0 %v2957
    %3548 = vmatmul.bf16.gmra.mxu0 %v2162
    %v3549 = vpop.f32.mrf.mxu0
    %v3550 = vadd.f32 %v2173, %v3549
    %v3551 = vpop.f32.mrf.mxu0
    %v3552 = vadd.f32 %v2173, %v3551
    %3553 = vmatmul.bf16.gmra.mxu0 %v2166
    %v3554 = vpop.f32.mrf.mxu0
    %v3555 = vadd.f32 %v2173, %v3554
    %v3556 = vpop.f32.mrf.mxu0
    %3557 = vdwg.mxu0
    %3558 = vmatpush.bf16.msra.mxu0 %v3077
    %3559 = vmatpush.bf16.msra.mxu0 %v3069
    %3560 = vmatpush.bf16.msra.mxu0 %v3061
    %3561 = vmatpush.bf16.msra.mxu0 %v3053
    %3562 = vmatpush.bf16.msra.mxu0 %v3045
    %3563 = vmatpush.bf16.msra.mxu0 %v3037
    %3564 = vmatpush.bf16.msra.mxu0 %v3029
    %3565 = vmatpush.bf16.msra.mxu0 %v3021
    %3566 = vmatmul.bf16.gmra.mxu0 %v2163
    %v3567 = vpop.f32.mrf.mxu0
    %v3568 = vadd.f32 %v3550, %v3567
    %v3569 = vpop.f32.mrf.mxu0
    %v3570 = vadd.f32 %v3552, %v3569
    %3571 = vmatmul.bf16.gmra.mxu0 %v2167
    %v3572 = vpop.f32.mrf.mxu0
    %v3573 = vadd.f32 %v3555, %v3572
    %v3574 = vpop.f32.mrf.mxu0
    %3575 = vdwg.mxu0
    %3576 = vmatpush.bf16.msra.mxu0 %v3141
    %3577 = vmatpush.bf16.msra.mxu0 %v3133
    %3578 = vmatpush.bf16.msra.mxu0 %v3125
    %3579 = vmatpush.bf16.msra.mxu0 %v3117
    %3580 = vmatpush.bf16.msra.mxu0 %v3109
    %3581 = vmatpush.bf16.msra.mxu0 %v3101
    %3582 = vmatpush.bf16.msra.mxu0 %v3093
    %3583 = vmatpush.bf16.msra.mxu0 %v3085
    %3584 = vmatmul.bf16.gmra.mxu0 %v2164
    %v3585 = vpop.f32.mrf.mxu0
    %v3586 = vadd.f32 %v3568, %v3585
    %v3587 = vpop.f32.mrf.mxu0
    %v3588 = vadd.f32 %v3570, %v3587
    %3589 = vmatmul.bf16.gmra.mxu0 %v2168
    %v3590 = vpop.f32.mrf.mxu0
    %v3591 = vadd.f32 %v3573, %v3590
    %v3592 = vpop.f32.mrf.mxu0
    %3593 = vdwg.mxu0
    %3594 = vmatpush.bf16.msra.mxu0 %v3205
    %3595 = vmatpush.bf16.msra.mxu0 %v3197
    %3596 = vmatpush.bf16.msra.mxu0 %v3189
    %3597 = vmatpush.bf16.msra.mxu0 %v3181
    %3598 = vmatpush.bf16.msra.mxu0 %v3173
    %3599 = vmatpush.bf16.msra.mxu0 %v3165
    %3600 = vmatpush.bf16.msra.mxu0 %v3157
    %3601 = vmatpush.bf16.msra.mxu0 %v3149
    %3602 = vmatmul.bf16.gmra.mxu0 %v2165
    %v3603 = vpop.f32.mrf.mxu0
    %v3604 = vadd.f32 %v3586, %v3603
    %v3605 = vpop.f32.mrf.mxu0
    %v3606 = vadd.f32 %v3588, %v3605
    %3607 = vmatmul.bf16.gmra.mxu0 %v2169
    %v3608 = vpop.f32.mrf.mxu0
    %v3609 = vadd.f32 %v3591, %v3608
    %v3610 = vpop.f32.mrf.mxu0
    %3611 = vdwg.mxu0
    %3612 = vmatpush.bf16.msra.mxu0 %v3014
    %3613 = vmatpush.bf16.msra.mxu0 %v3006
    %3614 = vmatpush.bf16.msra.mxu0 %v2998
    %3615 = vmatpush.bf16.msra.mxu0 %v2990
    %3616 = vmatpush.bf16.msra.mxu0 %v2982
    %3617 = vmatpush.bf16.msra.mxu0 %v2974
    %3618 = vmatpush.bf16.msra.mxu0 %v2966
    %3619 = vmatpush.bf16.msra.mxu0 %v2958
    %3620 = vmatmul.bf16.gmra.mxu0 %v2162
    %v3621 = vpop.f32.mrf.mxu0
    %v3622 = vadd.f32 %v2174, %v3621
    %v3623 = vpop.f32.mrf.mxu0
    %v3624 = vadd.f32 %v2174, %v3623
    %3625 = vmatmul.bf16.gmra.mxu0 %v2166
    %v3626 = vpop.f32.mrf.mxu0
    %v3627 = vadd.f32 %v2174, %v3626
    %v3628 = vpop.f32.mrf.mxu0
    %3629 = vdwg.mxu0
    %3630 = vmatpush.bf16.msra.mxu0 %v3078
    %3631 = vmatpush.bf16.msra.mxu0 %v3070
    %3632 = vmatpush.bf16.msra.mxu0 %v3062
    %3633 = vmatpush.bf16.msra.mxu0 %v3054
    %3634 = vmatpush.bf16.msra.mxu0 %v3046
    %3635 = vmatpush.bf16.msra.mxu0 %v3038
    %3636 = vmatpush.bf16.msra.mxu0 %v3030
    %3637 = vmatpush.bf16.msra.mxu0 %v3022
    %3638 = vmatmul.bf16.gmra.mxu0 %v2163
    %v3639 = vpop.f32.mrf.mxu0
    %v3640 = vadd.f32 %v3622, %v3639
    %v3641 = vpop.f32.mrf.mxu0
    %v3642 = vadd.f32 %v3624, %v3641
    %3643 = vmatmul.bf16.gmra.mxu0 %v2167
    %v3644 = vpop.f32.mrf.mxu0
    %v3645 = vadd.f32 %v3627, %v3644
    %v3646 = vpop.f32.mrf.mxu0
    %3647 = vdwg.mxu0
    %3648 = vmatpush.bf16.msra.mxu0 %v3142
    %3649 = vmatpush.bf16.msra.mxu0 %v3134
    %3650 = vmatpush.bf16.msra.mxu0 %v3126
    %3651 = vmatpush.bf16.msra.mxu0 %v3118
    %3652 = vmatpush.bf16.msra.mxu0 %v3110
    %3653 = vmatpush.bf16.msra.mxu0 %v3102
    %3654 = vmatpush.bf16.msra.mxu0 %v3094
    %3655 = vmatpush.bf16.msra.mxu0 %v3086
    %3656 = vmatmul.bf16.gmra.mxu0 %v2164
    %v3657 = vpop.f32.mrf.mxu0
    %v3658 = vadd.f32 %v3640, %v3657
    %v3659 = vpop.f32.mrf.mxu0
    %v3660 = vadd.f32 %v3642, %v3659
    %3661 = vmatmul.bf16.gmra.mxu0 %v2168
    %v3662 = vpop.f32.mrf.mxu0
    %v3663 = vadd.f32 %v3645, %v3662
    %v3664 = vpop.f32.mrf.mxu0
    %3665 = vdwg.mxu0
    %3666 = vmatpush.bf16.msra.mxu0 %v3206
    %3667 = vmatpush.bf16.msra.mxu0 %v3198
    %3668 = vmatpush.bf16.msra.mxu0 %v3190
    %3669 = vmatpush.bf16.msra.mxu0 %v3182
    %3670 = vmatpush.bf16.msra.mxu0 %v3174
    %3671 = vmatpush.bf16.msra.mxu0 %v3166
    %3672 = vmatpush.bf16.msra.mxu0 %v3158
    %3673 = vmatpush.bf16.msra.mxu0 %v3150
    %3674 = vmatmul.bf16.gmra.mxu0 %v2165
    %v3675 = vpop.f32.mrf.mxu0
    %v3676 = vadd.f32 %v3658, %v3675
    %v3677 = vpop.f32.mrf.mxu0
    %v3678 = vadd.f32 %v3660, %v3677
    %3679 = vmatmul.bf16.gmra.mxu0 %v2169
    %v3680 = vpop.f32.mrf.mxu0
    %v3681 = vadd.f32 %v3663, %v3680
    %v3682 = vpop.f32.mrf.mxu0
    %3683 = vdwg.mxu0
    %3684 = vmatpush.bf16.msra.mxu0 %v3015
    %3685 = vmatpush.bf16.msra.mxu0 %v3007
    %3686 = vmatpush.bf16.msra.mxu0 %v2999
    %3687 = vmatpush.bf16.msra.mxu0 %v2991
    %3688 = vmatpush.bf16.msra.mxu0 %v2983
    %3689 = vmatpush.bf16.msra.mxu0 %v2975
    %3690 = vmatpush.bf16.msra.mxu0 %v2967
    %3691 = vmatpush.bf16.msra.mxu0 %v2959
    %3692 = vmatmul.bf16.gmra.mxu0 %v2162
    %v3693 = vpop.f32.mrf.mxu0
    %v3694 = vadd.f32 %v2175, %v3693
    %v3695 = vpop.f32.mrf.mxu0
    %v3696 = vadd.f32 %v2175, %v3695
    %3697 = vmatmul.bf16.gmra.mxu0 %v2166
    %v3698 = vpop.f32.mrf.mxu0
    %v3699 = vadd.f32 %v2175, %v3698
    %v3700 = vpop.f32.mrf.mxu0
    %3701 = vdwg.mxu0
    %3702 = vmatpush.bf16.msra.mxu0 %v3079
    %3703 = vmatpush.bf16.msra.mxu0 %v3071
    %3704 = vmatpush.bf16.msra.mxu0 %v3063
    %3705 = vmatpush.bf16.msra.mxu0 %v3055
    %3706 = vmatpush.bf16.msra.mxu0 %v3047
    %3707 = vmatpush.bf16.msra.mxu0 %v3039
    %3708 = vmatpush.bf16.msra.mxu0 %v3031
    %3709 = vmatpush.bf16.msra.mxu0 %v3023
    %3710 = vmatmul.bf16.gmra.mxu0 %v2163
    %v3711 = vpop.f32.mrf.mxu0
    %v3712 = vadd.f32 %v3694, %v3711
    %v3713 = vpop.f32.mrf.mxu0
    %v3714 = vadd.f32 %v3696, %v3713
    %3715 = vmatmul.bf16.gmra.mxu0 %v2167
    %v3716 = vpop.f32.mrf.mxu0
    %v3717 = vadd.f32 %v3699, %v3716
    %v3718 = vpop.f32.mrf.mxu0
    %3719 = vdwg.mxu0
    %3720 = vmatpush.bf16.msra.mxu0 %v3143
    %3721 = vmatpush.bf16.msra.mxu0 %v3135
    %3722 = vmatpush.bf16.msra.mxu0 %v3127
    %3723 = vmatpush.bf16.msra.mxu0 %v3119
    %3724 = vmatpush.bf16.msra.mxu0 %v3111
    %3725 = vmatpush.bf16.msra.mxu0 %v3103
    %3726 = vmatpush.bf16.msra.mxu0 %v3095
    %3727 = vmatpush.bf16.msra.mxu0 %v3087
    %3728 = vmatmul.bf16.gmra.mxu0 %v2164
    %v3729 = vpop.f32.mrf.mxu0
    %v3730 = vadd.f32 %v3712, %v3729
    %v3731 = vpop.f32.mrf.mxu0
    %v3732 = vadd.f32 %v3714, %v3731
    %3733 = vmatmul.bf16.gmra.mxu0 %v2168
    %v3734 = vpop.f32.mrf.mxu0
    %v3735 = vadd.f32 %v3717, %v3734
    %v3736 = vpop.f32.mrf.mxu0
    %3737 = vdwg.mxu0
    %3738 = vmatpush.bf16.msra.mxu0 %v3207
    %3739 = vmatpush.bf16.msra.mxu0 %v3199
    %3740 = vmatpush.bf16.msra.mxu0 %v3191
    %3741 = vmatpush.bf16.msra.mxu0 %v3183
    %3742 = vmatpush.bf16.msra.mxu0 %v3175
    %3743 = vmatpush.bf16.msra.mxu0 %v3167
    %3744 = vmatpush.bf16.msra.mxu0 %v3159
    %3745 = vmatpush.bf16.msra.mxu0 %v3151
    %3746 = vmatmul.bf16.gmra.mxu0 %v2165
    %v3747 = vpop.f32.mrf.mxu0
    %v3748 = vadd.f32 %v3730, %v3747
    %v3749 = vpop.f32.mrf.mxu0
    %v3750 = vadd.f32 %v3732, %v3749
    %3751 = vmatmul.bf16.gmra.mxu0 %v2169
    %v3752 = vpop.f32.mrf.mxu0
    %v3753 = vadd.f32 %v3735, %v3752
    %v3754 = vpop.f32.mrf.mxu0
    %3755 = vdwg.mxu0
    %3756 = vmatpush.bf16.msra.mxu0 %v3016
    %3757 = vmatpush.bf16.msra.mxu0 %v3008
    %3758 = vmatpush.bf16.msra.mxu0 %v3000
    %3759 = vmatpush.bf16.msra.mxu0 %v2992
    %3760 = vmatpush.bf16.msra.mxu0 %v2984
    %3761 = vmatpush.bf16.msra.mxu0 %v2976
    %3762 = vmatpush.bf16.msra.mxu0 %v2968
    %3763 = vmatpush.bf16.msra.mxu0 %v2960
    %3764 = vmatmul.bf16.gmra.mxu0 %v2162
    %v3765 = vpop.f32.mrf.mxu0
    %v3766 = vadd.f32 %v2176, %v3765
    %v3767 = vpop.f32.mrf.mxu0
    %v3768 = vadd.f32 %v2176, %v3767
    %3769 = vmatmul.bf16.gmra.mxu0 %v2166
    %v3770 = vpop.f32.mrf.mxu0
    %v3771 = vadd.f32 %v2176, %v3770
    %v3772 = vpop.f32.mrf.mxu0
    %3773 = vdwg.mxu0
    %3774 = vmatpush.bf16.msra.mxu0 %v3080
    %3775 = vmatpush.bf16.msra.mxu0 %v3072
    %3776 = vmatpush.bf16.msra.mxu0 %v3064
    %3777 = vmatpush.bf16.msra.mxu0 %v3056
    %3778 = vmatpush.bf16.msra.mxu0 %v3048
    %3779 = vmatpush.bf16.msra.mxu0 %v3040
    %3780 = vmatpush.bf16.msra.mxu0 %v3032
    %3781 = vmatpush.bf16.msra.mxu0 %v3024
    %3782 = vmatmul.bf16.gmra.mxu0 %v2163
    %v3783 = vpop.f32.mrf.mxu0
    %v3784 = vadd.f32 %v3766, %v3783
    %v3785 = vpop.f32.mrf.mxu0
    %v3786 = vadd.f32 %v3768, %v3785
    %3787 = vmatmul.bf16.gmra.mxu0 %v2167
    %v3788 = vpop.f32.mrf.mxu0
    %v3789 = vadd.f32 %v3771, %v3788
    %v3790 = vpop.f32.mrf.mxu0
    %3791 = vdwg.mxu0
    %3792 = vmatpush.bf16.msra.mxu0 %v3144
    %3793 = vmatpush.bf16.msra.mxu0 %v3136
    %3794 = vmatpush.bf16.msra.mxu0 %v3128
    %3795 = vmatpush.bf16.msra.mxu0 %v3120
    %3796 = vmatpush.bf16.msra.mxu0 %v3112
    %3797 = vmatpush.bf16.msra.mxu0 %v3104
    %3798 = vmatpush.bf16.msra.mxu0 %v3096
    %3799 = vmatpush.bf16.msra.mxu0 %v3088
    %3800 = vmatmul.bf16.gmra.mxu0 %v2164
    %v3801 = vpop.f32.mrf.mxu0
    %v3802 = vadd.f32 %v3784, %v3801
    %v3803 = vpop.f32.mrf.mxu0
    %v3804 = vadd.f32 %v3786, %v3803
    %3805 = vmatmul.bf16.gmra.mxu0 %v2168
    %v3806 = vpop.f32.mrf.mxu0
    %v3807 = vadd.f32 %v3789, %v3806
    %v3808 = vpop.f32.mrf.mxu0
    %3809 = vdwg.mxu0
    %3810 = vmatpush.bf16.msra.mxu0 %v3208
    %3811 = vmatpush.bf16.msra.mxu0 %v3200
    %3812 = vmatpush.bf16.msra.mxu0 %v3192
    %3813 = vmatpush.bf16.msra.mxu0 %v3184
    %3814 = vmatpush.bf16.msra.mxu0 %v3176
    %3815 = vmatpush.bf16.msra.mxu0 %v3168
    %3816 = vmatpush.bf16.msra.mxu0 %v3160
    %3817 = vmatpush.bf16.msra.mxu0 %v3152
    %3818 = vmatmul.bf16.gmra.mxu0 %v2165
    %v3819 = vpop.f32.mrf.mxu0
    %v3820 = vadd.f32 %v3802, %v3819
    %v3821 = vpop.f32.mrf.mxu0
    %v3822 = vadd.f32 %v3804, %v3821
    %3823 = vmatmul.bf16.gmra.mxu0 %v2169
    %v3824 = vpop.f32.mrf.mxu0
    %v3825 = vadd.f32 %v3807, %v3824
    %v3826 = vpop.f32.mrf.mxu0
    %3827 = vdwg.mxu0
    %3828 = vmatpush.bf16.msra.mxu0 %v3017
    %3829 = vmatpush.bf16.msra.mxu0 %v3009
    %3830 = vmatpush.bf16.msra.mxu0 %v3001
    %3831 = vmatpush.bf16.msra.mxu0 %v2993
    %3832 = vmatpush.bf16.msra.mxu0 %v2985
    %3833 = vmatpush.bf16.msra.mxu0 %v2977
    %3834 = vmatpush.bf16.msra.mxu0 %v2969
    %3835 = vmatpush.bf16.msra.mxu0 %v2961
    %3836 = vmatmul.bf16.gmra.mxu0 %v2162
    %v3837 = vpop.f32.mrf.mxu0
    %v3838 = vadd.f32 %v2177, %v3837
    %v3839 = vpop.f32.mrf.mxu0
    %v3840 = vadd.f32 %v2177, %v3839
    %3841 = vmatmul.bf16.gmra.mxu0 %v2166
    %v3842 = vpop.f32.mrf.mxu0
    %v3843 = vadd.f32 %v2177, %v3842
    %v3844 = vpop.f32.mrf.mxu0
    %3845 = vdwg.mxu0
    %3846 = vmatpush.bf16.msra.mxu0 %v3081
    %3847 = vmatpush.bf16.msra.mxu0 %v3073
    %3848 = vmatpush.bf16.msra.mxu0 %v3065
    %3849 = vmatpush.bf16.msra.mxu0 %v3057
    %3850 = vmatpush.bf16.msra.mxu0 %v3049
    %3851 = vmatpush.bf16.msra.mxu0 %v3041
    %3852 = vmatpush.bf16.msra.mxu0 %v3033
    %3853 = vmatpush.bf16.msra.mxu0 %v3025
    %3854 = vmatmul.bf16.gmra.mxu0 %v2163
    %v3855 = vpop.f32.mrf.mxu0
    %v3856 = vadd.f32 %v3838, %v3855
    %v3857 = vpop.f32.mrf.mxu0
    %v3858 = vadd.f32 %v3840, %v3857
    %3859 = vmatmul.bf16.gmra.mxu0 %v2167
    %v3860 = vpop.f32.mrf.mxu0
    %v3861 = vadd.f32 %v3843, %v3860
    %v3862 = vpop.f32.mrf.mxu0
    %3863 = vdwg.mxu0
    %3864 = vmatpush.bf16.msra.mxu0 %v3145
    %3865 = vmatpush.bf16.msra.mxu0 %v3137
    %3866 = vmatpush.bf16.msra.mxu0 %v3129
    %3867 = vmatpush.bf16.msra.mxu0 %v3121
    %3868 = vmatpush.bf16.msra.mxu0 %v3113
    %3869 = vmatpush.bf16.msra.mxu0 %v3105
    %3870 = vmatpush.bf16.msra.mxu0 %v3097
    %3871 = vmatpush.bf16.msra.mxu0 %v3089
    %3872 = vmatmul.bf16.gmra.mxu0 %v2164
    %v3873 = vpop.f32.mrf.mxu0
    %v3874 = vadd.f32 %v3856, %v3873
    %v3875 = vpop.f32.mrf.mxu0
    %v3876 = vadd.f32 %v3858, %v3875
    %3877 = vmatmul.bf16.gmra.mxu0 %v2168
    %v3878 = vpop.f32.mrf.mxu0
    %v3879 = vadd.f32 %v3861, %v3878
    %v3880 = vpop.f32.mrf.mxu0
    %3881 = vdwg.mxu0
    %3882 = vmatpush.bf16.msra.mxu0 %v3209
    %3883 = vmatpush.bf16.msra.mxu0 %v3201
    %3884 = vmatpush.bf16.msra.mxu0 %v3193
    %3885 = vmatpush.bf16.msra.mxu0 %v3185
    %3886 = vmatpush.bf16.msra.mxu0 %v3177
    %3887 = vmatpush.bf16.msra.mxu0 %v3169
    %3888 = vmatpush.bf16.msra.mxu0 %v3161
    %3889 = vmatpush.bf16.msra.mxu0 %v3153
    %3890 = vmatmul.bf16.gmra.mxu0 %v2165
    %v3891 = vpop.f32.mrf.mxu0
    %v3892 = vadd.f32 %v3874, %v3891
    %v3893 = vpop.f32.mrf.mxu0
    %v3894 = vadd.f32 %v3876, %v3893
    %3895 = vmatmul.bf16.gmra.mxu0 %v2169
    %v3896 = vpop.f32.mrf.mxu0
    %v3897 = vadd.f32 %v3879, %v3896
    %v3898 = vpop.f32.mrf.mxu0
    %3899 = vdwg.mxu0
    %3900 = vmatpush.bf16.msra.mxu0 %v3018
    %3901 = vmatpush.bf16.msra.mxu0 %v3010
    %3902 = vmatpush.bf16.msra.mxu0 %v3002
    %3903 = vmatpush.bf16.msra.mxu0 %v2994
    %3904 = vmatpush.bf16.msra.mxu0 %v2986
    %3905 = vmatpush.bf16.msra.mxu0 %v2978
    %3906 = vmatpush.bf16.msra.mxu0 %v2970
    %3907 = vmatpush.bf16.msra.mxu0 %v2962
    %3908 = vmatmul.bf16.gmra.mxu0 %v2162
    %v3909 = vpop.f32.mrf.mxu0
    %v3910 = vadd.f32 %v2178, %v3909
    %v3911 = vpop.f32.mrf.mxu0
    %v3912 = vadd.f32 %v2178, %v3911
    %3913 = vmatmul.bf16.gmra.mxu0 %v2166
    %v3914 = vpop.f32.mrf.mxu0
    %v3915 = vadd.f32 %v2178, %v3914
    %v3916 = vpop.f32.mrf.mxu0
    %3917 = vdwg.mxu0
    %3918 = vmatpush.bf16.msra.mxu0 %v3082
    %3919 = vmatpush.bf16.msra.mxu0 %v3074
    %3920 = vmatpush.bf16.msra.mxu0 %v3066
    %3921 = vmatpush.bf16.msra.mxu0 %v3058
    %3922 = vmatpush.bf16.msra.mxu0 %v3050
    %3923 = vmatpush.bf16.msra.mxu0 %v3042
    %3924 = vmatpush.bf16.msra.mxu0 %v3034
    %3925 = vmatpush.bf16.msra.mxu0 %v3026
    %3926 = vmatmul.bf16.gmra.mxu0 %v2163
    %v3927 = vpop.f32.mrf.mxu0
    %v3928 = vadd.f32 %v3910, %v3927
    %v3929 = vpop.f32.mrf.mxu0
    %v3930 = vadd.f32 %v3912, %v3929
    %3931 = vmatmul.bf16.gmra.mxu0 %v2167
    %v3932 = vpop.f32.mrf.mxu0
    %v3933 = vadd.f32 %v3915, %v3932
    %v3934 = vpop.f32.mrf.mxu0
    %3935 = vdwg.mxu0
    %3936 = vmatpush.bf16.msra.mxu0 %v3146
    %3937 = vmatpush.bf16.msra.mxu0 %v3138
    %3938 = vmatpush.bf16.msra.mxu0 %v3130
    %3939 = vmatpush.bf16.msra.mxu0 %v3122
    %3940 = vmatpush.bf16.msra.mxu0 %v3114
    %3941 = vmatpush.bf16.msra.mxu0 %v3106
    %3942 = vmatpush.bf16.msra.mxu0 %v3098
    %3943 = vmatpush.bf16.msra.mxu0 %v3090
    %3944 = vmatmul.bf16.gmra.mxu0 %v2164
    %v3945 = vpop.f32.mrf.mxu0
    %v3946 = vadd.f32 %v3928, %v3945
    %v3947 = vpop.f32.mrf.mxu0
    %v3948 = vadd.f32 %v3930, %v3947
    %3949 = vmatmul.bf16.gmra.mxu0 %v2168
    %v3950 = vpop.f32.mrf.mxu0
    %v3951 = vadd.f32 %v3933, %v3950
    %v3952 = vpop.f32.mrf.mxu0
    %3953 = vdwg.mxu0
    %3954 = vmatpush.bf16.msra.mxu0 %v3210
    %3955 = vmatpush.bf16.msra.mxu0 %v3202
    %3956 = vmatpush.bf16.msra.mxu0 %v3194
    %3957 = vmatpush.bf16.msra.mxu0 %v3186
    %3958 = vmatpush.bf16.msra.mxu0 %v3178
    %3959 = vmatpush.bf16.msra.mxu0 %v3170
    %3960 = vmatpush.bf16.msra.mxu0 %v3162
    %3961 = vmatpush.bf16.msra.mxu0 %v3154
    %3962 = vmatmul.bf16.gmra.mxu0 %v2165
    %v3963 = vpop.f32.mrf.mxu0
    %v3964 = vadd.f32 %v3946, %v3963
    %v3965 = vpop.f32.mrf.mxu0
    %v3966 = vadd.f32 %v3948, %v3965
    %3967 = vmatmul.bf16.gmra.mxu0 %v2169
    %v3968 = vpop.f32.mrf.mxu0
    %v3969 = vadd.f32 %v3951, %v3968
    %v3970 = vpop.f32.mrf.mxu0
    %3971 = vdwg.mxu0
    %3972 = vmatpush.bf16.msra.mxu0 %v3019
    %3973 = vmatpush.bf16.msra.mxu0 %v3011
    %3974 = vmatpush.bf16.msra.mxu0 %v3003
    %3975 = vmatpush.bf16.msra.mxu0 %v2995
    %3976 = vmatpush.bf16.msra.mxu0 %v2987
    %3977 = vmatpush.bf16.msra.mxu0 %v2979
    %3978 = vmatpush.bf16.msra.mxu0 %v2971
    %3979 = vmatpush.bf16.msra.mxu0 %v2963
    %3980 = vmatmul.bf16.gmra.mxu0 %v2162
    %v3981 = vpop.f32.mrf.mxu0
    %v3982 = vadd.f32 %v2179, %v3981
    %v3983 = vpop.f32.mrf.mxu0
    %v3984 = vadd.f32 %v2179, %v3983
    %3985 = vmatmul.bf16.gmra.mxu0 %v2166
    %v3986 = vpop.f32.mrf.mxu0
    %v3987 = vadd.f32 %v2179, %v3986
    %v3988 = vpop.f32.mrf.mxu0
    %3989 = vdwg.mxu0
    %3990 = vmatpush.bf16.msra.mxu0 %v3083
    %3991 = vmatpush.bf16.msra.mxu0 %v3075
    %3992 = vmatpush.bf16.msra.mxu0 %v3067
    %3993 = vmatpush.bf16.msra.mxu0 %v3059
    %3994 = vmatpush.bf16.msra.mxu0 %v3051
    %3995 = vmatpush.bf16.msra.mxu0 %v3043
    %3996 = vmatpush.bf16.msra.mxu0 %v3035
    %3997 = vmatpush.bf16.msra.mxu0 %v3027
    %3998 = vmatmul.bf16.gmra.mxu0 %v2163
    %v3999 = vpop.f32.mrf.mxu0
    %v4000 = vadd.f32 %v3982, %v3999
    %v4001 = vpop.f32.mrf.mxu0
    %v4002 = vadd.f32 %v3984, %v4001
    %4003 = vmatmul.bf16.gmra.mxu0 %v2167
    %v4004 = vpop.f32.mrf.mxu0
    %v4005 = vadd.f32 %v3987, %v4004
    %v4006 = vpop.f32.mrf.mxu0
    %4007 = vdwg.mxu0
    %4008 = vmatpush.bf16.msra.mxu0 %v3147
    %4009 = vmatpush.bf16.msra.mxu0 %v3139
    %4010 = vmatpush.bf16.msra.mxu0 %v3131
    %4011 = vmatpush.bf16.msra.mxu0 %v3123
    %4012 = vmatpush.bf16.msra.mxu0 %v3115
    %4013 = vmatpush.bf16.msra.mxu0 %v3107
    %4014 = vmatpush.bf16.msra.mxu0 %v3099
    %4015 = vmatpush.bf16.msra.mxu0 %v3091
    %4016 = vmatmul.bf16.gmra.mxu0 %v2164
    %v4017 = vpop.f32.mrf.mxu0
    %v4018 = vadd.f32 %v4000, %v4017
    %v4019 = vpop.f32.mrf.mxu0
    %v4020 = vadd.f32 %v4002, %v4019
    %4021 = vmatmul.bf16.gmra.mxu0 %v2168
    %v4022 = vpop.f32.mrf.mxu0
    %v4023 = vadd.f32 %v4005, %v4022
    %v4024 = vpop.f32.mrf.mxu0
    %4025 = vdwg.mxu0
    %4026 = vmatpush.bf16.msra.mxu0 %v3211
    %4027 = vmatpush.bf16.msra.mxu0 %v3203
    %4028 = vmatpush.bf16.msra.mxu0 %v3195
    %4029 = vmatpush.bf16.msra.mxu0 %v3187
    %4030 = vmatpush.bf16.msra.mxu0 %v3179
    %4031 = vmatpush.bf16.msra.mxu0 %v3171
    %4032 = vmatpush.bf16.msra.mxu0 %v3163
    %4033 = vmatpush.bf16.msra.mxu0 %v3155
    %4034 = vmatmul.bf16.gmra.mxu0 %v2165
    %v4035 = vpop.f32.mrf.mxu0
    %v4036 = vadd.f32 %v4018, %v4035
    %v4037 = vpop.f32.mrf.mxu0
    %v4038 = vadd.f32 %v4020, %v4037
    %4039 = vmatmul.bf16.gmra.mxu0 %v2169
    %v4040 = vpop.f32.mrf.mxu0
    %v4041 = vadd.f32 %v4023, %v4040
    %v4042 = vpop.f32.mrf.mxu0
    %4043 = vdwg.mxu0
    %v4044 = vmax.f32 %v3532, 0.0
    %v4045 = vmax.f32 %v3604, 0.0
    %v4046 = vmax.f32 %v3676, 0.0
    %v4047 = vmax.f32 %v3748, 0.0
    %v4048 = vmax.f32 %v3820, 0.0
    %v4049 = vmax.f32 %v3892, 0.0
    %v4050 = vmax.f32 %v3964, 0.0
    %v4051 = vmax.f32 %v4036, 0.0
    %v4052 = vmax.f32 %v3534, 0.0
    %v4053 = vmax.f32 %v3606, 0.0
    %v4054 = vmax.f32 %v3678, 0.0
    %v4055 = vmax.f32 %v3750, 0.0
    %v4056 = vmax.f32 %v3822, 0.0
    %v4057 = vmax.f32 %v3894, 0.0
    %v4058 = vmax.f32 %v3966, 0.0
    %v4059 = vmax.f32 %v4038, 0.0
    %v4060 = vmax.f32 %v3537, 0.0
    %v4061 = vmax.f32 %v3609, 0.0
    %v4062 = vmax.f32 %v3681, 0.0
    %v4063 = vmax.f32 %v3753, 0.0
    %v4064 = vmax.f32 %v3825, 0.0
    %v4065 = vmax.f32 %v3897, 0.0
    %v4066 = vmax.f32 %v3969, 0.0
    %v4067 = vmax.f32 %v4041, 0.0
    %v4068 = vld [vmem:[%s51] sm:$0xff]
    %v4069 = vld [vmem:[%s51 + $0x8] sm:$0xff]
    %v4070 = vld [vmem:[%s51 + $0x10] sm:$0xff]
    %v4071 = vld [vmem:[%s51 + $0x18] sm:$0xff]
    %v4072 = vld [vmem:[%s51 + $0x20] sm:$0xff]
    %v4073 = vld [vmem:[%s51 + $0x28] sm:$0xff]
    %v4074 = vld [vmem:[%s51 + $0x30] sm:$0xff]
    %v4075 = vld [vmem:[%s51 + $0x38] sm:$0xff]
    %v4076 = vld [vmem:[%s51 + $0x40] sm:$0xff]
    %v4077 = vld [vmem:[%s51 + $0x48] sm:$0xff]
    %v4078 = vld [vmem:[%s51 + $0x50] sm:$0xff]
    %v4079 = vld [vmem:[%s51 + $0x58] sm:$0xff]
    %v4080 = vld [vmem:[%s51 + $0x60] sm:$0xff]
    %v4081 = vld [vmem:[%s51 + $0x68] sm:$0xff]
    %v4082 = vld [vmem:[%s51 + $0x70] sm:$0xff]
    %v4083 = vld [vmem:[%s51 + $0x78] sm:$0xff]
    %v4084 = vld [vmem:[%s51 + $0x80] sm:$0xff]
    %v4085 = vld [vmem:[%s51 + $0x88] sm:$0xff]
    %v4086 = vld [vmem:[%s51 + $0x90] sm:$0xff]
    %v4087 = vld [vmem:[%s51 + $0x98] sm:$0xff]
    %v4088 = vld [vmem:[%s51 + $0xa0] sm:$0xff]
    %v4089 = vld [vmem:[%s51 + $0xa8] sm:$0xff]
    %v4090 = vld [vmem:[%s51 + $0xb0] sm:$0xff]
    %v4091 = vld [vmem:[%s51 + $0xb8] sm:$0xff]
    %v4092 = vld [vmem:[%s51 + $0xc0] sm:$0xff]
    %v4093 = vld [vmem:[%s51 + $0xc8] sm:$0xff]
    %v4094 = vld [vmem:[%s51 + $0xd0] sm:$0xff]
    %v4095 = vld [vmem:[%s51 + $0xd8] sm:$0xff]
    %v4096 = vld [vmem:[%s51 + $0xe0] sm:$0xff]
    %v4097 = vld [vmem:[%s51 + $0xe8] sm:$0xff]
    %v4098 = vld [vmem:[%s51 + $0xf0] sm:$0xff]
    %v4099 = vld [vmem:[%s51 + $0xf8] sm:$0xff]
    %v4100 = vld [vmem:[%s51 + $0x100] sm:$0xff]
    %v4101 = vld [vmem:[%s51 + $0x108] sm:$0xff]
    %v4102 = vld [vmem:[%s51 + $0x110] sm:$0xff]
    %v4103 = vld [vmem:[%s51 + $0x118] sm:$0xff]
    %v4104 = vld [vmem:[%s51 + $0x120] sm:$0xff]
    %v4105 = vld [vmem:[%s51 + $0x128] sm:$0xff]
    %v4106 = vld [vmem:[%s51 + $0x130] sm:$0xff]
    %v4107 = vld [vmem:[%s51 + $0x138] sm:$0xff]
    %v4108 = vld [vmem:[%s51 + $0x140] sm:$0xff]
    %v4109 = vld [vmem:[%s51 + $0x148] sm:$0xff]
    %v4110 = vld [vmem:[%s51 + $0x150] sm:$0xff]
    %v4111 = vld [vmem:[%s51 + $0x158] sm:$0xff]
    %v4112 = vld [vmem:[%s51 + $0x160] sm:$0xff]
    %v4113 = vld [vmem:[%s51 + $0x168] sm:$0xff]
    %v4114 = vld [vmem:[%s51 + $0x170] sm:$0xff]
    %v4115 = vld [vmem:[%s51 + $0x178] sm:$0xff]
    %v4116 = vld [vmem:[%s51 + $0x180] sm:$0xff]
    %v4117 = vld [vmem:[%s51 + $0x188] sm:$0xff]
    %v4118 = vld [vmem:[%s51 + $0x190] sm:$0xff]
    %v4119 = vld [vmem:[%s51 + $0x198] sm:$0xff]
    %v4120 = vld [vmem:[%s51 + $0x1a0] sm:$0xff]
    %v4121 = vld [vmem:[%s51 + $0x1a8] sm:$0xff]
    %v4122 = vld [vmem:[%s51 + $0x1b0] sm:$0xff]
    %v4123 = vld [vmem:[%s51 + $0x1b8] sm:$0xff]
    %v4124 = vld [vmem:[%s51 + $0x1c0] sm:$0xff]
    %v4125 = vld [vmem:[%s51 + $0x1c8] sm:$0xff]
    %v4126 = vld [vmem:[%s51 + $0x1d0] sm:$0xff]
    %v4127 = vld [vmem:[%s51 + $0x1d8] sm:$0xff]
    %v4128 = vld [vmem:[%s51 + $0x1e0] sm:$0xff]
    %v4129 = vld [vmem:[%s51 + $0x1e8] sm:$0xff]
    %v4130 = vld [vmem:[%s51 + $0x1f0] sm:$0xff]
    %v4131 = vld [vmem:[%s51 + $0x1f8] sm:$0xff]
    %v4132 = vld [vmem:[%s51 + $0x200] sm:$0xff]
    %v4133 = vld [vmem:[%s51 + $0x208] sm:$0xff]
    %v4134 = vld [vmem:[%s51 + $0x210] sm:$0xff]
    %v4135 = vld [vmem:[%s51 + $0x218] sm:$0xff]
    %v4136 = vld [vmem:[%s51 + $0x220] sm:$0xff]
    %v4137 = vld [vmem:[%s51 + $0x228] sm:$0xff]
    %v4138 = vld [vmem:[%s51 + $0x230] sm:$0xff]
    %v4139 = vld [vmem:[%s51 + $0x238] sm:$0xff]
    %v4140 = vld [vmem:[%s51 + $0x240] sm:$0xff]
    %v4141 = vld [vmem:[%s51 + $0x248] sm:$0xff]
    %v4142 = vld [vmem:[%s51 + $0x250] sm:$0xff]
    %v4143 = vld [vmem:[%s51 + $0x258] sm:$0xff]
    %v4144 = vld [vmem:[%s51 + $0x260] sm:$0xff]
    %v4145 = vld [vmem:[%s51 + $0x268] sm:$0xff]
    %v4146 = vld [vmem:[%s51 + $0x270] sm:$0xff]
    %v4147 = vld [vmem:[%s51 + $0x278] sm:$0xff]
    %v4148 = vld [vmem:[%s51 + $0x280] sm:$0xff]
    %v4149 = vld [vmem:[%s51 + $0x288] sm:$0xff]
    %v4150 = vld [vmem:[%s51 + $0x290] sm:$0xff]
    %v4151 = vld [vmem:[%s51 + $0x298] sm:$0xff]
    %v4152 = vld [vmem:[%s51 + $0x2a0] sm:$0xff]
    %v4153 = vld [vmem:[%s51 + $0x2a8] sm:$0xff]
    %v4154 = vld [vmem:[%s51 + $0x2b0] sm:$0xff]
    %v4155 = vld [vmem:[%s51 + $0x2b8] sm:$0xff]
    %v4156 = vld [vmem:[%s51 + $0x2c0] sm:$0xff]
    %v4157 = vld [vmem:[%s51 + $0x2c8] sm:$0xff]
    %v4158 = vld [vmem:[%s51 + $0x2d0] sm:$0xff]
    %v4159 = vld [vmem:[%s51 + $0x2d8] sm:$0xff]
    %v4160 = vld [vmem:[%s51 + $0x2e0] sm:$0xff]
    %v4161 = vld [vmem:[%s51 + $0x2e8] sm:$0xff]
    %v4162 = vld [vmem:[%s51 + $0x2f0] sm:$0xff]
    %v4163 = vld [vmem:[%s51 + $0x2f8] sm:$0xff]
    %v4164 = vld [vmem:[%s51 + $0x300] sm:$0xff]
    %v4165 = vld [vmem:[%s51 + $0x308] sm:$0xff]
    %v4166 = vld [vmem:[%s51 + $0x310] sm:$0xff]
    %v4167 = vld [vmem:[%s51 + $0x318] sm:$0xff]
    %v4168 = vld [vmem:[%s51 + $0x320] sm:$0xff]
    %v4169 = vld [vmem:[%s51 + $0x328] sm:$0xff]
    %v4170 = vld [vmem:[%s51 + $0x330] sm:$0xff]
    %v4171 = vld [vmem:[%s51 + $0x338] sm:$0xff]
    %v4172 = vld [vmem:[%s51 + $0x340] sm:$0xff]
    %v4173 = vld [vmem:[%s51 + $0x348] sm:$0xff]
    %v4174 = vld [vmem:[%s51 + $0x350] sm:$0xff]
    %v4175 = vld [vmem:[%s51 + $0x358] sm:$0xff]
    %v4176 = vld [vmem:[%s51 + $0x360] sm:$0xff]
    %v4177 = vld [vmem:[%s51 + $0x368] sm:$0xff]
    %v4178 = vld [vmem:[%s51 + $0x370] sm:$0xff]
    %v4179 = vld [vmem:[%s51 + $0x378] sm:$0xff]
    %v4180 = vld [vmem:[%s51 + $0x380] sm:$0xff]
    %v4181 = vld [vmem:[%s51 + $0x388] sm:$0xff]
    %v4182 = vld [vmem:[%s51 + $0x390] sm:$0xff]
    %v4183 = vld [vmem:[%s51 + $0x398] sm:$0xff]
    %v4184 = vld [vmem:[%s51 + $0x3a0] sm:$0xff]
    %v4185 = vld [vmem:[%s51 + $0x3a8] sm:$0xff]
    %v4186 = vld [vmem:[%s51 + $0x3b0] sm:$0xff]
    %v4187 = vld [vmem:[%s51 + $0x3b8] sm:$0xff]
    %v4188 = vld [vmem:[%s51 + $0x3c0] sm:$0xff]
    %v4189 = vld [vmem:[%s51 + $0x3c8] sm:$0xff]
    %v4190 = vld [vmem:[%s51 + $0x3d0] sm:$0xff]
    %v4191 = vld [vmem:[%s51 + $0x3d8] sm:$0xff]
    %v4192 = vld [vmem:[%s51 + $0x3e0] sm:$0xff]
    %v4193 = vld [vmem:[%s51 + $0x3e8] sm:$0xff]
    %v4194 = vld [vmem:[%s51 + $0x3f0] sm:$0xff]
    %v4195 = vld [vmem:[%s51 + $0x3f8] sm:$0xff]
    %v4196 = vld [vmem:[%s51 + $0x400] sm:$0xff]
    %v4197 = vld [vmem:[%s51 + $0x408] sm:$0xff]
    %v4198 = vld [vmem:[%s51 + $0x410] sm:$0xff]
    %v4199 = vld [vmem:[%s51 + $0x418] sm:$0xff]
    %v4200 = vld [vmem:[%s51 + $0x420] sm:$0xff]
    %v4201 = vld [vmem:[%s51 + $0x428] sm:$0xff]
    %v4202 = vld [vmem:[%s51 + $0x430] sm:$0xff]
    %v4203 = vld [vmem:[%s51 + $0x438] sm:$0xff]
    %v4204 = vld [vmem:[%s51 + $0x440] sm:$0xff]
    %v4205 = vld [vmem:[%s51 + $0x448] sm:$0xff]
    %v4206 = vld [vmem:[%s51 + $0x450] sm:$0xff]
    %v4207 = vld [vmem:[%s51 + $0x458] sm:$0xff]
    %v4208 = vld [vmem:[%s51 + $0x460] sm:$0xff]
    %v4209 = vld [vmem:[%s51 + $0x468] sm:$0xff]
    %v4210 = vld [vmem:[%s51 + $0x470] sm:$0xff]
    %v4211 = vld [vmem:[%s51 + $0x478] sm:$0xff]
    %v4212 = vld [vmem:[%s51 + $0x480] sm:$0xff]
    %v4213 = vld [vmem:[%s51 + $0x488] sm:$0xff]
    %v4214 = vld [vmem:[%s51 + $0x490] sm:$0xff]
    %v4215 = vld [vmem:[%s51 + $0x498] sm:$0xff]
    %v4216 = vld [vmem:[%s51 + $0x4a0] sm:$0xff]
    %v4217 = vld [vmem:[%s51 + $0x4a8] sm:$0xff]
    %v4218 = vld [vmem:[%s51 + $0x4b0] sm:$0xff]
    %v4219 = vld [vmem:[%s51 + $0x4b8] sm:$0xff]
    %v4220 = vld [vmem:[%s51 + $0x4c0] sm:$0xff]
    %v4221 = vld [vmem:[%s51 + $0x4c8] sm:$0xff]
    %v4222 = vld [vmem:[%s51 + $0x4d0] sm:$0xff]
    %v4223 = vld [vmem:[%s51 + $0x4d8] sm:$0xff]
    %v4224 = vld [vmem:[%s51 + $0x4e0] sm:$0xff]
    %v4225 = vld [vmem:[%s51 + $0x4e8] sm:$0xff]
    %v4226 = vld [vmem:[%s51 + $0x4f0] sm:$0xff]
    %v4227 = vld [vmem:[%s51 + $0x4f8] sm:$0xff]
    %v4228 = vld [vmem:[%s51 + $0x500] sm:$0xff]
    %v4229 = vld [vmem:[%s51 + $0x508] sm:$0xff]
    %v4230 = vld [vmem:[%s51 + $0x510] sm:$0xff]
    %v4231 = vld [vmem:[%s51 + $0x518] sm:$0xff]
    %v4232 = vld [vmem:[%s51 + $0x520] sm:$0xff]
    %v4233 = vld [vmem:[%s51 + $0x528] sm:$0xff]
    %v4234 = vld [vmem:[%s51 + $0x530] sm:$0xff]
    %v4235 = vld [vmem:[%s51 + $0x538] sm:$0xff]
    %v4236 = vld [vmem:[%s51 + $0x540] sm:$0xff]
    %v4237 = vld [vmem:[%s51 + $0x548] sm:$0xff]
    %v4238 = vld [vmem:[%s51 + $0x550] sm:$0xff]
    %v4239 = vld [vmem:[%s51 + $0x558] sm:$0xff]
    %v4240 = vld [vmem:[%s51 + $0x560] sm:$0xff]
    %v4241 = vld [vmem:[%s51 + $0x568] sm:$0xff]
    %v4242 = vld [vmem:[%s51 + $0x570] sm:$0xff]
    %v4243 = vld [vmem:[%s51 + $0x578] sm:$0xff]
    %v4244 = vld [vmem:[%s51 + $0x580] sm:$0xff]
    %v4245 = vld [vmem:[%s51 + $0x588] sm:$0xff]
    %v4246 = vld [vmem:[%s51 + $0x590] sm:$0xff]
    %v4247 = vld [vmem:[%s51 + $0x598] sm:$0xff]
    %v4248 = vld [vmem:[%s51 + $0x5a0] sm:$0xff]
    %v4249 = vld [vmem:[%s51 + $0x5a8] sm:$0xff]
    %v4250 = vld [vmem:[%s51 + $0x5b0] sm:$0xff]
    %v4251 = vld [vmem:[%s51 + $0x5b8] sm:$0xff]
    %v4252 = vld [vmem:[%s51 + $0x5c0] sm:$0xff]
    %v4253 = vld [vmem:[%s51 + $0x5c8] sm:$0xff]
    %v4254 = vld [vmem:[%s51 + $0x5d0] sm:$0xff]
    %v4255 = vld [vmem:[%s51 + $0x5d8] sm:$0xff]
    %v4256 = vld [vmem:[%s51 + $0x5e0] sm:$0xff]
    %v4257 = vld [vmem:[%s51 + $0x5e8] sm:$0xff]
    %v4258 = vld [vmem:[%s51 + $0x5f0] sm:$0xff]
    %v4259 = vld [vmem:[%s51 + $0x5f8] sm:$0xff]
    %v4260 = vld [vmem:[%s51 + $0x600] sm:$0xff]
    %v4261 = vld [vmem:[%s51 + $0x608] sm:$0xff]
    %v4262 = vld [vmem:[%s51 + $0x610] sm:$0xff]
    %v4263 = vld [vmem:[%s51 + $0x618] sm:$0xff]
    %v4264 = vld [vmem:[%s51 + $0x620] sm:$0xff]
    %v4265 = vld [vmem:[%s51 + $0x628] sm:$0xff]
    %v4266 = vld [vmem:[%s51 + $0x630] sm:$0xff]
    %v4267 = vld [vmem:[%s51 + $0x638] sm:$0xff]
    %v4268 = vld [vmem:[%s51 + $0x640] sm:$0xff]
    %v4269 = vld [vmem:[%s51 + $0x648] sm:$0xff]
    %v4270 = vld [vmem:[%s51 + $0x650] sm:$0xff]
    %v4271 = vld [vmem:[%s51 + $0x658] sm:$0xff]
    %v4272 = vld [vmem:[%s51 + $0x660] sm:$0xff]
    %v4273 = vld [vmem:[%s51 + $0x668] sm:$0xff]
    %v4274 = vld [vmem:[%s51 + $0x670] sm:$0xff]
    %v4275 = vld [vmem:[%s51 + $0x678] sm:$0xff]
    %v4276 = vld [vmem:[%s51 + $0x680] sm:$0xff]
    %v4277 = vld [vmem:[%s51 + $0x688] sm:$0xff]
    %v4278 = vld [vmem:[%s51 + $0x690] sm:$0xff]
    %v4279 = vld [vmem:[%s51 + $0x698] sm:$0xff]
    %v4280 = vld [vmem:[%s51 + $0x6a0] sm:$0xff]
    %v4281 = vld [vmem:[%s51 + $0x6a8] sm:$0xff]
    %v4282 = vld [vmem:[%s51 + $0x6b0] sm:$0xff]
    %v4283 = vld [vmem:[%s51 + $0x6b8] sm:$0xff]
    %v4284 = vld [vmem:[%s51 + $0x6c0] sm:$0xff]
    %v4285 = vld [vmem:[%s51 + $0x6c8] sm:$0xff]
    %v4286 = vld [vmem:[%s51 + $0x6d0] sm:$0xff]
    %v4287 = vld [vmem:[%s51 + $0x6d8] sm:$0xff]
    %v4288 = vld [vmem:[%s51 + $0x6e0] sm:$0xff]
    %v4289 = vld [vmem:[%s51 + $0x6e8] sm:$0xff]
    %v4290 = vld [vmem:[%s51 + $0x6f0] sm:$0xff]
    %v4291 = vld [vmem:[%s51 + $0x6f8] sm:$0xff]
    %v4292 = vld [vmem:[%s51 + $0x700] sm:$0xff]
    %v4293 = vld [vmem:[%s51 + $0x708] sm:$0xff]
    %v4294 = vld [vmem:[%s51 + $0x710] sm:$0xff]
    %v4295 = vld [vmem:[%s51 + $0x718] sm:$0xff]
    %v4296 = vld [vmem:[%s51 + $0x720] sm:$0xff]
    %v4297 = vld [vmem:[%s51 + $0x728] sm:$0xff]
    %v4298 = vld [vmem:[%s51 + $0x730] sm:$0xff]
    %v4299 = vld [vmem:[%s51 + $0x738] sm:$0xff]
    %v4300 = vld [vmem:[%s51 + $0x740] sm:$0xff]
    %v4301 = vld [vmem:[%s51 + $0x748] sm:$0xff]
    %v4302 = vld [vmem:[%s51 + $0x750] sm:$0xff]
    %v4303 = vld [vmem:[%s51 + $0x758] sm:$0xff]
    %v4304 = vld [vmem:[%s51 + $0x760] sm:$0xff]
    %v4305 = vld [vmem:[%s51 + $0x768] sm:$0xff]
    %v4306 = vld [vmem:[%s51 + $0x770] sm:$0xff]
    %v4307 = vld [vmem:[%s51 + $0x778] sm:$0xff]
    %v4308 = vld [vmem:[%s51 + $0x780] sm:$0xff]
    %v4309 = vld [vmem:[%s51 + $0x788] sm:$0xff]
    %v4310 = vld [vmem:[%s51 + $0x790] sm:$0xff]
    %v4311 = vld [vmem:[%s51 + $0x798] sm:$0xff]
    %v4312 = vld [vmem:[%s51 + $0x7a0] sm:$0xff]
    %v4313 = vld [vmem:[%s51 + $0x7a8] sm:$0xff]
    %v4314 = vld [vmem:[%s51 + $0x7b0] sm:$0xff]
    %v4315 = vld [vmem:[%s51 + $0x7b8] sm:$0xff]
    %v4316 = vld [vmem:[%s51 + $0x7c0] sm:$0xff]
    %v4317 = vld [vmem:[%s51 + $0x7c8] sm:$0xff]
    %v4318 = vld [vmem:[%s51 + $0x7d0] sm:$0xff]
    %v4319 = vld [vmem:[%s51 + $0x7d8] sm:$0xff]
    %v4320 = vld [vmem:[%s51 + $0x7e0] sm:$0xff]
    %v4321 = vld [vmem:[%s51 + $0x7e8] sm:$0xff]
    %v4322 = vld [vmem:[%s51 + $0x7f0] sm:$0xff]
    %v4323 = vld [vmem:[%s51 + $0x7f8] sm:$0xff]
    %v4324 = vpack.c.bf16 %v4052, %v4044
    %v4325 = vpack.c.bf16 %v4053, %v4045
    %v4326 = vpack.c.bf16 %v4054, %v4046
    %v4327 = vpack.c.bf16 %v4055, %v4047
    %v4328 = vpack.c.bf16 %v4056, %v4048
    %v4329 = vpack.c.bf16 %v4057, %v4049
    %v4330 = vpack.c.bf16 %v4058, %v4050
    %v4331 = vpack.c.bf16 %v4059, %v4051
    %v4332 = vpack.c.bf16 %v4060, %v4060
    %v4333 = vpack.c.bf16 %v4061, %v4061
    %v4334 = vpack.c.bf16 %v4062, %v4062
    %v4335 = vpack.c.bf16 %v4063, %v4063
    %v4336 = vpack.c.bf16 %v4064, %v4064
    %v4337 = vpack.c.bf16 %v4065, %v4065
    %v4338 = vpack.c.bf16 %v4066, %v4066
    %v4339 = vpack.c.bf16 %v4067, %v4067
    %v4340 = vld [vmem:[%s53] sm:$0xf]
    %v4342 = vperm.slane %v4340, 0
    %v4343 = vperm.slane %v4340, 1
    %v4344 = vperm.slane %v4340, 2
    %v4345 = vperm.slane %v4340, 3
    %v4606 = vunpack.c.l.b16 %v4068
    %v4607 = vunpack.c.h.b16 %v4068
    %v4608 = vunpack.c.l.b16 %v4069
    %v4609 = vunpack.c.h.b16 %v4069
    %v4610 = vunpack.c.l.b16 %v4070
    %v4611 = vunpack.c.h.b16 %v4070
    %v4612 = vunpack.c.l.b16 %v4071
    %v4613 = vunpack.c.h.b16 %v4071
    %v4614 = vunpack.c.l.b16 %v4072
    %v4615 = vunpack.c.h.b16 %v4072
    %v4616 = vunpack.c.l.b16 %v4073
    %v4617 = vunpack.c.h.b16 %v4073
    %v4618 = vunpack.c.l.b16 %v4074
    %v4619 = vunpack.c.h.b16 %v4074
    %v4620 = vunpack.c.l.b16 %v4075
    %v4621 = vunpack.c.h.b16 %v4075
    %v4622 = vunpack.c.l.b16 %v4076
    %v4623 = vunpack.c.h.b16 %v4076
    %v4624 = vunpack.c.l.b16 %v4077
    %v4625 = vunpack.c.h.b16 %v4077
    %v4626 = vunpack.c.l.b16 %v4078
    %v4627 = vunpack.c.h.b16 %v4078
    %v4628 = vunpack.c.l.b16 %v4079
    %v4629 = vunpack.c.h.b16 %v4079
    %v4630 = vunpack.c.l.b16 %v4080
    %v4631 = vunpack.c.h.b16 %v4080
    %v4632 = vunpack.c.l.b16 %v4081
    %v4633 = vunpack.c.h.b16 %v4081
    %v4634 = vunpack.c.l.b16 %v4082
    %v4635 = vunpack.c.h.b16 %v4082
    %v4636 = vunpack.c.l.b16 %v4083
    %v4637 = vunpack.c.h.b16 %v4083
    %v4638 = vunpack.c.l.b16 %v4084
    %v4639 = vunpack.c.h.b16 %v4084
    %v4640 = vunpack.c.l.b16 %v4085
    %v4641 = vunpack.c.h.b16 %v4085
    %v4642 = vunpack.c.l.b16 %v4086
    %v4643 = vunpack.c.h.b16 %v4086
    %v4644 = vunpack.c.l.b16 %v4087
    %v4645 = vunpack.c.h.b16 %v4087
    %v4646 = vunpack.c.l.b16 %v4088
    %v4647 = vunpack.c.h.b16 %v4088
    %v4648 = vunpack.c.l.b16 %v4089
    %v4649 = vunpack.c.h.b16 %v4089
    %v4650 = vunpack.c.l.b16 %v4090
    %v4651 = vunpack.c.h.b16 %v4090
    %v4652 = vunpack.c.l.b16 %v4091
    %v4653 = vunpack.c.h.b16 %v4091
    %v4654 = vunpack.c.l.b16 %v4092
    %v4655 = vunpack.c.h.b16 %v4092
    %v4656 = vunpack.c.l.b16 %v4093
    %v4657 = vunpack.c.h.b16 %v4093
    %v4658 = vunpack.c.l.b16 %v4094
    %v4659 = vunpack.c.h.b16 %v4094
    %v4660 = vunpack.c.l.b16 %v4095
    %v4661 = vunpack.c.h.b16 %v4095
    %v4662 = vunpack.c.l.b16 %v4096
    %v4663 = vunpack.c.h.b16 %v4096
    %v4664 = vunpack.c.l.b16 %v4097
    %v4665 = vunpack.c.h.b16 %v4097
    %v4666 = vunpack.c.l.b16 %v4098
    %v4667 = vunpack.c.h.b16 %v4098
    %v4668 = vunpack.c.l.b16 %v4099
    %v4669 = vunpack.c.h.b16 %v4099
    %v4670 = vunpack.c.l.b16 %v4100
    %v4671 = vunpack.c.h.b16 %v4100
    %v4672 = vunpack.c.l.b16 %v4101
    %v4673 = vunpack.c.h.b16 %v4101
    %v4674 = vunpack.c.l.b16 %v4102
    %v4675 = vunpack.c.h.b16 %v4102
    %v4676 = vunpack.c.l.b16 %v4103
    %v4677 = vunpack.c.h.b16 %v4103
    %v4678 = vunpack.c.l.b16 %v4104
    %v4679 = vunpack.c.h.b16 %v4104
    %v4680 = vunpack.c.l.b16 %v4105
    %v4681 = vunpack.c.h.b16 %v4105
    %v4682 = vunpack.c.l.b16 %v4106
    %v4683 = vunpack.c.h.b16 %v4106
    %v4684 = vunpack.c.l.b16 %v4107
    %v4685 = vunpack.c.h.b16 %v4107
    %v4686 = vunpack.c.l.b16 %v4108
    %v4687 = vunpack.c.h.b16 %v4108
    %v4688 = vunpack.c.l.b16 %v4109
    %v4689 = vunpack.c.h.b16 %v4109
    %v4690 = vunpack.c.l.b16 %v4110
    %v4691 = vunpack.c.h.b16 %v4110
    %v4692 = vunpack.c.l.b16 %v4111
    %v4693 = vunpack.c.h.b16 %v4111
    %v4694 = vunpack.c.l.b16 %v4112
    %v4695 = vunpack.c.h.b16 %v4112
    %v4696 = vunpack.c.l.b16 %v4113
    %v4697 = vunpack.c.h.b16 %v4113
    %v4698 = vunpack.c.l.b16 %v4114
    %v4699 = vunpack.c.h.b16 %v4114
    %v4700 = vunpack.c.l.b16 %v4115
    %v4701 = vunpack.c.h.b16 %v4115
    %v4702 = vunpack.c.l.b16 %v4116
    %v4703 = vunpack.c.h.b16 %v4116
    %v4704 = vunpack.c.l.b16 %v4117
    %v4705 = vunpack.c.h.b16 %v4117
    %v4706 = vunpack.c.l.b16 %v4118
    %v4707 = vunpack.c.h.b16 %v4118
    %v4708 = vunpack.c.l.b16 %v4119
    %v4709 = vunpack.c.h.b16 %v4119
    %v4710 = vunpack.c.l.b16 %v4120
    %v4711 = vunpack.c.h.b16 %v4120
    %v4712 = vunpack.c.l.b16 %v4121
    %v4713 = vunpack.c.h.b16 %v4121
    %v4714 = vunpack.c.l.b16 %v4122
    %v4715 = vunpack.c.h.b16 %v4122
    %v4716 = vunpack.c.l.b16 %v4123
    %v4717 = vunpack.c.h.b16 %v4123
    %v4718 = vunpack.c.l.b16 %v4124
    %v4719 = vunpack.c.h.b16 %v4124
    %v4720 = vunpack.c.l.b16 %v4125
    %v4721 = vunpack.c.h.b16 %v4125
    %v4722 = vunpack.c.l.b16 %v4126
    %v4723 = vunpack.c.h.b16 %v4126
    %v4724 = vunpack.c.l.b16 %v4127
    %v4725 = vunpack.c.h.b16 %v4127
    %v4726 = vunpack.c.l.b16 %v4128
    %v4727 = vunpack.c.h.b16 %v4128
    %v4728 = vunpack.c.l.b16 %v4129
    %v4729 = vunpack.c.h.b16 %v4129
    %v4730 = vunpack.c.l.b16 %v4130
    %v4731 = vunpack.c.h.b16 %v4130
    %v4732 = vunpack.c.l.b16 %v4131
    %v4733 = vunpack.c.h.b16 %v4131
    %v4734 = vunpack.c.l.b16 %v4132
    %v4735 = vunpack.c.h.b16 %v4132
    %v4736 = vunpack.c.l.b16 %v4133
    %v4737 = vunpack.c.h.b16 %v4133
    %v4738 = vunpack.c.l.b16 %v4134
    %v4739 = vunpack.c.h.b16 %v4134
    %v4740 = vunpack.c.l.b16 %v4135
    %v4741 = vunpack.c.h.b16 %v4135
    %v4742 = vunpack.c.l.b16 %v4136
    %v4743 = vunpack.c.h.b16 %v4136
    %v4744 = vunpack.c.l.b16 %v4137
    %v4745 = vunpack.c.h.b16 %v4137
    %v4746 = vunpack.c.l.b16 %v4138
    %v4747 = vunpack.c.h.b16 %v4138
    %v4748 = vunpack.c.l.b16 %v4139
    %v4749 = vunpack.c.h.b16 %v4139
    %v4750 = vunpack.c.l.b16 %v4140
    %v4751 = vunpack.c.h.b16 %v4140
    %v4752 = vunpack.c.l.b16 %v4141
    %v4753 = vunpack.c.h.b16 %v4141
    %v4754 = vunpack.c.l.b16 %v4142
    %v4755 = vunpack.c.h.b16 %v4142
    %v4756 = vunpack.c.l.b16 %v4143
    %v4757 = vunpack.c.h.b16 %v4143
    %v4758 = vunpack.c.l.b16 %v4144
    %v4759 = vunpack.c.h.b16 %v4144
    %v4760 = vunpack.c.l.b16 %v4145
    %v4761 = vunpack.c.h.b16 %v4145
    %v4762 = vunpack.c.l.b16 %v4146
    %v4763 = vunpack.c.h.b16 %v4146
    %v4764 = vunpack.c.l.b16 %v4147
    %v4765 = vunpack.c.h.b16 %v4147
    %v4766 = vunpack.c.l.b16 %v4148
    %v4767 = vunpack.c.h.b16 %v4148
    %v4768 = vunpack.c.l.b16 %v4149
    %v4769 = vunpack.c.h.b16 %v4149
    %v4770 = vunpack.c.l.b16 %v4150
    %v4771 = vunpack.c.h.b16 %v4150
    %v4772 = vunpack.c.l.b16 %v4151
    %v4773 = vunpack.c.h.b16 %v4151
    %v4774 = vunpack.c.l.b16 %v4152
    %v4775 = vunpack.c.h.b16 %v4152
    %v4776 = vunpack.c.l.b16 %v4153
    %v4777 = vunpack.c.h.b16 %v4153
    %v4778 = vunpack.c.l.b16 %v4154
    %v4779 = vunpack.c.h.b16 %v4154
    %v4780 = vunpack.c.l.b16 %v4155
    %v4781 = vunpack.c.h.b16 %v4155
    %v4782 = vunpack.c.l.b16 %v4156
    %v4783 = vunpack.c.h.b16 %v4156
    %v4784 = vunpack.c.l.b16 %v4157
    %v4785 = vunpack.c.h.b16 %v4157
    %v4786 = vunpack.c.l.b16 %v4158
    %v4787 = vunpack.c.h.b16 %v4158
    %v4788 = vunpack.c.l.b16 %v4159
    %v4789 = vunpack.c.h.b16 %v4159
    %v4790 = vunpack.c.l.b16 %v4160
    %v4791 = vunpack.c.h.b16 %v4160
    %v4792 = vunpack.c.l.b16 %v4161
    %v4793 = vunpack.c.h.b16 %v4161
    %v4794 = vunpack.c.l.b16 %v4162
    %v4795 = vunpack.c.h.b16 %v4162
    %v4796 = vunpack.c.l.b16 %v4163
    %v4797 = vunpack.c.h.b16 %v4163
    %v4798 = vunpack.c.l.b16 %v4164
    %v4799 = vunpack.c.h.b16 %v4164
    %v4800 = vunpack.c.l.b16 %v4165
    %v4801 = vunpack.c.h.b16 %v4165
    %v4802 = vunpack.c.l.b16 %v4166
    %v4803 = vunpack.c.h.b16 %v4166
    %v4804 = vunpack.c.l.b16 %v4167
    %v4805 = vunpack.c.h.b16 %v4167
    %v4806 = vunpack.c.l.b16 %v4168
    %v4807 = vunpack.c.h.b16 %v4168
    %v4808 = vunpack.c.l.b16 %v4169
    %v4809 = vunpack.c.h.b16 %v4169
    %v4810 = vunpack.c.l.b16 %v4170
    %v4811 = vunpack.c.h.b16 %v4170
    %v4812 = vunpack.c.l.b16 %v4171
    %v4813 = vunpack.c.h.b16 %v4171
    %v4814 = vunpack.c.l.b16 %v4172
    %v4815 = vunpack.c.h.b16 %v4172
    %v4816 = vunpack.c.l.b16 %v4173
    %v4817 = vunpack.c.h.b16 %v4173
    %v4818 = vunpack.c.l.b16 %v4174
    %v4819 = vunpack.c.h.b16 %v4174
    %v4820 = vunpack.c.l.b16 %v4175
    %v4821 = vunpack.c.h.b16 %v4175
    %v4822 = vunpack.c.l.b16 %v4176
    %v4823 = vunpack.c.h.b16 %v4176
    %v4824 = vunpack.c.l.b16 %v4177
    %v4825 = vunpack.c.h.b16 %v4177
    %v4826 = vunpack.c.l.b16 %v4178
    %v4827 = vunpack.c.h.b16 %v4178
    %v4828 = vunpack.c.l.b16 %v4179
    %v4829 = vunpack.c.h.b16 %v4179
    %v4830 = vunpack.c.l.b16 %v4180
    %v4831 = vunpack.c.h.b16 %v4180
    %v4832 = vunpack.c.l.b16 %v4181
    %v4833 = vunpack.c.h.b16 %v4181
    %v4834 = vunpack.c.l.b16 %v4182
    %v4835 = vunpack.c.h.b16 %v4182
    %v4836 = vunpack.c.l.b16 %v4183
    %v4837 = vunpack.c.h.b16 %v4183
    %v4838 = vunpack.c.l.b16 %v4184
    %v4839 = vunpack.c.h.b16 %v4184
    %v4840 = vunpack.c.l.b16 %v4185
    %v4841 = vunpack.c.h.b16 %v4185
    %v4842 = vunpack.c.l.b16 %v4186
    %v4843 = vunpack.c.h.b16 %v4186
    %v4844 = vunpack.c.l.b16 %v4187
    %v4845 = vunpack.c.h.b16 %v4187
    %v4846 = vunpack.c.l.b16 %v4188
    %v4847 = vunpack.c.h.b16 %v4188
    %v4848 = vunpack.c.l.b16 %v4189
    %v4849 = vunpack.c.h.b16 %v4189
    %v4850 = vunpack.c.l.b16 %v4190
    %v4851 = vunpack.c.h.b16 %v4190
    %v4852 = vunpack.c.l.b16 %v4191
    %v4853 = vunpack.c.h.b16 %v4191
    %v4854 = vunpack.c.l.b16 %v4192
    %v4855 = vunpack.c.h.b16 %v4192
    %v4856 = vunpack.c.l.b16 %v4193
    %v4857 = vunpack.c.h.b16 %v4193
    %v4858 = vunpack.c.l.b16 %v4194
    %v4859 = vunpack.c.h.b16 %v4194
    %v4860 = vunpack.c.l.b16 %v4195
    %v4861 = vunpack.c.h.b16 %v4195
    %v4862 = vunpack.c.l.b16 %v4196
    %v4863 = vunpack.c.h.b16 %v4196
    %v4864 = vunpack.c.l.b16 %v4197
    %v4865 = vunpack.c.h.b16 %v4197
    %v4866 = vunpack.c.l.b16 %v4198
    %v4867 = vunpack.c.h.b16 %v4198
    %v4868 = vunpack.c.l.b16 %v4199
    %v4869 = vunpack.c.h.b16 %v4199
    %v4870 = vunpack.c.l.b16 %v4200
    %v4871 = vunpack.c.h.b16 %v4200
    %v4872 = vunpack.c.l.b16 %v4201
    %v4873 = vunpack.c.h.b16 %v4201
    %v4874 = vunpack.c.l.b16 %v4202
    %v4875 = vunpack.c.h.b16 %v4202
    %v4876 = vunpack.c.l.b16 %v4203
    %v4877 = vunpack.c.h.b16 %v4203
    %v4878 = vunpack.c.l.b16 %v4204
    %v4879 = vunpack.c.h.b16 %v4204
    %v4880 = vunpack.c.l.b16 %v4205
    %v4881 = vunpack.c.h.b16 %v4205
    %v4882 = vunpack.c.l.b16 %v4206
    %v4883 = vunpack.c.h.b16 %v4206
    %v4884 = vunpack.c.l.b16 %v4207
    %v4885 = vunpack.c.h.b16 %v4207
    %v4886 = vunpack.c.l.b16 %v4208
    %v4887 = vunpack.c.h.b16 %v4208
    %v4888 = vunpack.c.l.b16 %v4209
    %v4889 = vunpack.c.h.b16 %v4209
    %v4890 = vunpack.c.l.b16 %v4210
    %v4891 = vunpack.c.h.b16 %v4210
    %v4892 = vunpack.c.l.b16 %v4211
    %v4893 = vunpack.c.h.b16 %v4211
    %v4894 = vunpack.c.l.b16 %v4212
    %v4895 = vunpack.c.h.b16 %v4212
    %v4896 = vunpack.c.l.b16 %v4213
    %v4897 = vunpack.c.h.b16 %v4213
    %v4898 = vunpack.c.l.b16 %v4214
    %v4899 = vunpack.c.h.b16 %v4214
    %v4900 = vunpack.c.l.b16 %v4215
    %v4901 = vunpack.c.h.b16 %v4215
    %v4902 = vunpack.c.l.b16 %v4216
    %v4903 = vunpack.c.h.b16 %v4216
    %v4904 = vunpack.c.l.b16 %v4217
    %v4905 = vunpack.c.h.b16 %v4217
    %v4906 = vunpack.c.l.b16 %v4218
    %v4907 = vunpack.c.h.b16 %v4218
    %v4908 = vunpack.c.l.b16 %v4219
    %v4909 = vunpack.c.h.b16 %v4219
    %v4910 = vunpack.c.l.b16 %v4220
    %v4911 = vunpack.c.h.b16 %v4220
    %v4912 = vunpack.c.l.b16 %v4221
    %v4913 = vunpack.c.h.b16 %v4221
    %v4914 = vunpack.c.l.b16 %v4222
    %v4915 = vunpack.c.h.b16 %v4222
    %v4916 = vunpack.c.l.b16 %v4223
    %v4917 = vunpack.c.h.b16 %v4223
    %v4918 = vunpack.c.l.b16 %v4224
    %v4919 = vunpack.c.h.b16 %v4224
    %v4920 = vunpack.c.l.b16 %v4225
    %v4921 = vunpack.c.h.b16 %v4225
    %v4922 = vunpack.c.l.b16 %v4226
    %v4923 = vunpack.c.h.b16 %v4226
    %v4924 = vunpack.c.l.b16 %v4227
    %v4925 = vunpack.c.h.b16 %v4227
    %v4926 = vunpack.c.l.b16 %v4228
    %v4927 = vunpack.c.h.b16 %v4228
    %v4928 = vunpack.c.l.b16 %v4229
    %v4929 = vunpack.c.h.b16 %v4229
    %v4930 = vunpack.c.l.b16 %v4230
    %v4931 = vunpack.c.h.b16 %v4230
    %v4932 = vunpack.c.l.b16 %v4231
    %v4933 = vunpack.c.h.b16 %v4231
    %v4934 = vunpack.c.l.b16 %v4232
    %v4935 = vunpack.c.h.b16 %v4232
    %v4936 = vunpack.c.l.b16 %v4233
    %v4937 = vunpack.c.h.b16 %v4233
    %v4938 = vunpack.c.l.b16 %v4234
    %v4939 = vunpack.c.h.b16 %v4234
    %v4940 = vunpack.c.l.b16 %v4235
    %v4941 = vunpack.c.h.b16 %v4235
    %v4942 = vunpack.c.l.b16 %v4236
    %v4943 = vunpack.c.h.b16 %v4236
    %v4944 = vunpack.c.l.b16 %v4237
    %v4945 = vunpack.c.h.b16 %v4237
    %v4946 = vunpack.c.l.b16 %v4238
    %v4947 = vunpack.c.h.b16 %v4238
    %v4948 = vunpack.c.l.b16 %v4239
    %v4949 = vunpack.c.h.b16 %v4239
    %v4950 = vunpack.c.l.b16 %v4240
    %v4951 = vunpack.c.h.b16 %v4240
    %v4952 = vunpack.c.l.b16 %v4241
    %v4953 = vunpack.c.h.b16 %v4241
    %v4954 = vunpack.c.l.b16 %v4242
    %v4955 = vunpack.c.h.b16 %v4242
    %v4956 = vunpack.c.l.b16 %v4243
    %v4957 = vunpack.c.h.b16 %v4243
    %v4958 = vunpack.c.l.b16 %v4244
    %v4959 = vunpack.c.h.b16 %v4244
    %v4960 = vunpack.c.l.b16 %v4245
    %v4961 = vunpack.c.h.b16 %v4245
    %v4962 = vunpack.c.l.b16 %v4246
    %v4963 = vunpack.c.h.b16 %v4246
    %v4964 = vunpack.c.l.b16 %v4247
    %v4965 = vunpack.c.h.b16 %v4247
    %v4966 = vunpack.c.l.b16 %v4248
    %v4967 = vunpack.c.h.b16 %v4248
    %v4968 = vunpack.c.l.b16 %v4249
    %v4969 = vunpack.c.h.b16 %v4249
    %v4970 = vunpack.c.l.b16 %v4250
    %v4971 = vunpack.c.h.b16 %v4250
    %v4972 = vunpack.c.l.b16 %v4251
    %v4973 = vunpack.c.h.b16 %v4251
    %v4974 = vunpack.c.l.b16 %v4252
    %v4975 = vunpack.c.h.b16 %v4252
    %v4976 = vunpack.c.l.b16 %v4253
    %v4977 = vunpack.c.h.b16 %v4253
    %v4978 = vunpack.c.l.b16 %v4254
    %v4979 = vunpack.c.h.b16 %v4254
    %v4980 = vunpack.c.l.b16 %v4255
    %v4981 = vunpack.c.h.b16 %v4255
    %v4982 = vunpack.c.l.b16 %v4256
    %v4983 = vunpack.c.h.b16 %v4256
    %v4984 = vunpack.c.l.b16 %v4257
    %v4985 = vunpack.c.h.b16 %v4257
    %v4986 = vunpack.c.l.b16 %v4258
    %v4987 = vunpack.c.h.b16 %v4258
    %v4988 = vunpack.c.l.b16 %v4259
    %v4989 = vunpack.c.h.b16 %v4259
    %v4990 = vunpack.c.l.b16 %v4260
    %v4991 = vunpack.c.h.b16 %v4260
    %v4992 = vunpack.c.l.b16 %v4261
    %v4993 = vunpack.c.h.b16 %v4261
    %v4994 = vunpack.c.l.b16 %v4262
    %v4995 = vunpack.c.h.b16 %v4262
    %v4996 = vunpack.c.l.b16 %v4263
    %v4997 = vunpack.c.h.b16 %v4263
    %v4998 = vunpack.c.l.b16 %v4264
    %v4999 = vunpack.c.h.b16 %v4264
    %v5000 = vunpack.c.l.b16 %v4265
    %v5001 = vunpack.c.h.b16 %v4265
    %v5002 = vunpack.c.l.b16 %v4266
    %v5003 = vunpack.c.h.b16 %v4266
    %v5004 = vunpack.c.l.b16 %v4267
    %v5005 = vunpack.c.h.b16 %v4267
    %v5006 = vunpack.c.l.b16 %v4268
    %v5007 = vunpack.c.h.b16 %v4268
    %v5008 = vunpack.c.l.b16 %v4269
    %v5009 = vunpack.c.h.b16 %v4269
    %v5010 = vunpack.c.l.b16 %v4270
    %v5011 = vunpack.c.h.b16 %v4270
    %v5012 = vunpack.c.l.b16 %v4271
    %v5013 = vunpack.c.h.b16 %v4271
    %v5014 = vunpack.c.l.b16 %v4272
    %v5015 = vunpack.c.h.b16 %v4272
    %v5016 = vunpack.c.l.b16 %v4273
    %v5017 = vunpack.c.h.b16 %v4273
    %v5018 = vunpack.c.l.b16 %v4274
    %v5019 = vunpack.c.h.b16 %v4274
    %v5020 = vunpack.c.l.b16 %v4275
    %v5021 = vunpack.c.h.b16 %v4275
    %v5022 = vunpack.c.l.b16 %v4276
    %v5023 = vunpack.c.h.b16 %v4276
    %v5024 = vunpack.c.l.b16 %v4277
    %v5025 = vunpack.c.h.b16 %v4277
    %v5026 = vunpack.c.l.b16 %v4278
    %v5027 = vunpack.c.h.b16 %v4278
    %v5028 = vunpack.c.l.b16 %v4279
    %v5029 = vunpack.c.h.b16 %v4279
    %v5030 = vunpack.c.l.b16 %v4280
    %v5031 = vunpack.c.h.b16 %v4280
    %v5032 = vunpack.c.l.b16 %v4281
    %v5033 = vunpack.c.h.b16 %v4281
    %v5034 = vunpack.c.l.b16 %v4282
    %v5035 = vunpack.c.h.b16 %v4282
    %v5036 = vunpack.c.l.b16 %v4283
    %v5037 = vunpack.c.h.b16 %v4283
    %v5038 = vunpack.c.l.b16 %v4284
    %v5039 = vunpack.c.h.b16 %v4284
    %v5040 = vunpack.c.l.b16 %v4285
    %v5041 = vunpack.c.h.b16 %v4285
    %v5042 = vunpack.c.l.b16 %v4286
    %v5043 = vunpack.c.h.b16 %v4286
    %v5044 = vunpack.c.l.b16 %v4287
    %v5045 = vunpack.c.h.b16 %v4287
    %v5046 = vunpack.c.l.b16 %v4288
    %v5047 = vunpack.c.h.b16 %v4288
    %v5048 = vunpack.c.l.b16 %v4289
    %v5049 = vunpack.c.h.b16 %v4289
    %v5050 = vunpack.c.l.b16 %v4290
    %v5051 = vunpack.c.h.b16 %v4290
    %v5052 = vunpack.c.l.b16 %v4291
    %v5053 = vunpack.c.h.b16 %v4291
    %v5054 = vunpack.c.l.b16 %v4292
    %v5055 = vunpack.c.h.b16 %v4292
    %v5056 = vunpack.c.l.b16 %v4293
    %v5057 = vunpack.c.h.b16 %v4293
    %v5058 = vunpack.c.l.b16 %v4294
    %v5059 = vunpack.c.h.b16 %v4294
    %v5060 = vunpack.c.l.b16 %v4295
    %v5061 = vunpack.c.h.b16 %v4295
    %v5062 = vunpack.c.l.b16 %v4296
    %v5063 = vunpack.c.h.b16 %v4296
    %v5064 = vunpack.c.l.b16 %v4297
    %v5065 = vunpack.c.h.b16 %v4297
    %v5066 = vunpack.c.l.b16 %v4298
    %v5067 = vunpack.c.h.b16 %v4298
    %v5068 = vunpack.c.l.b16 %v4299
    %v5069 = vunpack.c.h.b16 %v4299
    %v5070 = vunpack.c.l.b16 %v4300
    %v5071 = vunpack.c.h.b16 %v4300
    %v5072 = vunpack.c.l.b16 %v4301
    %v5073 = vunpack.c.h.b16 %v4301
    %v5074 = vunpack.c.l.b16 %v4302
    %v5075 = vunpack.c.h.b16 %v4302
    %v5076 = vunpack.c.l.b16 %v4303
    %v5077 = vunpack.c.h.b16 %v4303
    %v5078 = vunpack.c.l.b16 %v4304
    %v5079 = vunpack.c.h.b16 %v4304
    %v5080 = vunpack.c.l.b16 %v4305
    %v5081 = vunpack.c.h.b16 %v4305
    %v5082 = vunpack.c.l.b16 %v4306
    %v5083 = vunpack.c.h.b16 %v4306
    %v5084 = vunpack.c.l.b16 %v4307
    %v5085 = vunpack.c.h.b16 %v4307
    %v5086 = vunpack.c.l.b16 %v4308
    %v5087 = vunpack.c.h.b16 %v4308
    %v5088 = vunpack.c.l.b16 %v4309
    %v5089 = vunpack.c.h.b16 %v4309
    %v5090 = vunpack.c.l.b16 %v4310
    %v5091 = vunpack.c.h.b16 %v4310
    %v5092 = vunpack.c.l.b16 %v4311
    %v5093 = vunpack.c.h.b16 %v4311
    %v5094 = vunpack.c.l.b16 %v4312
    %v5095 = vunpack.c.h.b16 %v4312
    %v5096 = vunpack.c.l.b16 %v4313
    %v5097 = vunpack.c.h.b16 %v4313
    %v5098 = vunpack.c.l.b16 %v4314
    %v5099 = vunpack.c.h.b16 %v4314
    %v5100 = vunpack.c.l.b16 %v4315
    %v5101 = vunpack.c.h.b16 %v4315
    %v5102 = vunpack.c.l.b16 %v4316
    %v5103 = vunpack.c.h.b16 %v4316
    %v5104 = vunpack.c.l.b16 %v4317
    %v5105 = vunpack.c.h.b16 %v4317
    %v5106 = vunpack.c.l.b16 %v4318
    %v5107 = vunpack.c.h.b16 %v4318
    %v5108 = vunpack.c.l.b16 %v4319
    %v5109 = vunpack.c.h.b16 %v4319
    %v5110 = vunpack.c.l.b16 %v4320
    %v5111 = vunpack.c.h.b16 %v4320
    %v5112 = vunpack.c.l.b16 %v4321
    %v5113 = vunpack.c.h.b16 %v4321
    %v5114 = vunpack.c.l.b16 %v4322
    %v5115 = vunpack.c.h.b16 %v4322
    %v5116 = vunpack.c.l.b16 %v4323
    %v5117 = vunpack.c.h.b16 %v4323
    %v5118 = vpack.c.b16 %v4610, %v4606
    %v5119 = vpack.c.b16 %v4611, %v4607
    %v5120 = vpack.c.b16 %v4612, %v4608
    %v5121 = vpack.c.b16 %v4613, %v4609
    %v5122 = vpack.c.b16 %v4618, %v4614
    %v5123 = vpack.c.b16 %v4619, %v4615
    %v5124 = vpack.c.b16 %v4620, %v4616
    %v5125 = vpack.c.b16 %v4621, %v4617
    %v5126 = vpack.c.b16 %v4626, %v4622
    %v5127 = vpack.c.b16 %v4627, %v4623
    %v5128 = vpack.c.b16 %v4628, %v4624
    %v5129 = vpack.c.b16 %v4629, %v4625
    %v5130 = vpack.c.b16 %v4634, %v4630
    %v5131 = vpack.c.b16 %v4635, %v4631
    %v5132 = vpack.c.b16 %v4636, %v4632
    %v5133 = vpack.c.b16 %v4637, %v4633
    %v5134 = vpack.c.b16 %v4642, %v4638
    %v5135 = vpack.c.b16 %v4643, %v4639
    %v5136 = vpack.c.b16 %v4644, %v4640
    %v5137 = vpack.c.b16 %v4645, %v4641
    %v5138 = vpack.c.b16 %v4650, %v4646
    %v5139 = vpack.c.b16 %v4651, %v4647
    %v5140 = vpack.c.b16 %v4652, %v4648
    %v5141 = vpack.c.b16 %v4653, %v4649
    %v5142 = vpack.c.b16 %v4658, %v4654
    %v5143 = vpack.c.b16 %v4659, %v4655
    %v5144 = vpack.c.b16 %v4660, %v4656
    %v5145 = vpack.c.b16 %v4661, %v4657
    %v5146 = vpack.c.b16 %v4666, %v4662
    %v5147 = vpack.c.b16 %v4667, %v4663
    %v5148 = vpack.c.b16 %v4668, %v4664
    %v5149 = vpack.c.b16 %v4669, %v4665
    %v5150 = vpack.c.b16 %v4674, %v4670
    %v5151 = vpack.c.b16 %v4675, %v4671
    %v5152 = vpack.c.b16 %v4676, %v4672
    %v5153 = vpack.c.b16 %v4677, %v4673
    %v5154 = vpack.c.b16 %v4682, %v4678
    %v5155 = vpack.c.b16 %v4683, %v4679
    %v5156 = vpack.c.b16 %v4684, %v4680
    %v5157 = vpack.c.b16 %v4685, %v4681
    %v5158 = vpack.c.b16 %v4690, %v4686
    %v5159 = vpack.c.b16 %v4691, %v4687
    %v5160 = vpack.c.b16 %v4692, %v4688
    %v5161 = vpack.c.b16 %v4693, %v4689
    %v5162 = vpack.c.b16 %v4698, %v4694
    %v5163 = vpack.c.b16 %v4699, %v4695
    %v5164 = vpack.c.b16 %v4700, %v4696
    %v5165 = vpack.c.b16 %v4701, %v4697
    %v5166 = vpack.c.b16 %v4706, %v4702
    %v5167 = vpack.c.b16 %v4707, %v4703
    %v5168 = vpack.c.b16 %v4708, %v4704
    %v5169 = vpack.c.b16 %v4709, %v4705
    %v5170 = vpack.c.b16 %v4714, %v4710
    %v5171 = vpack.c.b16 %v4715, %v4711
    %v5172 = vpack.c.b16 %v4716, %v4712
    %v5173 = vpack.c.b16 %v4717, %v4713
    %v5174 = vpack.c.b16 %v4722, %v4718
    %v5175 = vpack.c.b16 %v4723, %v4719
    %v5176 = vpack.c.b16 %v4724, %v4720
    %v5177 = vpack.c.b16 %v4725, %v4721
    %v5178 = vpack.c.b16 %v4730, %v4726
    %v5179 = vpack.c.b16 %v4731, %v4727
    %v5180 = vpack.c.b16 %v4732, %v4728
    %v5181 = vpack.c.b16 %v4733, %v4729
    %v5182 = vpack.c.b16 %v4738, %v4734
    %v5183 = vpack.c.b16 %v4739, %v4735
    %v5184 = vpack.c.b16 %v4740, %v4736
    %v5185 = vpack.c.b16 %v4741, %v4737
    %v5186 = vpack.c.b16 %v4746, %v4742
    %v5187 = vpack.c.b16 %v4747, %v4743
    %v5188 = vpack.c.b16 %v4748, %v4744
    %v5189 = vpack.c.b16 %v4749, %v4745
    %v5190 = vpack.c.b16 %v4754, %v4750
    %v5191 = vpack.c.b16 %v4755, %v4751
    %v5192 = vpack.c.b16 %v4756, %v4752
    %v5193 = vpack.c.b16 %v4757, %v4753
    %v5194 = vpack.c.b16 %v4762, %v4758
    %v5195 = vpack.c.b16 %v4763, %v4759
    %v5196 = vpack.c.b16 %v4764, %v4760
    %v5197 = vpack.c.b16 %v4765, %v4761
    %v5198 = vpack.c.b16 %v4770, %v4766
    %v5199 = vpack.c.b16 %v4771, %v4767
    %v5200 = vpack.c.b16 %v4772, %v4768
    %v5201 = vpack.c.b16 %v4773, %v4769
    %v5202 = vpack.c.b16 %v4778, %v4774
    %v5203 = vpack.c.b16 %v4779, %v4775
    %v5204 = vpack.c.b16 %v4780, %v4776
    %v5205 = vpack.c.b16 %v4781, %v4777
    %v5206 = vpack.c.b16 %v4786, %v4782
    %v5207 = vpack.c.b16 %v4787, %v4783
    %v5208 = vpack.c.b16 %v4788, %v4784
    %v5209 = vpack.c.b16 %v4789, %v4785
    %v5210 = vpack.c.b16 %v4794, %v4790
    %v5211 = vpack.c.b16 %v4795, %v4791
    %v5212 = vpack.c.b16 %v4796, %v4792
    %v5213 = vpack.c.b16 %v4797, %v4793
    %v5214 = vpack.c.b16 %v4802, %v4798
    %v5215 = vpack.c.b16 %v4803, %v4799
    %v5216 = vpack.c.b16 %v4804, %v4800
    %v5217 = vpack.c.b16 %v4805, %v4801
    %v5218 = vpack.c.b16 %v4810, %v4806
    %v5219 = vpack.c.b16 %v4811, %v4807
    %v5220 = vpack.c.b16 %v4812, %v4808
    %v5221 = vpack.c.b16 %v4813, %v4809
    %v5222 = vpack.c.b16 %v4818, %v4814
    %v5223 = vpack.c.b16 %v4819, %v4815
    %v5224 = vpack.c.b16 %v4820, %v4816
    %v5225 = vpack.c.b16 %v4821, %v4817
    %v5226 = vpack.c.b16 %v4826, %v4822
    %v5227 = vpack.c.b16 %v4827, %v4823
    %v5228 = vpack.c.b16 %v4828, %v4824
    %v5229 = vpack.c.b16 %v4829, %v4825
    %v5230 = vpack.c.b16 %v4834, %v4830
    %v5231 = vpack.c.b16 %v4835, %v4831
    %v5232 = vpack.c.b16 %v4836, %v4832
    %v5233 = vpack.c.b16 %v4837, %v4833
    %v5234 = vpack.c.b16 %v4842, %v4838
    %v5235 = vpack.c.b16 %v4843, %v4839
    %v5236 = vpack.c.b16 %v4844, %v4840
    %v5237 = vpack.c.b16 %v4845, %v4841
    %v5238 = vpack.c.b16 %v4850, %v4846
    %v5239 = vpack.c.b16 %v4851, %v4847
    %v5240 = vpack.c.b16 %v4852, %v4848
    %v5241 = vpack.c.b16 %v4853, %v4849
    %v5242 = vpack.c.b16 %v4858, %v4854
    %v5243 = vpack.c.b16 %v4859, %v4855
    %v5244 = vpack.c.b16 %v4860, %v4856
    %v5245 = vpack.c.b16 %v4861, %v4857
    %v5246 = vpack.c.b16 %v4866, %v4862
    %v5247 = vpack.c.b16 %v4867, %v4863
    %v5248 = vpack.c.b16 %v4868, %v4864
    %v5249 = vpack.c.b16 %v4869, %v4865
    %v5250 = vpack.c.b16 %v4874, %v4870
    %v5251 = vpack.c.b16 %v4875, %v4871
    %v5252 = vpack.c.b16 %v4876, %v4872
    %v5253 = vpack.c.b16 %v4877, %v4873
    %v5254 = vpack.c.b16 %v4882, %v4878
    %v5255 = vpack.c.b16 %v4883, %v4879
    %v5256 = vpack.c.b16 %v4884, %v4880
    %v5257 = vpack.c.b16 %v4885, %v4881
    %v5258 = vpack.c.b16 %v4890, %v4886
    %v5259 = vpack.c.b16 %v4891, %v4887
    %v5260 = vpack.c.b16 %v4892, %v4888
    %v5261 = vpack.c.b16 %v4893, %v4889
    %v5262 = vpack.c.b16 %v4898, %v4894
    %v5263 = vpack.c.b16 %v4899, %v4895
    %v5264 = vpack.c.b16 %v4900, %v4896
    %v5265 = vpack.c.b16 %v4901, %v4897
    %v5266 = vpack.c.b16 %v4906, %v4902
    %v5267 = vpack.c.b16 %v4907, %v4903
    %v5268 = vpack.c.b16 %v4908, %v4904
    %v5269 = vpack.c.b16 %v4909, %v4905
    %v5270 = vpack.c.b16 %v4914, %v4910
    %v5271 = vpack.c.b16 %v4915, %v4911
    %v5272 = vpack.c.b16 %v4916, %v4912
    %v5273 = vpack.c.b16 %v4917, %v4913
    %v5274 = vpack.c.b16 %v4922, %v4918
    %v5275 = vpack.c.b16 %v4923, %v4919
    %v5276 = vpack.c.b16 %v4924, %v4920
    %v5277 = vpack.c.b16 %v4925, %v4921
    %v5278 = vpack.c.b16 %v4930, %v4926
    %v5279 = vpack.c.b16 %v4931, %v4927
    %v5280 = vpack.c.b16 %v4932, %v4928
    %v5281 = vpack.c.b16 %v4933, %v4929
    %v5282 = vpack.c.b16 %v4938, %v4934
    %v5283 = vpack.c.b16 %v4939, %v4935
    %v5284 = vpack.c.b16 %v4940, %v4936
    %v5285 = vpack.c.b16 %v4941, %v4937
    %v5286 = vpack.c.b16 %v4946, %v4942
    %v5287 = vpack.c.b16 %v4947, %v4943
    %v5288 = vpack.c.b16 %v4948, %v4944
    %v5289 = vpack.c.b16 %v4949, %v4945
    %v5290 = vpack.c.b16 %v4954, %v4950
    %v5291 = vpack.c.b16 %v4955, %v4951
    %v5292 = vpack.c.b16 %v4956, %v4952
    %v5293 = vpack.c.b16 %v4957, %v4953
    %v5294 = vpack.c.b16 %v4962, %v4958
    %v5295 = vpack.c.b16 %v4963, %v4959
    %v5296 = vpack.c.b16 %v4964, %v4960
    %v5297 = vpack.c.b16 %v4965, %v4961
    %v5298 = vpack.c.b16 %v4970, %v4966
    %v5299 = vpack.c.b16 %v4971, %v4967
    %v5300 = vpack.c.b16 %v4972, %v4968
    %v5301 = vpack.c.b16 %v4973, %v4969
    %v5302 = vpack.c.b16 %v4978, %v4974
    %v5303 = vpack.c.b16 %v4979, %v4975
    %v5304 = vpack.c.b16 %v4980, %v4976
    %v5305 = vpack.c.b16 %v4981, %v4977
    %v5306 = vpack.c.b16 %v4986, %v4982
    %v5307 = vpack.c.b16 %v4987, %v4983
    %v5308 = vpack.c.b16 %v4988, %v4984
    %v5309 = vpack.c.b16 %v4989, %v4985
    %v5310 = vpack.c.b16 %v4994, %v4990
    %v5311 = vpack.c.b16 %v4995, %v4991
    %v5312 = vpack.c.b16 %v4996, %v4992
    %v5313 = vpack.c.b16 %v4997, %v4993
    %v5314 = vpack.c.b16 %v5002, %v4998
    %v5315 = vpack.c.b16 %v5003, %v4999
    %v5316 = vpack.c.b16 %v5004, %v5000
    %v5317 = vpack.c.b16 %v5005, %v5001
    %v5318 = vpack.c.b16 %v5010, %v5006
    %v5319 = vpack.c.b16 %v5011, %v5007
    %v5320 = vpack.c.b16 %v5012, %v5008
    %v5321 = vpack.c.b16 %v5013, %v5009
    %v5322 = vpack.c.b16 %v5018, %v5014
    %v5323 = vpack.c.b16 %v5019, %v5015
    %v5324 = vpack.c.b16 %v5020, %v5016
    %v5325 = vpack.c.b16 %v5021, %v5017
    %v5326 = vpack.c.b16 %v5026, %v5022
    %v5327 = vpack.c.b16 %v5027, %v5023
    %v5328 = vpack.c.b16 %v5028, %v5024
    %v5329 = vpack.c.b16 %v5029, %v5025
    %v5330 = vpack.c.b16 %v5034, %v5030
    %v5331 = vpack.c.b16 %v5035, %v5031
    %v5332 = vpack.c.b16 %v5036, %v5032
    %v5333 = vpack.c.b16 %v5037, %v5033
    %v5334 = vpack.c.b16 %v5042, %v5038
    %v5335 = vpack.c.b16 %v5043, %v5039
    %v5336 = vpack.c.b16 %v5044, %v5040
    %v5337 = vpack.c.b16 %v5045, %v5041
    %v5338 = vpack.c.b16 %v5050, %v5046
    %v5339 = vpack.c.b16 %v5051, %v5047
    %v5340 = vpack.c.b16 %v5052, %v5048
    %v5341 = vpack.c.b16 %v5053, %v5049
    %v5342 = vpack.c.b16 %v5058, %v5054
    %v5343 = vpack.c.b16 %v5059, %v5055
    %v5344 = vpack.c.b16 %v5060, %v5056
    %v5345 = vpack.c.b16 %v5061, %v5057
    %v5346 = vpack.c.b16 %v5066, %v5062
    %v5347 = vpack.c.b16 %v5067, %v5063
    %v5348 = vpack.c.b16 %v5068, %v5064
    %v5349 = vpack.c.b16 %v5069, %v5065
    %v5350 = vpack.c.b16 %v5074, %v5070
    %v5351 = vpack.c.b16 %v5075, %v5071
    %v5352 = vpack.c.b16 %v5076, %v5072
    %v5353 = vpack.c.b16 %v5077, %v5073
    %v5354 = vpack.c.b16 %v5082, %v5078
    %v5355 = vpack.c.b16 %v5083, %v5079
    %v5356 = vpack.c.b16 %v5084, %v5080
    %v5357 = vpack.c.b16 %v5085, %v5081
    %v5358 = vpack.c.b16 %v5090, %v5086
    %v5359 = vpack.c.b16 %v5091, %v5087
    %v5360 = vpack.c.b16 %v5092, %v5088
    %v5361 = vpack.c.b16 %v5093, %v5089
    %v5362 = vpack.c.b16 %v5098, %v5094
    %v5363 = vpack.c.b16 %v5099, %v5095
    %v5364 = vpack.c.b16 %v5100, %v5096
    %v5365 = vpack.c.b16 %v5101, %v5097
    %v5366 = vpack.c.b16 %v5106, %v5102
    %v5367 = vpack.c.b16 %v5107, %v5103
    %v5368 = vpack.c.b16 %v5108, %v5104
    %v5369 = vpack.c.b16 %v5109, %v5105
    %v5370 = vpack.c.b16 %v5114, %v5110
    %v5371 = vpack.c.b16 %v5115, %v5111
    %v5372 = vpack.c.b16 %v5116, %v5112
    %v5373 = vpack.c.b16 %v5117, %v5113
    %5630 = vmatpush.bf16.msra.mxu0 %v5146
    %5631 = vmatpush.bf16.msra.mxu0 %v5142
    %5632 = vmatpush.bf16.msra.mxu0 %v5138
    %5633 = vmatpush.bf16.msra.mxu0 %v5134
    %5634 = vmatpush.bf16.msra.mxu0 %v5130
    %5635 = vmatpush.bf16.msra.mxu0 %v5126
    %5636 = vmatpush.bf16.msra.mxu0 %v5122
    %5637 = vmatpush.bf16.msra.mxu0 %v5118
    %5638 = vmatmul.bf16.gmra.mxu0 %v4324
    %v5639 = vpop.f32.mrf.mxu0
    %v5640 = vadd.f32 %v4342, %v5639
    %v5641 = vpop.f32.mrf.mxu0
    %v5642 = vadd.f32 %v4342, %v5641
    %5643 = vmatmul.bf16.gmra.mxu0 %v4332
    %v5644 = vpop.f32.mrf.mxu0
    %v5645 = vadd.f32 %v4342, %v5644
    %v5646 = vpop.f32.mrf.mxu0
    %5647 = vdwg.mxu0
    %5648 = vmatpush.bf16.msra.mxu0 %v5178
    %5649 = vmatpush.bf16.msra.mxu0 %v5174
    %5650 = vmatpush.bf16.msra.mxu0 %v5170
    %5651 = vmatpush.bf16.msra.mxu0 %v5166
    %5652 = vmatpush.bf16.msra.mxu0 %v5162
    %5653 = vmatpush.bf16.msra.mxu0 %v5158
    %5654 = vmatpush.bf16.msra.mxu0 %v5154
    %5655 = vmatpush.bf16.msra.mxu0 %v5150
    %5656 = vmatmul.bf16.gmra.mxu0 %v4325
    %v5657 = vpop.f32.mrf.mxu0
    %v5658 = vadd.f32 %v5640, %v5657
    %v5659 = vpop.f32.mrf.mxu0
    %v5660 = vadd.f32 %v5642, %v5659
    %5661 = vmatmul.bf16.gmra.mxu0 %v4333
    %v5662 = vpop.f32.mrf.mxu0
    %v5663 = vadd.f32 %v5645, %v5662
    %v5664 = vpop.f32.mrf.mxu0
    %5665 = vdwg.mxu0
    %5666 = vmatpush.bf16.msra.mxu0 %v5210
    %5667 = vmatpush.bf16.msra.mxu0 %v5206
    %5668 = vmatpush.bf16.msra.mxu0 %v5202
    %5669 = vmatpush.bf16.msra.mxu0 %v5198
    %5670 = vmatpush.bf16.msra.mxu0 %v5194
    %5671 = vmatpush.bf16.msra.mxu0 %v5190
    %5672 = vmatpush.bf16.msra.mxu0 %v5186
    %5673 = vmatpush.bf16.msra.mxu0 %v5182
    %5674 = vmatmul.bf16.gmra.mxu0 %v4326
    %v5675 = vpop.f32.mrf.mxu0
    %v5676 = vadd.f32 %v5658, %v5675
    %v5677 = vpop.f32.mrf.mxu0
    %v5678 = vadd.f32 %v5660, %v5677
    %5679 = vmatmul.bf16.gmra.mxu0 %v4334
    %v5680 = vpop.f32.mrf.mxu0
    %v5681 = vadd.f32 %v5663, %v5680
    %v5682 = vpop.f32.mrf.mxu0
    %5683 = vdwg.mxu0
    %5684 = vmatpush.bf16.msra.mxu0 %v5242
    %5685 = vmatpush.bf16.msra.mxu0 %v5238
    %5686 = vmatpush.bf16.msra.mxu0 %v5234
    %5687 = vmatpush.bf16.msra.mxu0 %v5230
    %5688 = vmatpush.bf16.msra.mxu0 %v5226
    %5689 = vmatpush.bf16.msra.mxu0 %v5222
    %5690 = vmatpush.bf16.msra.mxu0 %v5218
    %5691 = vmatpush.bf16.msra.mxu0 %v5214
    %5692 = vmatmul.bf16.gmra.mxu0 %v4327
    %v5693 = vpop.f32.mrf.mxu0
    %v5694 = vadd.f32 %v5676, %v5693
    %v5695 = vpop.f32.mrf.mxu0
    %v5696 = vadd.f32 %v5678, %v5695
    %5697 = vmatmul.bf16.gmra.mxu0 %v4335
    %v5698 = vpop.f32.mrf.mxu0
    %v5699 = vadd.f32 %v5681, %v5698
    %v5700 = vpop.f32.mrf.mxu0
    %5701 = vdwg.mxu0
    %5702 = vmatpush.bf16.msra.mxu0 %v5274
    %5703 = vmatpush.bf16.msra.mxu0 %v5270
    %5704 = vmatpush.bf16.msra.mxu0 %v5266
    %5705 = vmatpush.bf16.msra.mxu0 %v5262
    %5706 = vmatpush.bf16.msra.mxu0 %v5258
    %5707 = vmatpush.bf16.msra.mxu0 %v5254
    %5708 = vmatpush.bf16.msra.mxu0 %v5250
    %5709 = vmatpush.bf16.msra.mxu0 %v5246
    %5710 = vmatmul.bf16.gmra.mxu0 %v4328
    %v5711 = vpop.f32.mrf.mxu0
    %v5712 = vadd.f32 %v5694, %v5711
    %v5713 = vpop.f32.mrf.mxu0
    %v5714 = vadd.f32 %v5696, %v5713
    %5715 = vmatmul.bf16.gmra.mxu0 %v4336
    %v5716 = vpop.f32.mrf.mxu0
    %v5717 = vadd.f32 %v5699, %v5716
    %v5718 = vpop.f32.mrf.mxu0
    %5719 = vdwg.mxu0
    %5720 = vmatpush.bf16.msra.mxu0 %v5306
    %5721 = vmatpush.bf16.msra.mxu0 %v5302
    %5722 = vmatpush.bf16.msra.mxu0 %v5298
    %5723 = vmatpush.bf16.msra.mxu0 %v5294
    %5724 = vmatpush.bf16.msra.mxu0 %v5290
    %5725 = vmatpush.bf16.msra.mxu0 %v5286
    %5726 = vmatpush.bf16.msra.mxu0 %v5282
    %5727 = vmatpush.bf16.msra.mxu0 %v5278
    %5728 = vmatmul.bf16.gmra.mxu0 %v4329
    %v5729 = vpop.f32.mrf.mxu0
    %v5730 = vadd.f32 %v5712, %v5729
    %v5731 = vpop.f32.mrf.mxu0
    %v5732 = vadd.f32 %v5714, %v5731
    %5733 = vmatmul.bf16.gmra.mxu0 %v4337
    %v5734 = vpop.f32.mrf.mxu0
    %v5735 = vadd.f32 %v5717, %v5734
    %v5736 = vpop.f32.mrf.mxu0
    %5737 = vdwg.mxu0
    %5738 = vmatpush.bf16.msra.mxu0 %v5338
    %5739 = vmatpush.bf16.msra.mxu0 %v5334
    %5740 = vmatpush.bf16.msra.mxu0 %v5330
    %5741 = vmatpush.bf16.msra.mxu0 %v5326
    %5742 = vmatpush.bf16.msra.mxu0 %v5322
    %5743 = vmatpush.bf16.msra.mxu0 %v5318
    %5744 = vmatpush.bf16.msra.mxu0 %v5314
    %5745 = vmatpush.bf16.msra.mxu0 %v5310
    %5746 = vmatmul.bf16.gmra.mxu0 %v4330
    %v5747 = vpop.f32.mrf.mxu0
    %v5748 = vadd.f32 %v5730, %v5747
    %v5749 = vpop.f32.mrf.mxu0
    %v5750 = vadd.f32 %v5732, %v5749
    %5751 = vmatmul.bf16.gmra.mxu0 %v4338
    %v5752 = vpop.f32.mrf.mxu0
    %v5753 = vadd.f32 %v5735, %v5752
    %v5754 = vpop.f32.mrf.mxu0
    %5755 = vdwg.mxu0
    %5756 = vmatpush.bf16.msra.mxu0 %v5370
    %5757 = vmatpush.bf16.msra.mxu0 %v5366
    %5758 = vmatpush.bf16.msra.mxu0 %v5362
    %5759 = vmatpush.bf16.msra.mxu0 %v5358
    %5760 = vmatpush.bf16.msra.mxu0 %v5354
    %5761 = vmatpush.bf16.msra.mxu0 %v5350
    %5762 = vmatpush.bf16.msra.mxu0 %v5346
    %5763 = vmatpush.bf16.msra.mxu0 %v5342
    %5764 = vmatmul.bf16.gmra.mxu0 %v4331
    %v5765 = vpop.f32.mrf.mxu0
    %v5766 = vadd.f32 %v5748, %v5765
    %v5767 = vpop.f32.mrf.mxu0
    %v5768 = vadd.f32 %v5750, %v5767
    %5769 = vmatmul.bf16.gmra.mxu0 %v4339
    %v5770 = vpop.f32.mrf.mxu0
    %v5771 = vadd.f32 %v5753, %v5770
    %v5772 = vpop.f32.mrf.mxu0
    %5773 = vdwg.mxu0
    %5774 = vmatpush.bf16.msra.mxu0 %v5147
    %5775 = vmatpush.bf16.msra.mxu0 %v5143
    %5776 = vmatpush.bf16.msra.mxu0 %v5139
    %5777 = vmatpush.bf16.msra.mxu0 %v5135
    %5778 = vmatpush.bf16.msra.mxu0 %v5131
    %5779 = vmatpush.bf16.msra.mxu0 %v5127
    %5780 = vmatpush.bf16.msra.mxu0 %v5123
    %5781 = vmatpush.bf16.msra.mxu0 %v5119
    %5782 = vmatmul.bf16.gmra.mxu0 %v4324
    %v5783 = vpop.f32.mrf.mxu0
    %v5784 = vadd.f32 %v4343, %v5783
    %v5785 = vpop.f32.mrf.mxu0
    %v5786 = vadd.f32 %v4343, %v5785
    %5787 = vmatmul.bf16.gmra.mxu0 %v4332
    %v5788 = vpop.f32.mrf.mxu0
    %v5789 = vadd.f32 %v4343, %v5788
    %v5790 = vpop.f32.mrf.mxu0
    %5791 = vdwg.mxu0
    %5792 = vmatpush.bf16.msra.mxu0 %v5179
    %5793 = vmatpush.bf16.msra.mxu0 %v5175
    %5794 = vmatpush.bf16.msra.mxu0 %v5171
    %5795 = vmatpush.bf16.msra.mxu0 %v5167
    %5796 = vmatpush.bf16.msra.mxu0 %v5163
    %5797 = vmatpush.bf16.msra.mxu0 %v5159
    %5798 = vmatpush.bf16.msra.mxu0 %v5155
    %5799 = vmatpush.bf16.msra.mxu0 %v5151
    %5800 = vmatmul.bf16.gmra.mxu0 %v4325
    %v5801 = vpop.f32.mrf.mxu0
    %v5802 = vadd.f32 %v5784, %v5801
    %v5803 = vpop.f32.mrf.mxu0
    %v5804 = vadd.f32 %v5786, %v5803
    %5805 = vmatmul.bf16.gmra.mxu0 %v4333
    %v5806 = vpop.f32.mrf.mxu0
    %v5807 = vadd.f32 %v5789, %v5806
    %v5808 = vpop.f32.mrf.mxu0
    %5809 = vdwg.mxu0
    %5810 = vmatpush.bf16.msra.mxu0 %v5211
    %5811 = vmatpush.bf16.msra.mxu0 %v5207
    %5812 = vmatpush.bf16.msra.mxu0 %v5203
    %5813 = vmatpush.bf16.msra.mxu0 %v5199
    %5814 = vmatpush.bf16.msra.mxu0 %v5195
    %5815 = vmatpush.bf16.msra.mxu0 %v5191
    %5816 = vmatpush.bf16.msra.mxu0 %v5187
    %5817 = vmatpush.bf16.msra.mxu0 %v5183
    %5818 = vmatmul.bf16.gmra.mxu0 %v4326
    %v5819 = vpop.f32.mrf.mxu0
    %v5820 = vadd.f32 %v5802, %v5819
    %v5821 = vpop.f32.mrf.mxu0
    %v5822 = vadd.f32 %v5804, %v5821
    %5823 = vmatmul.bf16.gmra.mxu0 %v4334
    %v5824 = vpop.f32.mrf.mxu0
    %v5825 = vadd.f32 %v5807, %v5824
    %v5826 = vpop.f32.mrf.mxu0
    %5827 = vdwg.mxu0
    %5828 = vmatpush.bf16.msra.mxu0 %v5243
    %5829 = vmatpush.bf16.msra.mxu0 %v5239
    %5830 = vmatpush.bf16.msra.mxu0 %v5235
    %5831 = vmatpush.bf16.msra.mxu0 %v5231
    %5832 = vmatpush.bf16.msra.mxu0 %v5227
    %5833 = vmatpush.bf16.msra.mxu0 %v5223
    %5834 = vmatpush.bf16.msra.mxu0 %v5219
    %5835 = vmatpush.bf16.msra.mxu0 %v5215
    %5836 = vmatmul.bf16.gmra.mxu0 %v4327
    %v5837 = vpop.f32.mrf.mxu0
    %v5838 = vadd.f32 %v5820, %v5837
    %v5839 = vpop.f32.mrf.mxu0
    %v5840 = vadd.f32 %v5822, %v5839
    %5841 = vmatmul.bf16.gmra.mxu0 %v4335
    %v5842 = vpop.f32.mrf.mxu0
    %v5843 = vadd.f32 %v5825, %v5842
    %v5844 = vpop.f32.mrf.mxu0
    %5845 = vdwg.mxu0
    %5846 = vmatpush.bf16.msra.mxu0 %v5275
    %5847 = vmatpush.bf16.msra.mxu0 %v5271
    %5848 = vmatpush.bf16.msra.mxu0 %v5267
    %5849 = vmatpush.bf16.msra.mxu0 %v5263
    %5850 = vmatpush.bf16.msra.mxu0 %v5259
    %5851 = vmatpush.bf16.msra.mxu0 %v5255
    %5852 = vmatpush.bf16.msra.mxu0 %v5251
    %5853 = vmatpush.bf16.msra.mxu0 %v5247
    %5854 = vmatmul.bf16.gmra.mxu0 %v4328
    %v5855 = vpop.f32.mrf.mxu0
    %v5856 = vadd.f32 %v5838, %v5855
    %v5857 = vpop.f32.mrf.mxu0
    %v5858 = vadd.f32 %v5840, %v5857
    %5859 = vmatmul.bf16.gmra.mxu0 %v4336
    %v5860 = vpop.f32.mrf.mxu0
    %v5861 = vadd.f32 %v5843, %v5860
    %v5862 = vpop.f32.mrf.mxu0
    %5863 = vdwg.mxu0
    %5864 = vmatpush.bf16.msra.mxu0 %v5307
    %5865 = vmatpush.bf16.msra.mxu0 %v5303
    %5866 = vmatpush.bf16.msra.mxu0 %v5299
    %5867 = vmatpush.bf16.msra.mxu0 %v5295
    %5868 = vmatpush.bf16.msra.mxu0 %v5291
    %5869 = vmatpush.bf16.msra.mxu0 %v5287
    %5870 = vmatpush.bf16.msra.mxu0 %v5283
    %5871 = vmatpush.bf16.msra.mxu0 %v5279
    %5872 = vmatmul.bf16.gmra.mxu0 %v4329
    %v5873 = vpop.f32.mrf.mxu0
    %v5874 = vadd.f32 %v5856, %v5873
    %v5875 = vpop.f32.mrf.mxu0
    %v5876 = vadd.f32 %v5858, %v5875
    %5877 = vmatmul.bf16.gmra.mxu0 %v4337
    %v5878 = vpop.f32.mrf.mxu0
    %v5879 = vadd.f32 %v5861, %v5878
    %v5880 = vpop.f32.mrf.mxu0
    %5881 = vdwg.mxu0
    %5882 = vmatpush.bf16.msra.mxu0 %v5339
    %5883 = vmatpush.bf16.msra.mxu0 %v5335
    %5884 = vmatpush.bf16.msra.mxu0 %v5331
    %5885 = vmatpush.bf16.msra.mxu0 %v5327
    %5886 = vmatpush.bf16.msra.mxu0 %v5323
    %5887 = vmatpush.bf16.msra.mxu0 %v5319
    %5888 = vmatpush.bf16.msra.mxu0 %v5315
    %5889 = vmatpush.bf16.msra.mxu0 %v5311
    %5890 = vmatmul.bf16.gmra.mxu0 %v4330
    %v5891 = vpop.f32.mrf.mxu0
    %v5892 = vadd.f32 %v5874, %v5891
    %v5893 = vpop.f32.mrf.mxu0
    %v5894 = vadd.f32 %v5876, %v5893
    %5895 = vmatmul.bf16.gmra.mxu0 %v4338
    %v5896 = vpop.f32.mrf.mxu0
    %v5897 = vadd.f32 %v5879, %v5896
    %v5898 = vpop.f32.mrf.mxu0
    %5899 = vdwg.mxu0
    %5900 = vmatpush.bf16.msra.mxu0 %v5371
    %5901 = vmatpush.bf16.msra.mxu0 %v5367
    %5902 = vmatpush.bf16.msra.mxu0 %v5363
    %5903 = vmatpush.bf16.msra.mxu0 %v5359
    %5904 = vmatpush.bf16.msra.mxu0 %v5355
    %5905 = vmatpush.bf16.msra.mxu0 %v5351
    %5906 = vmatpush.bf16.msra.mxu0 %v5347
    %5907 = vmatpush.bf16.msra.mxu0 %v5343
    %5908 = vmatmul.bf16.gmra.mxu0 %v4331
    %v5909 = vpop.f32.mrf.mxu0
    %v5910 = vadd.f32 %v5892, %v5909
    %v5911 = vpop.f32.mrf.mxu0
    %v5912 = vadd.f32 %v5894, %v5911
    %5913 = vmatmul.bf16.gmra.mxu0 %v4339
    %v5914 = vpop.f32.mrf.mxu0
    %v5915 = vadd.f32 %v5897, %v5914
    %v5916 = vpop.f32.mrf.mxu0
    %5917 = vdwg.mxu0
    %5918 = vmatpush.bf16.msra.mxu0 %v5148
    %5919 = vmatpush.bf16.msra.mxu0 %v5144
    %5920 = vmatpush.bf16.msra.mxu0 %v5140
    %5921 = vmatpush.bf16.msra.mxu0 %v5136
    %5922 = vmatpush.bf16.msra.mxu0 %v5132
    %5923 = vmatpush.bf16.msra.mxu0 %v5128
    %5924 = vmatpush.bf16.msra.mxu0 %v5124
    %5925 = vmatpush.bf16.msra.mxu0 %v5120
    %5926 = vmatmul.bf16.gmra.mxu0 %v4324
    %v5927 = vpop.f32.mrf.mxu0
    %v5928 = vadd.f32 %v4344, %v5927
    %v5929 = vpop.f32.mrf.mxu0
    %v5930 = vadd.f32 %v4344, %v5929
    %5931 = vmatmul.bf16.gmra.mxu0 %v4332
    %v5932 = vpop.f32.mrf.mxu0
    %v5933 = vadd.f32 %v4344, %v5932
    %v5934 = vpop.f32.mrf.mxu0
    %5935 = vdwg.mxu0
    %5936 = vmatpush.bf16.msra.mxu0 %v5180
    %5937 = vmatpush.bf16.msra.mxu0 %v5176
    %5938 = vmatpush.bf16.msra.mxu0 %v5172
    %5939 = vmatpush.bf16.msra.mxu0 %v5168
    %5940 = vmatpush.bf16.msra.mxu0 %v5164
    %5941 = vmatpush.bf16.msra.mxu0 %v5160
    %5942 = vmatpush.bf16.msra.mxu0 %v5156
    %5943 = vmatpush.bf16.msra.mxu0 %v5152
    %5944 = vmatmul.bf16.gmra.mxu0 %v4325
    %v5945 = vpop.f32.mrf.mxu0
    %v5946 = vadd.f32 %v5928, %v5945
    %v5947 = vpop.f32.mrf.mxu0
    %v5948 = vadd.f32 %v5930, %v5947
    %5949 = vmatmul.bf16.gmra.mxu0 %v4333
    %v5950 = vpop.f32.mrf.mxu0
    %v5951 = vadd.f32 %v5933, %v5950
    %v5952 = vpop.f32.mrf.mxu0
    %5953 = vdwg.mxu0
    %5954 = vmatpush.bf16.msra.mxu0 %v5212
    %5955 = vmatpush.bf16.msra.mxu0 %v5208
    %5956 = vmatpush.bf16.msra.mxu0 %v5204
    %5957 = vmatpush.bf16.msra.mxu0 %v5200
    %5958 = vmatpush.bf16.msra.mxu0 %v5196
    %5959 = vmatpush.bf16.msra.mxu0 %v5192
    %5960 = vmatpush.bf16.msra.mxu0 %v5188
    %5961 = vmatpush.bf16.msra.mxu0 %v5184
    %5962 = vmatmul.bf16.gmra.mxu0 %v4326
    %v5963 = vpop.f32.mrf.mxu0
    %v5964 = vadd.f32 %v5946, %v5963
    %v5965 = vpop.f32.mrf.mxu0
    %v5966 = vadd.f32 %v5948, %v5965
    %5967 = vmatmul.bf16.gmra.mxu0 %v4334
    %v5968 = vpop.f32.mrf.mxu0
    %v5969 = vadd.f32 %v5951, %v5968
    %v5970 = vpop.f32.mrf.mxu0
    %5971 = vdwg.mxu0
    %5972 = vmatpush.bf16.msra.mxu0 %v5244
    %5973 = vmatpush.bf16.msra.mxu0 %v5240
    %5974 = vmatpush.bf16.msra.mxu0 %v5236
    %5975 = vmatpush.bf16.msra.mxu0 %v5232
    %5976 = vmatpush.bf16.msra.mxu0 %v5228
    %5977 = vmatpush.bf16.msra.mxu0 %v5224
    %5978 = vmatpush.bf16.msra.mxu0 %v5220
    %5979 = vmatpush.bf16.msra.mxu0 %v5216
    %5980 = vmatmul.bf16.gmra.mxu0 %v4327
    %v5981 = vpop.f32.mrf.mxu0
    %v5982 = vadd.f32 %v5964, %v5981
    %v5983 = vpop.f32.mrf.mxu0
    %v5984 = vadd.f32 %v5966, %v5983
    %5985 = vmatmul.bf16.gmra.mxu0 %v4335
    %v5986 = vpop.f32.mrf.mxu0
    %v5987 = vadd.f32 %v5969, %v5986
    %v5988 = vpop.f32.mrf.mxu0
    %5989 = vdwg.mxu0
    %5990 = vmatpush.bf16.msra.mxu0 %v5276
    %5991 = vmatpush.bf16.msra.mxu0 %v5272
    %5992 = vmatpush.bf16.msra.mxu0 %v5268
    %5993 = vmatpush.bf16.msra.mxu0 %v5264
    %5994 = vmatpush.bf16.msra.mxu0 %v5260
    %5995 = vmatpush.bf16.msra.mxu0 %v5256
    %5996 = vmatpush.bf16.msra.mxu0 %v5252
    %5997 = vmatpush.bf16.msra.mxu0 %v5248
    %5998 = vmatmul.bf16.gmra.mxu0 %v4328
    %v5999 = vpop.f32.mrf.mxu0
    %v6000 = vadd.f32 %v5982, %v5999
    %v6001 = vpop.f32.mrf.mxu0
    %v6002 = vadd.f32 %v5984, %v6001
    %6003 = vmatmul.bf16.gmra.mxu0 %v4336
    %v6004 = vpop.f32.mrf.mxu0
    %v6005 = vadd.f32 %v5987, %v6004
    %v6006 = vpop.f32.mrf.mxu0
    %6007 = vdwg.mxu0
    %6008 = vmatpush.bf16.msra.mxu0 %v5308
    %6009 = vmatpush.bf16.msra.mxu0 %v5304
    %6010 = vmatpush.bf16.msra.mxu0 %v5300
    %6011 = vmatpush.bf16.msra.mxu0 %v5296
    %6012 = vmatpush.bf16.msra.mxu0 %v5292
    %6013 = vmatpush.bf16.msra.mxu0 %v5288
    %6014 = vmatpush.bf16.msra.mxu0 %v5284
    %6015 = vmatpush.bf16.msra.mxu0 %v5280
    %6016 = vmatmul.bf16.gmra.mxu0 %v4329
    %v6017 = vpop.f32.mrf.mxu0
    %v6018 = vadd.f32 %v6000, %v6017
    %v6019 = vpop.f32.mrf.mxu0
    %v6020 = vadd.f32 %v6002, %v6019
    %6021 = vmatmul.bf16.gmra.mxu0 %v4337
    %v6022 = vpop.f32.mrf.mxu0
    %v6023 = vadd.f32 %v6005, %v6022
    %v6024 = vpop.f32.mrf.mxu0
    %6025 = vdwg.mxu0
    %6026 = vmatpush.bf16.msra.mxu0 %v5340
    %6027 = vmatpush.bf16.msra.mxu0 %v5336
    %6028 = vmatpush.bf16.msra.mxu0 %v5332
    %6029 = vmatpush.bf16.msra.mxu0 %v5328
    %6030 = vmatpush.bf16.msra.mxu0 %v5324
    %6031 = vmatpush.bf16.msra.mxu0 %v5320
    %6032 = vmatpush.bf16.msra.mxu0 %v5316
    %6033 = vmatpush.bf16.msra.mxu0 %v5312
    %6034 = vmatmul.bf16.gmra.mxu0 %v4330
    %v6035 = vpop.f32.mrf.mxu0
    %v6036 = vadd.f32 %v6018, %v6035
    %v6037 = vpop.f32.mrf.mxu0
    %v6038 = vadd.f32 %v6020, %v6037
    %6039 = vmatmul.bf16.gmra.mxu0 %v4338
    %v6040 = vpop.f32.mrf.mxu0
    %v6041 = vadd.f32 %v6023, %v6040
    %v6042 = vpop.f32.mrf.mxu0
    %6043 = vdwg.mxu0
    %6044 = vmatpush.bf16.msra.mxu0 %v5372
    %6045 = vmatpush.bf16.msra.mxu0 %v5368
    %6046 = vmatpush.bf16.msra.mxu0 %v5364
    %6047 = vmatpush.bf16.msra.mxu0 %v5360
    %6048 = vmatpush.bf16.msra.mxu0 %v5356
    %6049 = vmatpush.bf16.msra.mxu0 %v5352
    %6050 = vmatpush.bf16.msra.mxu0 %v5348
    %6051 = vmatpush.bf16.msra.mxu0 %v5344
    %6052 = vmatmul.bf16.gmra.mxu0 %v4331
    %v6053 = vpop.f32.mrf.mxu0
    %v6054 = vadd.f32 %v6036, %v6053
    %v6055 = vpop.f32.mrf.mxu0
    %v6056 = vadd.f32 %v6038, %v6055
    %6057 = vmatmul.bf16.gmra.mxu0 %v4339
    %v6058 = vpop.f32.mrf.mxu0
    %v6059 = vadd.f32 %v6041, %v6058
    %v6060 = vpop.f32.mrf.mxu0
    %6061 = vdwg.mxu0
    %6062 = vmatpush.bf16.msra.mxu0 %v5149
    %6063 = vmatpush.bf16.msra.mxu0 %v5145
    %6064 = vmatpush.bf16.msra.mxu0 %v5141
    %6065 = vmatpush.bf16.msra.mxu0 %v5137
    %6066 = vmatpush.bf16.msra.mxu0 %v5133
    %6067 = vmatpush.bf16.msra.mxu0 %v5129
    %6068 = vmatpush.bf16.msra.mxu0 %v5125
    %6069 = vmatpush.bf16.msra.mxu0 %v5121
    %6070 = vmatmul.bf16.gmra.mxu0 %v4324
    %v6071 = vpop.f32.mrf.mxu0
    %v6072 = vadd.f32 %v4345, %v6071
    %v6073 = vpop.f32.mrf.mxu0
    %v6074 = vadd.f32 %v4345, %v6073
    %6075 = vmatmul.bf16.gmra.mxu0 %v4332
    %v6076 = vpop.f32.mrf.mxu0
    %v6077 = vadd.f32 %v4345, %v6076
    %v6078 = vpop.f32.mrf.mxu0
    %6079 = vdwg.mxu0
    %6080 = vmatpush.bf16.msra.mxu0 %v5181
    %6081 = vmatpush.bf16.msra.mxu0 %v5177
    %6082 = vmatpush.bf16.msra.mxu0 %v5173
    %6083 = vmatpush.bf16.msra.mxu0 %v5169
    %6084 = vmatpush.bf16.msra.mxu0 %v5165
    %6085 = vmatpush.bf16.msra.mxu0 %v5161
    %6086 = vmatpush.bf16.msra.mxu0 %v5157
    %6087 = vmatpush.bf16.msra.mxu0 %v5153
    %6088 = vmatmul.bf16.gmra.mxu0 %v4325
    %v6089 = vpop.f32.mrf.mxu0
    %v6090 = vadd.f32 %v6072, %v6089
    %v6091 = vpop.f32.mrf.mxu0
    %v6092 = vadd.f32 %v6074, %v6091
    %6093 = vmatmul.bf16.gmra.mxu0 %v4333
    %v6094 = vpop.f32.mrf.mxu0
    %v6095 = vadd.f32 %v6077, %v6094
    %v6096 = vpop.f32.mrf.mxu0
    %6097 = vdwg.mxu0
    %6098 = vmatpush.bf16.msra.mxu0 %v5213
    %6099 = vmatpush.bf16.msra.mxu0 %v5209
    %6100 = vmatpush.bf16.msra.mxu0 %v5205
    %6101 = vmatpush.bf16.msra.mxu0 %v5201
    %6102 = vmatpush.bf16.msra.mxu0 %v5197
    %6103 = vmatpush.bf16.msra.mxu0 %v5193
    %6104 = vmatpush.bf16.msra.mxu0 %v5189
    %6105 = vmatpush.bf16.msra.mxu0 %v5185
    %6106 = vmatmul.bf16.gmra.mxu0 %v4326
    %v6107 = vpop.f32.mrf.mxu0
    %v6108 = vadd.f32 %v6090, %v6107
    %v6109 = vpop.f32.mrf.mxu0
    %v6110 = vadd.f32 %v6092, %v6109
    %6111 = vmatmul.bf16.gmra.mxu0 %v4334
    %v6112 = vpop.f32.mrf.mxu0
    %v6113 = vadd.f32 %v6095, %v6112
    %v6114 = vpop.f32.mrf.mxu0
    %6115 = vdwg.mxu0
    %6116 = vmatpush.bf16.msra.mxu0 %v5245
    %6117 = vmatpush.bf16.msra.mxu0 %v5241
    %6118 = vmatpush.bf16.msra.mxu0 %v5237
    %6119 = vmatpush.bf16.msra.mxu0 %v5233
    %6120 = vmatpush.bf16.msra.mxu0 %v5229
    %6121 = vmatpush.bf16.msra.mxu0 %v5225
    %6122 = vmatpush.bf16.msra.mxu0 %v5221
    %6123 = vmatpush.bf16.msra.mxu0 %v5217
    %6124 = vmatmul.bf16.gmra.mxu0 %v4327
    %v6125 = vpop.f32.mrf.mxu0
    %v6126 = vadd.f32 %v6108, %v6125
    %v6127 = vpop.f32.mrf.mxu0
    %v6128 = vadd.f32 %v6110, %v6127
    %6129 = vmatmul.bf16.gmra.mxu0 %v4335
    %v6130 = vpop.f32.mrf.mxu0
    %v6131 = vadd.f32 %v6113, %v6130
    %v6132 = vpop.f32.mrf.mxu0
    %6133 = vdwg.mxu0
    %6134 = vmatpush.bf16.msra.mxu0 %v5277
    %6135 = vmatpush.bf16.msra.mxu0 %v5273
    %6136 = vmatpush.bf16.msra.mxu0 %v5269
    %6137 = vmatpush.bf16.msra.mxu0 %v5265
    %6138 = vmatpush.bf16.msra.mxu0 %v5261
    %6139 = vmatpush.bf16.msra.mxu0 %v5257
    %6140 = vmatpush.bf16.msra.mxu0 %v5253
    %6141 = vmatpush.bf16.msra.mxu0 %v5249
    %6142 = vmatmul.bf16.gmra.mxu0 %v4328
    %v6143 = vpop.f32.mrf.mxu0
    %v6144 = vadd.f32 %v6126, %v6143
    %v6145 = vpop.f32.mrf.mxu0
    %v6146 = vadd.f32 %v6128, %v6145
    %6147 = vmatmul.bf16.gmra.mxu0 %v4336
    %v6148 = vpop.f32.mrf.mxu0
    %v6149 = vadd.f32 %v6131, %v6148
    %v6150 = vpop.f32.mrf.mxu0
    %6151 = vdwg.mxu0
    %6152 = vmatpush.bf16.msra.mxu0 %v5309
    %6153 = vmatpush.bf16.msra.mxu0 %v5305
    %6154 = vmatpush.bf16.msra.mxu0 %v5301
    %6155 = vmatpush.bf16.msra.mxu0 %v5297
    %6156 = vmatpush.bf16.msra.mxu0 %v5293
    %6157 = vmatpush.bf16.msra.mxu0 %v5289
    %6158 = vmatpush.bf16.msra.mxu0 %v5285
    %6159 = vmatpush.bf16.msra.mxu0 %v5281
    %6160 = vmatmul.bf16.gmra.mxu0 %v4329
    %v6161 = vpop.f32.mrf.mxu0
    %v6162 = vadd.f32 %v6144, %v6161
    %v6163 = vpop.f32.mrf.mxu0
    %v6164 = vadd.f32 %v6146, %v6163
    %6165 = vmatmul.bf16.gmra.mxu0 %v4337
    %v6166 = vpop.f32.mrf.mxu0
    %v6167 = vadd.f32 %v6149, %v6166
    %v6168 = vpop.f32.mrf.mxu0
    %6169 = vdwg.mxu0
    %6170 = vmatpush.bf16.msra.mxu0 %v5341
    %6171 = vmatpush.bf16.msra.mxu0 %v5337
    %6172 = vmatpush.bf16.msra.mxu0 %v5333
    %6173 = vmatpush.bf16.msra.mxu0 %v5329
    %6174 = vmatpush.bf16.msra.mxu0 %v5325
    %6175 = vmatpush.bf16.msra.mxu0 %v5321
    %6176 = vmatpush.bf16.msra.mxu0 %v5317
    %6177 = vmatpush.bf16.msra.mxu0 %v5313
    %6178 = vmatmul.bf16.gmra.mxu0 %v4330
    %v6179 = vpop.f32.mrf.mxu0
    %v6180 = vadd.f32 %v6162, %v6179
    %v6181 = vpop.f32.mrf.mxu0
    %v6182 = vadd.f32 %v6164, %v6181
    %6183 = vmatmul.bf16.gmra.mxu0 %v4338
    %v6184 = vpop.f32.mrf.mxu0
    %v6185 = vadd.f32 %v6167, %v6184
    %v6186 = vpop.f32.mrf.mxu0
    %6187 = vdwg.mxu0
    %6188 = vmatpush.bf16.msra.mxu0 %v5373
    %6189 = vmatpush.bf16.msra.mxu0 %v5369
    %6190 = vmatpush.bf16.msra.mxu0 %v5365
    %6191 = vmatpush.bf16.msra.mxu0 %v5361
    %6192 = vmatpush.bf16.msra.mxu0 %v5357
    %6193 = vmatpush.bf16.msra.mxu0 %v5353
    %6194 = vmatpush.bf16.msra.mxu0 %v5349
    %6195 = vmatpush.bf16.msra.mxu0 %v5345
    %6196 = vmatmul.bf16.gmra.mxu0 %v4331
    %v6197 = vpop.f32.mrf.mxu0
    %v6198 = vadd.f32 %v6180, %v6197
    %v6199 = vpop.f32.mrf.mxu0
    %v6200 = vadd.f32 %v6182, %v6199
    %6201 = vmatmul.bf16.gmra.mxu0 %v4339
    %v6202 = vpop.f32.mrf.mxu0
    %v6203 = vadd.f32 %v6185, %v6202
    %v6204 = vpop.f32.mrf.mxu0
    %6205 = vdwg.mxu0
    %v6206 = vadd.f32 %v5766, %v5768
    %v6207 = vsel %vm1013, %v5771, 0.0
    %v6208 = vadd.f32 %v6206, %v6207
    %v6209 = vrot.slane %v6208, 4
    %v6210 = vadd.f32 %v6208, %v6209
    %v6211 = vrot.slane %v6210, 2
    %v6212 = vadd.f32 %v6210, %v6211
    %v6213 = vrot.slane %v6212, 1
    %v6214 = vadd.f32 %v6212, %v6213
    %v6215 = vadd.f32 %v5910, %v5912
    %v6216 = vsel %vm1013, %v5915, 0.0
    %v6217 = vadd.f32 %v6215, %v6216
    %v6218 = vrot.slane %v6217, 4
    %v6219 = vadd.f32 %v6217, %v6218
    %v6220 = vrot.slane %v6219, 2
    %v6221 = vadd.f32 %v6219, %v6220
    %v6222 = vrot.slane %v6221, 1
    %v6223 = vadd.f32 %v6221, %v6222
    %v6224 = vadd.f32 %v6054, %v6056
    %v6225 = vsel %vm1013, %v6059, 0.0
    %v6226 = vadd.f32 %v6224, %v6225
    %v6227 = vrot.slane %v6226, 4
    %v6228 = vadd.f32 %v6226, %v6227
    %v6229 = vrot.slane %v6228, 2
    %v6230 = vadd.f32 %v6228, %v6229
    %v6231 = vrot.slane %v6230, 1
    %v6232 = vadd.f32 %v6230, %v6231
    %v6233 = vadd.f32 %v6198, %v6200
    %v6234 = vsel %vm1013, %v6203, 0.0
    %v6235 = vadd.f32 %v6233, %v6234
    %v6236 = vrot.slane %v6235, 4
    %v6237 = vadd.f32 %v6235, %v6236
    %v6238 = vrot.slane %v6237, 2
    %v6239 = vadd.f32 %v6237, %v6238
    %v6240 = vrot.slane %v6239, 1
    %v6241 = vadd.f32 %v6239, %v6240
    %v6242 = vrcp.pop 22.0
    %v6243 = vmul.f32 22.0, %v6242
    %v6244 = vsub.f32 1.0, %v6243
    %v6245 = vmul.f32 %v6242, %v6244
    %v6246 = vadd.f32 %v6242, %v6245
    %vm6247 = vweird.f32 %v6242
    %v6248 = vsel %vm6247, %v6242, %v6246
    %v6249 = vmul.f32 %v6214, %v6248
    %v6250 = vmul.f32 %v6223, %v6248
    %v6251 = vmul.f32 %v6232, %v6248
    %v6252 = vmul.f32 %v6241, %v6248
    %v6253 = vsub.f32 %v5766, %v6249
    %v6254 = vsub.f32 %v5910, %v6250
    %v6255 = vsub.f32 %v6054, %v6251
    %v6256 = vsub.f32 %v6198, %v6252
    %v6257 = vsub.f32 %v5768, %v6249
    %v6258 = vsub.f32 %v5912, %v6250
    %v6259 = vsub.f32 %v6056, %v6251
    %v6260 = vsub.f32 %v6200, %v6252
    %v6261 = vsub.f32 %v5771, %v6249
    %v6262 = vsub.f32 %v5915, %v6250
    %v6263 = vsub.f32 %v6059, %v6251
    %v6264 = vsub.f32 %v6203, %v6252
    %v6265 = vmul.f32 %v6253, %v6253
    %v6266 = vmul.f32 %v6254, %v6254
    %v6267 = vmul.f32 %v6255, %v6255
    %v6268 = vmul.f32 %v6256, %v6256
    %v6269 = vmul.f32 %v6257, %v6257
    %v6270 = vmul.f32 %v6258, %v6258
    %v6271 = vmul.f32 %v6259, %v6259
    %v6272 = vmul.f32 %v6260, %v6260
    %v6273 = vmul.f32 %v6261, %v6261
    %v6274 = vmul.f32 %v6262, %v6262
    %v6275 = vmul.f32 %v6263, %v6263
    %v6276 = vmul.f32 %v6264, %v6264
    %v6277 = vadd.f32 %v6265, %v6269
    %v6278 = vsel %vm1013, %v6273, 0.0
    %v6279 = vadd.f32 %v6277, %v6278
    %v6280 = vrot.slane %v6279, 4
    %v6281 = vadd.f32 %v6279, %v6280
    %v6282 = vrot.slane %v6281, 2
    %v6283 = vadd.f32 %v6281, %v6282
    %v6284 = vrot.slane %v6283, 1
    %v6285 = vadd.f32 %v6283, %v6284
    %v6286 = vadd.f32 %v6266, %v6270
    %v6287 = vsel %vm1013, %v6274, 0.0
    %v6288 = vadd.f32 %v6286, %v6287
    %v6289 = vrot.slane %v6288, 4
    %v6290 = vadd.f32 %v6288, %v6289
    %v6291 = vrot.slane %v6290, 2
    %v6292 = vadd.f32 %v6290, %v6291
    %v6293 = vrot.slane %v6292, 1
    %v6294 = vadd.f32 %v6292, %v6293
    %v6295 = vadd.f32 %v6267, %v6271
    %v6296 = vsel %vm1013, %v6275, 0.0
    %v6297 = vadd.f32 %v6295, %v6296
    %v6298 = vrot.slane %v6297, 4
    %v6299 = vadd.f32 %v6297, %v6298
    %v6300 = vrot.slane %v6299, 2
    %v6301 = vadd.f32 %v6299, %v6300
    %v6302 = vrot.slane %v6301, 1
    %v6303 = vadd.f32 %v6301, %v6302
    %v6304 = vadd.f32 %v6268, %v6272
    %v6305 = vsel %vm1013, %v6276, 0.0
    %v6306 = vadd.f32 %v6304, %v6305
    %v6307 = vrot.slane %v6306, 4
    %v6308 = vadd.f32 %v6306, %v6307
    %v6309 = vrot.slane %v6308, 2
    %v6310 = vadd.f32 %v6308, %v6309
    %v6311 = vrot.slane %v6310, 1
    %v6312 = vadd.f32 %v6310, %v6311
    %v6313 = vmul.f32 %v6285, %v6248
    %v6314 = vmul.f32 %v6294, %v6248
    %v6315 = vmul.f32 %v6303, %v6248
    %v6316 = vmul.f32 %v6312, %v6248
    %v6317 = vld [vmem:[%s55] sm:$0xf]
    %v6318 = vadd.f32 %v6313, 1e-05
    %v6319 = vadd.f32 %v6314, 1e-05
    %v6320 = vadd.f32 %v6315, 1e-05
    %v6321 = vadd.f32 %v6316, 1e-05
    %v6322 = vrsqrt.pop %v6318
    %v6323 = vmul.f32 %v6322, %v6318
    %v6324 = vmul.f32 %v6323, %v6322
    %v6325 = vmul.f32 0.5, %v6324
    %v6326 = vsub.f32 1.5, %v6325
    %v6327 = vmul.f32 %v6322, %v6326
    %vm6328 = vweird.f32 %v6318
    %vm6329 = vweird.f32 %v6322
    %vm6330 = vmor %vm6328, %vm6329
    %v6331 = vsel %vm6330, %v6322, %v6327
    %v6332 = vrsqrt.pop %v6319
    %v6333 = vmul.f32 %v6332, %v6319
    %v6334 = vmul.f32 %v6333, %v6332
    %v6335 = vmul.f32 0.5, %v6334
    %v6336 = vsub.f32 1.5, %v6335
    %v6337 = vmul.f32 %v6332, %v6336
    %vm6338 = vweird.f32 %v6319
    %vm6339 = vweird.f32 %v6332
    %vm6340 = vmor %vm6338, %vm6339
    %v6341 = vsel %vm6340, %v6332, %v6337
    %v6342 = vrsqrt.pop %v6320
    %v6343 = vmul.f32 %v6342, %v6320
    %v6344 = vmul.f32 %v6343, %v6342
    %v6345 = vmul.f32 0.5, %v6344
    %v6346 = vsub.f32 1.5, %v6345
    %v6347 = vmul.f32 %v6342, %v6346
    %vm6348 = vweird.f32 %v6320
    %vm6349 = vweird.f32 %v6342
    %vm6350 = vmor %vm6348, %vm6349
    %v6351 = vsel %vm6350, %v6342, %v6347
    %v6352 = vrsqrt.pop %v6321
    %v6353 = vmul.f32 %v6352, %v6321
    %v6354 = vmul.f32 %v6353, %v6352
    %v6355 = vmul.f32 0.5, %v6354
    %v6356 = vsub.f32 1.5, %v6355
    %v6357 = vmul.f32 %v6352, %v6356
    %vm6358 = vweird.f32 %v6321
    %vm6359 = vweird.f32 %v6352
    %vm6360 = vmor %vm6358, %vm6359
    %v6361 = vsel %vm6360, %v6352, %v6357
    %v6366 = vrot.slane %v6341, 7
    %v6367 = vrot.slane %v6351, 6
    %v6368 = vrot.slane %v6361, 5
    %vm6369 = vcmask 1040384
    %v6370 = vsel %vm6369, %v6331, %v6366
    %vm6371 = vcmask 1042434
    %v6372 = vsel %vm6371, %v6367, %v6368
    %vm6373 = vcmask 1041408
    %v6374 = vsel %vm6373, %v6370, %v6372
    %v6376 = vmul.f32 %v6317, %v6374
    %v6378 = vperm.slane %v6376, 0
    %v6379 = vperm.slane %v6376, 1
    %v6380 = vperm.slane %v6376, 2
    %v6381 = vperm.slane %v6376, 3
    %v6386 = vmul.f32 %v6253, %v6378
    %v6387 = vmul.f32 %v6254, %v6379
    %v6388 = vmul.f32 %v6255, %v6380
    %v6389 = vmul.f32 %v6256, %v6381
    %v6390 = vmul.f32 %v6257, %v6378
    %v6391 = vmul.f32 %v6258, %v6379
    %v6392 = vmul.f32 %v6259, %v6380
    %v6393 = vmul.f32 %v6260, %v6381
    %v6394 = vmul.f32 %v6261, %v6378
    %v6395 = vmul.f32 %v6262, %v6379
    %v6396 = vmul.f32 %v6263, %v6380
    %v6397 = vmul.f32 %v6264, %v6381
    %v6398 = vld [vmem:[%s57] sm:$0xf]
    %v6400 = vperm.slane %v6398, 0
    %v6401 = vperm.slane %v6398, 1
    %v6402 = vperm.slane %v6398, 2
    %v6403 = vperm.slane %v6398, 3
    %v6408 = vadd.f32 %v6386, %v6400
    %v6409 = vadd.f32 %v6387, %v6401
    %v6410 = vadd.f32 %v6388, %v6402
    %v6411 = vadd.f32 %v6389, %v6403
    %v6412 = vadd.f32 %v6390, %v6400
    %v6413 = vadd.f32 %v6391, %v6401
    %v6414 = vadd.f32 %v6392, %v6402
    %v6415 = vadd.f32 %v6393, %v6403
    %v6416 = vadd.f32 %v6394, %v6400
    %v6417 = vadd.f32 %v6395, %v6401
    %v6418 = vadd.f32 %v6396, %v6402
    %v6419 = vadd.f32 %v6397, %v6403
    %v6420 = vmax.f32 %v6408, 0.0
    %v6421 = vmax.f32 %v6409, 0.0
    %v6422 = vmax.f32 %v6410, 0.0
    %v6423 = vmax.f32 %v6411, 0.0
    %v6424 = vmax.f32 %v6412, 0.0
    %v6425 = vmax.f32 %v6413, 0.0
    %v6426 = vmax.f32 %v6414, 0.0
    %v6427 = vmax.f32 %v6415, 0.0
    %v6428 = vmax.f32 %v6416, 0.0
    %v6429 = vmax.f32 %v6417, 0.0
    %v6430 = vmax.f32 %v6418, 0.0
    %v6431 = vmax.f32 %v6419, 0.0
    %v6432 = vld [vmem:[%s13] sm:$0x3]
    %vm6433 = vcmask 179200
    %v6435 = vsel %vm6433, %v6432, 0
    %v6438 = vsel %vm1013, %v6428, 0
    %v6441 = vsel %vm1013, %v6429, 0
    %v6444 = vsel %vm1013, %v6430, 0
    %v6447 = vsel %vm1013, %v6431, 0
    %6449 = vmatpush.msra.mxu0 0.0
    %6450 = vmatpush.msra.mxu0 0.0
    %6451 = vmatpush.msra.mxu0 0.0
    %6452 = vmatpush.msra.mxu0 0.0
    %6453 = vmatpush.msra.mxu0 0.0
    %6454 = vmatpush.msra.mxu0 0.0
    %6455 = vmatpush.msra.mxu0 0.0
    %6456 = vmatpush.msra.mxu0 0.0
    %6457 = vmatpush.msra.mxu0 0.0
    %6458 = vmatpush.msra.mxu0 0.0
    %6459 = vmatpush.msra.mxu0 0.0
    %6460 = vmatpush.msra.mxu0 0.0
    %6461 = vmatpush.msra.mxu0 0.0
    %6462 = vmatpush.msra.mxu0 %v6438
    %6463 = vmatpush.msra.mxu0 %v6424
    %6464 = vmatpush.msra.mxu0 %v6420
    %6465 = vmatmul.f32.gmra.mxu0 %v6435
    %v6466 = vpop.f32.mrf.mxu0
    %v6467 = vadd.f32 0.0, %v6466
    %6468 = vdwg.mxu0
    %6469 = vmatpush.msra.mxu0 0.0
    %6470 = vmatpush.msra.mxu0 0.0
    %6471 = vmatpush.msra.mxu0 0.0
    %6472 = vmatpush.msra.mxu0 0.0
    %6473 = vmatpush.msra.mxu0 0.0
    %6474 = vmatpush.msra.mxu0 0.0
    %6475 = vmatpush.msra.mxu0 0.0
    %6476 = vmatpush.msra.mxu0 0.0
    %6477 = vmatpush.msra.mxu0 0.0
    %6478 = vmatpush.msra.mxu0 0.0
    %6479 = vmatpush.msra.mxu0 0.0
    %6480 = vmatpush.msra.mxu0 0.0
    %6481 = vmatpush.msra.mxu0 0.0
    %6482 = vmatpush.msra.mxu0 %v6441
    %6483 = vmatpush.msra.mxu0 %v6425
    %6484 = vmatpush.msra.mxu0 %v6421
    %6485 = vmatmul.f32.gmra.mxu0 %v6435
    %v6486 = vpop.f32.mrf.mxu0
    %v6487 = vadd.f32 0.0, %v6486
    %6488 = vdwg.mxu0
    %6489 = vmatpush.msra.mxu0 0.0
    %6490 = vmatpush.msra.mxu0 0.0
    %6491 = vmatpush.msra.mxu0 0.0
    %6492 = vmatpush.msra.mxu0 0.0
    %6493 = vmatpush.msra.mxu0 0.0
    %6494 = vmatpush.msra.mxu0 0.0
    %6495 = vmatpush.msra.mxu0 0.0
    %6496 = vmatpush.msra.mxu0 0.0
    %6497 = vmatpush.msra.mxu0 0.0
    %6498 = vmatpush.msra.mxu0 0.0
    %6499 = vmatpush.msra.mxu0 0.0
    %6500 = vmatpush.msra.mxu0 0.0
    %6501 = vmatpush.msra.mxu0 0.0
    %6502 = vmatpush.msra.mxu0 %v6444
    %6503 = vmatpush.msra.mxu0 %v6426
    %6504 = vmatpush.msra.mxu0 %v6422
    %6505 = vmatmul.f32.gmra.mxu0 %v6435
    %v6506 = vpop.f32.mrf.mxu0
    %v6507 = vadd.f32 0.0, %v6506
    %6508 = vdwg.mxu0
    %6509 = vmatpush.msra.mxu0 0.0
    %6510 = vmatpush.msra.mxu0 0.0
    %6511 = vmatpush.msra.mxu0 0.0
    %6512 = vmatpush.msra.mxu0 0.0
    %6513 = vmatpush.msra.mxu0 0.0
    %6514 = vmatpush.msra.mxu0 0.0
    %6515 = vmatpush.msra.mxu0 0.0
    %6516 = vmatpush.msra.mxu0 0.0
    %6517 = vmatpush.msra.mxu0 0.0
    %6518 = vmatpush.msra.mxu0 0.0
    %6519 = vmatpush.msra.mxu0 0.0
    %6520 = vmatpush.msra.mxu0 0.0
    %6521 = vmatpush.msra.mxu0 0.0
    %6522 = vmatpush.msra.mxu0 %v6447
    %6523 = vmatpush.msra.mxu0 %v6427
    %6524 = vmatpush.msra.mxu0 %v6423
    %6525 = vmatmul.f32.gmra.mxu0 %v6435
    %v6526 = vpop.f32.mrf.mxu0
    %v6527 = vadd.f32 0.0, %v6526
    %6528 = vdwg.mxu0
    %v6529 = vld [vmem:[%s59] sm:$0xff]
    %v6530 = vld [vmem:[%s59 + $0x8] sm:$0xff]
    %v6531 = vld [vmem:[%s59 + $0x10] sm:$0xff]
    %v6532 = vld [vmem:[%s59 + $0x18] sm:$0xff]
    %v6533 = vld [vmem:[%s59 + $0x20] sm:$0xff]
    %v6534 = vld [vmem:[%s59 + $0x28] sm:$0xff]
    %v6535 = vld [vmem:[%s59 + $0x30] sm:$0xff]
    %v6536 = vld [vmem:[%s59 + $0x38] sm:$0xff]
    %v6537 = vld [vmem:[%s59 + $0x40] sm:$0xff]
    %v6538 = vld [vmem:[%s59 + $0x48] sm:$0xff]
    %v6539 = vld [vmem:[%s59 + $0x50] sm:$0xff]
    %v6540 = vld [vmem:[%s59 + $0x58] sm:$0xff]
    %v6541 = vld [vmem:[%s59 + $0x60] sm:$0xff]
    %v6542 = vld [vmem:[%s59 + $0x68] sm:$0xff]
    %v6543 = vld [vmem:[%s59 + $0x70] sm:$0xff]
    %v6544 = vld [vmem:[%s59 + $0x78] sm:$0xff]
    %v6545 = vld [vmem:[%s59 + $0x80] sm:$0xff]
    %v6546 = vld [vmem:[%s59 + $0x88] sm:$0xff]
    %v6547 = vld [vmem:[%s59 + $0x90] sm:$0xff]
    %v6548 = vld [vmem:[%s59 + $0x98] sm:$0xff]
    %v6549 = vld [vmem:[%s59 + $0xa0] sm:$0xff]
    %v6550 = vld [vmem:[%s59 + $0xa8] sm:$0xff]
    %v6551 = vld [vmem:[%s59 + $0xb0] sm:$0xff]
    %v6552 = vld [vmem:[%s59 + $0xb8] sm:$0xff]
    %v6553 = vld [vmem:[%s59 + $0xc0] sm:$0xff]
    %v6554 = vld [vmem:[%s59 + $0xc8] sm:$0xff]
    %v6555 = vld [vmem:[%s59 + $0xd0] sm:$0xff]
    %v6556 = vld [vmem:[%s59 + $0xd8] sm:$0xff]
    %v6557 = vld [vmem:[%s59 + $0xe0] sm:$0xff]
    %v6558 = vld [vmem:[%s59 + $0xe8] sm:$0xff]
    %v6559 = vld [vmem:[%s59 + $0xf0] sm:$0xff]
    %v6560 = vld [vmem:[%s59 + $0xf8] sm:$0xff]
    %v6561 = vld [vmem:[%s59 + $0x100] sm:$0xff]
    %v6562 = vld [vmem:[%s59 + $0x108] sm:$0xff]
    %v6563 = vld [vmem:[%s59 + $0x110] sm:$0xff]
    %v6564 = vld [vmem:[%s59 + $0x118] sm:$0xff]
    %v6565 = vld [vmem:[%s59 + $0x120] sm:$0xff]
    %v6566 = vld [vmem:[%s59 + $0x128] sm:$0xff]
    %v6567 = vld [vmem:[%s59 + $0x130] sm:$0xff]
    %v6568 = vld [vmem:[%s59 + $0x138] sm:$0xff]
    %v6569 = vld [vmem:[%s59 + $0x140] sm:$0xff]
    %v6570 = vld [vmem:[%s59 + $0x148] sm:$0xff]
    %v6571 = vld [vmem:[%s59 + $0x150] sm:$0xff]
    %v6572 = vld [vmem:[%s59 + $0x158] sm:$0xff]
    %v6573 = vld [vmem:[%s59 + $0x160] sm:$0xff]
    %v6574 = vld [vmem:[%s59 + $0x168] sm:$0xff]
    %v6575 = vld [vmem:[%s59 + $0x170] sm:$0xff]
    %v6576 = vld [vmem:[%s59 + $0x178] sm:$0xff]
    %v6577 = vld [vmem:[%s59 + $0x180] sm:$0xff]
    %v6578 = vld [vmem:[%s59 + $0x188] sm:$0xff]
    %v6579 = vld [vmem:[%s59 + $0x190] sm:$0xff]
    %v6580 = vld [vmem:[%s59 + $0x198] sm:$0xff]
    %v6581 = vld [vmem:[%s59 + $0x1a0] sm:$0xff]
    %v6582 = vld [vmem:[%s59 + $0x1a8] sm:$0xff]
    %v6583 = vld [vmem:[%s59 + $0x1b0] sm:$0xff]
    %v6584 = vld [vmem:[%s59 + $0x1b8] sm:$0xff]
    %v6585 = vld [vmem:[%s59 + $0x1c0] sm:$0xff]
    %v6586 = vld [vmem:[%s59 + $0x1c8] sm:$0xff]
    %v6587 = vld [vmem:[%s59 + $0x1d0] sm:$0xff]
    %v6588 = vld [vmem:[%s59 + $0x1d8] sm:$0xff]
    %v6589 = vld [vmem:[%s59 + $0x1e0] sm:$0xff]
    %v6590 = vld [vmem:[%s59 + $0x1e8] sm:$0xff]
    %v6591 = vld [vmem:[%s59 + $0x1f0] sm:$0xff]
    %v6592 = vld [vmem:[%s59 + $0x1f8] sm:$0xff]
    %v6593 = vld [vmem:[%s59 + $0x200] sm:$0xff]
    %v6594 = vld [vmem:[%s59 + $0x208] sm:$0xff]
    %v6595 = vld [vmem:[%s59 + $0x210] sm:$0xff]
    %v6596 = vld [vmem:[%s59 + $0x218] sm:$0xff]
    %v6597 = vld [vmem:[%s59 + $0x220] sm:$0xff]
    %v6598 = vld [vmem:[%s59 + $0x228] sm:$0xff]
    %v6599 = vld [vmem:[%s59 + $0x230] sm:$0xff]
    %v6600 = vld [vmem:[%s59 + $0x238] sm:$0xff]
    %v6601 = vld [vmem:[%s59 + $0x240] sm:$0xff]
    %v6602 = vld [vmem:[%s59 + $0x248] sm:$0xff]
    %v6603 = vld [vmem:[%s59 + $0x250] sm:$0xff]
    %v6604 = vld [vmem:[%s59 + $0x258] sm:$0xff]
    %v6605 = vld [vmem:[%s59 + $0x260] sm:$0xff]
    %v6606 = vld [vmem:[%s59 + $0x268] sm:$0xff]
    %v6607 = vld [vmem:[%s59 + $0x270] sm:$0xff]
    %v6608 = vld [vmem:[%s59 + $0x278] sm:$0xff]
    %v6609 = vld [vmem:[%s59 + $0x280] sm:$0xff]
    %v6610 = vld [vmem:[%s59 + $0x288] sm:$0xff]
    %v6611 = vld [vmem:[%s59 + $0x290] sm:$0xff]
    %v6612 = vld [vmem:[%s59 + $0x298] sm:$0xff]
    %v6613 = vld [vmem:[%s59 + $0x2a0] sm:$0xff]
    %v6614 = vld [vmem:[%s59 + $0x2a8] sm:$0xff]
    %v6615 = vld [vmem:[%s59 + $0x2b0] sm:$0xff]
    %v6616 = vld [vmem:[%s59 + $0x2b8] sm:$0xff]
    %v6617 = vld [vmem:[%s59 + $0x2c0] sm:$0xff]
    %v6618 = vld [vmem:[%s59 + $0x2c8] sm:$0xff]
    %v6619 = vld [vmem:[%s59 + $0x2d0] sm:$0xff]
    %v6620 = vld [vmem:[%s59 + $0x2d8] sm:$0xff]
    %v6621 = vld [vmem:[%s59 + $0x2e0] sm:$0xff]
    %v6622 = vld [vmem:[%s59 + $0x2e8] sm:$0xff]
    %v6623 = vld [vmem:[%s59 + $0x2f0] sm:$0xff]
    %v6624 = vld [vmem:[%s59 + $0x2f8] sm:$0xff]
    %v6625 = vld [vmem:[%s59 + $0x300] sm:$0xff]
    %v6626 = vld [vmem:[%s59 + $0x308] sm:$0xff]
    %v6627 = vld [vmem:[%s59 + $0x310] sm:$0xff]
    %v6628 = vld [vmem:[%s59 + $0x318] sm:$0xff]
    %v6629 = vld [vmem:[%s59 + $0x320] sm:$0xff]
    %v6630 = vld [vmem:[%s59 + $0x328] sm:$0xff]
    %v6631 = vld [vmem:[%s59 + $0x330] sm:$0xff]
    %v6632 = vld [vmem:[%s59 + $0x338] sm:$0xff]
    %v6633 = vld [vmem:[%s59 + $0x340] sm:$0xff]
    %v6634 = vld [vmem:[%s59 + $0x348] sm:$0xff]
    %v6635 = vld [vmem:[%s59 + $0x350] sm:$0xff]
    %v6636 = vld [vmem:[%s59 + $0x358] sm:$0xff]
    %v6637 = vld [vmem:[%s59 + $0x360] sm:$0xff]
    %v6638 = vld [vmem:[%s59 + $0x368] sm:$0xff]
    %v6639 = vld [vmem:[%s59 + $0x370] sm:$0xff]
    %v6640 = vld [vmem:[%s59 + $0x378] sm:$0xff]
    %v6641 = vld [vmem:[%s59 + $0x380] sm:$0xff]
    %v6642 = vld [vmem:[%s59 + $0x388] sm:$0xff]
    %v6643 = vld [vmem:[%s59 + $0x390] sm:$0xff]
    %v6644 = vld [vmem:[%s59 + $0x398] sm:$0xff]
    %v6645 = vld [vmem:[%s59 + $0x3a0] sm:$0xff]
    %v6646 = vld [vmem:[%s59 + $0x3a8] sm:$0xff]
    %v6647 = vld [vmem:[%s59 + $0x3b0] sm:$0xff]
    %v6648 = vld [vmem:[%s59 + $0x3b8] sm:$0xff]
    %v6649 = vld [vmem:[%s59 + $0x3c0] sm:$0xff]
    %v6650 = vld [vmem:[%s59 + $0x3c8] sm:$0xff]
    %v6651 = vld [vmem:[%s59 + $0x3d0] sm:$0xff]
    %v6652 = vld [vmem:[%s59 + $0x3d8] sm:$0xff]
    %v6653 = vld [vmem:[%s59 + $0x3e0] sm:$0xff]
    %v6654 = vld [vmem:[%s59 + $0x3e8] sm:$0xff]
    %v6655 = vld [vmem:[%s59 + $0x3f0] sm:$0xff]
    %v6656 = vld [vmem:[%s59 + $0x3f8] sm:$0xff]
    %v6657 = vpack.c.bf16 %v6467, %v6467
    %v6658 = vpack.c.bf16 %v6487, %v6487
    %v6659 = vpack.c.bf16 %v6507, %v6507
    %v6660 = vpack.c.bf16 %v6527, %v6527
    %v6661 = vld [vmem:[%s61] sm:$0xf]
    %v6663 = vperm.slane %v6661, 0
    %v6664 = vperm.slane %v6661, 1
    %v6665 = vperm.slane %v6661, 2
    %v6666 = vperm.slane %v6661, 3
    %v6799 = vunpack.c.l.b16 %v6529
    %v6800 = vunpack.c.h.b16 %v6529
    %v6801 = vunpack.c.l.b16 %v6530
    %v6802 = vunpack.c.h.b16 %v6530
    %v6803 = vunpack.c.l.b16 %v6531
    %v6804 = vunpack.c.h.b16 %v6531
    %v6805 = vunpack.c.l.b16 %v6532
    %v6806 = vunpack.c.h.b16 %v6532
    %v6807 = vunpack.c.l.b16 %v6533
    %v6808 = vunpack.c.h.b16 %v6533
    %v6809 = vunpack.c.l.b16 %v6534
    %v6810 = vunpack.c.h.b16 %v6534
    %v6811 = vunpack.c.l.b16 %v6535
    %v6812 = vunpack.c.h.b16 %v6535
    %v6813 = vunpack.c.l.b16 %v6536
    %v6814 = vunpack.c.h.b16 %v6536
    %v6815 = vunpack.c.l.b16 %v6537
    %v6816 = vunpack.c.h.b16 %v6537
    %v6817 = vunpack.c.l.b16 %v6538
    %v6818 = vunpack.c.h.b16 %v6538
    %v6819 = vunpack.c.l.b16 %v6539
    %v6820 = vunpack.c.h.b16 %v6539
    %v6821 = vunpack.c.l.b16 %v6540
    %v6822 = vunpack.c.h.b16 %v6540
    %v6823 = vunpack.c.l.b16 %v6541
    %v6824 = vunpack.c.h.b16 %v6541
    %v6825 = vunpack.c.l.b16 %v6542
    %v6826 = vunpack.c.h.b16 %v6542
    %v6827 = vunpack.c.l.b16 %v6543
    %v6828 = vunpack.c.h.b16 %v6543
    %v6829 = vunpack.c.l.b16 %v6544
    %v6830 = vunpack.c.h.b16 %v6544
    %v6831 = vunpack.c.l.b16 %v6545
    %v6832 = vunpack.c.h.b16 %v6545
    %v6833 = vunpack.c.l.b16 %v6546
    %v6834 = vunpack.c.h.b16 %v6546
    %v6835 = vunpack.c.l.b16 %v6547
    %v6836 = vunpack.c.h.b16 %v6547
    %v6837 = vunpack.c.l.b16 %v6548
    %v6838 = vunpack.c.h.b16 %v6548
    %v6839 = vunpack.c.l.b16 %v6549
    %v6840 = vunpack.c.h.b16 %v6549
    %v6841 = vunpack.c.l.b16 %v6550
    %v6842 = vunpack.c.h.b16 %v6550
    %v6843 = vunpack.c.l.b16 %v6551
    %v6844 = vunpack.c.h.b16 %v6551
    %v6845 = vunpack.c.l.b16 %v6552
    %v6846 = vunpack.c.h.b16 %v6552
    %v6847 = vunpack.c.l.b16 %v6553
    %v6848 = vunpack.c.h.b16 %v6553
    %v6849 = vunpack.c.l.b16 %v6554
    %v6850 = vunpack.c.h.b16 %v6554
    %v6851 = vunpack.c.l.b16 %v6555
    %v6852 = vunpack.c.h.b16 %v6555
    %v6853 = vunpack.c.l.b16 %v6556
    %v6854 = vunpack.c.h.b16 %v6556
    %v6855 = vunpack.c.l.b16 %v6557
    %v6856 = vunpack.c.h.b16 %v6557
    %v6857 = vunpack.c.l.b16 %v6558
    %v6858 = vunpack.c.h.b16 %v6558
    %v6859 = vunpack.c.l.b16 %v6559
    %v6860 = vunpack.c.h.b16 %v6559
    %v6861 = vunpack.c.l.b16 %v6560
    %v6862 = vunpack.c.h.b16 %v6560
    %v6863 = vunpack.c.l.b16 %v6561
    %v6864 = vunpack.c.h.b16 %v6561
    %v6865 = vunpack.c.l.b16 %v6562
    %v6866 = vunpack.c.h.b16 %v6562
    %v6867 = vunpack.c.l.b16 %v6563
    %v6868 = vunpack.c.h.b16 %v6563
    %v6869 = vunpack.c.l.b16 %v6564
    %v6870 = vunpack.c.h.b16 %v6564
    %v6871 = vunpack.c.l.b16 %v6565
    %v6872 = vunpack.c.h.b16 %v6565
    %v6873 = vunpack.c.l.b16 %v6566
    %v6874 = vunpack.c.h.b16 %v6566
    %v6875 = vunpack.c.l.b16 %v6567
    %v6876 = vunpack.c.h.b16 %v6567
    %v6877 = vunpack.c.l.b16 %v6568
    %v6878 = vunpack.c.h.b16 %v6568
    %v6879 = vunpack.c.l.b16 %v6569
    %v6880 = vunpack.c.h.b16 %v6569
    %v6881 = vunpack.c.l.b16 %v6570
    %v6882 = vunpack.c.h.b16 %v6570
    %v6883 = vunpack.c.l.b16 %v6571
    %v6884 = vunpack.c.h.b16 %v6571
    %v6885 = vunpack.c.l.b16 %v6572
    %v6886 = vunpack.c.h.b16 %v6572
    %v6887 = vunpack.c.l.b16 %v6573
    %v6888 = vunpack.c.h.b16 %v6573
    %v6889 = vunpack.c.l.b16 %v6574
    %v6890 = vunpack.c.h.b16 %v6574
    %v6891 = vunpack.c.l.b16 %v6575
    %v6892 = vunpack.c.h.b16 %v6575
    %v6893 = vunpack.c.l.b16 %v6576
    %v6894 = vunpack.c.h.b16 %v6576
    %v6895 = vunpack.c.l.b16 %v6577
    %v6896 = vunpack.c.h.b16 %v6577
    %v6897 = vunpack.c.l.b16 %v6578
    %v6898 = vunpack.c.h.b16 %v6578
    %v6899 = vunpack.c.l.b16 %v6579
    %v6900 = vunpack.c.h.b16 %v6579
    %v6901 = vunpack.c.l.b16 %v6580
    %v6902 = vunpack.c.h.b16 %v6580
    %v6903 = vunpack.c.l.b16 %v6581
    %v6904 = vunpack.c.h.b16 %v6581
    %v6905 = vunpack.c.l.b16 %v6582
    %v6906 = vunpack.c.h.b16 %v6582
    %v6907 = vunpack.c.l.b16 %v6583
    %v6908 = vunpack.c.h.b16 %v6583
    %v6909 = vunpack.c.l.b16 %v6584
    %v6910 = vunpack.c.h.b16 %v6584
    %v6911 = vunpack.c.l.b16 %v6585
    %v6912 = vunpack.c.h.b16 %v6585
    %v6913 = vunpack.c.l.b16 %v6586
    %v6914 = vunpack.c.h.b16 %v6586
    %v6915 = vunpack.c.l.b16 %v6587
    %v6916 = vunpack.c.h.b16 %v6587
    %v6917 = vunpack.c.l.b16 %v6588
    %v6918 = vunpack.c.h.b16 %v6588
    %v6919 = vunpack.c.l.b16 %v6589
    %v6920 = vunpack.c.h.b16 %v6589
    %v6921 = vunpack.c.l.b16 %v6590
    %v6922 = vunpack.c.h.b16 %v6590
    %v6923 = vunpack.c.l.b16 %v6591
    %v6924 = vunpack.c.h.b16 %v6591
    %v6925 = vunpack.c.l.b16 %v6592
    %v6926 = vunpack.c.h.b16 %v6592
    %v6927 = vunpack.c.l.b16 %v6593
    %v6928 = vunpack.c.h.b16 %v6593
    %v6929 = vunpack.c.l.b16 %v6594
    %v6930 = vunpack.c.h.b16 %v6594
    %v6931 = vunpack.c.l.b16 %v6595
    %v6932 = vunpack.c.h.b16 %v6595
    %v6933 = vunpack.c.l.b16 %v6596
    %v6934 = vunpack.c.h.b16 %v6596
    %v6935 = vunpack.c.l.b16 %v6597
    %v6936 = vunpack.c.h.b16 %v6597
    %v6937 = vunpack.c.l.b16 %v6598
    %v6938 = vunpack.c.h.b16 %v6598
    %v6939 = vunpack.c.l.b16 %v6599
    %v6940 = vunpack.c.h.b16 %v6599
    %v6941 = vunpack.c.l.b16 %v6600
    %v6942 = vunpack.c.h.b16 %v6600
    %v6943 = vunpack.c.l.b16 %v6601
    %v6944 = vunpack.c.h.b16 %v6601
    %v6945 = vunpack.c.l.b16 %v6602
    %v6946 = vunpack.c.h.b16 %v6602
    %v6947 = vunpack.c.l.b16 %v6603
    %v6948 = vunpack.c.h.b16 %v6603
    %v6949 = vunpack.c.l.b16 %v6604
    %v6950 = vunpack.c.h.b16 %v6604
    %v6951 = vunpack.c.l.b16 %v6605
    %v6952 = vunpack.c.h.b16 %v6605
    %v6953 = vunpack.c.l.b16 %v6606
    %v6954 = vunpack.c.h.b16 %v6606
    %v6955 = vunpack.c.l.b16 %v6607
    %v6956 = vunpack.c.h.b16 %v6607
    %v6957 = vunpack.c.l.b16 %v6608
    %v6958 = vunpack.c.h.b16 %v6608
    %v6959 = vunpack.c.l.b16 %v6609
    %v6960 = vunpack.c.h.b16 %v6609
    %v6961 = vunpack.c.l.b16 %v6610
    %v6962 = vunpack.c.h.b16 %v6610
    %v6963 = vunpack.c.l.b16 %v6611
    %v6964 = vunpack.c.h.b16 %v6611
    %v6965 = vunpack.c.l.b16 %v6612
    %v6966 = vunpack.c.h.b16 %v6612
    %v6967 = vunpack.c.l.b16 %v6613
    %v6968 = vunpack.c.h.b16 %v6613
    %v6969 = vunpack.c.l.b16 %v6614
    %v6970 = vunpack.c.h.b16 %v6614
    %v6971 = vunpack.c.l.b16 %v6615
    %v6972 = vunpack.c.h.b16 %v6615
    %v6973 = vunpack.c.l.b16 %v6616
    %v6974 = vunpack.c.h.b16 %v6616
    %v6975 = vunpack.c.l.b16 %v6617
    %v6976 = vunpack.c.h.b16 %v6617
    %v6977 = vunpack.c.l.b16 %v6618
    %v6978 = vunpack.c.h.b16 %v6618
    %v6979 = vunpack.c.l.b16 %v6619
    %v6980 = vunpack.c.h.b16 %v6619
    %v6981 = vunpack.c.l.b16 %v6620
    %v6982 = vunpack.c.h.b16 %v6620
    %v6983 = vunpack.c.l.b16 %v6621
    %v6984 = vunpack.c.h.b16 %v6621
    %v6985 = vunpack.c.l.b16 %v6622
    %v6986 = vunpack.c.h.b16 %v6622
    %v6987 = vunpack.c.l.b16 %v6623
    %v6988 = vunpack.c.h.b16 %v6623
    %v6989 = vunpack.c.l.b16 %v6624
    %v6990 = vunpack.c.h.b16 %v6624
    %v6991 = vunpack.c.l.b16 %v6625
    %v6992 = vunpack.c.h.b16 %v6625
    %v6993 = vunpack.c.l.b16 %v6626
    %v6994 = vunpack.c.h.b16 %v6626
    %v6995 = vunpack.c.l.b16 %v6627
    %v6996 = vunpack.c.h.b16 %v6627
    %v6997 = vunpack.c.l.b16 %v6628
    %v6998 = vunpack.c.h.b16 %v6628
    %v6999 = vunpack.c.l.b16 %v6629
    %v7000 = vunpack.c.h.b16 %v6629
    %v7001 = vunpack.c.l.b16 %v6630
    %v7002 = vunpack.c.h.b16 %v6630
    %v7003 = vunpack.c.l.b16 %v6631
    %v7004 = vunpack.c.h.b16 %v6631
    %v7005 = vunpack.c.l.b16 %v6632
    %v7006 = vunpack.c.h.b16 %v6632
    %v7007 = vunpack.c.l.b16 %v6633
    %v7008 = vunpack.c.h.b16 %v6633
    %v7009 = vunpack.c.l.b16 %v6634
    %v7010 = vunpack.c.h.b16 %v6634
    %v7011 = vunpack.c.l.b16 %v6635
    %v7012 = vunpack.c.h.b16 %v6635
    %v7013 = vunpack.c.l.b16 %v6636
    %v7014 = vunpack.c.h.b16 %v6636
    %v7015 = vunpack.c.l.b16 %v6637
    %v7016 = vunpack.c.h.b16 %v6637
    %v7017 = vunpack.c.l.b16 %v6638
    %v7018 = vunpack.c.h.b16 %v6638
    %v7019 = vunpack.c.l.b16 %v6639
    %v7020 = vunpack.c.h.b16 %v6639
    %v7021 = vunpack.c.l.b16 %v6640
    %v7022 = vunpack.c.h.b16 %v6640
    %v7023 = vunpack.c.l.b16 %v6641
    %v7024 = vunpack.c.h.b16 %v6641
    %v7025 = vunpack.c.l.b16 %v6642
    %v7026 = vunpack.c.h.b16 %v6642
    %v7027 = vunpack.c.l.b16 %v6643
    %v7028 = vunpack.c.h.b16 %v6643
    %v7029 = vunpack.c.l.b16 %v6644
    %v7030 = vunpack.c.h.b16 %v6644
    %v7031 = vunpack.c.l.b16 %v6645
    %v7032 = vunpack.c.h.b16 %v6645
    %v7033 = vunpack.c.l.b16 %v6646
    %v7034 = vunpack.c.h.b16 %v6646
    %v7035 = vunpack.c.l.b16 %v6647
    %v7036 = vunpack.c.h.b16 %v6647
    %v7037 = vunpack.c.l.b16 %v6648
    %v7038 = vunpack.c.h.b16 %v6648
    %v7039 = vunpack.c.l.b16 %v6649
    %v7040 = vunpack.c.h.b16 %v6649
    %v7041 = vunpack.c.l.b16 %v6650
    %v7042 = vunpack.c.h.b16 %v6650
    %v7043 = vunpack.c.l.b16 %v6651
    %v7044 = vunpack.c.h.b16 %v6651
    %v7045 = vunpack.c.l.b16 %v6652
    %v7046 = vunpack.c.h.b16 %v6652
    %v7047 = vunpack.c.l.b16 %v6653
    %v7048 = vunpack.c.h.b16 %v6653
    %v7049 = vunpack.c.l.b16 %v6654
    %v7050 = vunpack.c.h.b16 %v6654
    %v7051 = vunpack.c.l.b16 %v6655
    %v7052 = vunpack.c.h.b16 %v6655
    %v7053 = vunpack.c.l.b16 %v6656
    %v7054 = vunpack.c.h.b16 %v6656
    %v7055 = vpack.c.b16 %v6803, %v6799
    %v7056 = vpack.c.b16 %v6804, %v6800
    %v7057 = vpack.c.b16 %v6805, %v6801
    %v7058 = vpack.c.b16 %v6806, %v6802
    %v7059 = vpack.c.b16 %v6811, %v6807
    %v7060 = vpack.c.b16 %v6812, %v6808
    %v7061 = vpack.c.b16 %v6813, %v6809
    %v7062 = vpack.c.b16 %v6814, %v6810
    %v7063 = vpack.c.b16 %v6819, %v6815
    %v7064 = vpack.c.b16 %v6820, %v6816
    %v7065 = vpack.c.b16 %v6821, %v6817
    %v7066 = vpack.c.b16 %v6822, %v6818
    %v7067 = vpack.c.b16 %v6827, %v6823
    %v7068 = vpack.c.b16 %v6828, %v6824
    %v7069 = vpack.c.b16 %v6829, %v6825
    %v7070 = vpack.c.b16 %v6830, %v6826
    %v7071 = vpack.c.b16 %v6835, %v6831
    %v7072 = vpack.c.b16 %v6836, %v6832
    %v7073 = vpack.c.b16 %v6837, %v6833
    %v7074 = vpack.c.b16 %v6838, %v6834
    %v7075 = vpack.c.b16 %v6843, %v6839
    %v7076 = vpack.c.b16 %v6844, %v6840
    %v7077 = vpack.c.b16 %v6845, %v6841
    %v7078 = vpack.c.b16 %v6846, %v6842
    %v7079 = vpack.c.b16 %v6851, %v6847
    %v7080 = vpack.c.b16 %v6852, %v6848
    %v7081 = vpack.c.b16 %v6853, %v6849
    %v7082 = vpack.c.b16 %v6854, %v6850
    %v7083 = vpack.c.b16 %v6859, %v6855
    %v7084 = vpack.c.b16 %v6860, %v6856
    %v7085 = vpack.c.b16 %v6861, %v6857
    %v7086 = vpack.c.b16 %v6862, %v6858
    %v7087 = vpack.c.b16 %v6867, %v6863
    %v7088 = vpack.c.b16 %v6868, %v6864
    %v7089 = vpack.c.b16 %v6869, %v6865
    %v7090 = vpack.c.b16 %v6870, %v6866
    %v7091 = vpack.c.b16 %v6875, %v6871
    %v7092 = vpack.c.b16 %v6876, %v6872
    %v7093 = vpack.c.b16 %v6877, %v6873
    %v7094 = vpack.c.b16 %v6878, %v6874
    %v7095 = vpack.c.b16 %v6883, %v6879
    %v7096 = vpack.c.b16 %v6884, %v6880
    %v7097 = vpack.c.b16 %v6885, %v6881
    %v7098 = vpack.c.b16 %v6886, %v6882
    %v7099 = vpack.c.b16 %v6891, %v6887
    %v7100 = vpack.c.b16 %v6892, %v6888
    %v7101 = vpack.c.b16 %v6893, %v6889
    %v7102 = vpack.c.b16 %v6894, %v6890
    %v7103 = vpack.c.b16 %v6899, %v6895
    %v7104 = vpack.c.b16 %v6900, %v6896
    %v7105 = vpack.c.b16 %v6901, %v6897
    %v7106 = vpack.c.b16 %v6902, %v6898
    %v7107 = vpack.c.b16 %v6907, %v6903
    %v7108 = vpack.c.b16 %v6908, %v6904
    %v7109 = vpack.c.b16 %v6909, %v6905
    %v7110 = vpack.c.b16 %v6910, %v6906
    %v7111 = vpack.c.b16 %v6915, %v6911
    %v7112 = vpack.c.b16 %v6916, %v6912
    %v7113 = vpack.c.b16 %v6917, %v6913
    %v7114 = vpack.c.b16 %v6918, %v6914
    %v7115 = vpack.c.b16 %v6923, %v6919
    %v7116 = vpack.c.b16 %v6924, %v6920
    %v7117 = vpack.c.b16 %v6925, %v6921
    %v7118 = vpack.c.b16 %v6926, %v6922
    %v7119 = vpack.c.b16 %v6931, %v6927
    %v7120 = vpack.c.b16 %v6932, %v6928
    %v7121 = vpack.c.b16 %v6933, %v6929
    %v7122 = vpack.c.b16 %v6934, %v6930
    %v7123 = vpack.c.b16 %v6939, %v6935
    %v7124 = vpack.c.b16 %v6940, %v6936
    %v7125 = vpack.c.b16 %v6941, %v6937
    %v7126 = vpack.c.b16 %v6942, %v6938
    %v7127 = vpack.c.b16 %v6947, %v6943
    %v7128 = vpack.c.b16 %v6948, %v6944
    %v7129 = vpack.c.b16 %v6949, %v6945
    %v7130 = vpack.c.b16 %v6950, %v6946
    %v7131 = vpack.c.b16 %v6955, %v6951
    %v7132 = vpack.c.b16 %v6956, %v6952
    %v7133 = vpack.c.b16 %v6957, %v6953
    %v7134 = vpack.c.b16 %v6958, %v6954
    %v7135 = vpack.c.b16 %v6963, %v6959
    %v7136 = vpack.c.b16 %v6964, %v6960
    %v7137 = vpack.c.b16 %v6965, %v6961
    %v7138 = vpack.c.b16 %v6966, %v6962
    %v7139 = vpack.c.b16 %v6971, %v6967
    %v7140 = vpack.c.b16 %v6972, %v6968
    %v7141 = vpack.c.b16 %v6973, %v6969
    %v7142 = vpack.c.b16 %v6974, %v6970
    %v7143 = vpack.c.b16 %v6979, %v6975
    %v7144 = vpack.c.b16 %v6980, %v6976
    %v7145 = vpack.c.b16 %v6981, %v6977
    %v7146 = vpack.c.b16 %v6982, %v6978
    %v7147 = vpack.c.b16 %v6987, %v6983
    %v7148 = vpack.c.b16 %v6988, %v6984
    %v7149 = vpack.c.b16 %v6989, %v6985
    %v7150 = vpack.c.b16 %v6990, %v6986
    %v7151 = vpack.c.b16 %v6995, %v6991
    %v7152 = vpack.c.b16 %v6996, %v6992
    %v7153 = vpack.c.b16 %v6997, %v6993
    %v7154 = vpack.c.b16 %v6998, %v6994
    %v7155 = vpack.c.b16 %v7003, %v6999
    %v7156 = vpack.c.b16 %v7004, %v7000
    %v7157 = vpack.c.b16 %v7005, %v7001
    %v7158 = vpack.c.b16 %v7006, %v7002
    %v7159 = vpack.c.b16 %v7011, %v7007
    %v7160 = vpack.c.b16 %v7012, %v7008
    %v7161 = vpack.c.b16 %v7013, %v7009
    %v7162 = vpack.c.b16 %v7014, %v7010
    %v7163 = vpack.c.b16 %v7019, %v7015
    %v7164 = vpack.c.b16 %v7020, %v7016
    %v7165 = vpack.c.b16 %v7021, %v7017
    %v7166 = vpack.c.b16 %v7022, %v7018
    %v7167 = vpack.c.b16 %v7027, %v7023
    %v7168 = vpack.c.b16 %v7028, %v7024
    %v7169 = vpack.c.b16 %v7029, %v7025
    %v7170 = vpack.c.b16 %v7030, %v7026
    %v7171 = vpack.c.b16 %v7035, %v7031
    %v7172 = vpack.c.b16 %v7036, %v7032
    %v7173 = vpack.c.b16 %v7037, %v7033
    %v7174 = vpack.c.b16 %v7038, %v7034
    %v7175 = vpack.c.b16 %v7043, %v7039
    %v7176 = vpack.c.b16 %v7044, %v7040
    %v7177 = vpack.c.b16 %v7045, %v7041
    %v7178 = vpack.c.b16 %v7046, %v7042
    %v7179 = vpack.c.b16 %v7051, %v7047
    %v7180 = vpack.c.b16 %v7052, %v7048
    %v7181 = vpack.c.b16 %v7053, %v7049
    %v7182 = vpack.c.b16 %v7054, %v7050
    %7311 = vmatpush.bf16.msra.mxu0 %v7083
    %7312 = vmatpush.bf16.msra.mxu0 %v7079
    %7313 = vmatpush.bf16.msra.mxu0 %v7075
    %7314 = vmatpush.bf16.msra.mxu0 %v7071
    %7315 = vmatpush.bf16.msra.mxu0 %v7067
    %7316 = vmatpush.bf16.msra.mxu0 %v7063
    %7317 = vmatpush.bf16.msra.mxu0 %v7059
    %7318 = vmatpush.bf16.msra.mxu0 %v7055
    %7319 = vmatmul.bf16.gmra.mxu0 %v6657
    %v7320 = vpop.f32.mrf.mxu0
    %v7321 = vadd.f32 %v6663, %v7320
    %v7322 = vpop.f32.mrf.mxu0
    %7323 = vdwg.mxu0
    %7324 = vmatpush.bf16.msra.mxu0 %v7115
    %7325 = vmatpush.bf16.msra.mxu0 %v7111
    %7326 = vmatpush.bf16.msra.mxu0 %v7107
    %7327 = vmatpush.bf16.msra.mxu0 %v7103
    %7328 = vmatpush.bf16.msra.mxu0 %v7099
    %7329 = vmatpush.bf16.msra.mxu0 %v7095
    %7330 = vmatpush.bf16.msra.mxu0 %v7091
    %7331 = vmatpush.bf16.msra.mxu0 %v7087
    %7332 = vmatmul.bf16.gmra.mxu0 %v6658
    %v7333 = vpop.f32.mrf.mxu0
    %v7334 = vadd.f32 %v7321, %v7333
    %v7335 = vpop.f32.mrf.mxu0
    %7336 = vdwg.mxu0
    %7337 = vmatpush.bf16.msra.mxu0 %v7147
    %7338 = vmatpush.bf16.msra.mxu0 %v7143
    %7339 = vmatpush.bf16.msra.mxu0 %v7139
    %7340 = vmatpush.bf16.msra.mxu0 %v7135
    %7341 = vmatpush.bf16.msra.mxu0 %v7131
    %7342 = vmatpush.bf16.msra.mxu0 %v7127
    %7343 = vmatpush.bf16.msra.mxu0 %v7123
    %7344 = vmatpush.bf16.msra.mxu0 %v7119
    %7345 = vmatmul.bf16.gmra.mxu0 %v6659
    %v7346 = vpop.f32.mrf.mxu0
    %v7347 = vadd.f32 %v7334, %v7346
    %v7348 = vpop.f32.mrf.mxu0
    %7349 = vdwg.mxu0
    %7350 = vmatpush.bf16.msra.mxu0 %v7179
    %7351 = vmatpush.bf16.msra.mxu0 %v7175
    %7352 = vmatpush.bf16.msra.mxu0 %v7171
    %7353 = vmatpush.bf16.msra.mxu0 %v7167
    %7354 = vmatpush.bf16.msra.mxu0 %v7163
    %7355 = vmatpush.bf16.msra.mxu0 %v7159
    %7356 = vmatpush.bf16.msra.mxu0 %v7155
    %7357 = vmatpush.bf16.msra.mxu0 %v7151
    %7358 = vmatmul.bf16.gmra.mxu0 %v6660
    %v7359 = vpop.f32.mrf.mxu0
    %v7360 = vadd.f32 %v7347, %v7359
    %v7361 = vpop.f32.mrf.mxu0
    %7362 = vdwg.mxu0
    %7363 = vmatpush.bf16.msra.mxu0 %v7084
    %7364 = vmatpush.bf16.msra.mxu0 %v7080
    %7365 = vmatpush.bf16.msra.mxu0 %v7076
    %7366 = vmatpush.bf16.msra.mxu0 %v7072
    %7367 = vmatpush.bf16.msra.mxu0 %v7068
    %7368 = vmatpush.bf16.msra.mxu0 %v7064
    %7369 = vmatpush.bf16.msra.mxu0 %v7060
    %7370 = vmatpush.bf16.msra.mxu0 %v7056
    %7371 = vmatmul.bf16.gmra.mxu0 %v6657
    %v7372 = vpop.f32.mrf.mxu0
    %v7373 = vadd.f32 %v6664, %v7372
    %v7374 = vpop.f32.mrf.mxu0
    %7375 = vdwg.mxu0
    %7376 = vmatpush.bf16.msra.mxu0 %v7116
    %7377 = vmatpush.bf16.msra.mxu0 %v7112
    %7378 = vmatpush.bf16.msra.mxu0 %v7108
    %7379 = vmatpush.bf16.msra.mxu0 %v7104
    %7380 = vmatpush.bf16.msra.mxu0 %v7100
    %7381 = vmatpush.bf16.msra.mxu0 %v7096
    %7382 = vmatpush.bf16.msra.mxu0 %v7092
    %7383 = vmatpush.bf16.msra.mxu0 %v7088
    %7384 = vmatmul.bf16.gmra.mxu0 %v6658
    %v7385 = vpop.f32.mrf.mxu0
    %v7386 = vadd.f32 %v7373, %v7385
    %v7387 = vpop.f32.mrf.mxu0
    %7388 = vdwg.mxu0
    %7389 = vmatpush.bf16.msra.mxu0 %v7148
    %7390 = vmatpush.bf16.msra.mxu0 %v7144
    %7391 = vmatpush.bf16.msra.mxu0 %v7140
    %7392 = vmatpush.bf16.msra.mxu0 %v7136
    %7393 = vmatpush.bf16.msra.mxu0 %v7132
    %7394 = vmatpush.bf16.msra.mxu0 %v7128
    %7395 = vmatpush.bf16.msra.mxu0 %v7124
    %7396 = vmatpush.bf16.msra.mxu0 %v7120
    %7397 = vmatmul.bf16.gmra.mxu0 %v6659
    %v7398 = vpop.f32.mrf.mxu0
    %v7399 = vadd.f32 %v7386, %v7398
    %v7400 = vpop.f32.mrf.mxu0
    %7401 = vdwg.mxu0
    %7402 = vmatpush.bf16.msra.mxu0 %v7180
    %7403 = vmatpush.bf16.msra.mxu0 %v7176
    %7404 = vmatpush.bf16.msra.mxu0 %v7172
    %7405 = vmatpush.bf16.msra.mxu0 %v7168
    %7406 = vmatpush.bf16.msra.mxu0 %v7164
    %7407 = vmatpush.bf16.msra.mxu0 %v7160
    %7408 = vmatpush.bf16.msra.mxu0 %v7156
    %7409 = vmatpush.bf16.msra.mxu0 %v7152
    %7410 = vmatmul.bf16.gmra.mxu0 %v6660
    %v7411 = vpop.f32.mrf.mxu0
    %v7412 = vadd.f32 %v7399, %v7411
    %v7413 = vpop.f32.mrf.mxu0
    %7414 = vdwg.mxu0
    %7415 = vmatpush.bf16.msra.mxu0 %v7085
    %7416 = vmatpush.bf16.msra.mxu0 %v7081
    %7417 = vmatpush.bf16.msra.mxu0 %v7077
    %7418 = vmatpush.bf16.msra.mxu0 %v7073
    %7419 = vmatpush.bf16.msra.mxu0 %v7069
    %7420 = vmatpush.bf16.msra.mxu0 %v7065
    %7421 = vmatpush.bf16.msra.mxu0 %v7061
    %7422 = vmatpush.bf16.msra.mxu0 %v7057
    %7423 = vmatmul.bf16.gmra.mxu0 %v6657
    %v7424 = vpop.f32.mrf.mxu0
    %v7425 = vadd.f32 %v6665, %v7424
    %v7426 = vpop.f32.mrf.mxu0
    %7427 = vdwg.mxu0
    %7428 = vmatpush.bf16.msra.mxu0 %v7117
    %7429 = vmatpush.bf16.msra.mxu0 %v7113
    %7430 = vmatpush.bf16.msra.mxu0 %v7109
    %7431 = vmatpush.bf16.msra.mxu0 %v7105
    %7432 = vmatpush.bf16.msra.mxu0 %v7101
    %7433 = vmatpush.bf16.msra.mxu0 %v7097
    %7434 = vmatpush.bf16.msra.mxu0 %v7093
    %7435 = vmatpush.bf16.msra.mxu0 %v7089
    %7436 = vmatmul.bf16.gmra.mxu0 %v6658
    %v7437 = vpop.f32.mrf.mxu0
    %v7438 = vadd.f32 %v7425, %v7437
    %v7439 = vpop.f32.mrf.mxu0
    %7440 = vdwg.mxu0
    %7441 = vmatpush.bf16.msra.mxu0 %v7149
    %7442 = vmatpush.bf16.msra.mxu0 %v7145
    %7443 = vmatpush.bf16.msra.mxu0 %v7141
    %7444 = vmatpush.bf16.msra.mxu0 %v7137
    %7445 = vmatpush.bf16.msra.mxu0 %v7133
    %7446 = vmatpush.bf16.msra.mxu0 %v7129
    %7447 = vmatpush.bf16.msra.mxu0 %v7125
    %7448 = vmatpush.bf16.msra.mxu0 %v7121
    %7449 = vmatmul.bf16.gmra.mxu0 %v6659
    %v7450 = vpop.f32.mrf.mxu0
    %v7451 = vadd.f32 %v7438, %v7450
    %v7452 = vpop.f32.mrf.mxu0
    %7453 = vdwg.mxu0
    %7454 = vmatpush.bf16.msra.mxu0 %v7181
    %7455 = vmatpush.bf16.msra.mxu0 %v7177
    %7456 = vmatpush.bf16.msra.mxu0 %v7173
    %7457 = vmatpush.bf16.msra.mxu0 %v7169
    %7458 = vmatpush.bf16.msra.mxu0 %v7165
    %7459 = vmatpush.bf16.msra.mxu0 %v7161
    %7460 = vmatpush.bf16.msra.mxu0 %v7157
    %7461 = vmatpush.bf16.msra.mxu0 %v7153
    %7462 = vmatmul.bf16.gmra.mxu0 %v6660
    %v7463 = vpop.f32.mrf.mxu0
    %v7464 = vadd.f32 %v7451, %v7463
    %v7465 = vpop.f32.mrf.mxu0
    %7466 = vdwg.mxu0
    %7467 = vmatpush.bf16.msra.mxu0 %v7086
    %7468 = vmatpush.bf16.msra.mxu0 %v7082
    %7469 = vmatpush.bf16.msra.mxu0 %v7078
    %7470 = vmatpush.bf16.msra.mxu0 %v7074
    %7471 = vmatpush.bf16.msra.mxu0 %v7070
    %7472 = vmatpush.bf16.msra.mxu0 %v7066
    %7473 = vmatpush.bf16.msra.mxu0 %v7062
    %7474 = vmatpush.bf16.msra.mxu0 %v7058
    %7475 = vmatmul.bf16.gmra.mxu0 %v6657
    %v7476 = vpop.f32.mrf.mxu0
    %v7477 = vadd.f32 %v6666, %v7476
    %v7478 = vpop.f32.mrf.mxu0
    %7479 = vdwg.mxu0
    %7480 = vmatpush.bf16.msra.mxu0 %v7118
    %7481 = vmatpush.bf16.msra.mxu0 %v7114
    %7482 = vmatpush.bf16.msra.mxu0 %v7110
    %7483 = vmatpush.bf16.msra.mxu0 %v7106
    %7484 = vmatpush.bf16.msra.mxu0 %v7102
    %7485 = vmatpush.bf16.msra.mxu0 %v7098
    %7486 = vmatpush.bf16.msra.mxu0 %v7094
    %7487 = vmatpush.bf16.msra.mxu0 %v7090
    %7488 = vmatmul.bf16.gmra.mxu0 %v6658
    %v7489 = vpop.f32.mrf.mxu0
    %v7490 = vadd.f32 %v7477, %v7489
    %v7491 = vpop.f32.mrf.mxu0
    %7492 = vdwg.mxu0
    %7493 = vmatpush.bf16.msra.mxu0 %v7150
    %7494 = vmatpush.bf16.msra.mxu0 %v7146
    %7495 = vmatpush.bf16.msra.mxu0 %v7142
    %7496 = vmatpush.bf16.msra.mxu0 %v7138
    %7497 = vmatpush.bf16.msra.mxu0 %v7134
    %7498 = vmatpush.bf16.msra.mxu0 %v7130
    %7499 = vmatpush.bf16.msra.mxu0 %v7126
    %7500 = vmatpush.bf16.msra.mxu0 %v7122
    %7501 = vmatmul.bf16.gmra.mxu0 %v6659
    %v7502 = vpop.f32.mrf.mxu0
    %v7503 = vadd.f32 %v7490, %v7502
    %v7504 = vpop.f32.mrf.mxu0
    %7505 = vdwg.mxu0
    %7506 = vmatpush.bf16.msra.mxu0 %v7182
    %7507 = vmatpush.bf16.msra.mxu0 %v7178
    %7508 = vmatpush.bf16.msra.mxu0 %v7174
    %7509 = vmatpush.bf16.msra.mxu0 %v7170
    %7510 = vmatpush.bf16.msra.mxu0 %v7166
    %7511 = vmatpush.bf16.msra.mxu0 %v7162
    %7512 = vmatpush.bf16.msra.mxu0 %v7158
    %7513 = vmatpush.bf16.msra.mxu0 %v7154
    %7514 = vmatmul.bf16.gmra.mxu0 %v6660
    %v7515 = vpop.f32.mrf.mxu0
    %v7516 = vadd.f32 %v7503, %v7515
    %v7517 = vpop.f32.mrf.mxu0
    %7518 = vdwg.mxu0
    %v7519 = vsel %vm6373, %v7360, 0.0
    %v7520 = vrot.slane %v7519, 4
    %v7521 = vadd.f32 %v7519, %v7520
    %v7522 = vrot.slane %v7521, 2
    %v7523 = vadd.f32 %v7521, %v7522
    %v7524 = vrot.slane %v7523, 1
    %v7525 = vadd.f32 %v7523, %v7524
    %v7526 = vsel %vm6373, %v7412, 0.0
    %v7527 = vrot.slane %v7526, 4
    %v7528 = vadd.f32 %v7526, %v7527
    %v7529 = vrot.slane %v7528, 2
    %v7530 = vadd.f32 %v7528, %v7529
    %v7531 = vrot.slane %v7530, 1
    %v7532 = vadd.f32 %v7530, %v7531
    %v7533 = vsel %vm6373, %v7464, 0.0
    %v7534 = vrot.slane %v7533, 4
    %v7535 = vadd.f32 %v7533, %v7534
    %v7536 = vrot.slane %v7535, 2
    %v7537 = vadd.f32 %v7535, %v7536
    %v7538 = vrot.slane %v7537, 1
    %v7539 = vadd.f32 %v7537, %v7538
    %v7540 = vsel %vm6373, %v7516, 0.0
    %v7541 = vrot.slane %v7540, 4
    %v7542 = vadd.f32 %v7540, %v7541
    %v7543 = vrot.slane %v7542, 2
    %v7544 = vadd.f32 %v7542, %v7543
    %v7545 = vrot.slane %v7544, 1
    %v7546 = vadd.f32 %v7544, %v7545
    %v7547 = vld [vmem:[%s67] sm:$0xff]
    %v7548 = vld [vmem:[%s67 + $0x8] sm:$0xff]
    %v7549 = vld [vmem:[%s67 + $0x10] sm:$0xff]
    %v7550 = vld [vmem:[%s67 + $0x18] sm:$0xff]
    %v7551 = vld [vmem:[%s67 + $0x20] sm:$0xff]
    %v7552 = vld [vmem:[%s67 + $0x28] sm:$0xff]
    %v7553 = vld [vmem:[%s67 + $0x30] sm:$0xff]
    %v7554 = vld [vmem:[%s67 + $0x38] sm:$0xff]
    %v7555 = vld [vmem:[%s67 + $0x40] sm:$0xff]
    %v7556 = vld [vmem:[%s67 + $0x48] sm:$0xff]
    %v7557 = vld [vmem:[%s67 + $0x50] sm:$0xff]
    %v7558 = vld [vmem:[%s67 + $0x58] sm:$0xff]
    %v7559 = vld [vmem:[%s67 + $0x60] sm:$0xff]
    %v7560 = vld [vmem:[%s67 + $0x68] sm:$0xff]
    %v7561 = vld [vmem:[%s67 + $0x70] sm:$0xff]
    %v7562 = vld [vmem:[%s67 + $0x78] sm:$0xff]
    %v7563 = vld [vmem:[%s67 + $0x80] sm:$0xff]
    %v7564 = vld [vmem:[%s67 + $0x88] sm:$0xff]
    %v7565 = vld [vmem:[%s67 + $0x90] sm:$0xff]
    %v7566 = vld [vmem:[%s67 + $0x98] sm:$0xff]
    %v7567 = vld [vmem:[%s67 + $0xa0] sm:$0xff]
    %v7568 = vld [vmem:[%s67 + $0xa8] sm:$0xff]
    %v7569 = vld [vmem:[%s67 + $0xb0] sm:$0xff]
    %v7570 = vld [vmem:[%s67 + $0xb8] sm:$0xff]
    %v7571 = vld [vmem:[%s67 + $0xc0] sm:$0xff]
    %v7572 = vld [vmem:[%s67 + $0xc8] sm:$0xff]
    %v7573 = vld [vmem:[%s67 + $0xd0] sm:$0xff]
    %v7574 = vld [vmem:[%s67 + $0xd8] sm:$0xff]
    %v7575 = vld [vmem:[%s67 + $0xe0] sm:$0xff]
    %v7576 = vld [vmem:[%s67 + $0xe8] sm:$0xff]
    %v7577 = vld [vmem:[%s67 + $0xf0] sm:$0xff]
    %v7578 = vld [vmem:[%s67 + $0xf8] sm:$0xff]
    %v7579 = vld [vmem:[%s67 + $0x100] sm:$0xff]
    %v7580 = vld [vmem:[%s67 + $0x108] sm:$0xff]
    %v7581 = vld [vmem:[%s67 + $0x110] sm:$0xff]
    %v7582 = vld [vmem:[%s67 + $0x118] sm:$0xff]
    %v7583 = vld [vmem:[%s67 + $0x120] sm:$0xff]
    %v7584 = vld [vmem:[%s67 + $0x128] sm:$0xff]
    %v7585 = vld [vmem:[%s67 + $0x130] sm:$0xff]
    %v7586 = vld [vmem:[%s67 + $0x138] sm:$0xff]
    %v7587 = vld [vmem:[%s67 + $0x140] sm:$0xff]
    %v7588 = vld [vmem:[%s67 + $0x148] sm:$0xff]
    %v7589 = vld [vmem:[%s67 + $0x150] sm:$0xff]
    %v7590 = vld [vmem:[%s67 + $0x158] sm:$0xff]
    %v7591 = vld [vmem:[%s67 + $0x160] sm:$0xff]
    %v7592 = vld [vmem:[%s67 + $0x168] sm:$0xff]
    %v7593 = vld [vmem:[%s67 + $0x170] sm:$0xff]
    %v7594 = vld [vmem:[%s67 + $0x178] sm:$0xff]
    %v7595 = vld [vmem:[%s67 + $0x180] sm:$0xff]
    %v7596 = vld [vmem:[%s67 + $0x188] sm:$0xff]
    %v7597 = vld [vmem:[%s67 + $0x190] sm:$0xff]
    %v7598 = vld [vmem:[%s67 + $0x198] sm:$0xff]
    %v7599 = vld [vmem:[%s67 + $0x1a0] sm:$0xff]
    %v7600 = vld [vmem:[%s67 + $0x1a8] sm:$0xff]
    %v7601 = vld [vmem:[%s67 + $0x1b0] sm:$0xff]
    %v7602 = vld [vmem:[%s67 + $0x1b8] sm:$0xff]
    %v7603 = vld [vmem:[%s67 + $0x1c0] sm:$0xff]
    %v7604 = vld [vmem:[%s67 + $0x1c8] sm:$0xff]
    %v7605 = vld [vmem:[%s67 + $0x1d0] sm:$0xff]
    %v7606 = vld [vmem:[%s67 + $0x1d8] sm:$0xff]
    %v7607 = vld [vmem:[%s67 + $0x1e0] sm:$0xff]
    %v7608 = vld [vmem:[%s67 + $0x1e8] sm:$0xff]
    %v7609 = vld [vmem:[%s67 + $0x1f0] sm:$0xff]
    %v7610 = vld [vmem:[%s67 + $0x1f8] sm:$0xff]
    %7611 = vmatpush.msra.mxu0 %v7562
    %7612 = vmatpush.msra.mxu0 %v7561
    %7613 = vmatpush.msra.mxu0 %v7560
    %7614 = vmatpush.msra.mxu0 %v7559
    %7615 = vmatpush.msra.mxu0 %v7558
    %7616 = vmatpush.msra.mxu0 %v7557
    %7617 = vmatpush.msra.mxu0 %v7556
    %7618 = vmatpush.msra.mxu0 %v7555
    %7619 = vmatpush.msra.mxu0 %v7554
    %7620 = vmatpush.msra.mxu0 %v7553
    %7621 = vmatpush.msra.mxu0 %v7552
    %7622 = vmatpush.msra.mxu0 %v7551
    %7623 = vmatpush.msra.mxu0 %v7550
    %7624 = vmatpush.msra.mxu0 %v7549
    %7625 = vmatpush.msra.mxu0 %v7548
    %7626 = vmatpush.msra.mxu0 %v7547
    %7627 = vmatmul.f32.gmra.mxu0 %v7525
    %v7628 = vpop.f32.mrf.mxu0
    %v7629 = vadd.f32 0.0, %v7628
    %7630 = vdwg.mxu0
    %7631 = vmatpush.msra.mxu0 %v7578
    %7632 = vmatpush.msra.mxu0 %v7577
    %7633 = vmatpush.msra.mxu0 %v7576
    %7634 = vmatpush.msra.mxu0 %v7575
    %7635 = vmatpush.msra.mxu0 %v7574
    %7636 = vmatpush.msra.mxu0 %v7573
    %7637 = vmatpush.msra.mxu0 %v7572
    %7638 = vmatpush.msra.mxu0 %v7571
    %7639 = vmatpush.msra.mxu0 %v7570
    %7640 = vmatpush.msra.mxu0 %v7569
    %7641 = vmatpush.msra.mxu0 %v7568
    %7642 = vmatpush.msra.mxu0 %v7567
    %7643 = vmatpush.msra.mxu0 %v7566
    %7644 = vmatpush.msra.mxu0 %v7565
    %7645 = vmatpush.msra.mxu0 %v7564
    %7646 = vmatpush.msra.mxu0 %v7563
    %7647 = vmatmul.f32.gmra.mxu0 %v7532
    %v7648 = vpop.f32.mrf.mxu0
    %v7649 = vadd.f32 %v7629, %v7648
    %7650 = vdwg.mxu0
    %7651 = vmatpush.msra.mxu0 %v7594
    %7652 = vmatpush.msra.mxu0 %v7593
    %7653 = vmatpush.msra.mxu0 %v7592
    %7654 = vmatpush.msra.mxu0 %v7591
    %7655 = vmatpush.msra.mxu0 %v7590
    %7656 = vmatpush.msra.mxu0 %v7589
    %7657 = vmatpush.msra.mxu0 %v7588
    %7658 = vmatpush.msra.mxu0 %v7587
    %7659 = vmatpush.msra.mxu0 %v7586
    %7660 = vmatpush.msra.mxu0 %v7585
    %7661 = vmatpush.msra.mxu0 %v7584
    %7662 = vmatpush.msra.mxu0 %v7583
    %7663 = vmatpush.msra.mxu0 %v7582
    %7664 = vmatpush.msra.mxu0 %v7581
    %7665 = vmatpush.msra.mxu0 %v7580
    %7666 = vmatpush.msra.mxu0 %v7579
    %7667 = vmatmul.f32.gmra.mxu0 %v7539
    %v7668 = vpop.f32.mrf.mxu0
    %v7669 = vadd.f32 %v7649, %v7668
    %7670 = vdwg.mxu0
    %7671 = vmatpush.msra.mxu0 %v7610
    %7672 = vmatpush.msra.mxu0 %v7609
    %7673 = vmatpush.msra.mxu0 %v7608
    %7674 = vmatpush.msra.mxu0 %v7607
    %7675 = vmatpush.msra.mxu0 %v7606
    %7676 = vmatpush.msra.mxu0 %v7605
    %7677 = vmatpush.msra.mxu0 %v7604
    %7678 = vmatpush.msra.mxu0 %v7603
    %7679 = vmatpush.msra.mxu0 %v7602
    %7680 = vmatpush.msra.mxu0 %v7601
    %7681 = vmatpush.msra.mxu0 %v7600
    %7682 = vmatpush.msra.mxu0 %v7599
    %7683 = vmatpush.msra.mxu0 %v7598
    %7684 = vmatpush.msra.mxu0 %v7597
    %7685 = vmatpush.msra.mxu0 %v7596
    %7686 = vmatpush.msra.mxu0 %v7595
    %7687 = vmatmul.f32.gmra.mxu0 %v7546
    %v7688 = vpop.f32.mrf.mxu0
    %v7689 = vadd.f32 %v7669, %v7688
    %7690 = vdwg.mxu0
    %v7691 = vld [vmem:[%s69] sm:$0xff]
    %v7692 = vld [vmem:[%s69 + $0x8] sm:$0xff]
    %v7693 = vld [vmem:[%s69 + $0x10] sm:$0xff]
    %v7694 = vld [vmem:[%s69 + $0x18] sm:$0xff]
    %v7695 = vld [vmem:[%s69 + $0x20] sm:$0xff]
    %v7696 = vld [vmem:[%s69 + $0x28] sm:$0xff]
    %v7697 = vld [vmem:[%s69 + $0x30] sm:$0xff]
    %v7698 = vld [vmem:[%s69 + $0x38] sm:$0xff]
    %vm7699 = vcmask 130048
    %v7701 = vsel %vm7699, %v7689, 0
    %7703 = vmatpush.msra.mxu0 0.0
    %7704 = vmatpush.msra.mxu0 0.0
    %7705 = vmatpush.msra.mxu0 0.0
    %7706 = vmatpush.msra.mxu0 0.0
    %7707 = vmatpush.msra.mxu0 0.0
    %7708 = vmatpush.msra.mxu0 0.0
    %7709 = vmatpush.msra.mxu0 0.0
    %7710 = vmatpush.msra.mxu0 0.0
    %7711 = vmatpush.msra.mxu0 0.0
    %7712 = vmatpush.msra.mxu0 0.0
    %7713 = vmatpush.msra.mxu0 0.0
    %7714 = vmatpush.msra.mxu0 0.0
    %7715 = vmatpush.msra.mxu0 0.0
    %7716 = vmatpush.msra.mxu0 0.0
    %7717 = vmatpush.msra.mxu0 %v7695
    %7718 = vmatpush.msra.mxu0 %v7691
    %7719 = vmatmul.f32.gmra.mxu0 %v7701
    %v7720 = vpop.f32.mrf.mxu0
    %v7721 = vadd.f32 0.0, %v7720
    %7722 = vdwg.mxu0
    %7723 = vmatpush.msra.mxu0 0.0
    %7724 = vmatpush.msra.mxu0 0.0
    %7725 = vmatpush.msra.mxu0 0.0
    %7726 = vmatpush.msra.mxu0 0.0
    %7727 = vmatpush.msra.mxu0 0.0
    %7728 = vmatpush.msra.mxu0 0.0
    %7729 = vmatpush.msra.mxu0 0.0
    %7730 = vmatpush.msra.mxu0 0.0
    %7731 = vmatpush.msra.mxu0 0.0
    %7732 = vmatpush.msra.mxu0 0.0
    %7733 = vmatpush.msra.mxu0 0.0
    %7734 = vmatpush.msra.mxu0 0.0
    %7735 = vmatpush.msra.mxu0 0.0
    %7736 = vmatpush.msra.mxu0 0.0
    %7737 = vmatpush.msra.mxu0 %v7696
    %7738 = vmatpush.msra.mxu0 %v7692
    %7739 = vmatmul.f32.gmra.mxu0 %v7701
    %v7740 = vpop.f32.mrf.mxu0
    %v7741 = vadd.f32 0.0, %v7740
    %7742 = vdwg.mxu0
    %7743 = vmatpush.msra.mxu0 0.0
    %7744 = vmatpush.msra.mxu0 0.0
    %7745 = vmatpush.msra.mxu0 0.0
    %7746 = vmatpush.msra.mxu0 0.0
    %7747 = vmatpush.msra.mxu0 0.0
    %7748 = vmatpush.msra.mxu0 0.0
    %7749 = vmatpush.msra.mxu0 0.0
    %7750 = vmatpush.msra.mxu0 0.0
    %7751 = vmatpush.msra.mxu0 0.0
    %7752 = vmatpush.msra.mxu0 0.0
    %7753 = vmatpush.msra.mxu0 0.0
    %7754 = vmatpush.msra.mxu0 0.0
    %7755 = vmatpush.msra.mxu0 0.0
    %7756 = vmatpush.msra.mxu0 0.0
    %7757 = vmatpush.msra.mxu0 %v7697
    %7758 = vmatpush.msra.mxu0 %v7693
    %7759 = vmatmul.f32.gmra.mxu0 %v7701
    %v7760 = vpop.f32.mrf.mxu0
    %v7761 = vadd.f32 0.0, %v7760
    %7762 = vdwg.mxu0
    %7763 = vmatpush.msra.mxu0 0.0
    %7764 = vmatpush.msra.mxu0 0.0
    %7765 = vmatpush.msra.mxu0 0.0
    %7766 = vmatpush.msra.mxu0 0.0
    %7767 = vmatpush.msra.mxu0 0.0
    %7768 = vmatpush.msra.mxu0 0.0
    %7769 = vmatpush.msra.mxu0 0.0
    %7770 = vmatpush.msra.mxu0 0.0
    %7771 = vmatpush.msra.mxu0 0.0
    %7772 = vmatpush.msra.mxu0 0.0
    %7773 = vmatpush.msra.mxu0 0.0
    %7774 = vmatpush.msra.mxu0 0.0
    %7775 = vmatpush.msra.mxu0 0.0
    %7776 = vmatpush.msra.mxu0 0.0
    %7777 = vmatpush.msra.mxu0 %v7698
    %7778 = vmatpush.msra.mxu0 %v7694
    %7779 = vmatmul.f32.gmra.mxu0 %v7701
    %v7780 = vpop.f32.mrf.mxu0
    %v7781 = vadd.f32 0.0, %v7780
    %7782 = vdwg.mxu0
    %v7783 = vperm.slane %v7721, 0
    %v7784 = vperm.slane %v7741, 0
    %v7785 = vperm.slane %v7761, 0
    %v7786 = vperm.slane %v7781, 0
    %v7787 = vsub.f32 %v7360, %v7783
    %v7788 = vsub.f32 %v7412, %v7784
    %v7789 = vsub.f32 %v7464, %v7785
    %v7790 = vsub.f32 %v7516, %v7786
    %v7791 = vmul.f32 %v7787, %v7787
    %v7792 = vmul.f32 %v7788, %v7788
    %v7793 = vmul.f32 %v7789, %v7789
    %v7794 = vmul.f32 %v7790, %v7790
    %v7795 = vsel %vm6373, %v7791, 0.0
    %v7796 = vrot.slane %v7795, 4
    %v7797 = vadd.f32 %v7795, %v7796
    %v7798 = vrot.slane %v7797, 2
    %v7799 = vadd.f32 %v7797, %v7798
    %v7800 = vrot.slane %v7799, 1
    %v7801 = vadd.f32 %v7799, %v7800
    %v7802 = vsel %vm6373, %v7792, 0.0
    %v7803 = vrot.slane %v7802, 4
    %v7804 = vadd.f32 %v7802, %v7803
    %v7805 = vrot.slane %v7804, 2
    %v7806 = vadd.f32 %v7804, %v7805
    %v7807 = vrot.slane %v7806, 1
    %v7808 = vadd.f32 %v7806, %v7807
    %v7809 = vsel %vm6373, %v7793, 0.0
    %v7810 = vrot.slane %v7809, 4
    %v7811 = vadd.f32 %v7809, %v7810
    %v7812 = vrot.slane %v7811, 2
    %v7813 = vadd.f32 %v7811, %v7812
    %v7814 = vrot.slane %v7813, 1
    %v7815 = vadd.f32 %v7813, %v7814
    %v7816 = vsel %vm6373, %v7794, 0.0
    %v7817 = vrot.slane %v7816, 4
    %v7818 = vadd.f32 %v7816, %v7817
    %v7819 = vrot.slane %v7818, 2
    %v7820 = vadd.f32 %v7818, %v7819
    %v7821 = vrot.slane %v7820, 1
    %v7822 = vadd.f32 %v7820, %v7821
    %7823 = vmatpush.msra.mxu0 %v7562
    %7824 = vmatpush.msra.mxu0 %v7561
    %7825 = vmatpush.msra.mxu0 %v7560
    %7826 = vmatpush.msra.mxu0 %v7559
    %7827 = vmatpush.msra.mxu0 %v7558
    %7828 = vmatpush.msra.mxu0 %v7557
    %7829 = vmatpush.msra.mxu0 %v7556
    %7830 = vmatpush.msra.mxu0 %v7555
    %7831 = vmatpush.msra.mxu0 %v7554
    %7832 = vmatpush.msra.mxu0 %v7553
    %7833 = vmatpush.msra.mxu0 %v7552
    %7834 = vmatpush.msra.mxu0 %v7551
    %7835 = vmatpush.msra.mxu0 %v7550
    %7836 = vmatpush.msra.mxu0 %v7549
    %7837 = vmatpush.msra.mxu0 %v7548
    %7838 = vmatpush.msra.mxu0 %v7547
    %7839 = vmatmul.f32.gmra.mxu0 %v7801
    %v7840 = vpop.f32.mrf.mxu0
    %v7841 = vadd.f32 0.0, %v7840
    %7842 = vdwg.mxu0
    %7843 = vmatpush.msra.mxu0 %v7578
    %7844 = vmatpush.msra.mxu0 %v7577
    %7845 = vmatpush.msra.mxu0 %v7576
    %7846 = vmatpush.msra.mxu0 %v7575
    %7847 = vmatpush.msra.mxu0 %v7574
    %7848 = vmatpush.msra.mxu0 %v7573
    %7849 = vmatpush.msra.mxu0 %v7572
    %7850 = vmatpush.msra.mxu0 %v7571
    %7851 = vmatpush.msra.mxu0 %v7570
    %7852 = vmatpush.msra.mxu0 %v7569
    %7853 = vmatpush.msra.mxu0 %v7568
    %7854 = vmatpush.msra.mxu0 %v7567
    %7855 = vmatpush.msra.mxu0 %v7566
    %7856 = vmatpush.msra.mxu0 %v7565
    %7857 = vmatpush.msra.mxu0 %v7564
    %7858 = vmatpush.msra.mxu0 %v7563
    %7859 = vmatmul.f32.gmra.mxu0 %v7808
    %v7860 = vpop.f32.mrf.mxu0
    %v7861 = vadd.f32 %v7841, %v7860
    %7862 = vdwg.mxu0
    %7863 = vmatpush.msra.mxu0 %v7594
    %7864 = vmatpush.msra.mxu0 %v7593
    %7865 = vmatpush.msra.mxu0 %v7592
    %7866 = vmatpush.msra.mxu0 %v7591
    %7867 = vmatpush.msra.mxu0 %v7590
    %7868 = vmatpush.msra.mxu0 %v7589
    %7869 = vmatpush.msra.mxu0 %v7588
    %7870 = vmatpush.msra.mxu0 %v7587
    %7871 = vmatpush.msra.mxu0 %v7586
    %7872 = vmatpush.msra.mxu0 %v7585
    %7873 = vmatpush.msra.mxu0 %v7584
    %7874 = vmatpush.msra.mxu0 %v7583
    %7875 = vmatpush.msra.mxu0 %v7582
    %7876 = vmatpush.msra.mxu0 %v7581
    %7877 = vmatpush.msra.mxu0 %v7580
    %7878 = vmatpush.msra.mxu0 %v7579
    %7879 = vmatmul.f32.gmra.mxu0 %v7815
    %v7880 = vpop.f32.mrf.mxu0
    %v7881 = vadd.f32 %v7861, %v7880
    %7882 = vdwg.mxu0
    %7883 = vmatpush.msra.mxu0 %v7610
    %7884 = vmatpush.msra.mxu0 %v7609
    %7885 = vmatpush.msra.mxu0 %v7608
    %7886 = vmatpush.msra.mxu0 %v7607
    %7887 = vmatpush.msra.mxu0 %v7606
    %7888 = vmatpush.msra.mxu0 %v7605
    %7889 = vmatpush.msra.mxu0 %v7604
    %7890 = vmatpush.msra.mxu0 %v7603
    %7891 = vmatpush.msra.mxu0 %v7602
    %7892 = vmatpush.msra.mxu0 %v7601
    %7893 = vmatpush.msra.mxu0 %v7600
    %7894 = vmatpush.msra.mxu0 %v7599
    %7895 = vmatpush.msra.mxu0 %v7598
    %7896 = vmatpush.msra.mxu0 %v7597
    %7897 = vmatpush.msra.mxu0 %v7596
    %7898 = vmatpush.msra.mxu0 %v7595
    %7899 = vmatmul.f32.gmra.mxu0 %v7822
    %v7900 = vpop.f32.mrf.mxu0
    %v7901 = vadd.f32 %v7881, %v7900
    %7902 = vdwg.mxu0
    %v7903 = vld [vmem:[%s63] sm:$0xf]
    %v7905 = vsel %vm7699, %v7901, 0
    %7907 = vmatpush.msra.mxu0 0.0
    %7908 = vmatpush.msra.mxu0 0.0
    %7909 = vmatpush.msra.mxu0 0.0
    %7910 = vmatpush.msra.mxu0 0.0
    %7911 = vmatpush.msra.mxu0 0.0
    %7912 = vmatpush.msra.mxu0 0.0
    %7913 = vmatpush.msra.mxu0 0.0
    %7914 = vmatpush.msra.mxu0 0.0
    %7915 = vmatpush.msra.mxu0 0.0
    %7916 = vmatpush.msra.mxu0 0.0
    %7917 = vmatpush.msra.mxu0 0.0
    %7918 = vmatpush.msra.mxu0 0.0
    %7919 = vmatpush.msra.mxu0 0.0
    %7920 = vmatpush.msra.mxu0 0.0
    %7921 = vmatpush.msra.mxu0 %v7695
    %7922 = vmatpush.msra.mxu0 %v7691
    %7923 = vmatmul.f32.gmra.mxu0 %v7905
    %v7924 = vpop.f32.mrf.mxu0
    %v7925 = vadd.f32 1e-05, %v7924
    %7926 = vdwg.mxu0
    %7927 = vmatpush.msra.mxu0 0.0
    %7928 = vmatpush.msra.mxu0 0.0
    %7929 = vmatpush.msra.mxu0 0.0
    %7930 = vmatpush.msra.mxu0 0.0
    %7931 = vmatpush.msra.mxu0 0.0
    %7932 = vmatpush.msra.mxu0 0.0
    %7933 = vmatpush.msra.mxu0 0.0
    %7934 = vmatpush.msra.mxu0 0.0
    %7935 = vmatpush.msra.mxu0 0.0
    %7936 = vmatpush.msra.mxu0 0.0
    %7937 = vmatpush.msra.mxu0 0.0
    %7938 = vmatpush.msra.mxu0 0.0
    %7939 = vmatpush.msra.mxu0 0.0
    %7940 = vmatpush.msra.mxu0 0.0
    %7941 = vmatpush.msra.mxu0 %v7696
    %7942 = vmatpush.msra.mxu0 %v7692
    %7943 = vmatmul.f32.gmra.mxu0 %v7905
    %v7944 = vpop.f32.mrf.mxu0
    %v7945 = vadd.f32 1e-05, %v7944
    %7946 = vdwg.mxu0
    %7947 = vmatpush.msra.mxu0 0.0
    %7948 = vmatpush.msra.mxu0 0.0
    %7949 = vmatpush.msra.mxu0 0.0
    %7950 = vmatpush.msra.mxu0 0.0
    %7951 = vmatpush.msra.mxu0 0.0
    %7952 = vmatpush.msra.mxu0 0.0
    %7953 = vmatpush.msra.mxu0 0.0
    %7954 = vmatpush.msra.mxu0 0.0
    %7955 = vmatpush.msra.mxu0 0.0
    %7956 = vmatpush.msra.mxu0 0.0
    %7957 = vmatpush.msra.mxu0 0.0
    %7958 = vmatpush.msra.mxu0 0.0
    %7959 = vmatpush.msra.mxu0 0.0
    %7960 = vmatpush.msra.mxu0 0.0
    %7961 = vmatpush.msra.mxu0 %v7697
    %7962 = vmatpush.msra.mxu0 %v7693
    %7963 = vmatmul.f32.gmra.mxu0 %v7905
    %v7964 = vpop.f32.mrf.mxu0
    %v7965 = vadd.f32 1e-05, %v7964
    %7966 = vdwg.mxu0
    %7967 = vmatpush.msra.mxu0 0.0
    %7968 = vmatpush.msra.mxu0 0.0
    %7969 = vmatpush.msra.mxu0 0.0
    %7970 = vmatpush.msra.mxu0 0.0
    %7971 = vmatpush.msra.mxu0 0.0
    %7972 = vmatpush.msra.mxu0 0.0
    %7973 = vmatpush.msra.mxu0 0.0
    %7974 = vmatpush.msra.mxu0 0.0
    %7975 = vmatpush.msra.mxu0 0.0
    %7976 = vmatpush.msra.mxu0 0.0
    %7977 = vmatpush.msra.mxu0 0.0
    %7978 = vmatpush.msra.mxu0 0.0
    %7979 = vmatpush.msra.mxu0 0.0
    %7980 = vmatpush.msra.mxu0 0.0
    %7981 = vmatpush.msra.mxu0 %v7698
    %7982 = vmatpush.msra.mxu0 %v7694
    %7983 = vmatmul.f32.gmra.mxu0 %v7905
    %v7984 = vpop.f32.mrf.mxu0
    %v7985 = vadd.f32 1e-05, %v7984
    %7986 = vdwg.mxu0
    %v7987 = vrsqrt.pop %v7925
    %v7988 = vmul.f32 %v7987, %v7925
    %v7989 = vmul.f32 %v7988, %v7987
    %v7990 = vmul.f32 0.5, %v7989
    %v7991 = vsub.f32 1.5, %v7990
    %v7992 = vmul.f32 %v7987, %v7991
    %vm7993 = vweird.f32 %v7925
    %vm7994 = vweird.f32 %v7987
    %vm7995 = vmor %vm7993, %vm7994
    %v7996 = vsel %vm7995, %v7987, %v7992
    %v7997 = vrsqrt.pop %v7945
    %v7998 = vmul.f32 %v7997, %v7945
    %v7999 = vmul.f32 %v7998, %v7997
    %v8000 = vmul.f32 0.5, %v7999
    %v8001 = vsub.f32 1.5, %v8000
    %v8002 = vmul.f32 %v7997, %v8001
    %vm8003 = vweird.f32 %v7945
    %vm8004 = vweird.f32 %v7997
    %vm8005 = vmor %vm8003, %vm8004
    %v8006 = vsel %vm8005, %v7997, %v8002
    %v8007 = vrsqrt.pop %v7965
    %v8008 = vmul.f32 %v8007, %v7965
    %v8009 = vmul.f32 %v8008, %v8007
    %v8010 = vmul.f32 0.5, %v8009
    %v8011 = vsub.f32 1.5, %v8010
    %v8012 = vmul.f32 %v8007, %v8011
    %vm8013 = vweird.f32 %v7965
    %vm8014 = vweird.f32 %v8007
    %vm8015 = vmor %vm8013, %vm8014
    %v8016 = vsel %vm8015, %v8007, %v8012
    %v8017 = vrsqrt.pop %v7985
    %v8018 = vmul.f32 %v8017, %v7985
    %v8019 = vmul.f32 %v8018, %v8017
    %v8020 = vmul.f32 0.5, %v8019
    %v8021 = vsub.f32 1.5, %v8020
    %v8022 = vmul.f32 %v8017, %v8021
    %vm8023 = vweird.f32 %v7985
    %vm8024 = vweird.f32 %v8017
    %vm8025 = vmor %vm8023, %vm8024
    %v8026 = vsel %vm8025, %v8017, %v8022
    %v8031 = vrot.slane %v8006, 7
    %v8032 = vrot.slane %v8016, 6
    %v8033 = vrot.slane %v8026, 5
    %v8034 = vsel %vm6369, %v7996, %v8031
    %v8035 = vsel %vm6371, %v8032, %v8033
    %v8036 = vsel %vm6373, %v8034, %v8035
    %v8038 = vmul.f32 %v7903, %v8036
    %v8040 = vperm.slane %v8038, 0
    %v8041 = vperm.slane %v8038, 1
    %v8042 = vperm.slane %v8038, 2
    %v8043 = vperm.slane %v8038, 3
    %v8048 = vmul.f32 %v7787, %v8040
    %v8049 = vmul.f32 %v7788, %v8041
    %v8050 = vmul.f32 %v7789, %v8042
    %v8051 = vmul.f32 %v7790, %v8043
    %v8052 = vld [vmem:[%s65] sm:$0xf]
    %v8054 = vperm.slane %v8052, 0
    %v8055 = vperm.slane %v8052, 1
    %v8056 = vperm.slane %v8052, 2
    %v8057 = vperm.slane %v8052, 3
    %v8062 = vadd.f32 %v8048, %v8054
    %v8063 = vadd.f32 %v8049, %v8055
    %v8064 = vadd.f32 %v8050, %v8056
    %v8065 = vadd.f32 %v8051, %v8057
    %v8066 = vmax.f32 %v8062, 0.0
    %v8067 = vmax.f32 %v8063, 0.0
    %v8068 = vmax.f32 %v8064, 0.0
    %v8069 = vmax.f32 %v8065, 0.0
    %v8074 = vrot.slane %v8067, 6
    %v8075 = vrot.slane %v8068, 4
    %v8076 = vrot.slane %v8069, 2
    %v8077 = vsel %vm6373, %v8066, %v8074
    %vm8078 = vcmask 1045508
    %v8079 = vsel %vm8078, %v8075, %v8076
    %v8080 = vsel %vm689, %v8077, %v8079
    %8082 = vst [vmem:[#allocation2] sm:$0xff] %v8080
    // Predicated region
    $region142: #{pointnet_v2_forward.1} parent=1 // pred_check
      _
    $region143: #{pointnet_v2_forward.1} parent=1 // pred_check_branch
      %8084 = sbr.rel (0) target = $region145
    $region144: #{pointnet_v2_forward.1} parent=1 // pred_region
      %8086 = vsyncadd [#allocation3], 0
      %s8088 = sshll.u32 [#allocation2], 4
      %s8089 = int_to_ptr.vmem [resolvable:$true] %s8088
      %s8090 = sshll.u32 %s71, 4
      %s8091 = int_to_ptr.hbm [resolvable:$true] %s8090
      %8093 = dma.vmem_to_hbm [thread:$0]  %s8089, 128, %s8091, [#allocation3]
    $region145: #{pointnet_v2_forward.1} parent=1 // pred_fallthru
      _
    // Predicated region
    $region146: #{pointnet_v2_forward.1} parent=1 // pred_check
      _
    $region147: #{pointnet_v2_forward.1} parent=1 // pred_check_branch
      %8095 = sbr.rel (0) target = $region149
    $region148: #{pointnet_v2_forward.1} parent=1 // pred_region
      %8097 = dma.done [#allocation3], 128
    $region149: #{pointnet_v2_forward.1} parent=1 // pred_fallthru
      _
    %8098 = vsyncpa [#allocation3], 1

</llo_original>
